<compile_context>
chip_gen: v6e
topology: v6e:2x2x1
jax: 0.10.0
libtpu: 0.0.40
codegen_flags: <defaults>
</compile_context>

<pallas_src>
import jax
import jax.numpy as jnp
from jax import lax
from jax.experimental import pallas as pl
from jax.experimental.pallas import tpu as pltpu


def _sigmoid(x):
    # one EUP tanh per gate (avoids exp + divide from the logistic lowering)
    return 0.5 * jnp.tanh(0.5 * x) + 0.5


# ----------------------------- Pallas kernel ------------------------------ #
def _bilstm_fused_kernel(gxf_ref, gxb_ref, len_ref, whhf_ref, whhb_ref,
                         out_ref, hn_ref, cn_ref):
    """Single program: both LSTM directions interleaved over the time loop.

    gxf_ref : (T*B, 4H) bf16  precomputed x @ W_ih_fwd^T + b_fwd
    gxb_ref : (T*B, 4H) bf16  precomputed x @ W_ih_bwd^T + b_bwd
    len_ref : (B, 1)    i32   sequence lengths
    whhf_ref: (H, 4H)   bf16  W_hh_fwd^T
    whhb_ref: (H, 4H)   bf16  W_hh_bwd^T
    out_ref : (T, B, H) f32   fwd + bwd hidden history (0 at padded steps)
    hn_ref  : (2, B, H) f32   final hidden states  [fwd, bwd]
    cn_ref  : (2, B, H) f32   final cell states    [fwd, bwd]
    """
    T, B, H = out_ref.shape

    # zero-init summed output once; per-step writes below accumulate into it
    out_ref[...] = jnp.zeros_like(out_ref)

    lens = len_ref[...]                       # (B, 1) int32, loop-invariant

    def lstm_update(gates, h, c, valid):
        i = _sigmoid(gates[:, 0 * H:1 * H])
        f = _sigmoid(gates[:, 1 * H:2 * H])
        g = jnp.tanh(gates[:, 2 * H:3 * H])
        o = _sigmoid(gates[:, 3 * H:4 * H])
        c_new = f * c + i * g
        h_new = o * jnp.tanh(c_new)
        # packed-sequence semantics: padded steps keep state, emit zeros
        return (jnp.where(valid, h_new, h),
                jnp.where(valid, c_new, c),
                jnp.where(valid, h_new, 0.0))

    def step(s, carry):
        h_f, c_f, h_b, c_b = carry            # (B, H) f32 each, in vregs
        t_f = s                               # forward walks 0 .. T-1
        t_b = T - 1 - s                       # reverse walks T-1 .. 0
        row_f = pl.multiple_of(t_f * B, B)
        row_b = pl.multiple_of(t_b * B, B)

        # two independent recurrence chains -> their MXU / EUP / VPU work
        # interleaves on a single TensorCore
        gates_f = (gxf_ref[pl.ds(row_f, B), :].astype(jnp.float32)
                   + jnp.dot(h_f.astype(jnp.bfloat16), whhf_ref[...],
                             preferred_element_type=jnp.float32))
        gates_b = (gxb_ref[pl.ds(row_b, B), :].astype(jnp.float32)
                   + jnp.dot(h_b.astype(jnp.bfloat16), whhb_ref[...],
                             preferred_element_type=jnp.float32))

        h_f, c_f, of = lstm_update(gates_f, h_f, c_f, lens > t_f)
        h_b, c_b, ob = lstm_update(gates_b, h_b, c_b, lens > t_b)

        # accumulate fwd + bwd contributions (VMEM-resident output block)
        out_ref[t_f] = out_ref[t_f] + of
        out_ref[t_b] = out_ref[t_b] + ob
        return (h_f, c_f, h_b, c_b)

    z = jnp.zeros((B, H), jnp.float32)
    unroll = True if T <= 32 else 8           # partial unroll for long T
    h_f, c_f, h_b, c_b = lax.fori_loop(0, T, step, (z, z, z, z), unroll=unroll)

    hn_ref[0] = h_f
    hn_ref[1] = h_b
    cn_ref[0] = c_f
    cn_ref[1] = c_b


def bilstm_pallas(emb, lengths, wih_f, whh_f, b_f, wih_b, whh_b, b_b):
    """emb: (T, B, E) f32; lengths: (B,) int; weights in PyTorch (4H, X) layout."""
    T, B, E = emb.shape
    H = whh_f.shape[1]
    G = 4 * H
    bf16 = jnp.bfloat16

    # Input projection for BOTH directions in one XLA matmul, off the
    # recurrence's critical path; gx handed to the kernel in bf16.
    x_flat = emb.reshape(T * B, E).astype(bf16)
    wih_cat = jnp.concatenate([wih_f.T, wih_b.T], axis=1).astype(bf16)  # (E, 8H)
    bias_cat = jnp.concatenate([b_f, b_b]).reshape(1, 2 * G)
    gx = jnp.dot(x_flat, wih_cat, preferred_element_type=jnp.float32) + bias_cat
    gxf = gx[:, :G].astype(bf16)                                        # (T*B, 4H)
    gxb = gx[:, G:].astype(bf16)                                        # (T*B, 4H)

    lens_col = lengths.astype(jnp.int32).reshape(B, 1)
    whhf_t = whh_f.T.astype(bf16)                                       # (H, 4H)
    whhb_t = whh_b.T.astype(bf16)

    out_sum, hn, cn = pl.pallas_call(
        _bilstm_fused_kernel,
        out_shape=(jax.ShapeDtypeStruct((T, B, H), jnp.float32),
                   jax.ShapeDtypeStruct((2, B, H), jnp.float32),
                   jax.ShapeDtypeStruct((2, B, H), jnp.float32)),
        grid=(1,),
        in_specs=[pl.BlockSpec((T * B, G), lambda i: (0, 0)),
                  pl.BlockSpec((T * B, G), lambda i: (0, 0)),
                  pl.BlockSpec((B, 1), lambda i: (0, 0)),
                  pl.BlockSpec((H, G), lambda i: (0, 0)),
                  pl.BlockSpec((H, G), lambda i: (0, 0))],
        out_specs=(pl.BlockSpec((T, B, H), lambda i: (0, 0, 0)),
                   pl.BlockSpec((2, B, H), lambda i: (0, 0, 0)),
                   pl.BlockSpec((2, B, H), lambda i: (0, 0, 0))),
        compiler_params=pltpu.CompilerParams(
            dimension_semantics=("arbitrary",),
            vmem_limit_bytes=64 * 1024 * 1024),
    )(gxf, gxb, lens_col, whhf_t, whhb_t)
    return out_sum, hn, cn


# ------------------------------ parameters -------------------------------- #
def init_params(key, loc_size, loc_emb_size, hidden_size):
    ks = jax.random.split(key, 6)
    glorot = jax.nn.initializers.glorot_uniform()
    orth = jax.nn.initializers.orthogonal()
    emb = jax.random.normal(ks[0], (loc_size, loc_emb_size), jnp.float32)
    wih_f = glorot(ks[1], (4 * hidden_size, loc_emb_size), jnp.float32)
    whh_f = orth(ks[2], (4 * hidden_size, hidden_size), jnp.float32)
    wih_b = glorot(ks[3], (4 * hidden_size, loc_emb_size), jnp.float32)
    whh_b = orth(ks[4], (4 * hidden_size, hidden_size), jnp.float32)
    # combined bias = bias_ih + bias_hh, both constant-0 per init_weights()
    b_f = jnp.zeros((4 * hidden_size,), jnp.float32)
    b_b = jnp.zeros((4 * hidden_size,), jnp.float32)
    return dict(emb=emb, wih_f=wih_f, whh_f=whh_f, b_f=b_f,
                wih_b=wih_b, whh_b=whh_b, b_b=b_b)


@jax.jit
def encoder_model_batch_forward(params, history_seqs, history_lengths):
    """history_seqs: (T, B) int32 seq-major; history_lengths: (B,) sorted desc."""
    history_embedded = jnp.take(params['emb'], history_seqs, axis=0)   # (T,B,E)
    hidden_history, hn, cn = None, None, None
    out_sum, hn, cn = bilstm_pallas(
        history_embedded, history_lengths,
        params['wih_f'], params['whh_f'], params['b_f'],
        params['wih_b'], params['whh_b'], params['b_b'])
    # hidden_history = history[:, :, :H] + history[:, :, H:]  (summed in-kernel)
    hidden_history = out_sum
    return hidden_history, (hn, cn)


# --------------------------- pure-JAX reference ---------------------------- #
# Mirrors the kernel numerics (bf16 MXU operands / bf16 gx, f32 state and
# elementwise math, same sigmoid form) so the check is tight.
def reference_forward(params, history_seqs, history_lengths):
    emb = jnp.take(params['emb'], history_seqs, axis=0)                # (T,B,E)
    T, B, E = emb.shape
    H = params['whh_f'].shape[1]
    G = 4 * H
    bf16 = jnp.bfloat16
    lens = history_lengths.astype(jnp.int32)[:, None]                  # (B,1)

    x = emb.reshape(T * B, E).astype(bf16)
    wih_cat = jnp.concatenate([params['wih_f'].T, params['wih_b'].T],
                              axis=1).astype(bf16)
    bias_cat = jnp.concatenate([params['b_f'], params['b_b']]).reshape(1, 2 * G)
    gx = jnp.dot(x, wih_cat, preferred_element_type=jnp.float32) + bias_cat
    gxf = gx[:, :G].astype(bf16).reshape(T, B, G)
    gxb = gx[:, G:].astype(bf16).reshape(T, B, G)
    whhf = params['whh_f'].T.astype(bf16)
    whhb = params['whh_b'].T.astype(bf16)

    def cell(gx_t, h, c, whh, valid):
        gates = gx_t.astype(jnp.float32) + jnp.dot(
            h.astype(bf16), whh, preferred_element_type=jnp.float32)
        i = _sigmoid(gates[:, :H])
        f = _sigmoid(gates[:, H:2 * H])
        g = jnp.tanh(gates[:, 2 * H:3 * H])
        o = _sigmoid(gates[:, 3 * H:])
        c_new = f * c + i * g
        h_new = o * jnp.tanh(c_new)
        return (jnp.where(valid, h_new, h), jnp.where(valid, c_new, c),
                jnp.where(valid, h_new, 0.0))

    def body(carry, s):
        h_f, c_f, h_b, c_b = carry
        t_f = s
        t_b = T - 1 - s
        h_f, c_f, of = cell(gxf[t_f], h_f, c_f, whhf, lens > t_f)
        h_b, c_b, ob = cell(gxb[t_b], h_b, c_b, whhb, lens > t_b)
        return (h_f, c_f, h_b, c_b), (of, ob)

    z = jnp.zeros((B, H), jnp.float32)
    (h_f, c_f, h_b, c_b), (of_seq, ob_seq) = lax.scan(
        body, (z, z, z, z), jnp.arange(T))
    out = of_seq + ob_seq[::-1]          # ob_seq[s] is timestep T-1-s
    return out, (jnp.stack([h_f, h_b]), jnp.stack([c_f, c_b]))


# --------------------------------- main ------------------------------------ #
if __name__ == "__main__":
    # small synthetic config; H=128 keeps gates / outputs 128-lane aligned
    loc_size, loc_emb_size, hidden_size = 200, 32, 128
    T, B = 10, 16

    key = jax.random.PRNGKey(0)
    k_param, k_seq = jax.random.split(key)
    params = init_params(k_param, loc_size, loc_emb_size, hidden_size)

    history_seqs = jax.random.randint(k_seq, (T, B), 0, loc_size, dtype=jnp.int32)
    # pack_padded_sequence requires lengths sorted in decreasing order, >= 1
    history_lengths = jnp.array([10, 10, 10, 9, 9, 8, 8, 7, 6, 6, 5, 4, 3, 3, 2, 1],
                                dtype=jnp.int32)

    hidden_history, (h1, c1) = encoder_model_batch_forward(
        params, history_seqs, history_lengths)
    jax.block_until_ready((hidden_history, h1, c1))

    ref_hist, (ref_h, ref_c) = reference_forward(params, history_seqs,
                                                 history_lengths)
    assert jnp.allclose(hidden_history, ref_hist, atol=1e-3, rtol=1e-3), "hidden mismatch"
    assert jnp.allclose(h1, ref_h, atol=1e-3, rtol=1e-3), "h_n mismatch"
    assert jnp.allclose(c1, ref_c, atol=1e-3, rtol=1e-3), "c_n mismatch"

    print("KERNEL_OK")
</pallas_src>

<mosaic_0001>
module attributes {stable_mosaic.version = 11 : i64} {
  func.func @_bilstm_fused_kernel(%arg0: i32, %arg1: memref<160x512xbf16, #tpu.memory_space<vmem>>, %arg2: memref<160x512xbf16, #tpu.memory_space<vmem>>, %arg3: memref<16x1xi32, #tpu.memory_space<vmem>>, %arg4: memref<128x512xbf16, #tpu.memory_space<vmem>>, %arg5: memref<128x512xbf16, #tpu.memory_space<vmem>>, %arg6: memref<10x16x128xf32, #tpu.memory_space<vmem>>, %arg7: memref<2x16x128xf32, #tpu.memory_space<vmem>>, %arg8: memref<2x16x128xf32, #tpu.memory_space<vmem>>) attributes {dimension_semantics = [#tpu.dimension_semantics<arbitrary>], iteration_bounds = array<i64: 1>, scalar_prefetch = 0 : i64, scratch_operands = 0 : i64, tpu.core_type = #tpu.core_type<tc>, window_params = [{pipeline_mode = #tpu.pipeline_mode<synchronous>, transform_indices = @transform_0, window_bounds = array<i64: 160, 512>}, {pipeline_mode = #tpu.pipeline_mode<synchronous>, transform_indices = @transform_1, window_bounds = array<i64: 160, 512>}, {pipeline_mode = #tpu.pipeline_mode<synchronous>, transform_indices = @transform_2, window_bounds = array<i64: 16, 1>}, {pipeline_mode = #tpu.pipeline_mode<synchronous>, transform_indices = @transform_3, window_bounds = array<i64: 128, 512>}, {pipeline_mode = #tpu.pipeline_mode<synchronous>, transform_indices = @transform_4, window_bounds = array<i64: 128, 512>}, {pipeline_mode = #tpu.pipeline_mode<synchronous>, transform_indices = @transform_5, window_bounds = array<i64: 10, 16, 128>}, {pipeline_mode = #tpu.pipeline_mode<synchronous>, transform_indices = @transform_6, window_bounds = array<i64: 2, 16, 128>}, {pipeline_mode = #tpu.pipeline_mode<synchronous>, transform_indices = @transform_7, window_bounds = array<i64: 2, 16, 128>}]} {
    %cst = arith.constant 0.000000e+00 : f32
    %0 = vector.broadcast %cst : f32 to vector<10x16x128xf32>
    %c0 = arith.constant 0 : index
    %c0_0 = arith.constant 0 : index
    %c0_1 = arith.constant 0 : index
    %1 = vector.load %arg6[%c0, %c0_0, %c0_1] : memref<10x16x128xf32, #tpu.memory_space<vmem>>, vector<10x16x128xf32>
    tpu.vector_store %arg6[%c0, %c0_0, %c0_1], %0 {strides = array<i32>} : memref<10x16x128xf32, #tpu.memory_space<vmem>>, vector<10x16x128xf32>,
    %c0_2 = arith.constant 0 : index
    %c0_3 = arith.constant 0 : index
    %2 = vector.load %arg3[%c0_2, %c0_3] : memref<16x1xi32, #tpu.memory_space<vmem>>, vector<16x1xi32>
    %cst_4 = arith.constant 0.000000e+00 : f32
    %3 = vector.broadcast %cst_4 : f32 to vector<16x128xf32>
    %c0_i32 = arith.constant 0 : i32
    %c9_i32 = arith.constant 9 : i32
    %4 = arith.subi %c9_i32, %c0_i32 : i32
    %c16_i32 = arith.constant 16 : i32
    %5 = arith.muli %c0_i32, %c16_i32 : i32
    %6 = tpu.assume_multiple %5, 16 : i32
    %c16_i32_5 = arith.constant 16 : i32
    %7 = arith.muli %4, %c16_i32_5 : i32
    %8 = tpu.assume_multiple %7, 16 : i32
    %9 = arith.index_cast %6 : i32 to index
    %c0_6 = arith.constant 0 : index
    %10 = vector.load %arg1[%9, %c0_6] : memref<160x512xbf16, #tpu.memory_space<vmem>>, vector<16x512xbf16>
    %11 = arith.extf %10 : vector<16x512xbf16> to vector<16x512xf32>
    %12 = arith.truncf %3 : vector<16x128xf32> to vector<16x128xbf16>
    %c0_7 = arith.constant 0 : index
    %c0_8 = arith.constant 0 : index
    %13 = vector.load %arg4[%c0_7, %c0_8] : memref<128x512xbf16, #tpu.memory_space<vmem>>, vector<128x512xbf16>
    %cst_9 = arith.constant dense<0.000000e+00> : vector<16x512xf32>
    %14 = tpu.matmul %12, %13, %cst_9 {dimension_numbers = #tpu.dot_dimension_numbers<[1], [0], [0], [1], [0, 0, 1, 1], [], []>} : vector<16x128xbf16>, vector<128x512xbf16>, vector<16x512xf32> -> vector<16x512xf32>
    %15 = arith.addf %11, %14 : vector<16x512xf32>
    %16 = arith.index_cast %8 : i32 to index
    %c0_10 = arith.constant 0 : index
    %17 = vector.load %arg2[%16, %c0_10] : memref<160x512xbf16, #tpu.memory_space<vmem>>, vector<16x512xbf16>
    %18 = arith.extf %17 : vector<16x512xbf16> to vector<16x512xf32>
    %19 = arith.truncf %3 : vector<16x128xf32> to vector<16x128xbf16>
    %c0_11 = arith.constant 0 : index
    %c0_12 = arith.constant 0 : index
    %20 = vector.load %arg5[%c0_11, %c0_12] : memref<128x512xbf16, #tpu.memory_space<vmem>>, vector<128x512xbf16>
    %cst_13 = arith.constant dense<0.000000e+00> : vector<16x512xf32>
    %21 = tpu.matmul %19, %20, %cst_13 {dimension_numbers = #tpu.dot_dimension_numbers<[1], [0], [0], [1], [0, 0, 1, 1], [], []>} : vector<16x128xbf16>, vector<128x512xbf16>, vector<16x512xf32> -> vector<16x512xf32>
    %22 = arith.addf %18, %21 : vector<16x512xf32>
    %23 = vector.broadcast %c0_i32 : i32 to vector<16x1xi32>
    %24 = arith.cmpi sgt, %2, %23 : vector<16x1xi32>
    %25 = vector.extract_strided_slice %15 {offsets = [0, 0], sizes = [16, 128], strides = [1, 1]} : vector<16x512xf32> to vector<16x128xf32>
    %cst_14 = arith.constant 5.000000e-01 : f32
    %26 = vector.broadcast %cst_14 : f32 to vector<16x128xf32>
    %27 = arith.mulf %26, %25 : vector<16x128xf32>
    %28 = math.tanh %27 : vector<16x128xf32>
    %cst_15 = arith.constant 5.000000e-01 : f32
    %29 = vector.broadcast %cst_15 : f32 to vector<16x128xf32>
    %30 = arith.mulf %29, %28 : vector<16x128xf32>
    %cst_16 = arith.constant 5.000000e-01 : f32
    %31 = vector.broadcast %cst_16 : f32 to vector<16x128xf32>
    %32 = arith.addf %30, %31 : vector<16x128xf32>
    %33 = vector.extract_strided_slice %15 {offsets = [0, 128], sizes = [16, 128], strides = [1, 1]} : vector<16x512xf32> to vector<16x128xf32>
    %cst_17 = arith.constant 5.000000e-01 : f32
    %34 = vector.broadcast %cst_17 : f32 to vector<16x128xf32>
    %35 = arith.mulf %34, %33 : vector<16x128xf32>
    %36 = math.tanh %35 : vector<16x128xf32>
    %cst_18 = arith.constant 5.000000e-01 : f32
    %37 = vector.broadcast %cst_18 : f32 to vector<16x128xf32>
    %38 = arith.mulf %37, %36 : vector<16x128xf32>
    %cst_19 = arith.constant 5.000000e-01 : f32
    %39 = vector.broadcast %cst_19 : f32 to vector<16x128xf32>
    %40 = arith.addf %38, %39 : vector<16x128xf32>
    %41 = vector.extract_strided_slice %15 {offsets = [0, 256], sizes = [16, 128], strides = [1, 1]} : vector<16x512xf32> to vector<16x128xf32>
    %42 = math.tanh %41 : vector<16x128xf32>
    %43 = vector.extract_strided_slice %15 {offsets = [0, 384], sizes = [16, 128], strides = [1, 1]} : vector<16x512xf32> to vector<16x128xf32>
    %cst_20 = arith.constant 5.000000e-01 : f32
    %44 = vector.broadcast %cst_20 : f32 to vector<16x128xf32>
    %45 = arith.mulf %44, %43 : vector<16x128xf32>
    %46 = math.tanh %45 : vector<16x128xf32>
    %cst_21 = arith.constant 5.000000e-01 : f32
    %47 = vector.broadcast %cst_21 : f32 to vector<16x128xf32>
    %48 = arith.mulf %47, %46 : vector<16x128xf32>
    %cst_22 = arith.constant 5.000000e-01 : f32
    %49 = vector.broadcast %cst_22 : f32 to vector<16x128xf32>
    %50 = arith.addf %48, %49 : vector<16x128xf32>
    %51 = arith.mulf %40, %3 : vector<16x128xf32>
    %52 = arith.mulf %32, %42 : vector<16x128xf32>
    %53 = arith.addf %51, %52 : vector<16x128xf32>
    %54 = math.tanh %53 : vector<16x128xf32>
    %55 = arith.mulf %50, %54 : vector<16x128xf32>
    %56 = vector.shape_cast %24 : vector<16x1xi1> to vector<16x1xi1>
    %57 = vector.broadcast %56 : vector<16x1xi1> to vector<16x128xi1>
    %58 = arith.select %57, %55, %3 : vector<16x128xi1>, vector<16x128xf32>
    %59 = vector.shape_cast %24 : vector<16x1xi1> to vector<16x1xi1>
    %60 = vector.broadcast %59 : vector<16x1xi1> to vector<16x128xi1>
    %61 = arith.select %60, %53, %3 : vector<16x128xi1>, vector<16x128xf32>
    %cst_23 = arith.constant 0.000000e+00 : f32
    %62 = vector.shape_cast %24 : vector<16x1xi1> to vector<16x1xi1>
    %63 = vector.broadcast %62 : vector<16x1xi1> to vector<16x128xi1>
    %64 = vector.broadcast %cst_23 : f32 to vector<16x128xf32>
    %65 = arith.select %63, %55, %64 : vector<16x128xi1>, vector<16x128xf32>
    %66 = vector.broadcast %4 : i32 to vector<16x1xi32>
    %67 = arith.cmpi sgt, %2, %66 : vector<16x1xi32>
    %68 = vector.extract_strided_slice %22 {offsets = [0, 0], sizes = [16, 128], strides = [1, 1]} : vector<16x512xf32> to vector<16x128xf32>
    %cst_24 = arith.constant 5.000000e-01 : f32
    %69 = vector.broadcast %cst_24 : f32 to vector<16x128xf32>
    %70 = arith.mulf %69, %68 : vector<16x128xf32>
    %71 = math.tanh %70 : vector<16x128xf32>
    %cst_25 = arith.constant 5.000000e-01 : f32
    %72 = vector.broadcast %cst_25 : f32 to vector<16x128xf32>
    %73 = arith.mulf %72, %71 : vector<16x128xf32>
    %cst_26 = arith.constant 5.000000e-01 : f32
    %74 = vector.broadcast %cst_26 : f32 to vector<16x128xf32>
    %75 = arith.addf %73, %74 : vector<16x128xf32>
    %76 = vector.extract_strided_slice %22 {offsets = [0, 128], sizes = [16, 128], strides = [1, 1]} : vector<16x512xf32> to vector<16x128xf32>
    %cst_27 = arith.constant 5.000000e-01 : f32
    %77 = vector.broadcast %cst_27 : f32 to vector<16x128xf32>
    %78 = arith.mulf %77, %76 : vector<16x128xf32>
    %79 = math.tanh %78 : vector<16x128xf32>
    %cst_28 = arith.constant 5.000000e-01 : f32
    %80 = vector.broadcast %cst_28 : f32 to vector<16x128xf32>
    %81 = arith.mulf %80, %79 : vector<16x128xf32>
    %cst_29 = arith.constant 5.000000e-01 : f32
    %82 = vector.broadcast %cst_29 : f32 to vector<16x128xf32>
    %83 = arith.addf %81, %82 : vector<16x128xf32>
    %84 = vector.extract_strided_slice %22 {offsets = [0, 256], sizes = [16, 128], strides = [1, 1]} : vector<16x512xf32> to vector<16x128xf32>
    %85 = math.tanh %84 : vector<16x128xf32>
    %86 = vector.extract_strided_slice %22 {offsets = [0, 384], sizes = [16, 128], strides = [1, 1]} : vector<16x512xf32> to vector<16x128xf32>
    %cst_30 = arith.constant 5.000000e-01 : f32
    %87 = vector.broadcast %cst_30 : f32 to vector<16x128xf32>
    %88 = arith.mulf %87, %86 : vector<16x128xf32>
    %89 = math.tanh %88 : vector<16x128xf32>
    %cst_31 = arith.constant 5.000000e-01 : f32
    %90 = vector.broadcast %cst_31 : f32 to vector<16x128xf32>
    %91 = arith.mulf %90, %89 : vector<16x128xf32>
    %cst_32 = arith.constant 5.000000e-01 : f32
    %92 = vector.broadcast %cst_32 : f32 to vector<16x128xf32>
    %93 = arith.addf %91, %92 : vector<16x128xf32>
    %94 = arith.mulf %83, %3 : vector<16x128xf32>
    %95 = arith.mulf %75, %85 : vector<16x128xf32>
    %96 = arith.addf %94, %95 : vector<16x128xf32>
    %97 = math.tanh %96 : vector<16x128xf32>
    %98 = arith.mulf %93, %97 : vector<16x128xf32>
    %99 = vector.shape_cast %67 : vector<16x1xi1> to vector<16x1xi1>
    %100 = vector.broadcast %99 : vector<16x1xi1> to vector<16x128xi1>
    %101 = arith.select %100, %98, %3 : vector<16x128xi1>, vector<16x128xf32>
    %102 = vector.shape_cast %67 : vector<16x1xi1> to vector<16x1xi1>
    %103 = vector.broadcast %102 : vector<16x1xi1> to vector<16x128xi1>
    %104 = arith.select %103, %96, %3 : vector<16x128xi1>, vector<16x128xf32>
    %cst_33 = arith.constant 0.000000e+00 : f32
    %105 = vector.shape_cast %67 : vector<16x1xi1> to vector<16x1xi1>
    %106 = vector.broadcast %105 : vector<16x1xi1> to vector<16x128xi1>
    %107 = vector.broadcast %cst_33 : f32 to vector<16x128xf32>
    %108 = arith.select %106, %98, %107 : vector<16x128xi1>, vector<16x128xf32>
    %109 = arith.index_cast %c0_i32 : i32 to index
    %c0_34 = arith.constant 0 : index
    %c0_35 = arith.constant 0 : index
    %110 = vector.load %arg6[%109, %c0_34, %c0_35] : memref<10x16x128xf32, #tpu.memory_space<vmem>>, vector<1x16x128xf32>
    %111 = vector.shape_cast %110 : vector<1x16x128xf32> to vector<16x128xf32>
    %112 = arith.addf %111, %65 : vector<16x128xf32>
    %113 = arith.index_cast %c0_i32 : i32 to index
    %c0_36 = arith.constant 0 : index
    %c0_37 = arith.constant 0 : index
    %114 = vector.load %arg6[%113, %c0_36, %c0_37] : memref<10x16x128xf32, #tpu.memory_space<vmem>>, vector<1x16x128xf32>
    %115 = vector.shape_cast %114 : vector<1x16x128xf32> to vector<16x128xf32>
    %116 = vector.shape_cast %112 : vector<16x128xf32> to vector<1x16x128xf32>
    tpu.vector_store %arg6[%113, %c0_36, %c0_37], %116 {strides = array<i32>} : memref<10x16x128xf32, #tpu.memory_space<vmem>>, vector<1x16x128xf32>,
    %117 = arith.index_cast %4 : i32 to index
    %c0_38 = arith.constant 0 : index
    %c0_39 = arith.constant 0 : index
    %118 = vector.load %arg6[%117, %c0_38, %c0_39] : memref<10x16x128xf32, #tpu.memory_space<vmem>>, vector<1x16x128xf32>
    %119 = vector.shape_cast %118 : vector<1x16x128xf32> to vector<16x128xf32>
    %120 = arith.addf %119, %108 : vector<16x128xf32>
    %121 = arith.index_cast %4 : i32 to index
    %c0_40 = arith.constant 0 : index
    %c0_41 = arith.constant 0 : index
    %122 = vector.load %arg6[%121, %c0_40, %c0_41] : memref<10x16x128xf32, #tpu.memory_space<vmem>>, vector<1x16x128xf32>
    %123 = vector.shape_cast %122 : vector<1x16x128xf32> to vector<16x128xf32>
    %124 = vector.shape_cast %120 : vector<16x128xf32> to vector<1x16x128xf32>
    tpu.vector_store %arg6[%121, %c0_40, %c0_41], %124 {strides = array<i32>} : memref<10x16x128xf32, #tpu.memory_space<vmem>>, vector<1x16x128xf32>,
    %c1_i32 = arith.constant 1 : i32
    %c9_i32_42 = arith.constant 9 : i32
    %125 = arith.subi %c9_i32_42, %c1_i32 : i32
    %c16_i32_43 = arith.constant 16 : i32
    %126 = arith.muli %c1_i32, %c16_i32_43 : i32
    %127 = tpu.assume_multiple %126, 16 : i32
    %c16_i32_44 = arith.constant 16 : i32
    %128 = arith.muli %125, %c16_i32_44 : i32
    %129 = tpu.assume_multiple %128, 16 : i32
    %130 = arith.index_cast %127 : i32 to index
    %c0_45 = arith.constant 0 : index
    %131 = vector.load %arg1[%130, %c0_45] : memref<160x512xbf16, #tpu.memory_space<vmem>>, vector<16x512xbf16>
    %132 = arith.extf %131 : vector<16x512xbf16> to vector<16x512xf32>
    %133 = arith.truncf %58 : vector<16x128xf32> to vector<16x128xbf16>
    %c0_46 = arith.constant 0 : index
    %c0_47 = arith.constant 0 : index
    %134 = vector.load %arg4[%c0_46, %c0_47] : memref<128x512xbf16, #tpu.memory_space<vmem>>, vector<128x512xbf16>
    %cst_48 = arith.constant dense<0.000000e+00> : vector<16x512xf32>
    %135 = tpu.matmul %133, %134, %cst_48 {dimension_numbers = #tpu.dot_dimension_numbers<[1], [0], [0], [1], [0, 0, 1, 1], [], []>} : vector<16x128xbf16>, vector<128x512xbf16>, vector<16x512xf32> -> vector<16x512xf32>
    %136 = arith.addf %132, %135 : vector<16x512xf32>
    %137 = arith.index_cast %129 : i32 to index
    %c0_49 = arith.constant 0 : index
    %138 = vector.load %arg2[%137, %c0_49] : memref<160x512xbf16, #tpu.memory_space<vmem>>, vector<16x512xbf16>
    %139 = arith.extf %138 : vector<16x512xbf16> to vector<16x512xf32>
    %140 = arith.truncf %101 : vector<16x128xf32> to vector<16x128xbf16>
    %c0_50 = arith.constant 0 : index
    %c0_51 = arith.constant 0 : index
    %141 = vector.load %arg5[%c0_50, %c0_51] : memref<128x512xbf16, #tpu.memory_space<vmem>>, vector<128x512xbf16>
    %cst_52 = arith.constant dense<0.000000e+00> : vector<16x512xf32>
    %142 = tpu.matmul %140, %141, %cst_52 {dimension_numbers = #tpu.dot_dimension_numbers<[1], [0], [0], [1], [0, 0, 1, 1], [], []>} : vector<16x128xbf16>, vector<128x512xbf16>, vector<16x512xf32> -> vector<16x512xf32>
    %143 = arith.addf %139, %142 : vector<16x512xf32>
    %144 = vector.broadcast %c1_i32 : i32 to vector<16x1xi32>
    %145 = arith.cmpi sgt, %2, %144 : vector<16x1xi32>
    %146 = vector.extract_strided_slice %136 {offsets = [0, 0], sizes = [16, 128], strides = [1, 1]} : vector<16x512xf32> to vector<16x128xf32>
    %cst_53 = arith.constant 5.000000e-01 : f32
    %147 = vector.broadcast %cst_53 : f32 to vector<16x128xf32>
    %148 = arith.mulf %147, %146 : vector<16x128xf32>
    %149 = math.tanh %148 : vector<16x128xf32>
    %cst_54 = arith.constant 5.000000e-01 : f32
    %150 = vector.broadcast %cst_54 : f32 to vector<16x128xf32>
    %151 = arith.mulf %150, %149 : vector<16x128xf32>
    %cst_55 = arith.constant 5.000000e-01 : f32
    %152 = vector.broadcast %cst_55 : f32 to vector<16x128xf32>
    %153 = arith.addf %151, %152 : vector<16x128xf32>
    %154 = vector.extract_strided_slice %136 {offsets = [0, 128], sizes = [16, 128], strides = [1, 1]} : vector<16x512xf32> to vector<16x128xf32>
    %cst_56 = arith.constant 5.000000e-01 : f32
    %155 = vector.broadcast %cst_56 : f32 to vector<16x128xf32>
    %156 = arith.mulf %155, %154 : vector<16x128xf32>
    %157 = math.tanh %156 : vector<16x128xf32>
    %cst_57 = arith.constant 5.000000e-01 : f32
    %158 = vector.broadcast %cst_57 : f32 to vector<16x128xf32>
    %159 = arith.mulf %158, %157 : vector<16x128xf32>
    %cst_58 = arith.constant 5.000000e-01 : f32
    %160 = vector.broadcast %cst_58 : f32 to vector<16x128xf32>
    %161 = arith.addf %159, %160 : vector<16x128xf32>
    %162 = vector.extract_strided_slice %136 {offsets = [0, 256], sizes = [16, 128], strides = [1, 1]} : vector<16x512xf32> to vector<16x128xf32>
    %163 = math.tanh %162 : vector<16x128xf32>
    %164 = vector.extract_strided_slice %136 {offsets = [0, 384], sizes = [16, 128], strides = [1, 1]} : vector<16x512xf32> to vector<16x128xf32>
    %cst_59 = arith.constant 5.000000e-01 : f32
    %165 = vector.broadcast %cst_59 : f32 to vector<16x128xf32>
    %166 = arith.mulf %165, %164 : vector<16x128xf32>
    %167 = math.tanh %166 : vector<16x128xf32>
    %cst_60 = arith.constant 5.000000e-01 : f32
    %168 = vector.broadcast %cst_60 : f32 to vector<16x128xf32>
    %169 = arith.mulf %168, %167 : vector<16x128xf32>
    %cst_61 = arith.constant 5.000000e-01 : f32
    %170 = vector.broadcast %cst_61 : f32 to vector<16x128xf32>
    %171 = arith.addf %169, %170 : vector<16x128xf32>
    %172 = arith.mulf %161, %61 : vector<16x128xf32>
    %173 = arith.mulf %153, %163 : vector<16x128xf32>
    %174 = arith.addf %172, %173 : vector<16x128xf32>
    %175 = math.tanh %174 : vector<16x128xf32>
    %176 = arith.mulf %171, %175 : vector<16x128xf32>
    %177 = vector.shape_cast %145 : vector<16x1xi1> to vector<16x1xi1>
    %178 = vector.broadcast %177 : vector<16x1xi1> to vector<16x128xi1>
    %179 = arith.select %178, %176, %58 : vector<16x128xi1>, vector<16x128xf32>
    %180 = vector.shape_cast %145 : vector<16x1xi1> to vector<16x1xi1>
    %181 = vector.broadcast %180 : vector<16x1xi1> to vector<16x128xi1>
    %182 = arith.select %181, %174, %61 : vector<16x128xi1>, vector<16x128xf32>
    %cst_62 = arith.constant 0.000000e+00 : f32
    %183 = vector.shape_cast %145 : vector<16x1xi1> to vector<16x1xi1>
    %184 = vector.broadcast %183 : vector<16x1xi1> to vector<16x128xi1>
    %185 = vector.broadcast %cst_62 : f32 to vector<16x128xf32>
    %186 = arith.select %184, %176, %185 : vector<16x128xi1>, vector<16x128xf32>
    %187 = vector.broadcast %125 : i32 to vector<16x1xi32>
    %188 = arith.cmpi sgt, %2, %187 : vector<16x1xi32>
    %189 = vector.extract_strided_slice %143 {offsets = [0, 0], sizes = [16, 128], strides = [1, 1]} : vector<16x512xf32> to vector<16x128xf32>
    %cst_63 = arith.constant 5.000000e-01 : f32
    %190 = vector.broadcast %cst_63 : f32 to vector<16x128xf32>
    %191 = arith.mulf %190, %189 : vector<16x128xf32>
    %192 = math.tanh %191 : vector<16x128xf32>
    %cst_64 = arith.constant 5.000000e-01 : f32
    %193 = vector.broadcast %cst_64 : f32 to vector<16x128xf32>
    %194 = arith.mulf %193, %192 : vector<16x128xf32>
    %cst_65 = arith.constant 5.000000e-01 : f32
    %195 = vector.broadcast %cst_65 : f32 to vector<16x128xf32>
    %196 = arith.addf %194, %195 : vector<16x128xf32>
    %197 = vector.extract_strided_slice %143 {offsets = [0, 128], sizes = [16, 128], strides = [1, 1]} : vector<16x512xf32> to vector<16x128xf32>
    %cst_66 = arith.constant 5.000000e-01 : f32
    %198 = vector.broadcast %cst_66 : f32 to vector<16x128xf32>
    %199 = arith.mulf %198, %197 : vector<16x128xf32>
    %200 = math.tanh %199 : vector<16x128xf32>
    %cst_67 = arith.constant 5.000000e-01 : f32
    %201 = vector.broadcast %cst_67 : f32 to vector<16x128xf32>
    %202 = arith.mulf %201, %200 : vector<16x128xf32>
    %cst_68 = arith.constant 5.000000e-01 : f32
    %203 = vector.broadcast %cst_68 : f32 to vector<16x128xf32>
    %204 = arith.addf %202, %203 : vector<16x128xf32>
    %205 = vector.extract_strided_slice %143 {offsets = [0, 256], sizes = [16, 128], strides = [1, 1]} : vector<16x512xf32> to vector<16x128xf32>
    %206 = math.tanh %205 : vector<16x128xf32>
    %207 = vector.extract_strided_slice %143 {offsets = [0, 384], sizes = [16, 128], strides = [1, 1]} : vector<16x512xf32> to vector<16x128xf32>
    %cst_69 = arith.constant 5.000000e-01 : f32
    %208 = vector.broadcast %cst_69 : f32 to vector<16x128xf32>
    %209 = arith.mulf %208, %207 : vector<16x128xf32>
    %210 = math.tanh %209 : vector<16x128xf32>
    %cst_70 = arith.constant 5.000000e-01 : f32
    %211 = vector.broadcast %cst_70 : f32 to vector<16x128xf32>
    %212 = arith.mulf %211, %210 : vector<16x128xf32>
    %cst_71 = arith.constant 5.000000e-01 : f32
    %213 = vector.broadcast %cst_71 : f32 to vector<16x128xf32>
    %214 = arith.addf %212, %213 : vector<16x128xf32>
    %215 = arith.mulf %204, %104 : vector<16x128xf32>
    %216 = arith.mulf %196, %206 : vector<16x128xf32>
    %217 = arith.addf %215, %216 : vector<16x128xf32>
    %218 = math.tanh %217 : vector<16x128xf32>
    %219 = arith.mulf %214, %218 : vector<16x128xf32>
    %220 = vector.shape_cast %188 : vector<16x1xi1> to vector<16x1xi1>
    %221 = vector.broadcast %220 : vector<16x1xi1> to vector<16x128xi1>
    %222 = arith.select %221, %219, %101 : vector<16x128xi1>, vector<16x128xf32>
    %223 = vector.shape_cast %188 : vector<16x1xi1> to vector<16x1xi1>
    %224 = vector.broadcast %223 : vector<16x1xi1> to vector<16x128xi1>
    %225 = arith.select %224, %217, %104 : vector<16x128xi1>, vector<16x128xf32>
    %cst_72 = arith.constant 0.000000e+00 : f32
    %226 = vector.shape_cast %188 : vector<16x1xi1> to vector<16x1xi1>
    %227 = vector.broadcast %226 : vector<16x1xi1> to vector<16x128xi1>
    %228 = vector.broadcast %cst_72 : f32 to vector<16x128xf32>
    %229 = arith.select %227, %219, %228 : vector<16x128xi1>, vector<16x128xf32>
    %230 = arith.index_cast %c1_i32 : i32 to index
    %c0_73 = arith.constant 0 : index
    %c0_74 = arith.constant 0 : index
    %231 = vector.load %arg6[%230, %c0_73, %c0_74] : memref<10x16x128xf32, #tpu.memory_space<vmem>>, vector<1x16x128xf32>
    %232 = vector.shape_cast %231 : vector<1x16x128xf32> to vector<16x128xf32>
    %233 = arith.addf %232, %186 : vector<16x128xf32>
    %234 = arith.index_cast %c1_i32 : i32 to index
    %c0_75 = arith.constant 0 : index
    %c0_76 = arith.constant 0 : index
    %235 = vector.load %arg6[%234, %c0_75, %c0_76] : memref<10x16x128xf32, #tpu.memory_space<vmem>>, vector<1x16x128xf32>
    %236 = vector.shape_cast %235 : vector<1x16x128xf32> to vector<16x128xf32>
    %237 = vector.shape_cast %233 : vector<16x128xf32> to vector<1x16x128xf32>
    tpu.vector_store %arg6[%234, %c0_75, %c0_76], %237 {strides = array<i32>} : memref<10x16x128xf32, #tpu.memory_space<vmem>>, vector<1x16x128xf32>,
    %238 = arith.index_cast %125 : i32 to index
    %c0_77 = arith.constant 0 : index
    %c0_78 = arith.constant 0 : index
    %239 = vector.load %arg6[%238, %c0_77, %c0_78] : memref<10x16x128xf32, #tpu.memory_space<vmem>>, vector<1x16x128xf32>
    %240 = vector.shape_cast %239 : vector<1x16x128xf32> to vector<16x128xf32>
    %241 = arith.addf %240, %229 : vector<16x128xf32>
    %242 = arith.index_cast %125 : i32 to index
    %c0_79 = arith.constant 0 : index
    %c0_80 = arith.constant 0 : index
    %243 = vector.load %arg6[%242, %c0_79, %c0_80] : memref<10x16x128xf32, #tpu.memory_space<vmem>>, vector<1x16x128xf32>
    %244 = vector.shape_cast %243 : vector<1x16x128xf32> to vector<16x128xf32>
    %245 = vector.shape_cast %241 : vector<16x128xf32> to vector<1x16x128xf32>
    tpu.vector_store %arg6[%242, %c0_79, %c0_80], %245 {strides = array<i32>} : memref<10x16x128xf32, #tpu.memory_space<vmem>>, vector<1x16x128xf32>,
    %c2_i32 = arith.constant 2 : i32
    %c9_i32_81 = arith.constant 9 : i32
    %246 = arith.subi %c9_i32_81, %c2_i32 : i32
    %c16_i32_82 = arith.constant 16 : i32
    %247 = arith.muli %c2_i32, %c16_i32_82 : i32
    %248 = tpu.assume_multiple %247, 16 : i32
    %c16_i32_83 = arith.constant 16 : i32
    %249 = arith.muli %246, %c16_i32_83 : i32
    %250 = tpu.assume_multiple %249, 16 : i32
    %251 = arith.index_cast %248 : i32 to index
    %c0_84 = arith.constant 0 : index
    %252 = vector.load %arg1[%251, %c0_84] : memref<160x512xbf16, #tpu.memory_space<vmem>>, vector<16x512xbf16>
    %253 = arith.extf %252 : vector<16x512xbf16> to vector<16x512xf32>
    %254 = arith.truncf %179 : vector<16x128xf32> to vector<16x128xbf16>
    %c0_85 = arith.constant 0 : index
    %c0_86 = arith.constant 0 : index
    %255 = vector.load %arg4[%c0_85, %c0_86] : memref<128x512xbf16, #tpu.memory_space<vmem>>, vector<128x512xbf16>
    %cst_87 = arith.constant dense<0.000000e+00> : vector<16x512xf32>
    %256 = tpu.matmul %254, %255, %cst_87 {dimension_numbers = #tpu.dot_dimension_numbers<[1], [0], [0], [1], [0, 0, 1, 1], [], []>} : vector<16x128xbf16>, vector<128x512xbf16>, vector<16x512xf32> -> vector<16x512xf32>
    %257 = arith.addf %253, %256 : vector<16x512xf32>
    %258 = arith.index_cast %250 : i32 to index
    %c0_88 = arith.constant 0 : index
    %259 = vector.load %arg2[%258, %c0_88] : memref<160x512xbf16, #tpu.memory_space<vmem>>, vector<16x512xbf16>
    %260 = arith.extf %259 : vector<16x512xbf16> to vector<16x512xf32>
    %261 = arith.truncf %222 : vector<16x128xf32> to vector<16x128xbf16>
    %c0_89 = arith.constant 0 : index
    %c0_90 = arith.constant 0 : index
    %262 = vector.load %arg5[%c0_89, %c0_90] : memref<128x512xbf16, #tpu.memory_space<vmem>>, vector<128x512xbf16>
    %cst_91 = arith.constant dense<0.000000e+00> : vector<16x512xf32>
    %263 = tpu.matmul %261, %262, %cst_91 {dimension_numbers = #tpu.dot_dimension_numbers<[1], [0], [0], [1], [0, 0, 1, 1], [], []>} : vector<16x128xbf16>, vector<128x512xbf16>, vector<16x512xf32> -> vector<16x512xf32>
    %264 = arith.addf %260, %263 : vector<16x512xf32>
    %265 = vector.broadcast %c2_i32 : i32 to vector<16x1xi32>
    %266 = arith.cmpi sgt, %2, %265 : vector<16x1xi32>
    %267 = vector.extract_strided_slice %257 {offsets = [0, 0], sizes = [16, 128], strides = [1, 1]} : vector<16x512xf32> to vector<16x128xf32>
    %cst_92 = arith.constant 5.000000e-01 : f32
    %268 = vector.broadcast %cst_92 : f32 to vector<16x128xf32>
    %269 = arith.mulf %268, %267 : vector<16x128xf32>
    %270 = math.tanh %269 : vector<16x128xf32>
    %cst_93 = arith.constant 5.000000e-01 : f32
    %271 = vector.broadcast %cst_93 : f32 to vector<16x128xf32>
    %272 = arith.mulf %271, %270 : vector<16x128xf32>
    %cst_94 = arith.constant 5.000000e-01 : f32
    %273 = vector.broadcast %cst_94 : f32 to vector<16x128xf32>
    %274 = arith.addf %272, %273 : vector<16x128xf32>
    %275 = vector.extract_strided_slice %257 {offsets = [0, 128], sizes = [16, 128], strides = [1, 1]} : vector<16x512xf32> to vector<16x128xf32>
    %cst_95 = arith.constant 5.000000e-01 : f32
    %276 = vector.broadcast %cst_95 : f32 to vector<16x128xf32>
    %277 = arith.mulf %276, %275 : vector<16x128xf32>
    %278 = math.tanh %277 : vector<16x128xf32>
    %cst_96 = arith.constant 5.000000e-01 : f32
    %279 = vector.broadcast %cst_96 : f32 to vector<16x128xf32>
    %280 = arith.mulf %279, %278 : vector<16x128xf32>
    %cst_97 = arith.constant 5.000000e-01 : f32
    %281 = vector.broadcast %cst_97 : f32 to vector<16x128xf32>
    %282 = arith.addf %280, %281 : vector<16x128xf32>
    %283 = vector.extract_strided_slice %257 {offsets = [0, 256], sizes = [16, 128], strides = [1, 1]} : vector<16x512xf32> to vector<16x128xf32>
    %284 = math.tanh %283 : vector<16x128xf32>
    %285 = vector.extract_strided_slice %257 {offsets = [0, 384], sizes = [16, 128], strides = [1, 1]} : vector<16x512xf32> to vector<16x128xf32>
    %cst_98 = arith.constant 5.000000e-01 : f32
    %286 = vector.broadcast %cst_98 : f32 to vector<16x128xf32>
    %287 = arith.mulf %286, %285 : vector<16x128xf32>
    %288 = math.tanh %287 : vector<16x128xf32>
    %cst_99 = arith.constant 5.000000e-01 : f32
    %289 = vector.broadcast %cst_99 : f32 to vector<16x128xf32>
    %290 = arith.mulf %289, %288 : vector<16x128xf32>
    %cst_100 = arith.constant 5.000000e-01 : f32
    %291 = vector.broadcast %cst_100 : f32 to vector<16x128xf32>
    %292 = arith.addf %290, %291 : vector<16x128xf32>
    %293 = arith.mulf %282, %182 : vector<16x128xf32>
    %294 = arith.mulf %274, %284 : vector<16x128xf32>
    %295 = arith.addf %293, %294 : vector<16x128xf32>
    %296 = math.tanh %295 : vector<16x128xf32>
    %297 = arith.mulf %292, %296 : vector<16x128xf32>
    %298 = vector.shape_cast %266 : vector<16x1xi1> to vector<16x1xi1>
    %299 = vector.broadcast %298 : vector<16x1xi1> to vector<16x128xi1>
    %300 = arith.select %299, %297, %179 : vector<16x128xi1>, vector<16x128xf32>
    %301 = vector.shape_cast %266 : vector<16x1xi1> to vector<16x1xi1>
    %302 = vector.broadcast %301 : vector<16x1xi1> to vector<16x128xi1>
    %303 = arith.select %302, %295, %182 : vector<16x128xi1>, vector<16x128xf32>
    %cst_101 = arith.constant 0.000000e+00 : f32
    %304 = vector.shape_cast %266 : vector<16x1xi1> to vector<16x1xi1>
    %305 = vector.broadcast %304 : vector<16x1xi1> to vector<16x128xi1>
    %306 = vector.broadcast %cst_101 : f32 to vector<16x128xf32>
    %307 = arith.select %305, %297, %306 : vector<16x128xi1>, vector<16x128xf32>
    %308 = vector.broadcast %246 : i32 to vector<16x1xi32>
    %309 = arith.cmpi sgt, %2, %308 : vector<16x1xi32>
    %310 = vector.extract_strided_slice %264 {offsets = [0, 0], sizes = [16, 128], strides = [1, 1]} : vector<16x512xf32> to vector<16x128xf32>
    %cst_102 = arith.constant 5.000000e-01 : f32
    %311 = vector.broadcast %cst_102 : f32 to vector<16x128xf32>
    %312 = arith.mulf %311, %310 : vector<16x128xf32>
    %313 = math.tanh %312 : vector<16x128xf32>
    %cst_103 = arith.constant 5.000000e-01 : f32
    %314 = vector.broadcast %cst_103 : f32 to vector<16x128xf32>
    %315 = arith.mulf %314, %313 : vector<16x128xf32>
    %cst_104 = arith.constant 5.000000e-01 : f32
    %316 = vector.broadcast %cst_104 : f32 to vector<16x128xf32>
    %317 = arith.addf %315, %316 : vector<16x128xf32>
    %318 = vector.extract_strided_slice %264 {offsets = [0, 128], sizes = [16, 128], strides = [1, 1]} : vector<16x512xf32> to vector<16x128xf32>
    %cst_105 = arith.constant 5.000000e-01 : f32
    %319 = vector.broadcast %cst_105 : f32 to vector<16x128xf32>
    %320 = arith.mulf %319, %318 : vector<16x128xf32>
    %321 = math.tanh %320 : vector<16x128xf32>
    %cst_106 = arith.constant 5.000000e-01 : f32
    %322 = vector.broadcast %cst_106 : f32 to vector<16x128xf32>
    %323 = arith.mulf %322, %321 : vector<16x128xf32>
    %cst_107 = arith.constant 5.000000e-01 : f32
    %324 = vector.broadcast %cst_107 : f32 to vector<16x128xf32>
    %325 = arith.addf %323, %324 : vector<16x128xf32>
    %326 = vector.extract_strided_slice %264 {offsets = [0, 256], sizes = [16, 128], strides = [1, 1]} : vector<16x512xf32> to vector<16x128xf32>
    %327 = math.tanh %326 : vector<16x128xf32>
    %328 = vector.extract_strided_slice %264 {offsets = [0, 384], sizes = [16, 128], strides = [1, 1]} : vector<16x512xf32> to vector<16x128xf32>
    %cst_108 = arith.constant 5.000000e-01 : f32
    %329 = vector.broadcast %cst_108 : f32 to vector<16x128xf32>
    %330 = arith.mulf %329, %328 : vector<16x128xf32>
    %331 = math.tanh %330 : vector<16x128xf32>
    %cst_109 = arith.constant 5.000000e-01 : f32
    %332 = vector.broadcast %cst_109 : f32 to vector<16x128xf32>
    %333 = arith.mulf %332, %331 : vector<16x128xf32>
    %cst_110 = arith.constant 5.000000e-01 : f32
    %334 = vector.broadcast %cst_110 : f32 to vector<16x128xf32>
    %335 = arith.addf %333, %334 : vector<16x128xf32>
    %336 = arith.mulf %325, %225 : vector<16x128xf32>
    %337 = arith.mulf %317, %327 : vector<16x128xf32>
    %338 = arith.addf %336, %337 : vector<16x128xf32>
    %339 = math.tanh %338 : vector<16x128xf32>
    %340 = arith.mulf %335, %339 : vector<16x128xf32>
    %341 = vector.shape_cast %309 : vector<16x1xi1> to vector<16x1xi1>
    %342 = vector.broadcast %341 : vector<16x1xi1> to vector<16x128xi1>
    %343 = arith.select %342, %340, %222 : vector<16x128xi1>, vector<16x128xf32>
    %344 = vector.shape_cast %309 : vector<16x1xi1> to vector<16x1xi1>
    %345 = vector.broadcast %344 : vector<16x1xi1> to vector<16x128xi1>
    %346 = arith.select %345, %338, %225 : vector<16x128xi1>, vector<16x128xf32>
    %cst_111 = arith.constant 0.000000e+00 : f32
    %347 = vector.shape_cast %309 : vector<16x1xi1> to vector<16x1xi1>
    %348 = vector.broadcast %347 : vector<16x1xi1> to vector<16x128xi1>
    %349 = vector.broadcast %cst_111 : f32 to vector<16x128xf32>
    %350 = arith.select %348, %340, %349 : vector<16x128xi1>, vector<16x128xf32>
    %351 = arith.index_cast %c2_i32 : i32 to index
    %c0_112 = arith.constant 0 : index
    %c0_113 = arith.constant 0 : index
    %352 = vector.load %arg6[%351, %c0_112, %c0_113] : memref<10x16x128xf32, #tpu.memory_space<vmem>>, vector<1x16x128xf32>
    %353 = vector.shape_cast %352 : vector<1x16x128xf32> to vector<16x128xf32>
    %354 = arith.addf %353, %307 : vector<16x128xf32>
    %355 = arith.index_cast %c2_i32 : i32 to index
    %c0_114 = arith.constant 0 : index
    %c0_115 = arith.constant 0 : index
    %356 = vector.load %arg6[%355, %c0_114, %c0_115] : memref<10x16x128xf32, #tpu.memory_space<vmem>>, vector<1x16x128xf32>
    %357 = vector.shape_cast %356 : vector<1x16x128xf32> to vector<16x128xf32>
    %358 = vector.shape_cast %354 : vector<16x128xf32> to vector<1x16x128xf32>
    tpu.vector_store %arg6[%355, %c0_114, %c0_115], %358 {strides = array<i32>} : memref<10x16x128xf32, #tpu.memory_space<vmem>>, vector<1x16x128xf32>,
    %359 = arith.index_cast %246 : i32 to index
    %c0_116 = arith.constant 0 : index
    %c0_117 = arith.constant 0 : index
    %360 = vector.load %arg6[%359, %c0_116, %c0_117] : memref<10x16x128xf32, #tpu.memory_space<vmem>>, vector<1x16x128xf32>
    %361 = vector.shape_cast %360 : vector<1x16x128xf32> to vector<16x128xf32>
    %362 = arith.addf %361, %350 : vector<16x128xf32>
    %363 = arith.index_cast %246 : i32 to index
    %c0_118 = arith.constant 0 : index
    %c0_119 = arith.constant 0 : index
    %364 = vector.load %arg6[%363, %c0_118, %c0_119] : memref<10x16x128xf32, #tpu.memory_space<vmem>>, vector<1x16x128xf32>
    %365 = vector.shape_cast %364 : vector<1x16x128xf32> to vector<16x128xf32>
    %366 = vector.shape_cast %362 : vector<16x128xf32> to vector<1x16x128xf32>
    tpu.vector_store %arg6[%363, %c0_118, %c0_119], %366 {strides = array<i32>} : memref<10x16x128xf32, #tpu.memory_space<vmem>>, vector<1x16x128xf32>,
    %c3_i32 = arith.constant 3 : i32
    %c9_i32_120 = arith.constant 9 : i32
    %367 = arith.subi %c9_i32_120, %c3_i32 : i32
    %c16_i32_121 = arith.constant 16 : i32
    %368 = arith.muli %c3_i32, %c16_i32_121 : i32
    %369 = tpu.assume_multiple %368, 16 : i32
    %c16_i32_122 = arith.constant 16 : i32
    %370 = arith.muli %367, %c16_i32_122 : i32
    %371 = tpu.assume_multiple %370, 16 : i32
    %372 = arith.index_cast %369 : i32 to index
    %c0_123 = arith.constant 0 : index
    %373 = vector.load %arg1[%372, %c0_123] : memref<160x512xbf16, #tpu.memory_space<vmem>>, vector<16x512xbf16>
    %374 = arith.extf %373 : vector<16x512xbf16> to vector<16x512xf32>
    %375 = arith.truncf %300 : vector<16x128xf32> to vector<16x128xbf16>
    %c0_124 = arith.constant 0 : index
    %c0_125 = arith.constant 0 : index
    %376 = vector.load %arg4[%c0_124, %c0_125] : memref<128x512xbf16, #tpu.memory_space<vmem>>, vector<128x512xbf16>
    %cst_126 = arith.constant dense<0.000000e+00> : vector<16x512xf32>
    %377 = tpu.matmul %375, %376, %cst_126 {dimension_numbers = #tpu.dot_dimension_numbers<[1], [0], [0], [1], [0, 0, 1, 1], [], []>} : vector<16x128xbf16>, vector<128x512xbf16>, vector<16x512xf32> -> vector<16x512xf32>
    %378 = arith.addf %374, %377 : vector<16x512xf32>
    %379 = arith.index_cast %371 : i32 to index
    %c0_127 = arith.constant 0 : index
    %380 = vector.load %arg2[%379, %c0_127] : memref<160x512xbf16, #tpu.memory_space<vmem>>, vector<16x512xbf16>
    %381 = arith.extf %380 : vector<16x512xbf16> to vector<16x512xf32>
    %382 = arith.truncf %343 : vector<16x128xf32> to vector<16x128xbf16>
    %c0_128 = arith.constant 0 : index
    %c0_129 = arith.constant 0 : index
    %383 = vector.load %arg5[%c0_128, %c0_129] : memref<128x512xbf16, #tpu.memory_space<vmem>>, vector<128x512xbf16>
    %cst_130 = arith.constant dense<0.000000e+00> : vector<16x512xf32>
    %384 = tpu.matmul %382, %383, %cst_130 {dimension_numbers = #tpu.dot_dimension_numbers<[1], [0], [0], [1], [0, 0, 1, 1], [], []>} : vector<16x128xbf16>, vector<128x512xbf16>, vector<16x512xf32> -> vector<16x512xf32>
    %385 = arith.addf %381, %384 : vector<16x512xf32>
    %386 = vector.broadcast %c3_i32 : i32 to vector<16x1xi32>
    %387 = arith.cmpi sgt, %2, %386 : vector<16x1xi32>
    %388 = vector.extract_strided_slice %378 {offsets = [0, 0], sizes = [16, 128], strides = [1, 1]} : vector<16x512xf32> to vector<16x128xf32>
    %cst_131 = arith.constant 5.000000e-01 : f32
    %389 = vector.broadcast %cst_131 : f32 to vector<16x128xf32>
    %390 = arith.mulf %389, %388 : vector<16x128xf32>
    %391 = math.tanh %390 : vector<16x128xf32>
    %cst_132 = arith.constant 5.000000e-01 : f32
    %392 = vector.broadcast %cst_132 : f32 to vector<16x128xf32>
    %393 = arith.mulf %392, %391 : vector<16x128xf32>
    %cst_133 = arith.constant 5.000000e-01 : f32
    %394 = vector.broadcast %cst_133 : f32 to vector<16x128xf32>
    %395 = arith.addf %393, %394 : vector<16x128xf32>
    %396 = vector.extract_strided_slice %378 {offsets = [0, 128], sizes = [16, 128], strides = [1, 1]} : vector<16x512xf32> to vector<16x128xf32>
    %cst_134 = arith.constant 5.000000e-01 : f32
    %397 = vector.broadcast %cst_134 : f32 to vector<16x128xf32>
    %398 = arith.mulf %397, %396 : vector<16x128xf32>
    %399 = math.tanh %398 : vector<16x128xf32>
    %cst_135 = arith.constant 5.000000e-01 : f32
    %400 = vector.broadcast %cst_135 : f32 to vector<16x128xf32>
    %401 = arith.mulf %400, %399 : vector<16x128xf32>
    %cst_136 = arith.constant 5.000000e-01 : f32
    %402 = vector.broadcast %cst_136 : f32 to vector<16x128xf32>
    %403 = arith.addf %401, %402 : vector<16x128xf32>
    %404 = vector.extract_strided_slice %378 {offsets = [0, 256], sizes = [16, 128], strides = [1, 1]} : vector<16x512xf32> to vector<16x128xf32>
    %405 = math.tanh %404 : vector<16x128xf32>
    %406 = vector.extract_strided_slice %378 {offsets = [0, 384], sizes = [16, 128], strides = [1, 1]} : vector<16x512xf32> to vector<16x128xf32>
    %cst_137 = arith.constant 5.000000e-01 : f32
    %407 = vector.broadcast %cst_137 : f32 to vector<16x128xf32>
    %408 = arith.mulf %407, %406 : vector<16x128xf32>
    %409 = math.tanh %408 : vector<16x128xf32>
    %cst_138 = arith.constant 5.000000e-01 : f32
    %410 = vector.broadcast %cst_138 : f32 to vector<16x128xf32>
    %411 = arith.mulf %410, %409 : vector<16x128xf32>
    %cst_139 = arith.constant 5.000000e-01 : f32
    %412 = vector.broadcast %cst_139 : f32 to vector<16x128xf32>
    %413 = arith.addf %411, %412 : vector<16x128xf32>
    %414 = arith.mulf %403, %303 : vector<16x128xf32>
    %415 = arith.mulf %395, %405 : vector<16x128xf32>
    %416 = arith.addf %414, %415 : vector<16x128xf32>
    %417 = math.tanh %416 : vector<16x128xf32>
    %418 = arith.mulf %413, %417 : vector<16x128xf32>
    %419 = vector.shape_cast %387 : vector<16x1xi1> to vector<16x1xi1>
    %420 = vector.broadcast %419 : vector<16x1xi1> to vector<16x128xi1>
    %421 = arith.select %420, %418, %300 : vector<16x128xi1>, vector<16x128xf32>
    %422 = vector.shape_cast %387 : vector<16x1xi1> to vector<16x1xi1>
    %423 = vector.broadcast %422 : vector<16x1xi1> to vector<16x128xi1>
    %424 = arith.select %423, %416, %303 : vector<16x128xi1>, vector<16x128xf32>
    %cst_140 = arith.constant 0.000000e+00 : f32
    %425 = vector.shape_cast %387 : vector<16x1xi1> to vector<16x1xi1>
    %426 = vector.broadcast %425 : vector<16x1xi1> to vector<16x128xi1>
    %427 = vector.broadcast %cst_140 : f32 to vector<16x128xf32>
    %428 = arith.select %426, %418, %427 : vector<16x128xi1>, vector<16x128xf32>
    %429 = vector.broadcast %367 : i32 to vector<16x1xi32>
    %430 = arith.cmpi sgt, %2, %429 : vector<16x1xi32>
    %431 = vector.extract_strided_slice %385 {offsets = [0, 0], sizes = [16, 128], strides = [1, 1]} : vector<16x512xf32> to vector<16x128xf32>
    %cst_141 = arith.constant 5.000000e-01 : f32
    %432 = vector.broadcast %cst_141 : f32 to vector<16x128xf32>
    %433 = arith.mulf %432, %431 : vector<16x128xf32>
    %434 = math.tanh %433 : vector<16x128xf32>
    %cst_142 = arith.constant 5.000000e-01 : f32
    %435 = vector.broadcast %cst_142 : f32 to vector<16x128xf32>
    %436 = arith.mulf %435, %434 : vector<16x128xf32>
    %cst_143 = arith.constant 5.000000e-01 : f32
    %437 = vector.broadcast %cst_143 : f32 to vector<16x128xf32>
    %438 = arith.addf %436, %437 : vector<16x128xf32>
    %439 = vector.extract_strided_slice %385 {offsets = [0, 128], sizes = [16, 128], strides = [1, 1]} : vector<16x512xf32> to vector<16x128xf32>
    %cst_144 = arith.constant 5.000000e-01 : f32
    %440 = vector.broadcast %cst_144 : f32 to vector<16x128xf32>
    %441 = arith.mulf %440, %439 : vector<16x128xf32>
    %442 = math.tanh %441 : vector<16x128xf32>
    %cst_145 = arith.constant 5.000000e-01 : f32
    %443 = vector.broadcast %cst_145 : f32 to vector<16x128xf32>
    %444 = arith.mulf %443, %442 : vector<16x128xf32>
    %cst_146 = arith.constant 5.000000e-01 : f32
    %445 = vector.broadcast %cst_146 : f32 to vector<16x128xf32>
    %446 = arith.addf %444, %445 : vector<16x128xf32>
    %447 = vector.extract_strided_slice %385 {offsets = [0, 256], sizes = [16, 128], strides = [1, 1]} : vector<16x512xf32> to vector<16x128xf32>
    %448 = math.tanh %447 : vector<16x128xf32>
    %449 = vector.extract_strided_slice %385 {offsets = [0, 384], sizes = [16, 128], strides = [1, 1]} : vector<16x512xf32> to vector<16x128xf32>
    %cst_147 = arith.constant 5.000000e-01 : f32
    %450 = vector.broadcast %cst_147 : f32 to vector<16x128xf32>
    %451 = arith.mulf %450, %449 : vector<16x128xf32>
    %452 = math.tanh %451 : vector<16x128xf32>
    %cst_148 = arith.constant 5.000000e-01 : f32
    %453 = vector.broadcast %cst_148 : f32 to vector<16x128xf32>
    %454 = arith.mulf %453, %452 : vector<16x128xf32>
    %cst_149 = arith.constant 5.000000e-01 : f32
    %455 = vector.broadcast %cst_149 : f32 to vector<16x128xf32>
    %456 = arith.addf %454, %455 : vector<16x128xf32>
    %457 = arith.mulf %446, %346 : vector<16x128xf32>
    %458 = arith.mulf %438, %448 : vector<16x128xf32>
    %459 = arith.addf %457, %458 : vector<16x128xf32>
    %460 = math.tanh %459 : vector<16x128xf32>
    %461 = arith.mulf %456, %460 : vector<16x128xf32>
    %462 = vector.shape_cast %430 : vector<16x1xi1> to vector<16x1xi1>
    %463 = vector.broadcast %462 : vector<16x1xi1> to vector<16x128xi1>
    %464 = arith.select %463, %461, %343 : vector<16x128xi1>, vector<16x128xf32>
    %465 = vector.shape_cast %430 : vector<16x1xi1> to vector<16x1xi1>
    %466 = vector.broadcast %465 : vector<16x1xi1> to vector<16x128xi1>
    %467 = arith.select %466, %459, %346 : vector<16x128xi1>, vector<16x128xf32>
    %cst_150 = arith.constant 0.000000e+00 : f32
    %468 = vector.shape_cast %430 : vector<16x1xi1> to vector<16x1xi1>
    %469 = vector.broadcast %468 : vector<16x1xi1> to vector<16x128xi1>
    %470 = vector.broadcast %cst_150 : f32 to vector<16x128xf32>
    %471 = arith.select %469, %461, %470 : vector<16x128xi1>, vector<16x128xf32>
    %472 = arith.index_cast %c3_i32 : i32 to index
    %c0_151 = arith.constant 0 : index
    %c0_152 = arith.constant 0 : index
    %473 = vector.load %arg6[%472, %c0_151, %c0_152] : memref<10x16x128xf32, #tpu.memory_space<vmem>>, vector<1x16x128xf32>
    %474 = vector.shape_cast %473 : vector<1x16x128xf32> to vector<16x128xf32>
    %475 = arith.addf %474, %428 : vector<16x128xf32>
    %476 = arith.index_cast %c3_i32 : i32 to index
    %c0_153 = arith.constant 0 : index
    %c0_154 = arith.constant 0 : index
    %477 = vector.load %arg6[%476, %c0_153, %c0_154] : memref<10x16x128xf32, #tpu.memory_space<vmem>>, vector<1x16x128xf32>
    %478 = vector.shape_cast %477 : vector<1x16x128xf32> to vector<16x128xf32>
    %479 = vector.shape_cast %475 : vector<16x128xf32> to vector<1x16x128xf32>
    tpu.vector_store %arg6[%476, %c0_153, %c0_154], %479 {strides = array<i32>} : memref<10x16x128xf32, #tpu.memory_space<vmem>>, vector<1x16x128xf32>,
    %480 = arith.index_cast %367 : i32 to index
    %c0_155 = arith.constant 0 : index
    %c0_156 = arith.constant 0 : index
    %481 = vector.load %arg6[%480, %c0_155, %c0_156] : memref<10x16x128xf32, #tpu.memory_space<vmem>>, vector<1x16x128xf32>
    %482 = vector.shape_cast %481 : vector<1x16x128xf32> to vector<16x128xf32>
    %483 = arith.addf %482, %471 : vector<16x128xf32>
    %484 = arith.index_cast %367 : i32 to index
    %c0_157 = arith.constant 0 : index
    %c0_158 = arith.constant 0 : index
    %485 = vector.load %arg6[%484, %c0_157, %c0_158] : memref<10x16x128xf32, #tpu.memory_space<vmem>>, vector<1x16x128xf32>
    %486 = vector.shape_cast %485 : vector<1x16x128xf32> to vector<16x128xf32>
    %487 = vector.shape_cast %483 : vector<16x128xf32> to vector<1x16x128xf32>
    tpu.vector_store %arg6[%484, %c0_157, %c0_158], %487 {strides = array<i32>} : memref<10x16x128xf32, #tpu.memory_space<vmem>>, vector<1x16x128xf32>,
    %c4_i32 = arith.constant 4 : i32
    %c9_i32_159 = arith.constant 9 : i32
    %488 = arith.subi %c9_i32_159, %c4_i32 : i32
    %c16_i32_160 = arith.constant 16 : i32
    %489 = arith.muli %c4_i32, %c16_i32_160 : i32
    %490 = tpu.assume_multiple %489, 16 : i32
    %c16_i32_161 = arith.constant 16 : i32
    %491 = arith.muli %488, %c16_i32_161 : i32
    %492 = tpu.assume_multiple %491, 16 : i32
    %493 = arith.index_cast %490 : i32 to index
    %c0_162 = arith.constant 0 : index
    %494 = vector.load %arg1[%493, %c0_162] : memref<160x512xbf16, #tpu.memory_space<vmem>>, vector<16x512xbf16>
    %495 = arith.extf %494 : vector<16x512xbf16> to vector<16x512xf32>
    %496 = arith.truncf %421 : vector<16x128xf32> to vector<16x128xbf16>
    %c0_163 = arith.constant 0 : index
    %c0_164 = arith.constant 0 : index
    %497 = vector.load %arg4[%c0_163, %c0_164] : memref<128x512xbf16, #tpu.memory_space<vmem>>, vector<128x512xbf16>
    %cst_165 = arith.constant dense<0.000000e+00> : vector<16x512xf32>
    %498 = tpu.matmul %496, %497, %cst_165 {dimension_numbers = #tpu.dot_dimension_numbers<[1], [0], [0], [1], [0, 0, 1, 1], [], []>} : vector<16x128xbf16>, vector<128x512xbf16>, vector<16x512xf32> -> vector<16x512xf32>
    %499 = arith.addf %495, %498 : vector<16x512xf32>
    %500 = arith.index_cast %492 : i32 to index
    %c0_166 = arith.constant 0 : index
    %501 = vector.load %arg2[%500, %c0_166] : memref<160x512xbf16, #tpu.memory_space<vmem>>, vector<16x512xbf16>
    %502 = arith.extf %501 : vector<16x512xbf16> to vector<16x512xf32>
    %503 = arith.truncf %464 : vector<16x128xf32> to vector<16x128xbf16>
    %c0_167 = arith.constant 0 : index
    %c0_168 = arith.constant 0 : index
    %504 = vector.load %arg5[%c0_167, %c0_168] : memref<128x512xbf16, #tpu.memory_space<vmem>>, vector<128x512xbf16>
    %cst_169 = arith.constant dense<0.000000e+00> : vector<16x512xf32>
    %505 = tpu.matmul %503, %504, %cst_169 {dimension_numbers = #tpu.dot_dimension_numbers<[1], [0], [0], [1], [0, 0, 1, 1], [], []>} : vector<16x128xbf16>, vector<128x512xbf16>, vector<16x512xf32> -> vector<16x512xf32>
    %506 = arith.addf %502, %505 : vector<16x512xf32>
    %507 = vector.broadcast %c4_i32 : i32 to vector<16x1xi32>
    %508 = arith.cmpi sgt, %2, %507 : vector<16x1xi32>
    %509 = vector.extract_strided_slice %499 {offsets = [0, 0], sizes = [16, 128], strides = [1, 1]} : vector<16x512xf32> to vector<16x128xf32>
    %cst_170 = arith.constant 5.000000e-01 : f32
    %510 = vector.broadcast %cst_170 : f32 to vector<16x128xf32>
    %511 = arith.mulf %510, %509 : vector<16x128xf32>
    %512 = math.tanh %511 : vector<16x128xf32>
    %cst_171 = arith.constant 5.000000e-01 : f32
    %513 = vector.broadcast %cst_171 : f32 to vector<16x128xf32>
    %514 = arith.mulf %513, %512 : vector<16x128xf32>
    %cst_172 = arith.constant 5.000000e-01 : f32
    %515 = vector.broadcast %cst_172 : f32 to vector<16x128xf32>
    %516 = arith.addf %514, %515 : vector<16x128xf32>
    %517 = vector.extract_strided_slice %499 {offsets = [0, 128], sizes = [16, 128], strides = [1, 1]} : vector<16x512xf32> to vector<16x128xf32>
    %cst_173 = arith.constant 5.000000e-01 : f32
    %518 = vector.broadcast %cst_173 : f32 to vector<16x128xf32>
    %519 = arith.mulf %518, %517 : vector<16x128xf32>
    %520 = math.tanh %519 : vector<16x128xf32>
    %cst_174 = arith.constant 5.000000e-01 : f32
    %521 = vector.broadcast %cst_174 : f32 to vector<16x128xf32>
    %522 = arith.mulf %521, %520 : vector<16x128xf32>
    %cst_175 = arith.constant 5.000000e-01 : f32
    %523 = vector.broadcast %cst_175 : f32 to vector<16x128xf32>
    %524 = arith.addf %522, %523 : vector<16x128xf32>
    %525 = vector.extract_strided_slice %499 {offsets = [0, 256], sizes = [16, 128], strides = [1, 1]} : vector<16x512xf32> to vector<16x128xf32>
    %526 = math.tanh %525 : vector<16x128xf32>
    %527 = vector.extract_strided_slice %499 {offsets = [0, 384], sizes = [16, 128], strides = [1, 1]} : vector<16x512xf32> to vector<16x128xf32>
    %cst_176 = arith.constant 5.000000e-01 : f32
    %528 = vector.broadcast %cst_176 : f32 to vector<16x128xf32>
    %529 = arith.mulf %528, %527 : vector<16x128xf32>
    %530 = math.tanh %529 : vector<16x128xf32>
    %cst_177 = arith.constant 5.000000e-01 : f32
    %531 = vector.broadcast %cst_177 : f32 to vector<16x128xf32>
    %532 = arith.mulf %531, %530 : vector<16x128xf32>
    %cst_178 = arith.constant 5.000000e-01 : f32
    %533 = vector.broadcast %cst_178 : f32 to vector<16x128xf32>
    %534 = arith.addf %532, %533 : vector<16x128xf32>
    %535 = arith.mulf %524, %424 : vector<16x128xf32>
    %536 = arith.mulf %516, %526 : vector<16x128xf32>
    %537 = arith.addf %535, %536 : vector<16x128xf32>
    %538 = math.tanh %537 : vector<16x128xf32>
    %539 = arith.mulf %534, %538 : vector<16x128xf32>
    %540 = vector.shape_cast %508 : vector<16x1xi1> to vector<16x1xi1>
    %541 = vector.broadcast %540 : vector<16x1xi1> to vector<16x128xi1>
    %542 = arith.select %541, %539, %421 : vector<16x128xi1>, vector<16x128xf32>
    %543 = vector.shape_cast %508 : vector<16x1xi1> to vector<16x1xi1>
    %544 = vector.broadcast %543 : vector<16x1xi1> to vector<16x128xi1>
    %545 = arith.select %544, %537, %424 : vector<16x128xi1>, vector<16x128xf32>
    %cst_179 = arith.constant 0.000000e+00 : f32
    %546 = vector.shape_cast %508 : vector<16x1xi1> to vector<16x1xi1>
    %547 = vector.broadcast %546 : vector<16x1xi1> to vector<16x128xi1>
    %548 = vector.broadcast %cst_179 : f32 to vector<16x128xf32>
    %549 = arith.select %547, %539, %548 : vector<16x128xi1>, vector<16x128xf32>
    %550 = vector.broadcast %488 : i32 to vector<16x1xi32>
    %551 = arith.cmpi sgt, %2, %550 : vector<16x1xi32>
    %552 = vector.extract_strided_slice %506 {offsets = [0, 0], sizes = [16, 128], strides = [1, 1]} : vector<16x512xf32> to vector<16x128xf32>
    %cst_180 = arith.constant 5.000000e-01 : f32
    %553 = vector.broadcast %cst_180 : f32 to vector<16x128xf32>
    %554 = arith.mulf %553, %552 : vector<16x128xf32>
    %555 = math.tanh %554 : vector<16x128xf32>
    %cst_181 = arith.constant 5.000000e-01 : f32
    %556 = vector.broadcast %cst_181 : f32 to vector<16x128xf32>
    %557 = arith.mulf %556, %555 : vector<16x128xf32>
    %cst_182 = arith.constant 5.000000e-01 : f32
    %558 = vector.broadcast %cst_182 : f32 to vector<16x128xf32>
    %559 = arith.addf %557, %558 : vector<16x128xf32>
    %560 = vector.extract_strided_slice %506 {offsets = [0, 128], sizes = [16, 128], strides = [1, 1]} : vector<16x512xf32> to vector<16x128xf32>
    %cst_183 = arith.constant 5.000000e-01 : f32
    %561 = vector.broadcast %cst_183 : f32 to vector<16x128xf32>
    %562 = arith.mulf %561, %560 : vector<16x128xf32>
    %563 = math.tanh %562 : vector<16x128xf32>
    %cst_184 = arith.constant 5.000000e-01 : f32
    %564 = vector.broadcast %cst_184 : f32 to vector<16x128xf32>
    %565 = arith.mulf %564, %563 : vector<16x128xf32>
    %cst_185 = arith.constant 5.000000e-01 : f32
    %566 = vector.broadcast %cst_185 : f32 to vector<16x128xf32>
    %567 = arith.addf %565, %566 : vector<16x128xf32>
    %568 = vector.extract_strided_slice %506 {offsets = [0, 256], sizes = [16, 128], strides = [1, 1]} : vector<16x512xf32> to vector<16x128xf32>
    %569 = math.tanh %568 : vector<16x128xf32>
    %570 = vector.extract_strided_slice %506 {offsets = [0, 384], sizes = [16, 128], strides = [1, 1]} : vector<16x512xf32> to vector<16x128xf32>
    %cst_186 = arith.constant 5.000000e-01 : f32
    %571 = vector.broadcast %cst_186 : f32 to vector<16x128xf32>
    %572 = arith.mulf %571, %570 : vector<16x128xf32>
    %573 = math.tanh %572 : vector<16x128xf32>
    %cst_187 = arith.constant 5.000000e-01 : f32
    %574 = vector.broadcast %cst_187 : f32 to vector<16x128xf32>
    %575 = arith.mulf %574, %573 : vector<16x128xf32>
    %cst_188 = arith.constant 5.000000e-01 : f32
    %576 = vector.broadcast %cst_188 : f32 to vector<16x128xf32>
    %577 = arith.addf %575, %576 : vector<16x128xf32>
    %578 = arith.mulf %567, %467 : vector<16x128xf32>
    %579 = arith.mulf %559, %569 : vector<16x128xf32>
    %580 = arith.addf %578, %579 : vector<16x128xf32>
    %581 = math.tanh %580 : vector<16x128xf32>
    %582 = arith.mulf %577, %581 : vector<16x128xf32>
    %583 = vector.shape_cast %551 : vector<16x1xi1> to vector<16x1xi1>
    %584 = vector.broadcast %583 : vector<16x1xi1> to vector<16x128xi1>
    %585 = arith.select %584, %582, %464 : vector<16x128xi1>, vector<16x128xf32>
    %586 = vector.shape_cast %551 : vector<16x1xi1> to vector<16x1xi1>
    %587 = vector.broadcast %586 : vector<16x1xi1> to vector<16x128xi1>
    %588 = arith.select %587, %580, %467 : vector<16x128xi1>, vector<16x128xf32>
    %cst_189 = arith.constant 0.000000e+00 : f32
    %589 = vector.shape_cast %551 : vector<16x1xi1> to vector<16x1xi1>
    %590 = vector.broadcast %589 : vector<16x1xi1> to vector<16x128xi1>
    %591 = vector.broadcast %cst_189 : f32 to vector<16x128xf32>
    %592 = arith.select %590, %582, %591 : vector<16x128xi1>, vector<16x128xf32>
    %593 = arith.index_cast %c4_i32 : i32 to index
    %c0_190 = arith.constant 0 : index
    %c0_191 = arith.constant 0 : index
    %594 = vector.load %arg6[%593, %c0_190, %c0_191] : memref<10x16x128xf32, #tpu.memory_space<vmem>>, vector<1x16x128xf32>
    %595 = vector.shape_cast %594 : vector<1x16x128xf32> to vector<16x128xf32>
    %596 = arith.addf %595, %549 : vector<16x128xf32>
    %597 = arith.index_cast %c4_i32 : i32 to index
    %c0_192 = arith.constant 0 : index
    %c0_193 = arith.constant 0 : index
    %598 = vector.load %arg6[%597, %c0_192, %c0_193] : memref<10x16x128xf32, #tpu.memory_space<vmem>>, vector<1x16x128xf32>
    %599 = vector.shape_cast %598 : vector<1x16x128xf32> to vector<16x128xf32>
    %600 = vector.shape_cast %596 : vector<16x128xf32> to vector<1x16x128xf32>
    tpu.vector_store %arg6[%597, %c0_192, %c0_193], %600 {strides = array<i32>} : memref<10x16x128xf32, #tpu.memory_space<vmem>>, vector<1x16x128xf32>,
    %601 = arith.index_cast %488 : i32 to index
    %c0_194 = arith.constant 0 : index
    %c0_195 = arith.constant 0 : index
    %602 = vector.load %arg6[%601, %c0_194, %c0_195] : memref<10x16x128xf32, #tpu.memory_space<vmem>>, vector<1x16x128xf32>
    %603 = vector.shape_cast %602 : vector<1x16x128xf32> to vector<16x128xf32>
    %604 = arith.addf %603, %592 : vector<16x128xf32>
    %605 = arith.index_cast %488 : i32 to index
    %c0_196 = arith.constant 0 : index
    %c0_197 = arith.constant 0 : index
    %606 = vector.load %arg6[%605, %c0_196, %c0_197] : memref<10x16x128xf32, #tpu.memory_space<vmem>>, vector<1x16x128xf32>
    %607 = vector.shape_cast %606 : vector<1x16x128xf32> to vector<16x128xf32>
    %608 = vector.shape_cast %604 : vector<16x128xf32> to vector<1x16x128xf32>
    tpu.vector_store %arg6[%605, %c0_196, %c0_197], %608 {strides = array<i32>} : memref<10x16x128xf32, #tpu.memory_space<vmem>>, vector<1x16x128xf32>,
    %c5_i32 = arith.constant 5 : i32
    %c9_i32_198 = arith.constant 9 : i32
    %609 = arith.subi %c9_i32_198, %c5_i32 : i32
    %c16_i32_199 = arith.constant 16 : i32
    %610 = arith.muli %c5_i32, %c16_i32_199 : i32
    %611 = tpu.assume_multiple %610, 16 : i32
    %c16_i32_200 = arith.constant 16 : i32
    %612 = arith.muli %609, %c16_i32_200 : i32
    %613 = tpu.assume_multiple %612, 16 : i32
    %614 = arith.index_cast %611 : i32 to index
    %c0_201 = arith.constant 0 : index
    %615 = vector.load %arg1[%614, %c0_201] : memref<160x512xbf16, #tpu.memory_space<vmem>>, vector<16x512xbf16>
    %616 = arith.extf %615 : vector<16x512xbf16> to vector<16x512xf32>
    %617 = arith.truncf %542 : vector<16x128xf32> to vector<16x128xbf16>
    %c0_202 = arith.constant 0 : index
    %c0_203 = arith.constant 0 : index
    %618 = vector.load %arg4[%c0_202, %c0_203] : memref<128x512xbf16, #tpu.memory_space<vmem>>, vector<128x512xbf16>
    %cst_204 = arith.constant dense<0.000000e+00> : vector<16x512xf32>
    %619 = tpu.matmul %617, %618, %cst_204 {dimension_numbers = #tpu.dot_dimension_numbers<[1], [0], [0], [1], [0, 0, 1, 1], [], []>} : vector<16x128xbf16>, vector<128x512xbf16>, vector<16x512xf32> -> vector<16x512xf32>
    %620 = arith.addf %616, %619 : vector<16x512xf32>
    %621 = arith.index_cast %613 : i32 to index
    %c0_205 = arith.constant 0 : index
    %622 = vector.load %arg2[%621, %c0_205] : memref<160x512xbf16, #tpu.memory_space<vmem>>, vector<16x512xbf16>
    %623 = arith.extf %622 : vector<16x512xbf16> to vector<16x512xf32>
    %624 = arith.truncf %585 : vector<16x128xf32> to vector<16x128xbf16>
    %c0_206 = arith.constant 0 : index
    %c0_207 = arith.constant 0 : index
    %625 = vector.load %arg5[%c0_206, %c0_207] : memref<128x512xbf16, #tpu.memory_space<vmem>>, vector<128x512xbf16>
    %cst_208 = arith.constant dense<0.000000e+00> : vector<16x512xf32>
    %626 = tpu.matmul %624, %625, %cst_208 {dimension_numbers = #tpu.dot_dimension_numbers<[1], [0], [0], [1], [0, 0, 1, 1], [], []>} : vector<16x128xbf16>, vector<128x512xbf16>, vector<16x512xf32> -> vector<16x512xf32>
    %627 = arith.addf %623, %626 : vector<16x512xf32>
    %628 = vector.broadcast %c5_i32 : i32 to vector<16x1xi32>
    %629 = arith.cmpi sgt, %2, %628 : vector<16x1xi32>
    %630 = vector.extract_strided_slice %620 {offsets = [0, 0], sizes = [16, 128], strides = [1, 1]} : vector<16x512xf32> to vector<16x128xf32>
    %cst_209 = arith.constant 5.000000e-01 : f32
    %631 = vector.broadcast %cst_209 : f32 to vector<16x128xf32>
    %632 = arith.mulf %631, %630 : vector<16x128xf32>
    %633 = math.tanh %632 : vector<16x128xf32>
    %cst_210 = arith.constant 5.000000e-01 : f32
    %634 = vector.broadcast %cst_210 : f32 to vector<16x128xf32>
    %635 = arith.mulf %634, %633 : vector<16x128xf32>
    %cst_211 = arith.constant 5.000000e-01 : f32
    %636 = vector.broadcast %cst_211 : f32 to vector<16x128xf32>
    %637 = arith.addf %635, %636 : vector<16x128xf32>
    %638 = vector.extract_strided_slice %620 {offsets = [0, 128], sizes = [16, 128], strides = [1, 1]} : vector<16x512xf32> to vector<16x128xf32>
    %cst_212 = arith.constant 5.000000e-01 : f32
    %639 = vector.broadcast %cst_212 : f32 to vector<16x128xf32>
    %640 = arith.mulf %639, %638 : vector<16x128xf32>
    %641 = math.tanh %640 : vector<16x128xf32>
    %cst_213 = arith.constant 5.000000e-01 : f32
    %642 = vector.broadcast %cst_213 : f32 to vector<16x128xf32>
    %643 = arith.mulf %642, %641 : vector<16x128xf32>
    %cst_214 = arith.constant 5.000000e-01 : f32
    %644 = vector.broadcast %cst_214 : f32 to vector<16x128xf32>
    %645 = arith.addf %643, %644 : vector<16x128xf32>
    %646 = vector.extract_strided_slice %620 {offsets = [0, 256], sizes = [16, 128], strides = [1, 1]} : vector<16x512xf32> to vector<16x128xf32>
    %647 = math.tanh %646 : vector<16x128xf32>
    %648 = vector.extract_strided_slice %620 {offsets = [0, 384], sizes = [16, 128], strides = [1, 1]} : vector<16x512xf32> to vector<16x128xf32>
    %cst_215 = arith.constant 5.000000e-01 : f32
    %649 = vector.broadcast %cst_215 : f32 to vector<16x128xf32>
    %650 = arith.mulf %649, %648 : vector<16x128xf32>
    %651 = math.tanh %650 : vector<16x128xf32>
    %cst_216 = arith.constant 5.000000e-01 : f32
    %652 = vector.broadcast %cst_216 : f32 to vector<16x128xf32>
    %653 = arith.mulf %652, %651 : vector<16x128xf32>
    %cst_217 = arith.constant 5.000000e-01 : f32
    %654 = vector.broadcast %cst_217 : f32 to vector<16x128xf32>
    %655 = arith.addf %653, %654 : vector<16x128xf32>
    %656 = arith.mulf %645, %545 : vector<16x128xf32>
    %657 = arith.mulf %637, %647 : vector<16x128xf32>
    %658 = arith.addf %656, %657 : vector<16x128xf32>
    %659 = math.tanh %658 : vector<16x128xf32>
    %660 = arith.mulf %655, %659 : vector<16x128xf32>
    %661 = vector.shape_cast %629 : vector<16x1xi1> to vector<16x1xi1>
    %662 = vector.broadcast %661 : vector<16x1xi1> to vector<16x128xi1>
    %663 = arith.select %662, %660, %542 : vector<16x128xi1>, vector<16x128xf32>
    %664 = vector.shape_cast %629 : vector<16x1xi1> to vector<16x1xi1>
    %665 = vector.broadcast %664 : vector<16x1xi1> to vector<16x128xi1>
    %666 = arith.select %665, %658, %545 : vector<16x128xi1>, vector<16x128xf32>
    %cst_218 = arith.constant 0.000000e+00 : f32
    %667 = vector.shape_cast %629 : vector<16x1xi1> to vector<16x1xi1>
    %668 = vector.broadcast %667 : vector<16x1xi1> to vector<16x128xi1>
    %669 = vector.broadcast %cst_218 : f32 to vector<16x128xf32>
    %670 = arith.select %668, %660, %669 : vector<16x128xi1>, vector<16x128xf32>
    %671 = vector.broadcast %609 : i32 to vector<16x1xi32>
    %672 = arith.cmpi sgt, %2, %671 : vector<16x1xi32>
    %673 = vector.extract_strided_slice %627 {offsets = [0, 0], sizes = [16, 128], strides = [1, 1]} : vector<16x512xf32> to vector<16x128xf32>
    %cst_219 = arith.constant 5.000000e-01 : f32
    %674 = vector.broadcast %cst_219 : f32 to vector<16x128xf32>
    %675 = arith.mulf %674, %673 : vector<16x128xf32>
    %676 = math.tanh %675 : vector<16x128xf32>
    %cst_220 = arith.constant 5.000000e-01 : f32
    %677 = vector.broadcast %cst_220 : f32 to vector<16x128xf32>
    %678 = arith.mulf %677, %676 : vector<16x128xf32>
    %cst_221 = arith.constant 5.000000e-01 : f32
    %679 = vector.broadcast %cst_221 : f32 to vector<16x128xf32>
    %680 = arith.addf %678, %679 : vector<16x128xf32>
    %681 = vector.extract_strided_slice %627 {offsets = [0, 128], sizes = [16, 128], strides = [1, 1]} : vector<16x512xf32> to vector<16x128xf32>
    %cst_222 = arith.constant 5.000000e-01 : f32
    %682 = vector.broadcast %cst_222 : f32 to vector<16x128xf32>
    %683 = arith.mulf %682, %681 : vector<16x128xf32>
    %684 = math.tanh %683 : vector<16x128xf32>
    %cst_223 = arith.constant 5.000000e-01 : f32
    %685 = vector.broadcast %cst_223 : f32 to vector<16x128xf32>
    %686 = arith.mulf %685, %684 : vector<16x128xf32>
    %cst_224 = arith.constant 5.000000e-01 : f32
    %687 = vector.broadcast %cst_224 : f32 to vector<16x128xf32>
    %688 = arith.addf %686, %687 : vector<16x128xf32>
    %689 = vector.extract_strided_slice %627 {offsets = [0, 256], sizes = [16, 128], strides = [1, 1]} : vector<16x512xf32> to vector<16x128xf32>
    %690 = math.tanh %689 : vector<16x128xf32>
    %691 = vector.extract_strided_slice %627 {offsets = [0, 384], sizes = [16, 128], strides = [1, 1]} : vector<16x512xf32> to vector<16x128xf32>
    %cst_225 = arith.constant 5.000000e-01 : f32
    %692 = vector.broadcast %cst_225 : f32 to vector<16x128xf32>
    %693 = arith.mulf %692, %691 : vector<16x128xf32>
    %694 = math.tanh %693 : vector<16x128xf32>
    %cst_226 = arith.constant 5.000000e-01 : f32
    %695 = vector.broadcast %cst_226 : f32 to vector<16x128xf32>
    %696 = arith.mulf %695, %694 : vector<16x128xf32>
    %cst_227 = arith.constant 5.000000e-01 : f32
    %697 = vector.broadcast %cst_227 : f32 to vector<16x128xf32>
    %698 = arith.addf %696, %697 : vector<16x128xf32>
    %699 = arith.mulf %688, %588 : vector<16x128xf32>
    %700 = arith.mulf %680, %690 : vector<16x128xf32>
    %701 = arith.addf %699, %700 : vector<16x128xf32>
    %702 = math.tanh %701 : vector<16x128xf32>
    %703 = arith.mulf %698, %702 : vector<16x128xf32>
    %704 = vector.shape_cast %672 : vector<16x1xi1> to vector<16x1xi1>
    %705 = vector.broadcast %704 : vector<16x1xi1> to vector<16x128xi1>
    %706 = arith.select %705, %703, %585 : vector<16x128xi1>, vector<16x128xf32>
    %707 = vector.shape_cast %672 : vector<16x1xi1> to vector<16x1xi1>
    %708 = vector.broadcast %707 : vector<16x1xi1> to vector<16x128xi1>
    %709 = arith.select %708, %701, %588 : vector<16x128xi1>, vector<16x128xf32>
    %cst_228 = arith.constant 0.000000e+00 : f32
    %710 = vector.shape_cast %672 : vector<16x1xi1> to vector<16x1xi1>
    %711 = vector.broadcast %710 : vector<16x1xi1> to vector<16x128xi1>
    %712 = vector.broadcast %cst_228 : f32 to vector<16x128xf32>
    %713 = arith.select %711, %703, %712 : vector<16x128xi1>, vector<16x128xf32>
    %714 = arith.index_cast %c5_i32 : i32 to index
    %c0_229 = arith.constant 0 : index
    %c0_230 = arith.constant 0 : index
    %715 = vector.load %arg6[%714, %c0_229, %c0_230] : memref<10x16x128xf32, #tpu.memory_space<vmem>>, vector<1x16x128xf32>
    %716 = vector.shape_cast %715 : vector<1x16x128xf32> to vector<16x128xf32>
    %717 = arith.addf %716, %670 : vector<16x128xf32>
    %718 = arith.index_cast %c5_i32 : i32 to index
    %c0_231 = arith.constant 0 : index
    %c0_232 = arith.constant 0 : index
    %719 = vector.load %arg6[%718, %c0_231, %c0_232] : memref<10x16x128xf32, #tpu.memory_space<vmem>>, vector<1x16x128xf32>
    %720 = vector.shape_cast %719 : vector<1x16x128xf32> to vector<16x128xf32>
    %721 = vector.shape_cast %717 : vector<16x128xf32> to vector<1x16x128xf32>
    tpu.vector_store %arg6[%718, %c0_231, %c0_232], %721 {strides = array<i32>} : memref<10x16x128xf32, #tpu.memory_space<vmem>>, vector<1x16x128xf32>,
    %722 = arith.index_cast %609 : i32 to index
    %c0_233 = arith.constant 0 : index
    %c0_234 = arith.constant 0 : index
    %723 = vector.load %arg6[%722, %c0_233, %c0_234] : memref<10x16x128xf32, #tpu.memory_space<vmem>>, vector<1x16x128xf32>
    %724 = vector.shape_cast %723 : vector<1x16x128xf32> to vector<16x128xf32>
    %725 = arith.addf %724, %713 : vector<16x128xf32>
    %726 = arith.index_cast %609 : i32 to index
    %c0_235 = arith.constant 0 : index
    %c0_236 = arith.constant 0 : index
    %727 = vector.load %arg6[%726, %c0_235, %c0_236] : memref<10x16x128xf32, #tpu.memory_space<vmem>>, vector<1x16x128xf32>
    %728 = vector.shape_cast %727 : vector<1x16x128xf32> to vector<16x128xf32>
    %729 = vector.shape_cast %725 : vector<16x128xf32> to vector<1x16x128xf32>
    tpu.vector_store %arg6[%726, %c0_235, %c0_236], %729 {strides = array<i32>} : memref<10x16x128xf32, #tpu.memory_space<vmem>>, vector<1x16x128xf32>,
    %c6_i32 = arith.constant 6 : i32
    %c9_i32_237 = arith.constant 9 : i32
    %730 = arith.subi %c9_i32_237, %c6_i32 : i32
    %c16_i32_238 = arith.constant 16 : i32
    %731 = arith.muli %c6_i32, %c16_i32_238 : i32
    %732 = tpu.assume_multiple %731, 16 : i32
    %c16_i32_239 = arith.constant 16 : i32
    %733 = arith.muli %730, %c16_i32_239 : i32
    %734 = tpu.assume_multiple %733, 16 : i32
    %735 = arith.index_cast %732 : i32 to index
    %c0_240 = arith.constant 0 : index
    %736 = vector.load %arg1[%735, %c0_240] : memref<160x512xbf16, #tpu.memory_space<vmem>>, vector<16x512xbf16>
    %737 = arith.extf %736 : vector<16x512xbf16> to vector<16x512xf32>
    %738 = arith.truncf %663 : vector<16x128xf32> to vector<16x128xbf16>
    %c0_241 = arith.constant 0 : index
    %c0_242 = arith.constant 0 : index
    %739 = vector.load %arg4[%c0_241, %c0_242] : memref<128x512xbf16, #tpu.memory_space<vmem>>, vector<128x512xbf16>
    %cst_243 = arith.constant dense<0.000000e+00> : vector<16x512xf32>
    %740 = tpu.matmul %738, %739, %cst_243 {dimension_numbers = #tpu.dot_dimension_numbers<[1], [0], [0], [1], [0, 0, 1, 1], [], []>} : vector<16x128xbf16>, vector<128x512xbf16>, vector<16x512xf32> -> vector<16x512xf32>
    %741 = arith.addf %737, %740 : vector<16x512xf32>
    %742 = arith.index_cast %734 : i32 to index
    %c0_244 = arith.constant 0 : index
    %743 = vector.load %arg2[%742, %c0_244] : memref<160x512xbf16, #tpu.memory_space<vmem>>, vector<16x512xbf16>
    %744 = arith.extf %743 : vector<16x512xbf16> to vector<16x512xf32>
    %745 = arith.truncf %706 : vector<16x128xf32> to vector<16x128xbf16>
    %c0_245 = arith.constant 0 : index
    %c0_246 = arith.constant 0 : index
    %746 = vector.load %arg5[%c0_245, %c0_246] : memref<128x512xbf16, #tpu.memory_space<vmem>>, vector<128x512xbf16>
    %cst_247 = arith.constant dense<0.000000e+00> : vector<16x512xf32>
    %747 = tpu.matmul %745, %746, %cst_247 {dimension_numbers = #tpu.dot_dimension_numbers<[1], [0], [0], [1], [0, 0, 1, 1], [], []>} : vector<16x128xbf16>, vector<128x512xbf16>, vector<16x512xf32> -> vector<16x512xf32>
    %748 = arith.addf %744, %747 : vector<16x512xf32>
    %749 = vector.broadcast %c6_i32 : i32 to vector<16x1xi32>
    %750 = arith.cmpi sgt, %2, %749 : vector<16x1xi32>
    %751 = vector.extract_strided_slice %741 {offsets = [0, 0], sizes = [16, 128], strides = [1, 1]} : vector<16x512xf32> to vector<16x128xf32>
    %cst_248 = arith.constant 5.000000e-01 : f32
    %752 = vector.broadcast %cst_248 : f32 to vector<16x128xf32>
    %753 = arith.mulf %752, %751 : vector<16x128xf32>
    %754 = math.tanh %753 : vector<16x128xf32>
    %cst_249 = arith.constant 5.000000e-01 : f32
    %755 = vector.broadcast %cst_249 : f32 to vector<16x128xf32>
    %756 = arith.mulf %755, %754 : vector<16x128xf32>
    %cst_250 = arith.constant 5.000000e-01 : f32
    %757 = vector.broadcast %cst_250 : f32 to vector<16x128xf32>
    %758 = arith.addf %756, %757 : vector<16x128xf32>
    %759 = vector.extract_strided_slice %741 {offsets = [0, 128], sizes = [16, 128], strides = [1, 1]} : vector<16x512xf32> to vector<16x128xf32>
    %cst_251 = arith.constant 5.000000e-01 : f32
    %760 = vector.broadcast %cst_251 : f32 to vector<16x128xf32>
    %761 = arith.mulf %760, %759 : vector<16x128xf32>
    %762 = math.tanh %761 : vector<16x128xf32>
    %cst_252 = arith.constant 5.000000e-01 : f32
    %763 = vector.broadcast %cst_252 : f32 to vector<16x128xf32>
    %764 = arith.mulf %763, %762 : vector<16x128xf32>
    %cst_253 = arith.constant 5.000000e-01 : f32
    %765 = vector.broadcast %cst_253 : f32 to vector<16x128xf32>
    %766 = arith.addf %764, %765 : vector<16x128xf32>
    %767 = vector.extract_strided_slice %741 {offsets = [0, 256], sizes = [16, 128], strides = [1, 1]} : vector<16x512xf32> to vector<16x128xf32>
    %768 = math.tanh %767 : vector<16x128xf32>
    %769 = vector.extract_strided_slice %741 {offsets = [0, 384], sizes = [16, 128], strides = [1, 1]} : vector<16x512xf32> to vector<16x128xf32>
    %cst_254 = arith.constant 5.000000e-01 : f32
    %770 = vector.broadcast %cst_254 : f32 to vector<16x128xf32>
    %771 = arith.mulf %770, %769 : vector<16x128xf32>
    %772 = math.tanh %771 : vector<16x128xf32>
    %cst_255 = arith.constant 5.000000e-01 : f32
    %773 = vector.broadcast %cst_255 : f32 to vector<16x128xf32>
    %774 = arith.mulf %773, %772 : vector<16x128xf32>
    %cst_256 = arith.constant 5.000000e-01 : f32
    %775 = vector.broadcast %cst_256 : f32 to vector<16x128xf32>
    %776 = arith.addf %774, %775 : vector<16x128xf32>
    %777 = arith.mulf %766, %666 : vector<16x128xf32>
    %778 = arith.mulf %758, %768 : vector<16x128xf32>
    %779 = arith.addf %777, %778 : vector<16x128xf32>
    %780 = math.tanh %779 : vector<16x128xf32>
    %781 = arith.mulf %776, %780 : vector<16x128xf32>
    %782 = vector.shape_cast %750 : vector<16x1xi1> to vector<16x1xi1>
    %783 = vector.broadcast %782 : vector<16x1xi1> to vector<16x128xi1>
    %784 = arith.select %783, %781, %663 : vector<16x128xi1>, vector<16x128xf32>
    %785 = vector.shape_cast %750 : vector<16x1xi1> to vector<16x1xi1>
    %786 = vector.broadcast %785 : vector<16x1xi1> to vector<16x128xi1>
    %787 = arith.select %786, %779, %666 : vector<16x128xi1>, vector<16x128xf32>
    %cst_257 = arith.constant 0.000000e+00 : f32
    %788 = vector.shape_cast %750 : vector<16x1xi1> to vector<16x1xi1>
    %789 = vector.broadcast %788 : vector<16x1xi1> to vector<16x128xi1>
    %790 = vector.broadcast %cst_257 : f32 to vector<16x128xf32>
    %791 = arith.select %789, %781, %790 : vector<16x128xi1>, vector<16x128xf32>
    %792 = vector.broadcast %730 : i32 to vector<16x1xi32>
    %793 = arith.cmpi sgt, %2, %792 : vector<16x1xi32>
    %794 = vector.extract_strided_slice %748 {offsets = [0, 0], sizes = [16, 128], strides = [1, 1]} : vector<16x512xf32> to vector<16x128xf32>
    %cst_258 = arith.constant 5.000000e-01 : f32
    %795 = vector.broadcast %cst_258 : f32 to vector<16x128xf32>
    %796 = arith.mulf %795, %794 : vector<16x128xf32>
    %797 = math.tanh %796 : vector<16x128xf32>
    %cst_259 = arith.constant 5.000000e-01 : f32
    %798 = vector.broadcast %cst_259 : f32 to vector<16x128xf32>
    %799 = arith.mulf %798, %797 : vector<16x128xf32>
    %cst_260 = arith.constant 5.000000e-01 : f32
    %800 = vector.broadcast %cst_260 : f32 to vector<16x128xf32>
    %801 = arith.addf %799, %800 : vector<16x128xf32>
    %802 = vector.extract_strided_slice %748 {offsets = [0, 128], sizes = [16, 128], strides = [1, 1]} : vector<16x512xf32> to vector<16x128xf32>
    %cst_261 = arith.constant 5.000000e-01 : f32
    %803 = vector.broadcast %cst_261 : f32 to vector<16x128xf32>
    %804 = arith.mulf %803, %802 : vector<16x128xf32>
    %805 = math.tanh %804 : vector<16x128xf32>
    %cst_262 = arith.constant 5.000000e-01 : f32
    %806 = vector.broadcast %cst_262 : f32 to vector<16x128xf32>
    %807 = arith.mulf %806, %805 : vector<16x128xf32>
    %cst_263 = arith.constant 5.000000e-01 : f32
    %808 = vector.broadcast %cst_263 : f32 to vector<16x128xf32>
    %809 = arith.addf %807, %808 : vector<16x128xf32>
    %810 = vector.extract_strided_slice %748 {offsets = [0, 256], sizes = [16, 128], strides = [1, 1]} : vector<16x512xf32> to vector<16x128xf32>
    %811 = math.tanh %810 : vector<16x128xf32>
    %812 = vector.extract_strided_slice %748 {offsets = [0, 384], sizes = [16, 128], strides = [1, 1]} : vector<16x512xf32> to vector<16x128xf32>
    %cst_264 = arith.constant 5.000000e-01 : f32
    %813 = vector.broadcast %cst_264 : f32 to vector<16x128xf32>
    %814 = arith.mulf %813, %812 : vector<16x128xf32>
    %815 = math.tanh %814 : vector<16x128xf32>
    %cst_265 = arith.constant 5.000000e-01 : f32
    %816 = vector.broadcast %cst_265 : f32 to vector<16x128xf32>
    %817 = arith.mulf %816, %815 : vector<16x128xf32>
    %cst_266 = arith.constant 5.000000e-01 : f32
    %818 = vector.broadcast %cst_266 : f32 to vector<16x128xf32>
    %819 = arith.addf %817, %818 : vector<16x128xf32>
    %820 = arith.mulf %809, %709 : vector<16x128xf32>
    %821 = arith.mulf %801, %811 : vector<16x128xf32>
    %822 = arith.addf %820, %821 : vector<16x128xf32>
    %823 = math.tanh %822 : vector<16x128xf32>
    %824 = arith.mulf %819, %823 : vector<16x128xf32>
    %825 = vector.shape_cast %793 : vector<16x1xi1> to vector<16x1xi1>
    %826 = vector.broadcast %825 : vector<16x1xi1> to vector<16x128xi1>
    %827 = arith.select %826, %824, %706 : vector<16x128xi1>, vector<16x128xf32>
    %828 = vector.shape_cast %793 : vector<16x1xi1> to vector<16x1xi1>
    %829 = vector.broadcast %828 : vector<16x1xi1> to vector<16x128xi1>
    %830 = arith.select %829, %822, %709 : vector<16x128xi1>, vector<16x128xf32>
    %cst_267 = arith.constant 0.000000e+00 : f32
    %831 = vector.shape_cast %793 : vector<16x1xi1> to vector<16x1xi1>
    %832 = vector.broadcast %831 : vector<16x1xi1> to vector<16x128xi1>
    %833 = vector.broadcast %cst_267 : f32 to vector<16x128xf32>
    %834 = arith.select %832, %824, %833 : vector<16x128xi1>, vector<16x128xf32>
    %835 = arith.index_cast %c6_i32 : i32 to index
    %c0_268 = arith.constant 0 : index
    %c0_269 = arith.constant 0 : index
    %836 = vector.load %arg6[%835, %c0_268, %c0_269] : memref<10x16x128xf32, #tpu.memory_space<vmem>>, vector<1x16x128xf32>
    %837 = vector.shape_cast %836 : vector<1x16x128xf32> to vector<16x128xf32>
    %838 = arith.addf %837, %791 : vector<16x128xf32>
    %839 = arith.index_cast %c6_i32 : i32 to index
    %c0_270 = arith.constant 0 : index
    %c0_271 = arith.constant 0 : index
    %840 = vector.load %arg6[%839, %c0_270, %c0_271] : memref<10x16x128xf32, #tpu.memory_space<vmem>>, vector<1x16x128xf32>
    %841 = vector.shape_cast %840 : vector<1x16x128xf32> to vector<16x128xf32>
    %842 = vector.shape_cast %838 : vector<16x128xf32> to vector<1x16x128xf32>
    tpu.vector_store %arg6[%839, %c0_270, %c0_271], %842 {strides = array<i32>} : memref<10x16x128xf32, #tpu.memory_space<vmem>>, vector<1x16x128xf32>,
    %843 = arith.index_cast %730 : i32 to index
    %c0_272 = arith.constant 0 : index
    %c0_273 = arith.constant 0 : index
    %844 = vector.load %arg6[%843, %c0_272, %c0_273] : memref<10x16x128xf32, #tpu.memory_space<vmem>>, vector<1x16x128xf32>
    %845 = vector.shape_cast %844 : vector<1x16x128xf32> to vector<16x128xf32>
    %846 = arith.addf %845, %834 : vector<16x128xf32>
    %847 = arith.index_cast %730 : i32 to index
    %c0_274 = arith.constant 0 : index
    %c0_275 = arith.constant 0 : index
    %848 = vector.load %arg6[%847, %c0_274, %c0_275] : memref<10x16x128xf32, #tpu.memory_space<vmem>>, vector<1x16x128xf32>
    %849 = vector.shape_cast %848 : vector<1x16x128xf32> to vector<16x128xf32>
    %850 = vector.shape_cast %846 : vector<16x128xf32> to vector<1x16x128xf32>
    tpu.vector_store %arg6[%847, %c0_274, %c0_275], %850 {strides = array<i32>} : memref<10x16x128xf32, #tpu.memory_space<vmem>>, vector<1x16x128xf32>,
    %c7_i32 = arith.constant 7 : i32
    %c9_i32_276 = arith.constant 9 : i32
    %851 = arith.subi %c9_i32_276, %c7_i32 : i32
    %c16_i32_277 = arith.constant 16 : i32
    %852 = arith.muli %c7_i32, %c16_i32_277 : i32
    %853 = tpu.assume_multiple %852, 16 : i32
    %c16_i32_278 = arith.constant 16 : i32
    %854 = arith.muli %851, %c16_i32_278 : i32
    %855 = tpu.assume_multiple %854, 16 : i32
    %856 = arith.index_cast %853 : i32 to index
    %c0_279 = arith.constant 0 : index
    %857 = vector.load %arg1[%856, %c0_279] : memref<160x512xbf16, #tpu.memory_space<vmem>>, vector<16x512xbf16>
    %858 = arith.extf %857 : vector<16x512xbf16> to vector<16x512xf32>
    %859 = arith.truncf %784 : vector<16x128xf32> to vector<16x128xbf16>
    %c0_280 = arith.constant 0 : index
    %c0_281 = arith.constant 0 : index
    %860 = vector.load %arg4[%c0_280, %c0_281] : memref<128x512xbf16, #tpu.memory_space<vmem>>, vector<128x512xbf16>
    %cst_282 = arith.constant dense<0.000000e+00> : vector<16x512xf32>
    %861 = tpu.matmul %859, %860, %cst_282 {dimension_numbers = #tpu.dot_dimension_numbers<[1], [0], [0], [1], [0, 0, 1, 1], [], []>} : vector<16x128xbf16>, vector<128x512xbf16>, vector<16x512xf32> -> vector<16x512xf32>
    %862 = arith.addf %858, %861 : vector<16x512xf32>
    %863 = arith.index_cast %855 : i32 to index
    %c0_283 = arith.constant 0 : index
    %864 = vector.load %arg2[%863, %c0_283] : memref<160x512xbf16, #tpu.memory_space<vmem>>, vector<16x512xbf16>
    %865 = arith.extf %864 : vector<16x512xbf16> to vector<16x512xf32>
    %866 = arith.truncf %827 : vector<16x128xf32> to vector<16x128xbf16>
    %c0_284 = arith.constant 0 : index
    %c0_285 = arith.constant 0 : index
    %867 = vector.load %arg5[%c0_284, %c0_285] : memref<128x512xbf16, #tpu.memory_space<vmem>>, vector<128x512xbf16>
    %cst_286 = arith.constant dense<0.000000e+00> : vector<16x512xf32>
    %868 = tpu.matmul %866, %867, %cst_286 {dimension_numbers = #tpu.dot_dimension_numbers<[1], [0], [0], [1], [0, 0, 1, 1], [], []>} : vector<16x128xbf16>, vector<128x512xbf16>, vector<16x512xf32> -> vector<16x512xf32>
    %869 = arith.addf %865, %868 : vector<16x512xf32>
    %870 = vector.broadcast %c7_i32 : i32 to vector<16x1xi32>
    %871 = arith.cmpi sgt, %2, %870 : vector<16x1xi32>
    %872 = vector.extract_strided_slice %862 {offsets = [0, 0], sizes = [16, 128], strides = [1, 1]} : vector<16x512xf32> to vector<16x128xf32>
    %cst_287 = arith.constant 5.000000e-01 : f32
    %873 = vector.broadcast %cst_287 : f32 to vector<16x128xf32>
    %874 = arith.mulf %873, %872 : vector<16x128xf32>
    %875 = math.tanh %874 : vector<16x128xf32>
    %cst_288 = arith.constant 5.000000e-01 : f32
    %876 = vector.broadcast %cst_288 : f32 to vector<16x128xf32>
    %877 = arith.mulf %876, %875 : vector<16x128xf32>
    %cst_289 = arith.constant 5.000000e-01 : f32
    %878 = vector.broadcast %cst_289 : f32 to vector<16x128xf32>
    %879 = arith.addf %877, %878 : vector<16x128xf32>
    %880 = vector.extract_strided_slice %862 {offsets = [0, 128], sizes = [16, 128], strides = [1, 1]} : vector<16x512xf32> to vector<16x128xf32>
    %cst_290 = arith.constant 5.000000e-01 : f32
    %881 = vector.broadcast %cst_290 : f32 to vector<16x128xf32>
    %882 = arith.mulf %881, %880 : vector<16x128xf32>
    %883 = math.tanh %882 : vector<16x128xf32>
    %cst_291 = arith.constant 5.000000e-01 : f32
    %884 = vector.broadcast %cst_291 : f32 to vector<16x128xf32>
    %885 = arith.mulf %884, %883 : vector<16x128xf32>
    %cst_292 = arith.constant 5.000000e-01 : f32
    %886 = vector.broadcast %cst_292 : f32 to vector<16x128xf32>
    %887 = arith.addf %885, %886 : vector<16x128xf32>
    %888 = vector.extract_strided_slice %862 {offsets = [0, 256], sizes = [16, 128], strides = [1, 1]} : vector<16x512xf32> to vector<16x128xf32>
    %889 = math.tanh %888 : vector<16x128xf32>
    %890 = vector.extract_strided_slice %862 {offsets = [0, 384], sizes = [16, 128], strides = [1, 1]} : vector<16x512xf32> to vector<16x128xf32>
    %cst_293 = arith.constant 5.000000e-01 : f32
    %891 = vector.broadcast %cst_293 : f32 to vector<16x128xf32>
    %892 = arith.mulf %891, %890 : vector<16x128xf32>
    %893 = math.tanh %892 : vector<16x128xf32>
    %cst_294 = arith.constant 5.000000e-01 : f32
    %894 = vector.broadcast %cst_294 : f32 to vector<16x128xf32>
    %895 = arith.mulf %894, %893 : vector<16x128xf32>
    %cst_295 = arith.constant 5.000000e-01 : f32
    %896 = vector.broadcast %cst_295 : f32 to vector<16x128xf32>
    %897 = arith.addf %895, %896 : vector<16x128xf32>
    %898 = arith.mulf %887, %787 : vector<16x128xf32>
    %899 = arith.mulf %879, %889 : vector<16x128xf32>
    %900 = arith.addf %898, %899 : vector<16x128xf32>
    %901 = math.tanh %900 : vector<16x128xf32>
    %902 = arith.mulf %897, %901 : vector<16x128xf32>
    %903 = vector.shape_cast %871 : vector<16x1xi1> to vector<16x1xi1>
    %904 = vector.broadcast %903 : vector<16x1xi1> to vector<16x128xi1>
    %905 = arith.select %904, %902, %784 : vector<16x128xi1>, vector<16x128xf32>
    %906 = vector.shape_cast %871 : vector<16x1xi1> to vector<16x1xi1>
    %907 = vector.broadcast %906 : vector<16x1xi1> to vector<16x128xi1>
    %908 = arith.select %907, %900, %787 : vector<16x128xi1>, vector<16x128xf32>
    %cst_296 = arith.constant 0.000000e+00 : f32
    %909 = vector.shape_cast %871 : vector<16x1xi1> to vector<16x1xi1>
    %910 = vector.broadcast %909 : vector<16x1xi1> to vector<16x128xi1>
    %911 = vector.broadcast %cst_296 : f32 to vector<16x128xf32>
    %912 = arith.select %910, %902, %911 : vector<16x128xi1>, vector<16x128xf32>
    %913 = vector.broadcast %851 : i32 to vector<16x1xi32>
    %914 = arith.cmpi sgt, %2, %913 : vector<16x1xi32>
    %915 = vector.extract_strided_slice %869 {offsets = [0, 0], sizes = [16, 128], strides = [1, 1]} : vector<16x512xf32> to vector<16x128xf32>
    %cst_297 = arith.constant 5.000000e-01 : f32
    %916 = vector.broadcast %cst_297 : f32 to vector<16x128xf32>
    %917 = arith.mulf %916, %915 : vector<16x128xf32>
    %918 = math.tanh %917 : vector<16x128xf32>
    %cst_298 = arith.constant 5.000000e-01 : f32
    %919 = vector.broadcast %cst_298 : f32 to vector<16x128xf32>
    %920 = arith.mulf %919, %918 : vector<16x128xf32>
    %cst_299 = arith.constant 5.000000e-01 : f32
    %921 = vector.broadcast %cst_299 : f32 to vector<16x128xf32>
    %922 = arith.addf %920, %921 : vector<16x128xf32>
    %923 = vector.extract_strided_slice %869 {offsets = [0, 128], sizes = [16, 128], strides = [1, 1]} : vector<16x512xf32> to vector<16x128xf32>
    %cst_300 = arith.constant 5.000000e-01 : f32
    %924 = vector.broadcast %cst_300 : f32 to vector<16x128xf32>
    %925 = arith.mulf %924, %923 : vector<16x128xf32>
    %926 = math.tanh %925 : vector<16x128xf32>
    %cst_301 = arith.constant 5.000000e-01 : f32
    %927 = vector.broadcast %cst_301 : f32 to vector<16x128xf32>
    %928 = arith.mulf %927, %926 : vector<16x128xf32>
    %cst_302 = arith.constant 5.000000e-01 : f32
    %929 = vector.broadcast %cst_302 : f32 to vector<16x128xf32>
    %930 = arith.addf %928, %929 : vector<16x128xf32>
    %931 = vector.extract_strided_slice %869 {offsets = [0, 256], sizes = [16, 128], strides = [1, 1]} : vector<16x512xf32> to vector<16x128xf32>
    %932 = math.tanh %931 : vector<16x128xf32>
    %933 = vector.extract_strided_slice %869 {offsets = [0, 384], sizes = [16, 128], strides = [1, 1]} : vector<16x512xf32> to vector<16x128xf32>
    %cst_303 = arith.constant 5.000000e-01 : f32
    %934 = vector.broadcast %cst_303 : f32 to vector<16x128xf32>
    %935 = arith.mulf %934, %933 : vector<16x128xf32>
    %936 = math.tanh %935 : vector<16x128xf32>
    %cst_304 = arith.constant 5.000000e-01 : f32
    %937 = vector.broadcast %cst_304 : f32 to vector<16x128xf32>
    %938 = arith.mulf %937, %936 : vector<16x128xf32>
    %cst_305 = arith.constant 5.000000e-01 : f32
    %939 = vector.broadcast %cst_305 : f32 to vector<16x128xf32>
    %940 = arith.addf %938, %939 : vector<16x128xf32>
    %941 = arith.mulf %930, %830 : vector<16x128xf32>
    %942 = arith.mulf %922, %932 : vector<16x128xf32>
    %943 = arith.addf %941, %942 : vector<16x128xf32>
    %944 = math.tanh %943 : vector<16x128xf32>
    %945 = arith.mulf %940, %944 : vector<16x128xf32>
    %946 = vector.shape_cast %914 : vector<16x1xi1> to vector<16x1xi1>
    %947 = vector.broadcast %946 : vector<16x1xi1> to vector<16x128xi1>
    %948 = arith.select %947, %945, %827 : vector<16x128xi1>, vector<16x128xf32>
    %949 = vector.shape_cast %914 : vector<16x1xi1> to vector<16x1xi1>
    %950 = vector.broadcast %949 : vector<16x1xi1> to vector<16x128xi1>
    %951 = arith.select %950, %943, %830 : vector<16x128xi1>, vector<16x128xf32>
    %cst_306 = arith.constant 0.000000e+00 : f32
    %952 = vector.shape_cast %914 : vector<16x1xi1> to vector<16x1xi1>
    %953 = vector.broadcast %952 : vector<16x1xi1> to vector<16x128xi1>
    %954 = vector.broadcast %cst_306 : f32 to vector<16x128xf32>
    %955 = arith.select %953, %945, %954 : vector<16x128xi1>, vector<16x128xf32>
    %956 = arith.index_cast %c7_i32 : i32 to index
    %c0_307 = arith.constant 0 : index
    %c0_308 = arith.constant 0 : index
    %957 = vector.load %arg6[%956, %c0_307, %c0_308] : memref<10x16x128xf32, #tpu.memory_space<vmem>>, vector<1x16x128xf32>
    %958 = vector.shape_cast %957 : vector<1x16x128xf32> to vector<16x128xf32>
    %959 = arith.addf %958, %912 : vector<16x128xf32>
    %960 = arith.index_cast %c7_i32 : i32 to index
    %c0_309 = arith.constant 0 : index
    %c0_310 = arith.constant 0 : index
    %961 = vector.load %arg6[%960, %c0_309, %c0_310] : memref<10x16x128xf32, #tpu.memory_space<vmem>>, vector<1x16x128xf32>
    %962 = vector.shape_cast %961 : vector<1x16x128xf32> to vector<16x128xf32>
    %963 = vector.shape_cast %959 : vector<16x128xf32> to vector<1x16x128xf32>
    tpu.vector_store %arg6[%960, %c0_309, %c0_310], %963 {strides = array<i32>} : memref<10x16x128xf32, #tpu.memory_space<vmem>>, vector<1x16x128xf32>,
    %964 = arith.index_cast %851 : i32 to index
    %c0_311 = arith.constant 0 : index
    %c0_312 = arith.constant 0 : index
    %965 = vector.load %arg6[%964, %c0_311, %c0_312] : memref<10x16x128xf32, #tpu.memory_space<vmem>>, vector<1x16x128xf32>
    %966 = vector.shape_cast %965 : vector<1x16x128xf32> to vector<16x128xf32>
    %967 = arith.addf %966, %955 : vector<16x128xf32>
    %968 = arith.index_cast %851 : i32 to index
    %c0_313 = arith.constant 0 : index
    %c0_314 = arith.constant 0 : index
    %969 = vector.load %arg6[%968, %c0_313, %c0_314] : memref<10x16x128xf32, #tpu.memory_space<vmem>>, vector<1x16x128xf32>
    %970 = vector.shape_cast %969 : vector<1x16x128xf32> to vector<16x128xf32>
    %971 = vector.shape_cast %967 : vector<16x128xf32> to vector<1x16x128xf32>
    tpu.vector_store %arg6[%968, %c0_313, %c0_314], %971 {strides = array<i32>} : memref<10x16x128xf32, #tpu.memory_space<vmem>>, vector<1x16x128xf32>,
    %c8_i32 = arith.constant 8 : i32
    %c9_i32_315 = arith.constant 9 : i32
    %972 = arith.subi %c9_i32_315, %c8_i32 : i32
    %c16_i32_316 = arith.constant 16 : i32
    %973 = arith.muli %c8_i32, %c16_i32_316 : i32
    %974 = tpu.assume_multiple %973, 16 : i32
    %c16_i32_317 = arith.constant 16 : i32
    %975 = arith.muli %972, %c16_i32_317 : i32
    %976 = tpu.assume_multiple %975, 16 : i32
    %977 = arith.index_cast %974 : i32 to index
    %c0_318 = arith.constant 0 : index
    %978 = vector.load %arg1[%977, %c0_318] : memref<160x512xbf16, #tpu.memory_space<vmem>>, vector<16x512xbf16>
    %979 = arith.extf %978 : vector<16x512xbf16> to vector<16x512xf32>
    %980 = arith.truncf %905 : vector<16x128xf32> to vector<16x128xbf16>
    %c0_319 = arith.constant 0 : index
    %c0_320 = arith.constant 0 : index
    %981 = vector.load %arg4[%c0_319, %c0_320] : memref<128x512xbf16, #tpu.memory_space<vmem>>, vector<128x512xbf16>
    %cst_321 = arith.constant dense<0.000000e+00> : vector<16x512xf32>
    %982 = tpu.matmul %980, %981, %cst_321 {dimension_numbers = #tpu.dot_dimension_numbers<[1], [0], [0], [1], [0, 0, 1, 1], [], []>} : vector<16x128xbf16>, vector<128x512xbf16>, vector<16x512xf32> -> vector<16x512xf32>
    %983 = arith.addf %979, %982 : vector<16x512xf32>
    %984 = arith.index_cast %976 : i32 to index
    %c0_322 = arith.constant 0 : index
    %985 = vector.load %arg2[%984, %c0_322] : memref<160x512xbf16, #tpu.memory_space<vmem>>, vector<16x512xbf16>
    %986 = arith.extf %985 : vector<16x512xbf16> to vector<16x512xf32>
    %987 = arith.truncf %948 : vector<16x128xf32> to vector<16x128xbf16>
    %c0_323 = arith.constant 0 : index
    %c0_324 = arith.constant 0 : index
    %988 = vector.load %arg5[%c0_323, %c0_324] : memref<128x512xbf16, #tpu.memory_space<vmem>>, vector<128x512xbf16>
    %cst_325 = arith.constant dense<0.000000e+00> : vector<16x512xf32>
    %989 = tpu.matmul %987, %988, %cst_325 {dimension_numbers = #tpu.dot_dimension_numbers<[1], [0], [0], [1], [0, 0, 1, 1], [], []>} : vector<16x128xbf16>, vector<128x512xbf16>, vector<16x512xf32> -> vector<16x512xf32>
    %990 = arith.addf %986, %989 : vector<16x512xf32>
    %991 = vector.broadcast %c8_i32 : i32 to vector<16x1xi32>
    %992 = arith.cmpi sgt, %2, %991 : vector<16x1xi32>
    %993 = vector.extract_strided_slice %983 {offsets = [0, 0], sizes = [16, 128], strides = [1, 1]} : vector<16x512xf32> to vector<16x128xf32>
    %cst_326 = arith.constant 5.000000e-01 : f32
    %994 = vector.broadcast %cst_326 : f32 to vector<16x128xf32>
    %995 = arith.mulf %994, %993 : vector<16x128xf32>
    %996 = math.tanh %995 : vector<16x128xf32>
    %cst_327 = arith.constant 5.000000e-01 : f32
    %997 = vector.broadcast %cst_327 : f32 to vector<16x128xf32>
    %998 = arith.mulf %997, %996 : vector<16x128xf32>
    %cst_328 = arith.constant 5.000000e-01 : f32
    %999 = vector.broadcast %cst_328 : f32 to vector<16x128xf32>
    %1000 = arith.addf %998, %999 : vector<16x128xf32>
    %1001 = vector.extract_strided_slice %983 {offsets = [0, 128], sizes = [16, 128], strides = [1, 1]} : vector<16x512xf32> to vector<16x128xf32>
    %cst_329 = arith.constant 5.000000e-01 : f32
    %1002 = vector.broadcast %cst_329 : f32 to vector<16x128xf32>
    %1003 = arith.mulf %1002, %1001 : vector<16x128xf32>
    %1004 = math.tanh %1003 : vector<16x128xf32>
    %cst_330 = arith.constant 5.000000e-01 : f32
    %1005 = vector.broadcast %cst_330 : f32 to vector<16x128xf32>
    %1006 = arith.mulf %1005, %1004 : vector<16x128xf32>
    %cst_331 = arith.constant 5.000000e-01 : f32
    %1007 = vector.broadcast %cst_331 : f32 to vector<16x128xf32>
    %1008 = arith.addf %1006, %1007 : vector<16x128xf32>
    %1009 = vector.extract_strided_slice %983 {offsets = [0, 256], sizes = [16, 128], strides = [1, 1]} : vector<16x512xf32> to vector<16x128xf32>
    %1010 = math.tanh %1009 : vector<16x128xf32>
    %1011 = vector.extract_strided_slice %983 {offsets = [0, 384], sizes = [16, 128], strides = [1, 1]} : vector<16x512xf32> to vector<16x128xf32>
    %cst_332 = arith.constant 5.000000e-01 : f32
    %1012 = vector.broadcast %cst_332 : f32 to vector<16x128xf32>
    %1013 = arith.mulf %1012, %1011 : vector<16x128xf32>
    %1014 = math.tanh %1013 : vector<16x128xf32>
    %cst_333 = arith.constant 5.000000e-01 : f32
    %1015 = vector.broadcast %cst_333 : f32 to vector<16x128xf32>
    %1016 = arith.mulf %1015, %1014 : vector<16x128xf32>
    %cst_334 = arith.constant 5.000000e-01 : f32
    %1017 = vector.broadcast %cst_334 : f32 to vector<16x128xf32>
    %1018 = arith.addf %1016, %1017 : vector<16x128xf32>
    %1019 = arith.mulf %1008, %908 : vector<16x128xf32>
    %1020 = arith.mulf %1000, %1010 : vector<16x128xf32>
    %1021 = arith.addf %1019, %1020 : vector<16x128xf32>
    %1022 = math.tanh %1021 : vector<16x128xf32>
    %1023 = arith.mulf %1018, %1022 : vector<16x128xf32>
    %1024 = vector.shape_cast %992 : vector<16x1xi1> to vector<16x1xi1>
    %1025 = vector.broadcast %1024 : vector<16x1xi1> to vector<16x128xi1>
    %1026 = arith.select %1025, %1023, %905 : vector<16x128xi1>, vector<16x128xf32>
    %1027 = vector.shape_cast %992 : vector<16x1xi1> to vector<16x1xi1>
    %1028 = vector.broadcast %1027 : vector<16x1xi1> to vector<16x128xi1>
    %1029 = arith.select %1028, %1021, %908 : vector<16x128xi1>, vector<16x128xf32>
    %cst_335 = arith.constant 0.000000e+00 : f32
    %1030 = vector.shape_cast %992 : vector<16x1xi1> to vector<16x1xi1>
    %1031 = vector.broadcast %1030 : vector<16x1xi1> to vector<16x128xi1>
    %1032 = vector.broadcast %cst_335 : f32 to vector<16x128xf32>
    %1033 = arith.select %1031, %1023, %1032 : vector<16x128xi1>, vector<16x128xf32>
    %1034 = vector.broadcast %972 : i32 to vector<16x1xi32>
    %1035 = arith.cmpi sgt, %2, %1034 : vector<16x1xi32>
    %1036 = vector.extract_strided_slice %990 {offsets = [0, 0], sizes = [16, 128], strides = [1, 1]} : vector<16x512xf32> to vector<16x128xf32>
    %cst_336 = arith.constant 5.000000e-01 : f32
    %1037 = vector.broadcast %cst_336 : f32 to vector<16x128xf32>
    %1038 = arith.mulf %1037, %1036 : vector<16x128xf32>
    %1039 = math.tanh %1038 : vector<16x128xf32>
    %cst_337 = arith.constant 5.000000e-01 : f32
    %1040 = vector.broadcast %cst_337 : f32 to vector<16x128xf32>
    %1041 = arith.mulf %1040, %1039 : vector<16x128xf32>
    %cst_338 = arith.constant 5.000000e-01 : f32
    %1042 = vector.broadcast %cst_338 : f32 to vector<16x128xf32>
    %1043 = arith.addf %1041, %1042 : vector<16x128xf32>
    %1044 = vector.extract_strided_slice %990 {offsets = [0, 128], sizes = [16, 128], strides = [1, 1]} : vector<16x512xf32> to vector<16x128xf32>
    %cst_339 = arith.constant 5.000000e-01 : f32
    %1045 = vector.broadcast %cst_339 : f32 to vector<16x128xf32>
    %1046 = arith.mulf %1045, %1044 : vector<16x128xf32>
    %1047 = math.tanh %1046 : vector<16x128xf32>
    %cst_340 = arith.constant 5.000000e-01 : f32
    %1048 = vector.broadcast %cst_340 : f32 to vector<16x128xf32>
    %1049 = arith.mulf %1048, %1047 : vector<16x128xf32>
    %cst_341 = arith.constant 5.000000e-01 : f32
    %1050 = vector.broadcast %cst_341 : f32 to vector<16x128xf32>
    %1051 = arith.addf %1049, %1050 : vector<16x128xf32>
    %1052 = vector.extract_strided_slice %990 {offsets = [0, 256], sizes = [16, 128], strides = [1, 1]} : vector<16x512xf32> to vector<16x128xf32>
    %1053 = math.tanh %1052 : vector<16x128xf32>
    %1054 = vector.extract_strided_slice %990 {offsets = [0, 384], sizes = [16, 128], strides = [1, 1]} : vector<16x512xf32> to vector<16x128xf32>
    %cst_342 = arith.constant 5.000000e-01 : f32
    %1055 = vector.broadcast %cst_342 : f32 to vector<16x128xf32>
    %1056 = arith.mulf %1055, %1054 : vector<16x128xf32>
    %1057 = math.tanh %1056 : vector<16x128xf32>
    %cst_343 = arith.constant 5.000000e-01 : f32
    %1058 = vector.broadcast %cst_343 : f32 to vector<16x128xf32>
    %1059 = arith.mulf %1058, %1057 : vector<16x128xf32>
    %cst_344 = arith.constant 5.000000e-01 : f32
    %1060 = vector.broadcast %cst_344 : f32 to vector<16x128xf32>
    %1061 = arith.addf %1059, %1060 : vector<16x128xf32>
    %1062 = arith.mulf %1051, %951 : vector<16x128xf32>
    %1063 = arith.mulf %1043, %1053 : vector<16x128xf32>
    %1064 = arith.addf %1062, %1063 : vector<16x128xf32>
    %1065 = math.tanh %1064 : vector<16x128xf32>
    %1066 = arith.mulf %1061, %1065 : vector<16x128xf32>
    %1067 = vector.shape_cast %1035 : vector<16x1xi1> to vector<16x1xi1>
    %1068 = vector.broadcast %1067 : vector<16x1xi1> to vector<16x128xi1>
    %1069 = arith.select %1068, %1066, %948 : vector<16x128xi1>, vector<16x128xf32>
    %1070 = vector.shape_cast %1035 : vector<16x1xi1> to vector<16x1xi1>
    %1071 = vector.broadcast %1070 : vector<16x1xi1> to vector<16x128xi1>
    %1072 = arith.select %1071, %1064, %951 : vector<16x128xi1>, vector<16x128xf32>
    %cst_345 = arith.constant 0.000000e+00 : f32
    %1073 = vector.shape_cast %1035 : vector<16x1xi1> to vector<16x1xi1>
    %1074 = vector.broadcast %1073 : vector<16x1xi1> to vector<16x128xi1>
    %1075 = vector.broadcast %cst_345 : f32 to vector<16x128xf32>
    %1076 = arith.select %1074, %1066, %1075 : vector<16x128xi1>, vector<16x128xf32>
    %1077 = arith.index_cast %c8_i32 : i32 to index
    %c0_346 = arith.constant 0 : index
    %c0_347 = arith.constant 0 : index
    %1078 = vector.load %arg6[%1077, %c0_346, %c0_347] : memref<10x16x128xf32, #tpu.memory_space<vmem>>, vector<1x16x128xf32>
    %1079 = vector.shape_cast %1078 : vector<1x16x128xf32> to vector<16x128xf32>
    %1080 = arith.addf %1079, %1033 : vector<16x128xf32>
    %1081 = arith.index_cast %c8_i32 : i32 to index
    %c0_348 = arith.constant 0 : index
    %c0_349 = arith.constant 0 : index
    %1082 = vector.load %arg6[%1081, %c0_348, %c0_349] : memref<10x16x128xf32, #tpu.memory_space<vmem>>, vector<1x16x128xf32>
    %1083 = vector.shape_cast %1082 : vector<1x16x128xf32> to vector<16x128xf32>
    %1084 = vector.shape_cast %1080 : vector<16x128xf32> to vector<1x16x128xf32>
    tpu.vector_store %arg6[%1081, %c0_348, %c0_349], %1084 {strides = array<i32>} : memref<10x16x128xf32, #tpu.memory_space<vmem>>, vector<1x16x128xf32>,
    %1085 = arith.index_cast %972 : i32 to index
    %c0_350 = arith.constant 0 : index
    %c0_351 = arith.constant 0 : index
    %1086 = vector.load %arg6[%1085, %c0_350, %c0_351] : memref<10x16x128xf32, #tpu.memory_space<vmem>>, vector<1x16x128xf32>
    %1087 = vector.shape_cast %1086 : vector<1x16x128xf32> to vector<16x128xf32>
    %1088 = arith.addf %1087, %1076 : vector<16x128xf32>
    %1089 = arith.index_cast %972 : i32 to index
    %c0_352 = arith.constant 0 : index
    %c0_353 = arith.constant 0 : index
    %1090 = vector.load %arg6[%1089, %c0_352, %c0_353] : memref<10x16x128xf32, #tpu.memory_space<vmem>>, vector<1x16x128xf32>
    %1091 = vector.shape_cast %1090 : vector<1x16x128xf32> to vector<16x128xf32>
    %1092 = vector.shape_cast %1088 : vector<16x128xf32> to vector<1x16x128xf32>
    tpu.vector_store %arg6[%1089, %c0_352, %c0_353], %1092 {strides = array<i32>} : memref<10x16x128xf32, #tpu.memory_space<vmem>>, vector<1x16x128xf32>,
    %c9_i32_354 = arith.constant 9 : i32
    %c9_i32_355 = arith.constant 9 : i32
    %1093 = arith.subi %c9_i32_355, %c9_i32_354 : i32
    %c16_i32_356 = arith.constant 16 : i32
    %1094 = arith.muli %c9_i32_354, %c16_i32_356 : i32
    %1095 = tpu.assume_multiple %1094, 16 : i32
    %c16_i32_357 = arith.constant 16 : i32
    %1096 = arith.muli %1093, %c16_i32_357 : i32
    %1097 = tpu.assume_multiple %1096, 16 : i32
    %1098 = arith.index_cast %1095 : i32 to index
    %c0_358 = arith.constant 0 : index
    %1099 = vector.load %arg1[%1098, %c0_358] : memref<160x512xbf16, #tpu.memory_space<vmem>>, vector<16x512xbf16>
    %1100 = arith.extf %1099 : vector<16x512xbf16> to vector<16x512xf32>
    %1101 = arith.truncf %1026 : vector<16x128xf32> to vector<16x128xbf16>
    %c0_359 = arith.constant 0 : index
    %c0_360 = arith.constant 0 : index
    %1102 = vector.load %arg4[%c0_359, %c0_360] : memref<128x512xbf16, #tpu.memory_space<vmem>>, vector<128x512xbf16>
    %cst_361 = arith.constant dense<0.000000e+00> : vector<16x512xf32>
    %1103 = tpu.matmul %1101, %1102, %cst_361 {dimension_numbers = #tpu.dot_dimension_numbers<[1], [0], [0], [1], [0, 0, 1, 1], [], []>} : vector<16x128xbf16>, vector<128x512xbf16>, vector<16x512xf32> -> vector<16x512xf32>
    %1104 = arith.addf %1100, %1103 : vector<16x512xf32>
    %1105 = arith.index_cast %1097 : i32 to index
    %c0_362 = arith.constant 0 : index
    %1106 = vector.load %arg2[%1105, %c0_362] : memref<160x512xbf16, #tpu.memory_space<vmem>>, vector<16x512xbf16>
    %1107 = arith.extf %1106 : vector<16x512xbf16> to vector<16x512xf32>
    %1108 = arith.truncf %1069 : vector<16x128xf32> to vector<16x128xbf16>
    %c0_363 = arith.constant 0 : index
    %c0_364 = arith.constant 0 : index
    %1109 = vector.load %arg5[%c0_363, %c0_364] : memref<128x512xbf16, #tpu.memory_space<vmem>>, vector<128x512xbf16>
    %cst_365 = arith.constant dense<0.000000e+00> : vector<16x512xf32>
    %1110 = tpu.matmul %1108, %1109, %cst_365 {dimension_numbers = #tpu.dot_dimension_numbers<[1], [0], [0], [1], [0, 0, 1, 1], [], []>} : vector<16x128xbf16>, vector<128x512xbf16>, vector<16x512xf32> -> vector<16x512xf32>
    %1111 = arith.addf %1107, %1110 : vector<16x512xf32>
    %1112 = vector.broadcast %c9_i32_354 : i32 to vector<16x1xi32>
    %1113 = arith.cmpi sgt, %2, %1112 : vector<16x1xi32>
    %1114 = vector.extract_strided_slice %1104 {offsets = [0, 0], sizes = [16, 128], strides = [1, 1]} : vector<16x512xf32> to vector<16x128xf32>
    %cst_366 = arith.constant 5.000000e-01 : f32
    %1115 = vector.broadcast %cst_366 : f32 to vector<16x128xf32>
    %1116 = arith.mulf %1115, %1114 : vector<16x128xf32>
    %1117 = math.tanh %1116 : vector<16x128xf32>
    %cst_367 = arith.constant 5.000000e-01 : f32
    %1118 = vector.broadcast %cst_367 : f32 to vector<16x128xf32>
    %1119 = arith.mulf %1118, %1117 : vector<16x128xf32>
    %cst_368 = arith.constant 5.000000e-01 : f32
    %1120 = vector.broadcast %cst_368 : f32 to vector<16x128xf32>
    %1121 = arith.addf %1119, %1120 : vector<16x128xf32>
    %1122 = vector.extract_strided_slice %1104 {offsets = [0, 128], sizes = [16, 128], strides = [1, 1]} : vector<16x512xf32> to vector<16x128xf32>
    %cst_369 = arith.constant 5.000000e-01 : f32
    %1123 = vector.broadcast %cst_369 : f32 to vector<16x128xf32>
    %1124 = arith.mulf %1123, %1122 : vector<16x128xf32>
    %1125 = math.tanh %1124 : vector<16x128xf32>
    %cst_370 = arith.constant 5.000000e-01 : f32
    %1126 = vector.broadcast %cst_370 : f32 to vector<16x128xf32>
    %1127 = arith.mulf %1126, %1125 : vector<16x128xf32>
    %cst_371 = arith.constant 5.000000e-01 : f32
    %1128 = vector.broadcast %cst_371 : f32 to vector<16x128xf32>
    %1129 = arith.addf %1127, %1128 : vector<16x128xf32>
    %1130 = vector.extract_strided_slice %1104 {offsets = [0, 256], sizes = [16, 128], strides = [1, 1]} : vector<16x512xf32> to vector<16x128xf32>
    %1131 = math.tanh %1130 : vector<16x128xf32>
    %1132 = vector.extract_strided_slice %1104 {offsets = [0, 384], sizes = [16, 128], strides = [1, 1]} : vector<16x512xf32> to vector<16x128xf32>
    %cst_372 = arith.constant 5.000000e-01 : f32
    %1133 = vector.broadcast %cst_372 : f32 to vector<16x128xf32>
    %1134 = arith.mulf %1133, %1132 : vector<16x128xf32>
    %1135 = math.tanh %1134 : vector<16x128xf32>
    %cst_373 = arith.constant 5.000000e-01 : f32
    %1136 = vector.broadcast %cst_373 : f32 to vector<16x128xf32>
    %1137 = arith.mulf %1136, %1135 : vector<16x128xf32>
    %cst_374 = arith.constant 5.000000e-01 : f32
    %1138 = vector.broadcast %cst_374 : f32 to vector<16x128xf32>
    %1139 = arith.addf %1137, %1138 : vector<16x128xf32>
    %1140 = arith.mulf %1129, %1029 : vector<16x128xf32>
    %1141 = arith.mulf %1121, %1131 : vector<16x128xf32>
    %1142 = arith.addf %1140, %1141 : vector<16x128xf32>
    %1143 = math.tanh %1142 : vector<16x128xf32>
    %1144 = arith.mulf %1139, %1143 : vector<16x128xf32>
    %1145 = vector.shape_cast %1113 : vector<16x1xi1> to vector<16x1xi1>
    %1146 = vector.broadcast %1145 : vector<16x1xi1> to vector<16x128xi1>
    %1147 = arith.select %1146, %1144, %1026 : vector<16x128xi1>, vector<16x128xf32>
    %1148 = vector.shape_cast %1113 : vector<16x1xi1> to vector<16x1xi1>
    %1149 = vector.broadcast %1148 : vector<16x1xi1> to vector<16x128xi1>
    %1150 = arith.select %1149, %1142, %1029 : vector<16x128xi1>, vector<16x128xf32>
    %cst_375 = arith.constant 0.000000e+00 : f32
    %1151 = vector.shape_cast %1113 : vector<16x1xi1> to vector<16x1xi1>
    %1152 = vector.broadcast %1151 : vector<16x1xi1> to vector<16x128xi1>
    %1153 = vector.broadcast %cst_375 : f32 to vector<16x128xf32>
    %1154 = arith.select %1152, %1144, %1153 : vector<16x128xi1>, vector<16x128xf32>
    %1155 = vector.broadcast %1093 : i32 to vector<16x1xi32>
    %1156 = arith.cmpi sgt, %2, %1155 : vector<16x1xi32>
    %1157 = vector.extract_strided_slice %1111 {offsets = [0, 0], sizes = [16, 128], strides = [1, 1]} : vector<16x512xf32> to vector<16x128xf32>
    %cst_376 = arith.constant 5.000000e-01 : f32
    %1158 = vector.broadcast %cst_376 : f32 to vector<16x128xf32>
    %1159 = arith.mulf %1158, %1157 : vector<16x128xf32>
    %1160 = math.tanh %1159 : vector<16x128xf32>
    %cst_377 = arith.constant 5.000000e-01 : f32
    %1161 = vector.broadcast %cst_377 : f32 to vector<16x128xf32>
    %1162 = arith.mulf %1161, %1160 : vector<16x128xf32>
    %cst_378 = arith.constant 5.000000e-01 : f32
    %1163 = vector.broadcast %cst_378 : f32 to vector<16x128xf32>
    %1164 = arith.addf %1162, %1163 : vector<16x128xf32>
    %1165 = vector.extract_strided_slice %1111 {offsets = [0, 128], sizes = [16, 128], strides = [1, 1]} : vector<16x512xf32> to vector<16x128xf32>
    %cst_379 = arith.constant 5.000000e-01 : f32
    %1166 = vector.broadcast %cst_379 : f32 to vector<16x128xf32>
    %1167 = arith.mulf %1166, %1165 : vector<16x128xf32>
    %1168 = math.tanh %1167 : vector<16x128xf32>
    %cst_380 = arith.constant 5.000000e-01 : f32
    %1169 = vector.broadcast %cst_380 : f32 to vector<16x128xf32>
    %1170 = arith.mulf %1169, %1168 : vector<16x128xf32>
    %cst_381 = arith.constant 5.000000e-01 : f32
    %1171 = vector.broadcast %cst_381 : f32 to vector<16x128xf32>
    %1172 = arith.addf %1170, %1171 : vector<16x128xf32>
    %1173 = vector.extract_strided_slice %1111 {offsets = [0, 256], sizes = [16, 128], strides = [1, 1]} : vector<16x512xf32> to vector<16x128xf32>
    %1174 = math.tanh %1173 : vector<16x128xf32>
    %1175 = vector.extract_strided_slice %1111 {offsets = [0, 384], sizes = [16, 128], strides = [1, 1]} : vector<16x512xf32> to vector<16x128xf32>
    %cst_382 = arith.constant 5.000000e-01 : f32
    %1176 = vector.broadcast %cst_382 : f32 to vector<16x128xf32>
    %1177 = arith.mulf %1176, %1175 : vector<16x128xf32>
    %1178 = math.tanh %1177 : vector<16x128xf32>
    %cst_383 = arith.constant 5.000000e-01 : f32
    %1179 = vector.broadcast %cst_383 : f32 to vector<16x128xf32>
    %1180 = arith.mulf %1179, %1178 : vector<16x128xf32>
    %cst_384 = arith.constant 5.000000e-01 : f32
    %1181 = vector.broadcast %cst_384 : f32 to vector<16x128xf32>
    %1182 = arith.addf %1180, %1181 : vector<16x128xf32>
    %1183 = arith.mulf %1172, %1072 : vector<16x128xf32>
    %1184 = arith.mulf %1164, %1174 : vector<16x128xf32>
    %1185 = arith.addf %1183, %1184 : vector<16x128xf32>
    %1186 = math.tanh %1185 : vector<16x128xf32>
    %1187 = arith.mulf %1182, %1186 : vector<16x128xf32>
    %1188 = vector.shape_cast %1156 : vector<16x1xi1> to vector<16x1xi1>
    %1189 = vector.broadcast %1188 : vector<16x1xi1> to vector<16x128xi1>
    %1190 = arith.select %1189, %1187, %1069 : vector<16x128xi1>, vector<16x128xf32>
    %1191 = vector.shape_cast %1156 : vector<16x1xi1> to vector<16x1xi1>
    %1192 = vector.broadcast %1191 : vector<16x1xi1> to vector<16x128xi1>
    %1193 = arith.select %1192, %1185, %1072 : vector<16x128xi1>, vector<16x128xf32>
    %cst_385 = arith.constant 0.000000e+00 : f32
    %1194 = vector.shape_cast %1156 : vector<16x1xi1> to vector<16x1xi1>
    %1195 = vector.broadcast %1194 : vector<16x1xi1> to vector<16x128xi1>
    %1196 = vector.broadcast %cst_385 : f32 to vector<16x128xf32>
    %1197 = arith.select %1195, %1187, %1196 : vector<16x128xi1>, vector<16x128xf32>
    %1198 = arith.index_cast %c9_i32_354 : i32 to index
    %c0_386 = arith.constant 0 : index
    %c0_387 = arith.constant 0 : index
    %1199 = vector.load %arg6[%1198, %c0_386, %c0_387] : memref<10x16x128xf32, #tpu.memory_space<vmem>>, vector<1x16x128xf32>
    %1200 = vector.shape_cast %1199 : vector<1x16x128xf32> to vector<16x128xf32>
    %1201 = arith.addf %1200, %1154 : vector<16x128xf32>
    %1202 = arith.index_cast %c9_i32_354 : i32 to index
    %c0_388 = arith.constant 0 : index
    %c0_389 = arith.constant 0 : index
    %1203 = vector.load %arg6[%1202, %c0_388, %c0_389] : memref<10x16x128xf32, #tpu.memory_space<vmem>>, vector<1x16x128xf32>
    %1204 = vector.shape_cast %1203 : vector<1x16x128xf32> to vector<16x128xf32>
    %1205 = vector.shape_cast %1201 : vector<16x128xf32> to vector<1x16x128xf32>
    tpu.vector_store %arg6[%1202, %c0_388, %c0_389], %1205 {strides = array<i32>} : memref<10x16x128xf32, #tpu.memory_space<vmem>>, vector<1x16x128xf32>,
    %1206 = arith.index_cast %1093 : i32 to index
    %c0_390 = arith.constant 0 : index
    %c0_391 = arith.constant 0 : index
    %1207 = vector.load %arg6[%1206, %c0_390, %c0_391] : memref<10x16x128xf32, #tpu.memory_space<vmem>>, vector<1x16x128xf32>
    %1208 = vector.shape_cast %1207 : vector<1x16x128xf32> to vector<16x128xf32>
    %1209 = arith.addf %1208, %1197 : vector<16x128xf32>
    %1210 = arith.index_cast %1093 : i32 to index
    %c0_392 = arith.constant 0 : index
    %c0_393 = arith.constant 0 : index
    %1211 = vector.load %arg6[%1210, %c0_392, %c0_393] : memref<10x16x128xf32, #tpu.memory_space<vmem>>, vector<1x16x128xf32>
    %1212 = vector.shape_cast %1211 : vector<1x16x128xf32> to vector<16x128xf32>
    %1213 = vector.shape_cast %1209 : vector<16x128xf32> to vector<1x16x128xf32>
    tpu.vector_store %arg6[%1210, %c0_392, %c0_393], %1213 {strides = array<i32>} : memref<10x16x128xf32, #tpu.memory_space<vmem>>, vector<1x16x128xf32>,
    %c10_i32 = arith.constant 10 : i32
    %c0_394 = arith.constant 0 : index
    %c0_395 = arith.constant 0 : index
    %c0_396 = arith.constant 0 : index
    %1214 = vector.load %arg7[%c0_394, %c0_395, %c0_396] : memref<2x16x128xf32, #tpu.memory_space<vmem>>, vector<1x16x128xf32>
    %1215 = vector.shape_cast %1214 : vector<1x16x128xf32> to vector<16x128xf32>
    %1216 = vector.shape_cast %1147 : vector<16x128xf32> to vector<1x16x128xf32>
    tpu.vector_store %arg7[%c0_394, %c0_395, %c0_396], %1216 {strides = array<i32>} : memref<2x16x128xf32, #tpu.memory_space<vmem>>, vector<1x16x128xf32>,
    %c1 = arith.constant 1 : index
    %c0_397 = arith.constant 0 : index
    %c0_398 = arith.constant 0 : index
    %1217 = vector.load %arg7[%c1, %c0_397, %c0_398] : memref<2x16x128xf32, #tpu.memory_space<vmem>>, vector<1x16x128xf32>
    %1218 = vector.shape_cast %1217 : vector<1x16x128xf32> to vector<16x128xf32>
    %1219 = vector.shape_cast %1190 : vector<16x128xf32> to vector<1x16x128xf32>
    tpu.vector_store %arg7[%c1, %c0_397, %c0_398], %1219 {strides = array<i32>} : memref<2x16x128xf32, #tpu.memory_space<vmem>>, vector<1x16x128xf32>,
    %c0_399 = arith.constant 0 : index
    %c0_400 = arith.constant 0 : index
    %c0_401 = arith.constant 0 : index
    %1220 = vector.load %arg8[%c0_399, %c0_400, %c0_401] : memref<2x16x128xf32, #tpu.memory_space<vmem>>, vector<1x16x128xf32>
    %1221 = vector.shape_cast %1220 : vector<1x16x128xf32> to vector<16x128xf32>
    %1222 = vector.shape_cast %1150 : vector<16x128xf32> to vector<1x16x128xf32>
    tpu.vector_store %arg8[%c0_399, %c0_400, %c0_401], %1222 {strides = array<i32>} : memref<2x16x128xf32, #tpu.memory_space<vmem>>, vector<1x16x128xf32>,
    %c1_402 = arith.constant 1 : index
    %c0_403 = arith.constant 0 : index
    %c0_404 = arith.constant 0 : index
    %1223 = vector.load %arg8[%c1_402, %c0_403, %c0_404] : memref<2x16x128xf32, #tpu.memory_space<vmem>>, vector<1x16x128xf32>
    %1224 = vector.shape_cast %1223 : vector<1x16x128xf32> to vector<16x128xf32>
    %1225 = vector.shape_cast %1193 : vector<16x128xf32> to vector<1x16x128xf32>
    tpu.vector_store %arg8[%c1_402, %c0_403, %c0_404], %1225 {strides = array<i32>} : memref<2x16x128xf32, #tpu.memory_space<vmem>>, vector<1x16x128xf32>,
    return
  }
  func.func @transform_0(%arg0: i32) -> (i32, i32) {
    %c0_i32 = arith.constant 0 : i32
    %c0_i32_0 = arith.constant 0 : i32
    %c0_i32_1 = arith.constant 0 : i32
    return %c0_i32, %c0_i32_0 : i32, i32
  }
  func.func @transform_1(%arg0: i32) -> (i32, i32) {
    %c0_i32 = arith.constant 0 : i32
    %c0_i32_0 = arith.constant 0 : i32
    %c0_i32_1 = arith.constant 0 : i32
    return %c0_i32, %c0_i32_0 : i32, i32
  }
  func.func @transform_2(%arg0: i32) -> (i32, i32) {
    %c0_i32 = arith.constant 0 : i32
    %c0_i32_0 = arith.constant 0 : i32
    %c0_i32_1 = arith.constant 0 : i32
    return %c0_i32, %c0_i32_0 : i32, i32
  }
  func.func @transform_3(%arg0: i32) -> (i32, i32) {
    %c0_i32 = arith.constant 0 : i32
    %c0_i32_0 = arith.constant 0 : i32
    %c0_i32_1 = arith.constant 0 : i32
    return %c0_i32, %c0_i32_0 : i32, i32
  }
  func.func @transform_4(%arg0: i32) -> (i32, i32) {
    %c0_i32 = arith.constant 0 : i32
    %c0_i32_0 = arith.constant 0 : i32
    %c0_i32_1 = arith.constant 0 : i32
    return %c0_i32, %c0_i32_0 : i32, i32
  }
  func.func @transform_5(%arg0: i32) -> (i32, i32, i32) {
    %c0_i32 = arith.constant 0 : i32
    %c0_i32_0 = arith.constant 0 : i32
    %c0_i32_1 = arith.constant 0 : i32
    %c0_i32_2 = arith.constant 0 : i32
    return %c0_i32, %c0_i32_0, %c0_i32_1 : i32, i32, i32
  }
  func.func @transform_6(%arg0: i32) -> (i32, i32, i32) {
    %c0_i32 = arith.constant 0 : i32
    %c0_i32_0 = arith.constant 0 : i32
    %c0_i32_1 = arith.constant 0 : i32
    %c0_i32_2 = arith.constant 0 : i32
    return %c0_i32, %c0_i32_0, %c0_i32_1 : i32, i32, i32
  }
  func.func @transform_7(%arg0: i32) -> (i32, i32, i32) {
    %c0_i32 = arith.constant 0 : i32
    %c0_i32_0 = arith.constant 0 : i32
    %c0_i32_1 = arith.constant 0 : i32
    %c0_i32_2 = arith.constant 0 : i32
    return %c0_i32, %c0_i32_0, %c0_i32_1 : i32, i32, i32
  }
}

</mosaic_0001>

<llo_original>
// kernel: encoder_model_batch_forward.1
$region0: #{encoder_model_batch_forward.1}
  #allocation0 [shape = 'u32[]', space=smem, size = 0x4, offset = 0x4, fixed_abs, tag = 'smem constant byte address 0x4 - core index']
  #allocation1 [shape = 'u32[144,128]{1,0:T(1,128)}', space=vmem, size = 0x12000, scoped, tag = 'internal scratch']
  %s0 = inlined_call_operand.vmem [shape: bf16[160,512], index: 0, kind: input, shape index: {}]
  %s1 = inlined_call_operand.vmem [shape: bf16[160,512], index: 1, kind: input, shape index: {}]
  %s2 = inlined_call_operand.vmem [shape: s32[16,1], index: 2, kind: input, shape index: {}]
  %s3 = inlined_call_operand.vmem [shape: bf16[128,512], index: 3, kind: input, shape index: {}]
  %s4 = inlined_call_operand.vmem [shape: bf16[128,512], index: 4, kind: input, shape index: {}]
  %s5 = inlined_call_operand.hbm [shape: f32[10,16,128], index: 5, kind: output, shape index: {0}]
  %s6 = inlined_call_operand.hbm [shape: f32[2,16,128], index: 6, kind: output, shape index: {1}]
  %s7 = inlined_call_operand.hbm [shape: f32[2,16,128], index: 7, kind: output, shape index: {2}]
  %8 = xla_tuple %s5, %s6, %s7
  %s9 = sld [smem:[#allocation0]]
  $region46: #{encoder_model_batch_forward.1} parent=0
    _
  %s11 = ssub.s32 1, %s9
  %s12 = scalar_select 0, %s11, %s9
  $region1: #{encoder_model_batch_forward.1} parent=0
    #allocation2 [shape = 'u8[81920]{0}', space=vmem, size = 0x14000, scoped, tag = 'output window, operand 0, single buffered']
    #allocation3 [shape = 's32[1]{0}', space=sflag, size = 0x4, scoped, tag = 'scoped memory for encoder_model_batch_forward.1']
    #allocation4 [shape = 'u8[16384]{0}', space=vmem, size = 0x4000, scoped, tag = 'output window, operand 1, single buffered']
    #allocation5 [shape = 's32[1]{0}', space=sflag, size = 0x4, scoped, tag = 'scoped memory for encoder_model_batch_forward.1']
    #allocation6 [shape = 'u8[16384]{0}', space=vmem, size = 0x4000, scoped, tag = 'output window, operand 2, single buffered']
    %13 = vsyncpa [#allocation3], 0
    %14 = vsyncpa [#allocation5], 0
    // Predicated region
    $region2: #{encoder_model_batch_forward.1} parent=1 // pred_check
      _
    $region3: #{encoder_model_batch_forward.1} parent=1 // pred_check_branch
      %16 = sbr.rel (0) target = $region5
    $region4: #{encoder_model_batch_forward.1} parent=1 // pred_region
      _
    $region5: #{encoder_model_batch_forward.1} parent=1 // pred_fallthru
      _
    // Predicated region
    $region6: #{encoder_model_batch_forward.1} parent=1 // pred_check
      _
    $region7: #{encoder_model_batch_forward.1} parent=1 // pred_check_branch
      %18 = sbr.rel (0) target = $region9
    $region8: #{encoder_model_batch_forward.1} parent=1 // pred_region
      _
    $region9: #{encoder_model_batch_forward.1} parent=1 // pred_fallthru
      _
    // Predicated region
    $region10: #{encoder_model_batch_forward.1} parent=1 // pred_check
      _
    $region11: #{encoder_model_batch_forward.1} parent=1 // pred_check_branch
      %20 = sbr.rel (0) target = $region13
    $region12: #{encoder_model_batch_forward.1} parent=1 // pred_region
      _
    $region13: #{encoder_model_batch_forward.1} parent=1 // pred_fallthru
      _
    // Predicated region
    $region14: #{encoder_model_batch_forward.1} parent=1 // pred_check
      _
    $region15: #{encoder_model_batch_forward.1} parent=1 // pred_check_branch
      %22 = sbr.rel (0) target = $region17
    $region16: #{encoder_model_batch_forward.1} parent=1 // pred_region
      _
    $region17: #{encoder_model_batch_forward.1} parent=1 // pred_fallthru
      _
    // Predicated region
    $region18: #{encoder_model_batch_forward.1} parent=1 // pred_check
      _
    $region19: #{encoder_model_batch_forward.1} parent=1 // pred_check_branch
      %24 = sbr.rel (0) target = $region21
    $region20: #{encoder_model_batch_forward.1} parent=1 // pred_region
      _
    $region21: #{encoder_model_batch_forward.1} parent=1 // pred_fallthru
      _
    %26 = vst [vmem:[#allocation2] sm:$0xff] 0.0
    %27 = vst [vmem:[#allocation2 + $0x8] sm:$0xff] 0.0
    %28 = vst [vmem:[#allocation2 + $0x10] sm:$0xff] 0.0
    %29 = vst [vmem:[#allocation2 + $0x18] sm:$0xff] 0.0
    %30 = vst [vmem:[#allocation2 + $0x20] sm:$0xff] 0.0
    %31 = vst [vmem:[#allocation2 + $0x28] sm:$0xff] 0.0
    %32 = vst [vmem:[#allocation2 + $0x30] sm:$0xff] 0.0
    %33 = vst [vmem:[#allocation2 + $0x38] sm:$0xff] 0.0
    %34 = vst [vmem:[#allocation2 + $0x40] sm:$0xff] 0.0
    %35 = vst [vmem:[#allocation2 + $0x48] sm:$0xff] 0.0
    %36 = vst [vmem:[#allocation2 + $0x50] sm:$0xff] 0.0
    %37 = vst [vmem:[#allocation2 + $0x58] sm:$0xff] 0.0
    %38 = vst [vmem:[#allocation2 + $0x60] sm:$0xff] 0.0
    %39 = vst [vmem:[#allocation2 + $0x68] sm:$0xff] 0.0
    %40 = vst [vmem:[#allocation2 + $0x70] sm:$0xff] 0.0
    %41 = vst [vmem:[#allocation2 + $0x78] sm:$0xff] 0.0
    %42 = vst [vmem:[#allocation2 + $0x80] sm:$0xff] 0.0
    %43 = vst [vmem:[#allocation2 + $0x88] sm:$0xff] 0.0
    %44 = vst [vmem:[#allocation2 + $0x90] sm:$0xff] 0.0
    %45 = vst [vmem:[#allocation2 + $0x98] sm:$0xff] 0.0
    %v46 = vld [vmem:[%s2] sm:$0xff]
    %v47 = vld [vmem:[%s2 + $0x8] sm:$0xff]
    %s48 = smul.u32 0, 4
    %s49 = smul.addr %s48, 4
    %s50 = scalar_lea.vmem %s0, %s49
    %v51 = vld [vmem:[%s50] sm:$0xff]
    %v52 = vld [vmem:[%s50 + $0x8] sm:$0xff]
    %v53 = vld [vmem:[%s50 + $0x10] sm:$0xff]
    %v54 = vld [vmem:[%s50 + $0x18] sm:$0xff]
    %v55 = vunpack.c.l.bf16 %v51
    %v56 = vunpack.c.h.bf16 %v51
    %v57 = vunpack.c.l.bf16 %v52
    %v58 = vunpack.c.h.bf16 %v52
    %v59 = vunpack.c.l.bf16 %v53
    %v60 = vunpack.c.h.bf16 %v53
    %v61 = vunpack.c.l.bf16 %v54
    %v62 = vunpack.c.h.bf16 %v54
    %v63 = vld [vmem:[%s3] sm:$0xff]
    %v64 = vld [vmem:[%s3 + $0x8] sm:$0xff]
    %v65 = vld [vmem:[%s3 + $0x10] sm:$0xff]
    %v66 = vld [vmem:[%s3 + $0x18] sm:$0xff]
    %v67 = vld [vmem:[%s3 + $0x20] sm:$0xff]
    %v68 = vld [vmem:[%s3 + $0x28] sm:$0xff]
    %v69 = vld [vmem:[%s3 + $0x30] sm:$0xff]
    %v70 = vld [vmem:[%s3 + $0x38] sm:$0xff]
    %v71 = vld [vmem:[%s3 + $0x40] sm:$0xff]
    %v72 = vld [vmem:[%s3 + $0x48] sm:$0xff]
    %v73 = vld [vmem:[%s3 + $0x50] sm:$0xff]
    %v74 = vld [vmem:[%s3 + $0x58] sm:$0xff]
    %v75 = vld [vmem:[%s3 + $0x60] sm:$0xff]
    %v76 = vld [vmem:[%s3 + $0x68] sm:$0xff]
    %v77 = vld [vmem:[%s3 + $0x70] sm:$0xff]
    %v78 = vld [vmem:[%s3 + $0x78] sm:$0xff]
    %v79 = vld [vmem:[%s3 + $0x80] sm:$0xff]
    %v80 = vld [vmem:[%s3 + $0x88] sm:$0xff]
    %v81 = vld [vmem:[%s3 + $0x90] sm:$0xff]
    %v82 = vld [vmem:[%s3 + $0x98] sm:$0xff]
    %v83 = vld [vmem:[%s3 + $0xa0] sm:$0xff]
    %v84 = vld [vmem:[%s3 + $0xa8] sm:$0xff]
    %v85 = vld [vmem:[%s3 + $0xb0] sm:$0xff]
    %v86 = vld [vmem:[%s3 + $0xb8] sm:$0xff]
    %v87 = vld [vmem:[%s3 + $0xc0] sm:$0xff]
    %v88 = vld [vmem:[%s3 + $0xc8] sm:$0xff]
    %v89 = vld [vmem:[%s3 + $0xd0] sm:$0xff]
    %v90 = vld [vmem:[%s3 + $0xd8] sm:$0xff]
    %v91 = vld [vmem:[%s3 + $0xe0] sm:$0xff]
    %v92 = vld [vmem:[%s3 + $0xe8] sm:$0xff]
    %v93 = vld [vmem:[%s3 + $0xf0] sm:$0xff]
    %v94 = vld [vmem:[%s3 + $0xf8] sm:$0xff]
    %v127 = vunpack.c.l.b16 %v63
    %v128 = vunpack.c.h.b16 %v63
    %v129 = vunpack.c.l.b16 %v64
    %v130 = vunpack.c.h.b16 %v64
    %v131 = vunpack.c.l.b16 %v65
    %v132 = vunpack.c.h.b16 %v65
    %v133 = vunpack.c.l.b16 %v66
    %v134 = vunpack.c.h.b16 %v66
    %v135 = vunpack.c.l.b16 %v67
    %v136 = vunpack.c.h.b16 %v67
    %v137 = vunpack.c.l.b16 %v68
    %v138 = vunpack.c.h.b16 %v68
    %v139 = vunpack.c.l.b16 %v69
    %v140 = vunpack.c.h.b16 %v69
    %v141 = vunpack.c.l.b16 %v70
    %v142 = vunpack.c.h.b16 %v70
    %v143 = vunpack.c.l.b16 %v71
    %v144 = vunpack.c.h.b16 %v71
    %v145 = vunpack.c.l.b16 %v72
    %v146 = vunpack.c.h.b16 %v72
    %v147 = vunpack.c.l.b16 %v73
    %v148 = vunpack.c.h.b16 %v73
    %v149 = vunpack.c.l.b16 %v74
    %v150 = vunpack.c.h.b16 %v74
    %v151 = vunpack.c.l.b16 %v75
    %v152 = vunpack.c.h.b16 %v75
    %v153 = vunpack.c.l.b16 %v76
    %v154 = vunpack.c.h.b16 %v76
    %v155 = vunpack.c.l.b16 %v77
    %v156 = vunpack.c.h.b16 %v77
    %v157 = vunpack.c.l.b16 %v78
    %v158 = vunpack.c.h.b16 %v78
    %v159 = vunpack.c.l.b16 %v79
    %v160 = vunpack.c.h.b16 %v79
    %v161 = vunpack.c.l.b16 %v80
    %v162 = vunpack.c.h.b16 %v80
    %v163 = vunpack.c.l.b16 %v81
    %v164 = vunpack.c.h.b16 %v81
    %v165 = vunpack.c.l.b16 %v82
    %v166 = vunpack.c.h.b16 %v82
    %v167 = vunpack.c.l.b16 %v83
    %v168 = vunpack.c.h.b16 %v83
    %v169 = vunpack.c.l.b16 %v84
    %v170 = vunpack.c.h.b16 %v84
    %v171 = vunpack.c.l.b16 %v85
    %v172 = vunpack.c.h.b16 %v85
    %v173 = vunpack.c.l.b16 %v86
    %v174 = vunpack.c.h.b16 %v86
    %v175 = vunpack.c.l.b16 %v87
    %v176 = vunpack.c.h.b16 %v87
    %v177 = vunpack.c.l.b16 %v88
    %v178 = vunpack.c.h.b16 %v88
    %v179 = vunpack.c.l.b16 %v89
    %v180 = vunpack.c.h.b16 %v89
    %v181 = vunpack.c.l.b16 %v90
    %v182 = vunpack.c.h.b16 %v90
    %v183 = vunpack.c.l.b16 %v91
    %v184 = vunpack.c.h.b16 %v91
    %v185 = vunpack.c.l.b16 %v92
    %v186 = vunpack.c.h.b16 %v92
    %v187 = vunpack.c.l.b16 %v93
    %v188 = vunpack.c.h.b16 %v93
    %v189 = vunpack.c.l.b16 %v94
    %v190 = vunpack.c.h.b16 %v94
    %v191 = vpack.c.b16 %v131, %v127
    %v192 = vpack.c.b16 %v132, %v128
    %v193 = vpack.c.b16 %v133, %v129
    %v194 = vpack.c.b16 %v134, %v130
    %v195 = vpack.c.b16 %v139, %v135
    %v196 = vpack.c.b16 %v140, %v136
    %v197 = vpack.c.b16 %v141, %v137
    %v198 = vpack.c.b16 %v142, %v138
    %v199 = vpack.c.b16 %v147, %v143
    %v200 = vpack.c.b16 %v148, %v144
    %v201 = vpack.c.b16 %v149, %v145
    %v202 = vpack.c.b16 %v150, %v146
    %v203 = vpack.c.b16 %v155, %v151
    %v204 = vpack.c.b16 %v156, %v152
    %v205 = vpack.c.b16 %v157, %v153
    %v206 = vpack.c.b16 %v158, %v154
    %v207 = vpack.c.b16 %v163, %v159
    %v208 = vpack.c.b16 %v164, %v160
    %v209 = vpack.c.b16 %v165, %v161
    %v210 = vpack.c.b16 %v166, %v162
    %v211 = vpack.c.b16 %v171, %v167
    %v212 = vpack.c.b16 %v172, %v168
    %v213 = vpack.c.b16 %v173, %v169
    %v214 = vpack.c.b16 %v174, %v170
    %v215 = vpack.c.b16 %v179, %v175
    %v216 = vpack.c.b16 %v180, %v176
    %v217 = vpack.c.b16 %v181, %v177
    %v218 = vpack.c.b16 %v182, %v178
    %v219 = vpack.c.b16 %v187, %v183
    %v220 = vpack.c.b16 %v188, %v184
    %v221 = vpack.c.b16 %v189, %v185
    %v222 = vpack.c.b16 %v190, %v186
    %255 = vmatprep.subr.bf16.mxu0 %v220
    %256 = vmatpush1.bf16.msra.mxu0 %v219
    %257 = vmatprep.subr.bf16.mxu0 %v216
    %258 = vmatpush1.bf16.msra.mxu0 %v215
    %259 = vmatprep.subr.bf16.mxu0 %v212
    %260 = vmatpush1.bf16.msra.mxu0 %v211
    %261 = vmatprep.subr.bf16.mxu0 %v208
    %262 = vmatpush1.bf16.msra.mxu0 %v207
    %263 = vmatprep.subr.bf16.mxu0 %v204
    %264 = vmatpush1.bf16.msra.mxu0 %v203
    %265 = vmatprep.subr.bf16.mxu0 %v200
    %266 = vmatpush1.bf16.msra.mxu0 %v199
    %267 = vmatprep.subr.bf16.mxu0 %v196
    %268 = vmatpush1.bf16.msra.mxu0 %v195
    %269 = vmatprep.subr.bf16.mxu0 %v192
    %270 = vmatpush1.bf16.msra.mxu0 %v191
    %271 = vmatprep.subr.bf16.mxu0 0
    %272 = vmatpush2.bf16.msra.mxu0 0
    %273 = vmatprep.subr.bf16.mxu0 0
    %274 = vmatpush2.bf16.msra.mxu0 0
    %275 = vmatprep.subr.bf16.mxu0 0
    %276 = vmatpush2.bf16.msra.mxu0 0
    %277 = vmatprep.subr.bf16.mxu0 0
    %278 = vmatpush2.bf16.msra.mxu0 0
    %279 = vmatprep.subr.bf16.mxu0 0
    %280 = vmatpush2.bf16.msra.mxu0 0
    %281 = vmatprep.subr.bf16.mxu0 0
    %282 = vmatpush2.bf16.msra.mxu0 0
    %283 = vmatprep.subr.bf16.mxu0 0
    %284 = vmatpush2.bf16.msra.mxu0 0
    %285 = vmatprep.subr.bf16.mxu0 0
    %286 = vmatpush2.bf16.msra.mxu0 0
    %287 = vmatprep.mubr.bf16.mxu0 0
    %288 = vmatmul.mubr.bf16.gmra.mxu0 0
    %v289 = vpop.f32.mrf.mxu0
    %v290 = vadd.f32 0.0, %v289
    %v291 = vpop.f32.mrf.mxu0
    %v292 = vadd.f32 0.0, %v291
    %v293 = vpop.f32.mrf.mxu0
    %v294 = vadd.f32 0.0, %v293
    %v295 = vpop.f32.mrf.mxu0
    %v296 = vadd.f32 0.0, %v295
    %297 = vdwg.mxu0
    %298 = vmatprep.subr.bf16.mxu0 %v222
    %299 = vmatpush1.bf16.msra.mxu0 %v221
    %300 = vmatprep.subr.bf16.mxu0 %v218
    %301 = vmatpush1.bf16.msra.mxu0 %v217
    %302 = vmatprep.subr.bf16.mxu0 %v214
    %303 = vmatpush1.bf16.msra.mxu0 %v213
    %304 = vmatprep.subr.bf16.mxu0 %v210
    %305 = vmatpush1.bf16.msra.mxu0 %v209
    %306 = vmatprep.subr.bf16.mxu0 %v206
    %307 = vmatpush1.bf16.msra.mxu0 %v205
    %308 = vmatprep.subr.bf16.mxu0 %v202
    %309 = vmatpush1.bf16.msra.mxu0 %v201
    %310 = vmatprep.subr.bf16.mxu0 %v198
    %311 = vmatpush1.bf16.msra.mxu0 %v197
    %312 = vmatprep.subr.bf16.mxu0 %v194
    %313 = vmatpush1.bf16.msra.mxu0 %v193
    %314 = vmatprep.subr.bf16.mxu0 0
    %315 = vmatpush2.bf16.msra.mxu0 0
    %316 = vmatprep.subr.bf16.mxu0 0
    %317 = vmatpush2.bf16.msra.mxu0 0
    %318 = vmatprep.subr.bf16.mxu0 0
    %319 = vmatpush2.bf16.msra.mxu0 0
    %320 = vmatprep.subr.bf16.mxu0 0
    %321 = vmatpush2.bf16.msra.mxu0 0
    %322 = vmatprep.subr.bf16.mxu0 0
    %323 = vmatpush2.bf16.msra.mxu0 0
    %324 = vmatprep.subr.bf16.mxu0 0
    %325 = vmatpush2.bf16.msra.mxu0 0
    %326 = vmatprep.subr.bf16.mxu0 0
    %327 = vmatpush2.bf16.msra.mxu0 0
    %328 = vmatprep.subr.bf16.mxu0 0
    %329 = vmatpush2.bf16.msra.mxu0 0
    %330 = vmatprep.mubr.bf16.mxu0 0
    %331 = vmatmul.mubr.bf16.gmra.mxu0 0
    %v332 = vpop.f32.mrf.mxu0
    %v333 = vadd.f32 0.0, %v332
    %v334 = vpop.f32.mrf.mxu0
    %v335 = vadd.f32 0.0, %v334
    %v336 = vpop.f32.mrf.mxu0
    %v337 = vadd.f32 0.0, %v336
    %v338 = vpop.f32.mrf.mxu0
    %v339 = vadd.f32 0.0, %v338
    %340 = vdwg.mxu0
    %v341 = vadd.f32 %v55, %v290
    %v342 = vadd.f32 %v56, %v292
    %v343 = vadd.f32 %v57, %v333
    %v344 = vadd.f32 %v58, %v335
    %v345 = vadd.f32 %v59, %v294
    %v346 = vadd.f32 %v60, %v296
    %v347 = vadd.f32 %v61, %v337
    %v348 = vadd.f32 %v62, %v339
    %s349 = smul.u32 18, 4
    %s350 = smul.addr %s349, 4
    %s351 = scalar_lea.vmem %s1, %s350
    %v352 = vld [vmem:[%s351] sm:$0xff]
    %v353 = vld [vmem:[%s351 + $0x8] sm:$0xff]
    %v354 = vld [vmem:[%s351 + $0x10] sm:$0xff]
    %v355 = vld [vmem:[%s351 + $0x18] sm:$0xff]
    %v356 = vunpack.c.l.bf16 %v352
    %v357 = vunpack.c.h.bf16 %v352
    %v358 = vunpack.c.l.bf16 %v353
    %v359 = vunpack.c.h.bf16 %v353
    %v360 = vunpack.c.l.bf16 %v354
    %v361 = vunpack.c.h.bf16 %v354
    %v362 = vunpack.c.l.bf16 %v355
    %v363 = vunpack.c.h.bf16 %v355
    %v364 = vld [vmem:[%s4] sm:$0xff]
    %v365 = vld [vmem:[%s4 + $0x8] sm:$0xff]
    %v366 = vld [vmem:[%s4 + $0x10] sm:$0xff]
    %v367 = vld [vmem:[%s4 + $0x18] sm:$0xff]
    %v368 = vld [vmem:[%s4 + $0x20] sm:$0xff]
    %v369 = vld [vmem:[%s4 + $0x28] sm:$0xff]
    %v370 = vld [vmem:[%s4 + $0x30] sm:$0xff]
    %v371 = vld [vmem:[%s4 + $0x38] sm:$0xff]
    %v372 = vld [vmem:[%s4 + $0x40] sm:$0xff]
    %v373 = vld [vmem:[%s4 + $0x48] sm:$0xff]
    %v374 = vld [vmem:[%s4 + $0x50] sm:$0xff]
    %v375 = vld [vmem:[%s4 + $0x58] sm:$0xff]
    %v376 = vld [vmem:[%s4 + $0x60] sm:$0xff]
    %v377 = vld [vmem:[%s4 + $0x68] sm:$0xff]
    %v378 = vld [vmem:[%s4 + $0x70] sm:$0xff]
    %v379 = vld [vmem:[%s4 + $0x78] sm:$0xff]
    %v380 = vld [vmem:[%s4 + $0x80] sm:$0xff]
    %v381 = vld [vmem:[%s4 + $0x88] sm:$0xff]
    %v382 = vld [vmem:[%s4 + $0x90] sm:$0xff]
    %v383 = vld [vmem:[%s4 + $0x98] sm:$0xff]
    %v384 = vld [vmem:[%s4 + $0xa0] sm:$0xff]
    %v385 = vld [vmem:[%s4 + $0xa8] sm:$0xff]
    %v386 = vld [vmem:[%s4 + $0xb0] sm:$0xff]
    %v387 = vld [vmem:[%s4 + $0xb8] sm:$0xff]
    %v388 = vld [vmem:[%s4 + $0xc0] sm:$0xff]
    %v389 = vld [vmem:[%s4 + $0xc8] sm:$0xff]
    %v390 = vld [vmem:[%s4 + $0xd0] sm:$0xff]
    %v391 = vld [vmem:[%s4 + $0xd8] sm:$0xff]
    %v392 = vld [vmem:[%s4 + $0xe0] sm:$0xff]
    %v393 = vld [vmem:[%s4 + $0xe8] sm:$0xff]
    %v394 = vld [vmem:[%s4 + $0xf0] sm:$0xff]
    %v395 = vld [vmem:[%s4 + $0xf8] sm:$0xff]
    %v428 = vunpack.c.l.b16 %v364
    %v429 = vunpack.c.h.b16 %v364
    %v430 = vunpack.c.l.b16 %v365
    %v431 = vunpack.c.h.b16 %v365
    %v432 = vunpack.c.l.b16 %v366
    %v433 = vunpack.c.h.b16 %v366
    %v434 = vunpack.c.l.b16 %v367
    %v435 = vunpack.c.h.b16 %v367
    %v436 = vunpack.c.l.b16 %v368
    %v437 = vunpack.c.h.b16 %v368
    %v438 = vunpack.c.l.b16 %v369
    %v439 = vunpack.c.h.b16 %v369
    %v440 = vunpack.c.l.b16 %v370
    %v441 = vunpack.c.h.b16 %v370
    %v442 = vunpack.c.l.b16 %v371
    %v443 = vunpack.c.h.b16 %v371
    %v444 = vunpack.c.l.b16 %v372
    %v445 = vunpack.c.h.b16 %v372
    %v446 = vunpack.c.l.b16 %v373
    %v447 = vunpack.c.h.b16 %v373
    %v448 = vunpack.c.l.b16 %v374
    %v449 = vunpack.c.h.b16 %v374
    %v450 = vunpack.c.l.b16 %v375
    %v451 = vunpack.c.h.b16 %v375
    %v452 = vunpack.c.l.b16 %v376
    %v453 = vunpack.c.h.b16 %v376
    %v454 = vunpack.c.l.b16 %v377
    %v455 = vunpack.c.h.b16 %v377
    %v456 = vunpack.c.l.b16 %v378
    %v457 = vunpack.c.h.b16 %v378
    %v458 = vunpack.c.l.b16 %v379
    %v459 = vunpack.c.h.b16 %v379
    %v460 = vunpack.c.l.b16 %v380
    %v461 = vunpack.c.h.b16 %v380
    %v462 = vunpack.c.l.b16 %v381
    %v463 = vunpack.c.h.b16 %v381
    %v464 = vunpack.c.l.b16 %v382
    %v465 = vunpack.c.h.b16 %v382
    %v466 = vunpack.c.l.b16 %v383
    %v467 = vunpack.c.h.b16 %v383
    %v468 = vunpack.c.l.b16 %v384
    %v469 = vunpack.c.h.b16 %v384
    %v470 = vunpack.c.l.b16 %v385
    %v471 = vunpack.c.h.b16 %v385
    %v472 = vunpack.c.l.b16 %v386
    %v473 = vunpack.c.h.b16 %v386
    %v474 = vunpack.c.l.b16 %v387
    %v475 = vunpack.c.h.b16 %v387
    %v476 = vunpack.c.l.b16 %v388
    %v477 = vunpack.c.h.b16 %v388
    %v478 = vunpack.c.l.b16 %v389
    %v479 = vunpack.c.h.b16 %v389
    %v480 = vunpack.c.l.b16 %v390
    %v481 = vunpack.c.h.b16 %v390
    %v482 = vunpack.c.l.b16 %v391
    %v483 = vunpack.c.h.b16 %v391
    %v484 = vunpack.c.l.b16 %v392
    %v485 = vunpack.c.h.b16 %v392
    %v486 = vunpack.c.l.b16 %v393
    %v487 = vunpack.c.h.b16 %v393
    %v488 = vunpack.c.l.b16 %v394
    %v489 = vunpack.c.h.b16 %v394
    %v490 = vunpack.c.l.b16 %v395
    %v491 = vunpack.c.h.b16 %v395
    %v492 = vpack.c.b16 %v432, %v428
    %v493 = vpack.c.b16 %v433, %v429
    %v494 = vpack.c.b16 %v434, %v430
    %v495 = vpack.c.b16 %v435, %v431
    %v496 = vpack.c.b16 %v440, %v436
    %v497 = vpack.c.b16 %v441, %v437
    %v498 = vpack.c.b16 %v442, %v438
    %v499 = vpack.c.b16 %v443, %v439
    %v500 = vpack.c.b16 %v448, %v444
    %v501 = vpack.c.b16 %v449, %v445
    %v502 = vpack.c.b16 %v450, %v446
    %v503 = vpack.c.b16 %v451, %v447
    %v504 = vpack.c.b16 %v456, %v452
    %v505 = vpack.c.b16 %v457, %v453
    %v506 = vpack.c.b16 %v458, %v454
    %v507 = vpack.c.b16 %v459, %v455
    %v508 = vpack.c.b16 %v464, %v460
    %v509 = vpack.c.b16 %v465, %v461
    %v510 = vpack.c.b16 %v466, %v462
    %v511 = vpack.c.b16 %v467, %v463
    %v512 = vpack.c.b16 %v472, %v468
    %v513 = vpack.c.b16 %v473, %v469
    %v514 = vpack.c.b16 %v474, %v470
    %v515 = vpack.c.b16 %v475, %v471
    %v516 = vpack.c.b16 %v480, %v476
    %v517 = vpack.c.b16 %v481, %v477
    %v518 = vpack.c.b16 %v482, %v478
    %v519 = vpack.c.b16 %v483, %v479
    %v520 = vpack.c.b16 %v488, %v484
    %v521 = vpack.c.b16 %v489, %v485
    %v522 = vpack.c.b16 %v490, %v486
    %v523 = vpack.c.b16 %v491, %v487
    %556 = vmatprep.subr.bf16.mxu0 %v521
    %557 = vmatpush1.bf16.msra.mxu0 %v520
    %558 = vmatprep.subr.bf16.mxu0 %v517
    %559 = vmatpush1.bf16.msra.mxu0 %v516
    %560 = vmatprep.subr.bf16.mxu0 %v513
    %561 = vmatpush1.bf16.msra.mxu0 %v512
    %562 = vmatprep.subr.bf16.mxu0 %v509
    %563 = vmatpush1.bf16.msra.mxu0 %v508
    %564 = vmatprep.subr.bf16.mxu0 %v505
    %565 = vmatpush1.bf16.msra.mxu0 %v504
    %566 = vmatprep.subr.bf16.mxu0 %v501
    %567 = vmatpush1.bf16.msra.mxu0 %v500
    %568 = vmatprep.subr.bf16.mxu0 %v497
    %569 = vmatpush1.bf16.msra.mxu0 %v496
    %570 = vmatprep.subr.bf16.mxu0 %v493
    %571 = vmatpush1.bf16.msra.mxu0 %v492
    %572 = vmatprep.subr.bf16.mxu0 0
    %573 = vmatpush2.bf16.msra.mxu0 0
    %574 = vmatprep.subr.bf16.mxu0 0
    %575 = vmatpush2.bf16.msra.mxu0 0
    %576 = vmatprep.subr.bf16.mxu0 0
    %577 = vmatpush2.bf16.msra.mxu0 0
    %578 = vmatprep.subr.bf16.mxu0 0
    %579 = vmatpush2.bf16.msra.mxu0 0
    %580 = vmatprep.subr.bf16.mxu0 0
    %581 = vmatpush2.bf16.msra.mxu0 0
    %582 = vmatprep.subr.bf16.mxu0 0
    %583 = vmatpush2.bf16.msra.mxu0 0
    %584 = vmatprep.subr.bf16.mxu0 0
    %585 = vmatpush2.bf16.msra.mxu0 0
    %586 = vmatprep.subr.bf16.mxu0 0
    %587 = vmatpush2.bf16.msra.mxu0 0
    %588 = vmatprep.mubr.bf16.mxu0 0
    %589 = vmatmul.mubr.bf16.gmra.mxu0 0
    %v590 = vpop.f32.mrf.mxu0
    %v591 = vadd.f32 0.0, %v590
    %v592 = vpop.f32.mrf.mxu0
    %v593 = vadd.f32 0.0, %v592
    %v594 = vpop.f32.mrf.mxu0
    %v595 = vadd.f32 0.0, %v594
    %v596 = vpop.f32.mrf.mxu0
    %v597 = vadd.f32 0.0, %v596
    %598 = vdwg.mxu0
    %599 = vmatprep.subr.bf16.mxu0 %v523
    %600 = vmatpush1.bf16.msra.mxu0 %v522
    %601 = vmatprep.subr.bf16.mxu0 %v519
    %602 = vmatpush1.bf16.msra.mxu0 %v518
    %603 = vmatprep.subr.bf16.mxu0 %v515
    %604 = vmatpush1.bf16.msra.mxu0 %v514
    %605 = vmatprep.subr.bf16.mxu0 %v511
    %606 = vmatpush1.bf16.msra.mxu0 %v510
    %607 = vmatprep.subr.bf16.mxu0 %v507
    %608 = vmatpush1.bf16.msra.mxu0 %v506
    %609 = vmatprep.subr.bf16.mxu0 %v503
    %610 = vmatpush1.bf16.msra.mxu0 %v502
    %611 = vmatprep.subr.bf16.mxu0 %v499
    %612 = vmatpush1.bf16.msra.mxu0 %v498
    %613 = vmatprep.subr.bf16.mxu0 %v495
    %614 = vmatpush1.bf16.msra.mxu0 %v494
    %615 = vmatprep.subr.bf16.mxu0 0
    %616 = vmatpush2.bf16.msra.mxu0 0
    %617 = vmatprep.subr.bf16.mxu0 0
    %618 = vmatpush2.bf16.msra.mxu0 0
    %619 = vmatprep.subr.bf16.mxu0 0
    %620 = vmatpush2.bf16.msra.mxu0 0
    %621 = vmatprep.subr.bf16.mxu0 0
    %622 = vmatpush2.bf16.msra.mxu0 0
    %623 = vmatprep.subr.bf16.mxu0 0
    %624 = vmatpush2.bf16.msra.mxu0 0
    %625 = vmatprep.subr.bf16.mxu0 0
    %626 = vmatpush2.bf16.msra.mxu0 0
    %627 = vmatprep.subr.bf16.mxu0 0
    %628 = vmatpush2.bf16.msra.mxu0 0
    %629 = vmatprep.subr.bf16.mxu0 0
    %630 = vmatpush2.bf16.msra.mxu0 0
    %631 = vmatprep.mubr.bf16.mxu0 0
    %632 = vmatmul.mubr.bf16.gmra.mxu0 0
    %v633 = vpop.f32.mrf.mxu0
    %v634 = vadd.f32 0.0, %v633
    %v635 = vpop.f32.mrf.mxu0
    %v636 = vadd.f32 0.0, %v635
    %v637 = vpop.f32.mrf.mxu0
    %v638 = vadd.f32 0.0, %v637
    %v639 = vpop.f32.mrf.mxu0
    %v640 = vadd.f32 0.0, %v639
    %641 = vdwg.mxu0
    %v642 = vadd.f32 %v356, %v591
    %v643 = vadd.f32 %v357, %v593
    %v644 = vadd.f32 %v358, %v634
    %v645 = vadd.f32 %v359, %v636
    %v646 = vadd.f32 %v360, %v595
    %v647 = vadd.f32 %v361, %v597
    %v648 = vadd.f32 %v362, %v638
    %v649 = vadd.f32 %v363, %v640
    %vm650 = vcmp.gt.s32.totalorder %v46, 0
    %vm651 = vcmp.gt.s32.totalorder %v47, 0
    %v652 = vmul.f32 %v341, 0.5
    %v653 = vmul.f32 %v345, 0.5
    %v654 = vtanh.pop %v652
    %v655 = vtanh.pop %v653
    %v656 = vmul.f32 %v654, 0.5
    %v657 = vmul.f32 %v655, 0.5
    %v658 = vadd.f32 %v656, 0.5
    %v659 = vadd.f32 %v657, 0.5
    %v660 = vmul.f32 %v342, 0.5
    %v661 = vmul.f32 %v346, 0.5
    %v662 = vtanh.pop %v660
    %v663 = vtanh.pop %v661
    %v664 = vmul.f32 %v662, 0.5
    %v665 = vmul.f32 %v663, 0.5
    %v666 = vadd.f32 %v664, 0.5
    %v667 = vadd.f32 %v665, 0.5
    %v668 = vtanh.pop %v343
    %v669 = vtanh.pop %v347
    %v670 = vmul.f32 %v344, 0.5
    %v671 = vmul.f32 %v348, 0.5
    %v672 = vtanh.pop %v670
    %v673 = vtanh.pop %v671
    %v674 = vmul.f32 %v672, 0.5
    %v675 = vmul.f32 %v673, 0.5
    %v676 = vadd.f32 %v674, 0.5
    %v677 = vadd.f32 %v675, 0.5
    %v678 = vmul.f32 %v666, 0.0
    %v679 = vmul.f32 %v667, 0.0
    %v680 = vmul.f32 %v658, %v668
    %v681 = vmul.f32 %v659, %v669
    %v682 = vadd.f32 %v678, %v680
    %v683 = vadd.f32 %v679, %v681
    %v684 = vtanh.pop %v682
    %v685 = vtanh.pop %v683
    %v686 = vmul.f32 %v676, %v684
    %v687 = vmul.f32 %v677, %v685
    %v688 = vsel %vm650, 1, 0
    %v689 = vsel %vm651, 1, 0
    %690 = vset.pattern.permute.xlu0 0
    %691 = vperm.xlu0 %690, %v688
    %v692 = vpop.permute.xlu0 %691
    %693 = vset.pattern.permute.xlu0 0
    %694 = vperm.xlu0 %693, %v689
    %v695 = vpop.permute.xlu0 %694
    %vm696 = vcmp.eq.s32.totalorder %v692, 1
    %vm697 = vcmp.eq.s32.totalorder %v695, 1
    %v698 = vsel %vm696, %v686, 0.0
    %v699 = vsel %vm697, %v687, 0.0
    %v700 = vsel %vm696, %v682, 0.0
    %v701 = vsel %vm697, %v683, 0.0
    %vm702 = vcmp.gt.s32.totalorder %v46, 9
    %vm703 = vcmp.gt.s32.totalorder %v47, 9
    %v704 = vmul.f32 %v642, 0.5
    %v705 = vmul.f32 %v646, 0.5
    %v706 = vtanh.pop %v704
    %v707 = vtanh.pop %v705
    %v708 = vmul.f32 %v706, 0.5
    %v709 = vmul.f32 %v707, 0.5
    %v710 = vadd.f32 %v708, 0.5
    %v711 = vadd.f32 %v709, 0.5
    %v712 = vmul.f32 %v643, 0.5
    %v713 = vmul.f32 %v647, 0.5
    %v714 = vtanh.pop %v712
    %v715 = vtanh.pop %v713
    %v716 = vmul.f32 %v714, 0.5
    %v717 = vmul.f32 %v715, 0.5
    %v718 = vadd.f32 %v716, 0.5
    %v719 = vadd.f32 %v717, 0.5
    %v720 = vtanh.pop %v644
    %v721 = vtanh.pop %v648
    %v722 = vmul.f32 %v645, 0.5
    %v723 = vmul.f32 %v649, 0.5
    %v724 = vtanh.pop %v722
    %v725 = vtanh.pop %v723
    %v726 = vmul.f32 %v724, 0.5
    %v727 = vmul.f32 %v725, 0.5
    %v728 = vadd.f32 %v726, 0.5
    %v729 = vadd.f32 %v727, 0.5
    %v730 = vmul.f32 %v718, 0.0
    %v731 = vmul.f32 %v719, 0.0
    %v732 = vmul.f32 %v710, %v720
    %v733 = vmul.f32 %v711, %v721
    %v734 = vadd.f32 %v730, %v732
    %v735 = vadd.f32 %v731, %v733
    %v736 = vtanh.pop %v734
    %v737 = vtanh.pop %v735
    %v738 = vmul.f32 %v728, %v736
    %v739 = vmul.f32 %v729, %v737
    %v740 = vsel %vm702, 1, 0
    %v741 = vsel %vm703, 1, 0
    %742 = vset.pattern.permute.xlu0 0
    %743 = vperm.xlu0 %742, %v740
    %v744 = vpop.permute.xlu0 %743
    %745 = vset.pattern.permute.xlu0 0
    %746 = vperm.xlu0 %745, %v741
    %v747 = vpop.permute.xlu0 %746
    %vm748 = vcmp.eq.s32.totalorder %v744, 1
    %vm749 = vcmp.eq.s32.totalorder %v747, 1
    %v750 = vsel %vm748, %v738, 0.0
    %v751 = vsel %vm749, %v739, 0.0
    %v752 = vsel %vm748, %v734, 0.0
    %v753 = vsel %vm749, %v735, 0.0
    %v754 = vld [vmem:[#allocation2] sm:$0xff]
    %v755 = vld [vmem:[#allocation2 + $0x8] sm:$0xff]
    %v756 = vadd.f32 %v754, %v698
    %v757 = vadd.f32 %v755, %v699
    %758 = vst [vmem:[#allocation2] sm:$0xff] %v756
    %759 = vst [vmem:[#allocation2 + $0x8] sm:$0xff] %v757
    %s760 = scalar_lea.vmem [#allocation2], 144
    %v761 = vld [vmem:[%s760] sm:$0xff]
    %v762 = vld [vmem:[%s760 + $0x8] sm:$0xff]
    %v763 = vadd.f32 %v761, %v750
    %v764 = vadd.f32 %v762, %v751
    %765 = vst [vmem:[%s760] sm:$0xff] %v763
    %766 = vst [vmem:[%s760 + $0x8] sm:$0xff] %v764
    %s767 = smul.u32 2, 4
    %s768 = smul.addr %s767, 4
    %s769 = scalar_lea.vmem %s0, %s768
    %v770 = vld [vmem:[%s769] sm:$0xff]
    %v771 = vld [vmem:[%s769 + $0x8] sm:$0xff]
    %v772 = vld [vmem:[%s769 + $0x10] sm:$0xff]
    %v773 = vld [vmem:[%s769 + $0x18] sm:$0xff]
    %v774 = vunpack.c.l.bf16 %v770
    %v775 = vunpack.c.h.bf16 %v770
    %v776 = vunpack.c.l.bf16 %v771
    %v777 = vunpack.c.h.bf16 %v771
    %v778 = vunpack.c.l.bf16 %v772
    %v779 = vunpack.c.h.bf16 %v772
    %v780 = vunpack.c.l.bf16 %v773
    %v781 = vunpack.c.h.bf16 %v773
    %v782 = vpack.c.bf16 %v699, %v698
    %v783 = vld [vmem:[%s3] sm:$0xff]
    %v784 = vld [vmem:[%s3 + $0x8] sm:$0xff]
    %v785 = vld [vmem:[%s3 + $0x10] sm:$0xff]
    %v786 = vld [vmem:[%s3 + $0x18] sm:$0xff]
    %v787 = vld [vmem:[%s3 + $0x20] sm:$0xff]
    %v788 = vld [vmem:[%s3 + $0x28] sm:$0xff]
    %v789 = vld [vmem:[%s3 + $0x30] sm:$0xff]
    %v790 = vld [vmem:[%s3 + $0x38] sm:$0xff]
    %v791 = vld [vmem:[%s3 + $0x40] sm:$0xff]
    %v792 = vld [vmem:[%s3 + $0x48] sm:$0xff]
    %v793 = vld [vmem:[%s3 + $0x50] sm:$0xff]
    %v794 = vld [vmem:[%s3 + $0x58] sm:$0xff]
    %v795 = vld [vmem:[%s3 + $0x60] sm:$0xff]
    %v796 = vld [vmem:[%s3 + $0x68] sm:$0xff]
    %v797 = vld [vmem:[%s3 + $0x70] sm:$0xff]
    %v798 = vld [vmem:[%s3 + $0x78] sm:$0xff]
    %v799 = vld [vmem:[%s3 + $0x80] sm:$0xff]
    %v800 = vld [vmem:[%s3 + $0x88] sm:$0xff]
    %v801 = vld [vmem:[%s3 + $0x90] sm:$0xff]
    %v802 = vld [vmem:[%s3 + $0x98] sm:$0xff]
    %v803 = vld [vmem:[%s3 + $0xa0] sm:$0xff]
    %v804 = vld [vmem:[%s3 + $0xa8] sm:$0xff]
    %v805 = vld [vmem:[%s3 + $0xb0] sm:$0xff]
    %v806 = vld [vmem:[%s3 + $0xb8] sm:$0xff]
    %v807 = vld [vmem:[%s3 + $0xc0] sm:$0xff]
    %v808 = vld [vmem:[%s3 + $0xc8] sm:$0xff]
    %v809 = vld [vmem:[%s3 + $0xd0] sm:$0xff]
    %v810 = vld [vmem:[%s3 + $0xd8] sm:$0xff]
    %v811 = vld [vmem:[%s3 + $0xe0] sm:$0xff]
    %v812 = vld [vmem:[%s3 + $0xe8] sm:$0xff]
    %v813 = vld [vmem:[%s3 + $0xf0] sm:$0xff]
    %v814 = vld [vmem:[%s3 + $0xf8] sm:$0xff]
    %v847 = vunpack.c.l.b16 %v783
    %v848 = vunpack.c.h.b16 %v783
    %v849 = vunpack.c.l.b16 %v784
    %v850 = vunpack.c.h.b16 %v784
    %v851 = vunpack.c.l.b16 %v785
    %v852 = vunpack.c.h.b16 %v785
    %v853 = vunpack.c.l.b16 %v786
    %v854 = vunpack.c.h.b16 %v786
    %v855 = vunpack.c.l.b16 %v787
    %v856 = vunpack.c.h.b16 %v787
    %v857 = vunpack.c.l.b16 %v788
    %v858 = vunpack.c.h.b16 %v788
    %v859 = vunpack.c.l.b16 %v789
    %v860 = vunpack.c.h.b16 %v789
    %v861 = vunpack.c.l.b16 %v790
    %v862 = vunpack.c.h.b16 %v790
    %v863 = vunpack.c.l.b16 %v791
    %v864 = vunpack.c.h.b16 %v791
    %v865 = vunpack.c.l.b16 %v792
    %v866 = vunpack.c.h.b16 %v792
    %v867 = vunpack.c.l.b16 %v793
    %v868 = vunpack.c.h.b16 %v793
    %v869 = vunpack.c.l.b16 %v794
    %v870 = vunpack.c.h.b16 %v794
    %v871 = vunpack.c.l.b16 %v795
    %v872 = vunpack.c.h.b16 %v795
    %v873 = vunpack.c.l.b16 %v796
    %v874 = vunpack.c.h.b16 %v796
    %v875 = vunpack.c.l.b16 %v797
    %v876 = vunpack.c.h.b16 %v797
    %v877 = vunpack.c.l.b16 %v798
    %v878 = vunpack.c.h.b16 %v798
    %v879 = vunpack.c.l.b16 %v799
    %v880 = vunpack.c.h.b16 %v799
    %v881 = vunpack.c.l.b16 %v800
    %v882 = vunpack.c.h.b16 %v800
    %v883 = vunpack.c.l.b16 %v801
    %v884 = vunpack.c.h.b16 %v801
    %v885 = vunpack.c.l.b16 %v802
    %v886 = vunpack.c.h.b16 %v802
    %v887 = vunpack.c.l.b16 %v803
    %v888 = vunpack.c.h.b16 %v803
    %v889 = vunpack.c.l.b16 %v804
    %v890 = vunpack.c.h.b16 %v804
    %v891 = vunpack.c.l.b16 %v805
    %v892 = vunpack.c.h.b16 %v805
    %v893 = vunpack.c.l.b16 %v806
    %v894 = vunpack.c.h.b16 %v806
    %v895 = vunpack.c.l.b16 %v807
    %v896 = vunpack.c.h.b16 %v807
    %v897 = vunpack.c.l.b16 %v808
    %v898 = vunpack.c.h.b16 %v808
    %v899 = vunpack.c.l.b16 %v809
    %v900 = vunpack.c.h.b16 %v809
    %v901 = vunpack.c.l.b16 %v810
    %v902 = vunpack.c.h.b16 %v810
    %v903 = vunpack.c.l.b16 %v811
    %v904 = vunpack.c.h.b16 %v811
    %v905 = vunpack.c.l.b16 %v812
    %v906 = vunpack.c.h.b16 %v812
    %v907 = vunpack.c.l.b16 %v813
    %v908 = vunpack.c.h.b16 %v813
    %v909 = vunpack.c.l.b16 %v814
    %v910 = vunpack.c.h.b16 %v814
    %v911 = vpack.c.b16 %v851, %v847
    %v912 = vpack.c.b16 %v852, %v848
    %v913 = vpack.c.b16 %v853, %v849
    %v914 = vpack.c.b16 %v854, %v850
    %v915 = vpack.c.b16 %v859, %v855
    %v916 = vpack.c.b16 %v860, %v856
    %v917 = vpack.c.b16 %v861, %v857
    %v918 = vpack.c.b16 %v862, %v858
    %v919 = vpack.c.b16 %v867, %v863
    %v920 = vpack.c.b16 %v868, %v864
    %v921 = vpack.c.b16 %v869, %v865
    %v922 = vpack.c.b16 %v870, %v866
    %v923 = vpack.c.b16 %v875, %v871
    %v924 = vpack.c.b16 %v876, %v872
    %v925 = vpack.c.b16 %v877, %v873
    %v926 = vpack.c.b16 %v878, %v874
    %v927 = vpack.c.b16 %v883, %v879
    %v928 = vpack.c.b16 %v884, %v880
    %v929 = vpack.c.b16 %v885, %v881
    %v930 = vpack.c.b16 %v886, %v882
    %v931 = vpack.c.b16 %v891, %v887
    %v932 = vpack.c.b16 %v892, %v888
    %v933 = vpack.c.b16 %v893, %v889
    %v934 = vpack.c.b16 %v894, %v890
    %v935 = vpack.c.b16 %v899, %v895
    %v936 = vpack.c.b16 %v900, %v896
    %v937 = vpack.c.b16 %v901, %v897
    %v938 = vpack.c.b16 %v902, %v898
    %v939 = vpack.c.b16 %v907, %v903
    %v940 = vpack.c.b16 %v908, %v904
    %v941 = vpack.c.b16 %v909, %v905
    %v942 = vpack.c.b16 %v910, %v906
    %975 = vmatprep.subr.bf16.mxu0 %v940
    %976 = vmatpush1.bf16.msra.mxu0 %v939
    %977 = vmatprep.subr.bf16.mxu0 %v936
    %978 = vmatpush1.bf16.msra.mxu0 %v935
    %979 = vmatprep.subr.bf16.mxu0 %v932
    %980 = vmatpush1.bf16.msra.mxu0 %v931
    %981 = vmatprep.subr.bf16.mxu0 %v928
    %982 = vmatpush1.bf16.msra.mxu0 %v927
    %983 = vmatprep.subr.bf16.mxu0 %v924
    %984 = vmatpush1.bf16.msra.mxu0 %v923
    %985 = vmatprep.subr.bf16.mxu0 %v920
    %986 = vmatpush1.bf16.msra.mxu0 %v919
    %987 = vmatprep.subr.bf16.mxu0 %v916
    %988 = vmatpush1.bf16.msra.mxu0 %v915
    %989 = vmatprep.subr.bf16.mxu0 %v912
    %990 = vmatpush1.bf16.msra.mxu0 %v911
    %991 = vmatprep.subr.bf16.mxu0 0
    %992 = vmatpush2.bf16.msra.mxu0 0
    %993 = vmatprep.subr.bf16.mxu0 0
    %994 = vmatpush2.bf16.msra.mxu0 0
    %995 = vmatprep.subr.bf16.mxu0 0
    %996 = vmatpush2.bf16.msra.mxu0 0
    %997 = vmatprep.subr.bf16.mxu0 0
    %998 = vmatpush2.bf16.msra.mxu0 0
    %999 = vmatprep.subr.bf16.mxu0 0
    %1000 = vmatpush2.bf16.msra.mxu0 0
    %1001 = vmatprep.subr.bf16.mxu0 0
    %1002 = vmatpush2.bf16.msra.mxu0 0
    %1003 = vmatprep.subr.bf16.mxu0 0
    %1004 = vmatpush2.bf16.msra.mxu0 0
    %1005 = vmatprep.subr.bf16.mxu0 0
    %1006 = vmatpush2.bf16.msra.mxu0 0
    %1007 = vmatprep.mubr.bf16.mxu0 0
    %1008 = vmatmul.mubr.bf16.gmra.mxu0 %v782
    %v1009 = vpop.f32.mrf.mxu0
    %v1010 = vadd.f32 0.0, %v1009
    %v1011 = vpop.f32.mrf.mxu0
    %v1012 = vadd.f32 0.0, %v1011
    %v1013 = vpop.f32.mrf.mxu0
    %v1014 = vadd.f32 0.0, %v1013
    %v1015 = vpop.f32.mrf.mxu0
    %v1016 = vadd.f32 0.0, %v1015
    %1017 = vdwg.mxu0
    %1018 = vmatprep.subr.bf16.mxu0 %v942
    %1019 = vmatpush1.bf16.msra.mxu0 %v941
    %1020 = vmatprep.subr.bf16.mxu0 %v938
    %1021 = vmatpush1.bf16.msra.mxu0 %v937
    %1022 = vmatprep.subr.bf16.mxu0 %v934
    %1023 = vmatpush1.bf16.msra.mxu0 %v933
    %1024 = vmatprep.subr.bf16.mxu0 %v930
    %1025 = vmatpush1.bf16.msra.mxu0 %v929
    %1026 = vmatprep.subr.bf16.mxu0 %v926
    %1027 = vmatpush1.bf16.msra.mxu0 %v925
    %1028 = vmatprep.subr.bf16.mxu0 %v922
    %1029 = vmatpush1.bf16.msra.mxu0 %v921
    %1030 = vmatprep.subr.bf16.mxu0 %v918
    %1031 = vmatpush1.bf16.msra.mxu0 %v917
    %1032 = vmatprep.subr.bf16.mxu0 %v914
    %1033 = vmatpush1.bf16.msra.mxu0 %v913
    %1034 = vmatprep.subr.bf16.mxu0 0
    %1035 = vmatpush2.bf16.msra.mxu0 0
    %1036 = vmatprep.subr.bf16.mxu0 0
    %1037 = vmatpush2.bf16.msra.mxu0 0
    %1038 = vmatprep.subr.bf16.mxu0 0
    %1039 = vmatpush2.bf16.msra.mxu0 0
    %1040 = vmatprep.subr.bf16.mxu0 0
    %1041 = vmatpush2.bf16.msra.mxu0 0
    %1042 = vmatprep.subr.bf16.mxu0 0
    %1043 = vmatpush2.bf16.msra.mxu0 0
    %1044 = vmatprep.subr.bf16.mxu0 0
    %1045 = vmatpush2.bf16.msra.mxu0 0
    %1046 = vmatprep.subr.bf16.mxu0 0
    %1047 = vmatpush2.bf16.msra.mxu0 0
    %1048 = vmatprep.subr.bf16.mxu0 0
    %1049 = vmatpush2.bf16.msra.mxu0 0
    %1050 = vmatprep.mubr.bf16.mxu0 0
    %1051 = vmatmul.mubr.bf16.gmra.mxu0 %v782
    %v1052 = vpop.f32.mrf.mxu0
    %v1053 = vadd.f32 0.0, %v1052
    %v1054 = vpop.f32.mrf.mxu0
    %v1055 = vadd.f32 0.0, %v1054
    %v1056 = vpop.f32.mrf.mxu0
    %v1057 = vadd.f32 0.0, %v1056
    %v1058 = vpop.f32.mrf.mxu0
    %v1059 = vadd.f32 0.0, %v1058
    %1060 = vdwg.mxu0
    %v1061 = vadd.f32 %v774, %v1010
    %v1062 = vadd.f32 %v775, %v1012
    %v1063 = vadd.f32 %v776, %v1053
    %v1064 = vadd.f32 %v777, %v1055
    %v1065 = vadd.f32 %v778, %v1014
    %v1066 = vadd.f32 %v779, %v1016
    %v1067 = vadd.f32 %v780, %v1057
    %v1068 = vadd.f32 %v781, %v1059
    %s1069 = smul.u32 16, 4
    %s1070 = smul.addr %s1069, 4
    %s1071 = scalar_lea.vmem %s1, %s1070
    %v1072 = vld [vmem:[%s1071] sm:$0xff]
    %v1073 = vld [vmem:[%s1071 + $0x8] sm:$0xff]
    %v1074 = vld [vmem:[%s1071 + $0x10] sm:$0xff]
    %v1075 = vld [vmem:[%s1071 + $0x18] sm:$0xff]
    %v1076 = vunpack.c.l.bf16 %v1072
    %v1077 = vunpack.c.h.bf16 %v1072
    %v1078 = vunpack.c.l.bf16 %v1073
    %v1079 = vunpack.c.h.bf16 %v1073
    %v1080 = vunpack.c.l.bf16 %v1074
    %v1081 = vunpack.c.h.bf16 %v1074
    %v1082 = vunpack.c.l.bf16 %v1075
    %v1083 = vunpack.c.h.bf16 %v1075
    %v1084 = vpack.c.bf16 %v751, %v750
    %v1085 = vld [vmem:[%s4] sm:$0xff]
    %v1086 = vld [vmem:[%s4 + $0x8] sm:$0xff]
    %v1087 = vld [vmem:[%s4 + $0x10] sm:$0xff]
    %v1088 = vld [vmem:[%s4 + $0x18] sm:$0xff]
    %v1089 = vld [vmem:[%s4 + $0x20] sm:$0xff]
    %v1090 = vld [vmem:[%s4 + $0x28] sm:$0xff]
    %v1091 = vld [vmem:[%s4 + $0x30] sm:$0xff]
    %v1092 = vld [vmem:[%s4 + $0x38] sm:$0xff]
    %v1093 = vld [vmem:[%s4 + $0x40] sm:$0xff]
    %v1094 = vld [vmem:[%s4 + $0x48] sm:$0xff]
    %v1095 = vld [vmem:[%s4 + $0x50] sm:$0xff]
    %v1096 = vld [vmem:[%s4 + $0x58] sm:$0xff]
    %v1097 = vld [vmem:[%s4 + $0x60] sm:$0xff]
    %v1098 = vld [vmem:[%s4 + $0x68] sm:$0xff]
    %v1099 = vld [vmem:[%s4 + $0x70] sm:$0xff]
    %v1100 = vld [vmem:[%s4 + $0x78] sm:$0xff]
    %v1101 = vld [vmem:[%s4 + $0x80] sm:$0xff]
    %v1102 = vld [vmem:[%s4 + $0x88] sm:$0xff]
    %v1103 = vld [vmem:[%s4 + $0x90] sm:$0xff]
    %v1104 = vld [vmem:[%s4 + $0x98] sm:$0xff]
    %v1105 = vld [vmem:[%s4 + $0xa0] sm:$0xff]
    %v1106 = vld [vmem:[%s4 + $0xa8] sm:$0xff]
    %v1107 = vld [vmem:[%s4 + $0xb0] sm:$0xff]
    %v1108 = vld [vmem:[%s4 + $0xb8] sm:$0xff]
    %v1109 = vld [vmem:[%s4 + $0xc0] sm:$0xff]
    %v1110 = vld [vmem:[%s4 + $0xc8] sm:$0xff]
    %v1111 = vld [vmem:[%s4 + $0xd0] sm:$0xff]
    %v1112 = vld [vmem:[%s4 + $0xd8] sm:$0xff]
    %v1113 = vld [vmem:[%s4 + $0xe0] sm:$0xff]
    %v1114 = vld [vmem:[%s4 + $0xe8] sm:$0xff]
    %v1115 = vld [vmem:[%s4 + $0xf0] sm:$0xff]
    %v1116 = vld [vmem:[%s4 + $0xf8] sm:$0xff]
    %v1149 = vunpack.c.l.b16 %v1085
    %v1150 = vunpack.c.h.b16 %v1085
    %v1151 = vunpack.c.l.b16 %v1086
    %v1152 = vunpack.c.h.b16 %v1086
    %v1153 = vunpack.c.l.b16 %v1087
    %v1154 = vunpack.c.h.b16 %v1087
    %v1155 = vunpack.c.l.b16 %v1088
    %v1156 = vunpack.c.h.b16 %v1088
    %v1157 = vunpack.c.l.b16 %v1089
    %v1158 = vunpack.c.h.b16 %v1089
    %v1159 = vunpack.c.l.b16 %v1090
    %v1160 = vunpack.c.h.b16 %v1090
    %v1161 = vunpack.c.l.b16 %v1091
    %v1162 = vunpack.c.h.b16 %v1091
    %v1163 = vunpack.c.l.b16 %v1092
    %v1164 = vunpack.c.h.b16 %v1092
    %v1165 = vunpack.c.l.b16 %v1093
    %v1166 = vunpack.c.h.b16 %v1093
    %v1167 = vunpack.c.l.b16 %v1094
    %v1168 = vunpack.c.h.b16 %v1094
    %v1169 = vunpack.c.l.b16 %v1095
    %v1170 = vunpack.c.h.b16 %v1095
    %v1171 = vunpack.c.l.b16 %v1096
    %v1172 = vunpack.c.h.b16 %v1096
    %v1173 = vunpack.c.l.b16 %v1097
    %v1174 = vunpack.c.h.b16 %v1097
    %v1175 = vunpack.c.l.b16 %v1098
    %v1176 = vunpack.c.h.b16 %v1098
    %v1177 = vunpack.c.l.b16 %v1099
    %v1178 = vunpack.c.h.b16 %v1099
    %v1179 = vunpack.c.l.b16 %v1100
    %v1180 = vunpack.c.h.b16 %v1100
    %v1181 = vunpack.c.l.b16 %v1101
    %v1182 = vunpack.c.h.b16 %v1101
    %v1183 = vunpack.c.l.b16 %v1102
    %v1184 = vunpack.c.h.b16 %v1102
    %v1185 = vunpack.c.l.b16 %v1103
    %v1186 = vunpack.c.h.b16 %v1103
    %v1187 = vunpack.c.l.b16 %v1104
    %v1188 = vunpack.c.h.b16 %v1104
    %v1189 = vunpack.c.l.b16 %v1105
    %v1190 = vunpack.c.h.b16 %v1105
    %v1191 = vunpack.c.l.b16 %v1106
    %v1192 = vunpack.c.h.b16 %v1106
    %v1193 = vunpack.c.l.b16 %v1107
    %v1194 = vunpack.c.h.b16 %v1107
    %v1195 = vunpack.c.l.b16 %v1108
    %v1196 = vunpack.c.h.b16 %v1108
    %v1197 = vunpack.c.l.b16 %v1109
    %v1198 = vunpack.c.h.b16 %v1109
    %v1199 = vunpack.c.l.b16 %v1110
    %v1200 = vunpack.c.h.b16 %v1110
    %v1201 = vunpack.c.l.b16 %v1111
    %v1202 = vunpack.c.h.b16 %v1111
    %v1203 = vunpack.c.l.b16 %v1112
    %v1204 = vunpack.c.h.b16 %v1112
    %v1205 = vunpack.c.l.b16 %v1113
    %v1206 = vunpack.c.h.b16 %v1113
    %v1207 = vunpack.c.l.b16 %v1114
    %v1208 = vunpack.c.h.b16 %v1114
    %v1209 = vunpack.c.l.b16 %v1115
    %v1210 = vunpack.c.h.b16 %v1115
    %v1211 = vunpack.c.l.b16 %v1116
    %v1212 = vunpack.c.h.b16 %v1116
    %v1213 = vpack.c.b16 %v1153, %v1149
    %v1214 = vpack.c.b16 %v1154, %v1150
    %v1215 = vpack.c.b16 %v1155, %v1151
    %v1216 = vpack.c.b16 %v1156, %v1152
    %v1217 = vpack.c.b16 %v1161, %v1157
    %v1218 = vpack.c.b16 %v1162, %v1158
    %v1219 = vpack.c.b16 %v1163, %v1159
    %v1220 = vpack.c.b16 %v1164, %v1160
    %v1221 = vpack.c.b16 %v1169, %v1165
    %v1222 = vpack.c.b16 %v1170, %v1166
    %v1223 = vpack.c.b16 %v1171, %v1167
    %v1224 = vpack.c.b16 %v1172, %v1168
    %v1225 = vpack.c.b16 %v1177, %v1173
    %v1226 = vpack.c.b16 %v1178, %v1174
    %v1227 = vpack.c.b16 %v1179, %v1175
    %v1228 = vpack.c.b16 %v1180, %v1176
    %v1229 = vpack.c.b16 %v1185, %v1181
    %v1230 = vpack.c.b16 %v1186, %v1182
    %v1231 = vpack.c.b16 %v1187, %v1183
    %v1232 = vpack.c.b16 %v1188, %v1184
    %v1233 = vpack.c.b16 %v1193, %v1189
    %v1234 = vpack.c.b16 %v1194, %v1190
    %v1235 = vpack.c.b16 %v1195, %v1191
    %v1236 = vpack.c.b16 %v1196, %v1192
    %v1237 = vpack.c.b16 %v1201, %v1197
    %v1238 = vpack.c.b16 %v1202, %v1198
    %v1239 = vpack.c.b16 %v1203, %v1199
    %v1240 = vpack.c.b16 %v1204, %v1200
    %v1241 = vpack.c.b16 %v1209, %v1205
    %v1242 = vpack.c.b16 %v1210, %v1206
    %v1243 = vpack.c.b16 %v1211, %v1207
    %v1244 = vpack.c.b16 %v1212, %v1208
    %1277 = vmatprep.subr.bf16.mxu0 %v1242
    %1278 = vmatpush1.bf16.msra.mxu0 %v1241
    %1279 = vmatprep.subr.bf16.mxu0 %v1238
    %1280 = vmatpush1.bf16.msra.mxu0 %v1237
    %1281 = vmatprep.subr.bf16.mxu0 %v1234
    %1282 = vmatpush1.bf16.msra.mxu0 %v1233
    %1283 = vmatprep.subr.bf16.mxu0 %v1230
    %1284 = vmatpush1.bf16.msra.mxu0 %v1229
    %1285 = vmatprep.subr.bf16.mxu0 %v1226
    %1286 = vmatpush1.bf16.msra.mxu0 %v1225
    %1287 = vmatprep.subr.bf16.mxu0 %v1222
    %1288 = vmatpush1.bf16.msra.mxu0 %v1221
    %1289 = vmatprep.subr.bf16.mxu0 %v1218
    %1290 = vmatpush1.bf16.msra.mxu0 %v1217
    %1291 = vmatprep.subr.bf16.mxu0 %v1214
    %1292 = vmatpush1.bf16.msra.mxu0 %v1213
    %1293 = vmatprep.subr.bf16.mxu0 0
    %1294 = vmatpush2.bf16.msra.mxu0 0
    %1295 = vmatprep.subr.bf16.mxu0 0
    %1296 = vmatpush2.bf16.msra.mxu0 0
    %1297 = vmatprep.subr.bf16.mxu0 0
    %1298 = vmatpush2.bf16.msra.mxu0 0
    %1299 = vmatprep.subr.bf16.mxu0 0
    %1300 = vmatpush2.bf16.msra.mxu0 0
    %1301 = vmatprep.subr.bf16.mxu0 0
    %1302 = vmatpush2.bf16.msra.mxu0 0
    %1303 = vmatprep.subr.bf16.mxu0 0
    %1304 = vmatpush2.bf16.msra.mxu0 0
    %1305 = vmatprep.subr.bf16.mxu0 0
    %1306 = vmatpush2.bf16.msra.mxu0 0
    %1307 = vmatprep.subr.bf16.mxu0 0
    %1308 = vmatpush2.bf16.msra.mxu0 0
    %1309 = vmatprep.mubr.bf16.mxu0 0
    %1310 = vmatmul.mubr.bf16.gmra.mxu0 %v1084
    %v1311 = vpop.f32.mrf.mxu0
    %v1312 = vadd.f32 0.0, %v1311
    %v1313 = vpop.f32.mrf.mxu0
    %v1314 = vadd.f32 0.0, %v1313
    %v1315 = vpop.f32.mrf.mxu0
    %v1316 = vadd.f32 0.0, %v1315
    %v1317 = vpop.f32.mrf.mxu0
    %v1318 = vadd.f32 0.0, %v1317
    %1319 = vdwg.mxu0
    %1320 = vmatprep.subr.bf16.mxu0 %v1244
    %1321 = vmatpush1.bf16.msra.mxu0 %v1243
    %1322 = vmatprep.subr.bf16.mxu0 %v1240
    %1323 = vmatpush1.bf16.msra.mxu0 %v1239
    %1324 = vmatprep.subr.bf16.mxu0 %v1236
    %1325 = vmatpush1.bf16.msra.mxu0 %v1235
    %1326 = vmatprep.subr.bf16.mxu0 %v1232
    %1327 = vmatpush1.bf16.msra.mxu0 %v1231
    %1328 = vmatprep.subr.bf16.mxu0 %v1228
    %1329 = vmatpush1.bf16.msra.mxu0 %v1227
    %1330 = vmatprep.subr.bf16.mxu0 %v1224
    %1331 = vmatpush1.bf16.msra.mxu0 %v1223
    %1332 = vmatprep.subr.bf16.mxu0 %v1220
    %1333 = vmatpush1.bf16.msra.mxu0 %v1219
    %1334 = vmatprep.subr.bf16.mxu0 %v1216
    %1335 = vmatpush1.bf16.msra.mxu0 %v1215
    %1336 = vmatprep.subr.bf16.mxu0 0
    %1337 = vmatpush2.bf16.msra.mxu0 0
    %1338 = vmatprep.subr.bf16.mxu0 0
    %1339 = vmatpush2.bf16.msra.mxu0 0
    %1340 = vmatprep.subr.bf16.mxu0 0
    %1341 = vmatpush2.bf16.msra.mxu0 0
    %1342 = vmatprep.subr.bf16.mxu0 0
    %1343 = vmatpush2.bf16.msra.mxu0 0
    %1344 = vmatprep.subr.bf16.mxu0 0
    %1345 = vmatpush2.bf16.msra.mxu0 0
    %1346 = vmatprep.subr.bf16.mxu0 0
    %1347 = vmatpush2.bf16.msra.mxu0 0
    %1348 = vmatprep.subr.bf16.mxu0 0
    %1349 = vmatpush2.bf16.msra.mxu0 0
    %1350 = vmatprep.subr.bf16.mxu0 0
    %1351 = vmatpush2.bf16.msra.mxu0 0
    %1352 = vmatprep.mubr.bf16.mxu0 0
    %1353 = vmatmul.mubr.bf16.gmra.mxu0 %v1084
    %v1354 = vpop.f32.mrf.mxu0
    %v1355 = vadd.f32 0.0, %v1354
    %v1356 = vpop.f32.mrf.mxu0
    %v1357 = vadd.f32 0.0, %v1356
    %v1358 = vpop.f32.mrf.mxu0
    %v1359 = vadd.f32 0.0, %v1358
    %v1360 = vpop.f32.mrf.mxu0
    %v1361 = vadd.f32 0.0, %v1360
    %1362 = vdwg.mxu0
    %v1363 = vadd.f32 %v1076, %v1312
    %v1364 = vadd.f32 %v1077, %v1314
    %v1365 = vadd.f32 %v1078, %v1355
    %v1366 = vadd.f32 %v1079, %v1357
    %v1367 = vadd.f32 %v1080, %v1316
    %v1368 = vadd.f32 %v1081, %v1318
    %v1369 = vadd.f32 %v1082, %v1359
    %v1370 = vadd.f32 %v1083, %v1361
    %vm1371 = vcmp.gt.s32.totalorder %v46, 1
    %vm1372 = vcmp.gt.s32.totalorder %v47, 1
    %v1373 = vmul.f32 %v1061, 0.5
    %v1374 = vmul.f32 %v1065, 0.5
    %v1375 = vtanh.pop %v1373
    %v1376 = vtanh.pop %v1374
    %v1377 = vmul.f32 %v1375, 0.5
    %v1378 = vmul.f32 %v1376, 0.5
    %v1379 = vadd.f32 %v1377, 0.5
    %v1380 = vadd.f32 %v1378, 0.5
    %v1381 = vmul.f32 %v1062, 0.5
    %v1382 = vmul.f32 %v1066, 0.5
    %v1383 = vtanh.pop %v1381
    %v1384 = vtanh.pop %v1382
    %v1385 = vmul.f32 %v1383, 0.5
    %v1386 = vmul.f32 %v1384, 0.5
    %v1387 = vadd.f32 %v1385, 0.5
    %v1388 = vadd.f32 %v1386, 0.5
    %v1389 = vtanh.pop %v1063
    %v1390 = vtanh.pop %v1067
    %v1391 = vmul.f32 %v1064, 0.5
    %v1392 = vmul.f32 %v1068, 0.5
    %v1393 = vtanh.pop %v1391
    %v1394 = vtanh.pop %v1392
    %v1395 = vmul.f32 %v1393, 0.5
    %v1396 = vmul.f32 %v1394, 0.5
    %v1397 = vadd.f32 %v1395, 0.5
    %v1398 = vadd.f32 %v1396, 0.5
    %v1399 = vmul.f32 %v1387, %v700
    %v1400 = vmul.f32 %v1388, %v701
    %v1401 = vmul.f32 %v1379, %v1389
    %v1402 = vmul.f32 %v1380, %v1390
    %v1403 = vadd.f32 %v1399, %v1401
    %v1404 = vadd.f32 %v1400, %v1402
    %v1405 = vtanh.pop %v1403
    %v1406 = vtanh.pop %v1404
    %v1407 = vmul.f32 %v1397, %v1405
    %v1408 = vmul.f32 %v1398, %v1406
    %v1409 = vsel %vm1371, 1, 0
    %v1410 = vsel %vm1372, 1, 0
    %1411 = vset.pattern.permute.xlu0 0
    %1412 = vperm.xlu0 %1411, %v1409
    %v1413 = vpop.permute.xlu0 %1412
    %1414 = vset.pattern.permute.xlu0 0
    %1415 = vperm.xlu0 %1414, %v1410
    %v1416 = vpop.permute.xlu0 %1415
    %vm1417 = vcmp.eq.s32.totalorder %v1413, 1
    %vm1418 = vcmp.eq.s32.totalorder %v1416, 1
    %v1419 = vsel %vm1417, %v1407, %v698
    %v1420 = vsel %vm1418, %v1408, %v699
    %v1421 = vsel %vm1417, %v1403, %v700
    %v1422 = vsel %vm1418, %v1404, %v701
    %v1423 = vsel %vm1417, %v1407, 0.0
    %v1424 = vsel %vm1418, %v1408, 0.0
    %vm1425 = vcmp.gt.s32.totalorder %v46, 8
    %vm1426 = vcmp.gt.s32.totalorder %v47, 8
    %v1427 = vmul.f32 %v1363, 0.5
    %v1428 = vmul.f32 %v1367, 0.5
    %v1429 = vtanh.pop %v1427
    %v1430 = vtanh.pop %v1428
    %v1431 = vmul.f32 %v1429, 0.5
    %v1432 = vmul.f32 %v1430, 0.5
    %v1433 = vadd.f32 %v1431, 0.5
    %v1434 = vadd.f32 %v1432, 0.5
    %v1435 = vmul.f32 %v1364, 0.5
    %v1436 = vmul.f32 %v1368, 0.5
    %v1437 = vtanh.pop %v1435
    %v1438 = vtanh.pop %v1436
    %v1439 = vmul.f32 %v1437, 0.5
    %v1440 = vmul.f32 %v1438, 0.5
    %v1441 = vadd.f32 %v1439, 0.5
    %v1442 = vadd.f32 %v1440, 0.5
    %v1443 = vtanh.pop %v1365
    %v1444 = vtanh.pop %v1369
    %v1445 = vmul.f32 %v1366, 0.5
    %v1446 = vmul.f32 %v1370, 0.5
    %v1447 = vtanh.pop %v1445
    %v1448 = vtanh.pop %v1446
    %v1449 = vmul.f32 %v1447, 0.5
    %v1450 = vmul.f32 %v1448, 0.5
    %v1451 = vadd.f32 %v1449, 0.5
    %v1452 = vadd.f32 %v1450, 0.5
    %v1453 = vmul.f32 %v1441, %v752
    %v1454 = vmul.f32 %v1442, %v753
    %v1455 = vmul.f32 %v1433, %v1443
    %v1456 = vmul.f32 %v1434, %v1444
    %v1457 = vadd.f32 %v1453, %v1455
    %v1458 = vadd.f32 %v1454, %v1456
    %v1459 = vtanh.pop %v1457
    %v1460 = vtanh.pop %v1458
    %v1461 = vmul.f32 %v1451, %v1459
    %v1462 = vmul.f32 %v1452, %v1460
    %v1463 = vsel %vm1425, 1, 0
    %v1464 = vsel %vm1426, 1, 0
    %1465 = vset.pattern.permute.xlu0 0
    %1466 = vperm.xlu0 %1465, %v1463
    %v1467 = vpop.permute.xlu0 %1466
    %1468 = vset.pattern.permute.xlu0 0
    %1469 = vperm.xlu0 %1468, %v1464
    %v1470 = vpop.permute.xlu0 %1469
    %vm1471 = vcmp.eq.s32.totalorder %v1467, 1
    %vm1472 = vcmp.eq.s32.totalorder %v1470, 1
    %v1473 = vsel %vm1471, %v1461, %v750
    %v1474 = vsel %vm1472, %v1462, %v751
    %v1475 = vsel %vm1471, %v1457, %v752
    %v1476 = vsel %vm1472, %v1458, %v753
    %v1477 = vsel %vm1471, %v1461, 0.0
    %v1478 = vsel %vm1472, %v1462, 0.0
    %s1479 = scalar_lea.vmem [#allocation2], 16
    %v1480 = vld [vmem:[%s1479] sm:$0xff]
    %v1481 = vld [vmem:[%s1479 + $0x8] sm:$0xff]
    %v1482 = vadd.f32 %v1480, %v1423
    %v1483 = vadd.f32 %v1481, %v1424
    %1484 = vst [vmem:[%s1479] sm:$0xff] %v1482
    %1485 = vst [vmem:[%s1479 + $0x8] sm:$0xff] %v1483
    %s1486 = scalar_lea.vmem [#allocation2], 128
    %v1487 = vld [vmem:[%s1486] sm:$0xff]
    %v1488 = vld [vmem:[%s1486 + $0x8] sm:$0xff]
    %v1489 = vadd.f32 %v1487, %v1477
    %v1490 = vadd.f32 %v1488, %v1478
    %1491 = vst [vmem:[%s1486] sm:$0xff] %v1489
    %1492 = vst [vmem:[%s1486 + $0x8] sm:$0xff] %v1490
    %s1493 = smul.u32 4, 4
    %s1494 = smul.addr %s1493, 4
    %s1495 = scalar_lea.vmem %s0, %s1494
    %v1496 = vld [vmem:[%s1495] sm:$0xff]
    %v1497 = vld [vmem:[%s1495 + $0x8] sm:$0xff]
    %v1498 = vld [vmem:[%s1495 + $0x10] sm:$0xff]
    %v1499 = vld [vmem:[%s1495 + $0x18] sm:$0xff]
    %v1500 = vunpack.c.l.bf16 %v1496
    %v1501 = vunpack.c.h.bf16 %v1496
    %v1502 = vunpack.c.l.bf16 %v1497
    %v1503 = vunpack.c.h.bf16 %v1497
    %v1504 = vunpack.c.l.bf16 %v1498
    %v1505 = vunpack.c.h.bf16 %v1498
    %v1506 = vunpack.c.l.bf16 %v1499
    %v1507 = vunpack.c.h.bf16 %v1499
    %v1508 = vpack.c.bf16 %v1420, %v1419
    %v1509 = vld [vmem:[%s3] sm:$0xff]
    %v1510 = vld [vmem:[%s3 + $0x8] sm:$0xff]
    %v1511 = vld [vmem:[%s3 + $0x10] sm:$0xff]
    %v1512 = vld [vmem:[%s3 + $0x18] sm:$0xff]
    %v1513 = vld [vmem:[%s3 + $0x20] sm:$0xff]
    %v1514 = vld [vmem:[%s3 + $0x28] sm:$0xff]
    %v1515 = vld [vmem:[%s3 + $0x30] sm:$0xff]
    %v1516 = vld [vmem:[%s3 + $0x38] sm:$0xff]
    %v1517 = vld [vmem:[%s3 + $0x40] sm:$0xff]
    %v1518 = vld [vmem:[%s3 + $0x48] sm:$0xff]
    %v1519 = vld [vmem:[%s3 + $0x50] sm:$0xff]
    %v1520 = vld [vmem:[%s3 + $0x58] sm:$0xff]
    %v1521 = vld [vmem:[%s3 + $0x60] sm:$0xff]
    %v1522 = vld [vmem:[%s3 + $0x68] sm:$0xff]
    %v1523 = vld [vmem:[%s3 + $0x70] sm:$0xff]
    %v1524 = vld [vmem:[%s3 + $0x78] sm:$0xff]
    %v1525 = vld [vmem:[%s3 + $0x80] sm:$0xff]
    %v1526 = vld [vmem:[%s3 + $0x88] sm:$0xff]
    %v1527 = vld [vmem:[%s3 + $0x90] sm:$0xff]
    %v1528 = vld [vmem:[%s3 + $0x98] sm:$0xff]
    %v1529 = vld [vmem:[%s3 + $0xa0] sm:$0xff]
    %v1530 = vld [vmem:[%s3 + $0xa8] sm:$0xff]
    %v1531 = vld [vmem:[%s3 + $0xb0] sm:$0xff]
    %v1532 = vld [vmem:[%s3 + $0xb8] sm:$0xff]
    %v1533 = vld [vmem:[%s3 + $0xc0] sm:$0xff]
    %v1534 = vld [vmem:[%s3 + $0xc8] sm:$0xff]
    %v1535 = vld [vmem:[%s3 + $0xd0] sm:$0xff]
    %v1536 = vld [vmem:[%s3 + $0xd8] sm:$0xff]
    %v1537 = vld [vmem:[%s3 + $0xe0] sm:$0xff]
    %v1538 = vld [vmem:[%s3 + $0xe8] sm:$0xff]
    %v1539 = vld [vmem:[%s3 + $0xf0] sm:$0xff]
    %v1540 = vld [vmem:[%s3 + $0xf8] sm:$0xff]
    %v1573 = vunpack.c.l.b16 %v1509
    %v1574 = vunpack.c.h.b16 %v1509
    %v1575 = vunpack.c.l.b16 %v1510
    %v1576 = vunpack.c.h.b16 %v1510
    %v1577 = vunpack.c.l.b16 %v1511
    %v1578 = vunpack.c.h.b16 %v1511
    %v1579 = vunpack.c.l.b16 %v1512
    %v1580 = vunpack.c.h.b16 %v1512
    %v1581 = vunpack.c.l.b16 %v1513
    %v1582 = vunpack.c.h.b16 %v1513
    %v1583 = vunpack.c.l.b16 %v1514
    %v1584 = vunpack.c.h.b16 %v1514
    %v1585 = vunpack.c.l.b16 %v1515
    %v1586 = vunpack.c.h.b16 %v1515
    %v1587 = vunpack.c.l.b16 %v1516
    %v1588 = vunpack.c.h.b16 %v1516
    %v1589 = vunpack.c.l.b16 %v1517
    %v1590 = vunpack.c.h.b16 %v1517
    %v1591 = vunpack.c.l.b16 %v1518
    %v1592 = vunpack.c.h.b16 %v1518
    %v1593 = vunpack.c.l.b16 %v1519
    %v1594 = vunpack.c.h.b16 %v1519
    %v1595 = vunpack.c.l.b16 %v1520
    %v1596 = vunpack.c.h.b16 %v1520
    %v1597 = vunpack.c.l.b16 %v1521
    %v1598 = vunpack.c.h.b16 %v1521
    %v1599 = vunpack.c.l.b16 %v1522
    %v1600 = vunpack.c.h.b16 %v1522
    %v1601 = vunpack.c.l.b16 %v1523
    %v1602 = vunpack.c.h.b16 %v1523
    %v1603 = vunpack.c.l.b16 %v1524
    %v1604 = vunpack.c.h.b16 %v1524
    %v1605 = vunpack.c.l.b16 %v1525
    %v1606 = vunpack.c.h.b16 %v1525
    %v1607 = vunpack.c.l.b16 %v1526
    %v1608 = vunpack.c.h.b16 %v1526
    %v1609 = vunpack.c.l.b16 %v1527
    %v1610 = vunpack.c.h.b16 %v1527
    %v1611 = vunpack.c.l.b16 %v1528
    %v1612 = vunpack.c.h.b16 %v1528
    %v1613 = vunpack.c.l.b16 %v1529
    %v1614 = vunpack.c.h.b16 %v1529
    %v1615 = vunpack.c.l.b16 %v1530
    %v1616 = vunpack.c.h.b16 %v1530
    %v1617 = vunpack.c.l.b16 %v1531
    %v1618 = vunpack.c.h.b16 %v1531
    %v1619 = vunpack.c.l.b16 %v1532
    %v1620 = vunpack.c.h.b16 %v1532
    %v1621 = vunpack.c.l.b16 %v1533
    %v1622 = vunpack.c.h.b16 %v1533
    %v1623 = vunpack.c.l.b16 %v1534
    %v1624 = vunpack.c.h.b16 %v1534
    %v1625 = vunpack.c.l.b16 %v1535
    %v1626 = vunpack.c.h.b16 %v1535
    %v1627 = vunpack.c.l.b16 %v1536
    %v1628 = vunpack.c.h.b16 %v1536
    %v1629 = vunpack.c.l.b16 %v1537
    %v1630 = vunpack.c.h.b16 %v1537
    %v1631 = vunpack.c.l.b16 %v1538
    %v1632 = vunpack.c.h.b16 %v1538
    %v1633 = vunpack.c.l.b16 %v1539
    %v1634 = vunpack.c.h.b16 %v1539
    %v1635 = vunpack.c.l.b16 %v1540
    %v1636 = vunpack.c.h.b16 %v1540
    %v1637 = vpack.c.b16 %v1577, %v1573
    %v1638 = vpack.c.b16 %v1578, %v1574
    %v1639 = vpack.c.b16 %v1579, %v1575
    %v1640 = vpack.c.b16 %v1580, %v1576
    %v1641 = vpack.c.b16 %v1585, %v1581
    %v1642 = vpack.c.b16 %v1586, %v1582
    %v1643 = vpack.c.b16 %v1587, %v1583
    %v1644 = vpack.c.b16 %v1588, %v1584
    %v1645 = vpack.c.b16 %v1593, %v1589
    %v1646 = vpack.c.b16 %v1594, %v1590
    %v1647 = vpack.c.b16 %v1595, %v1591
    %v1648 = vpack.c.b16 %v1596, %v1592
    %v1649 = vpack.c.b16 %v1601, %v1597
    %v1650 = vpack.c.b16 %v1602, %v1598
    %v1651 = vpack.c.b16 %v1603, %v1599
    %v1652 = vpack.c.b16 %v1604, %v1600
    %v1653 = vpack.c.b16 %v1609, %v1605
    %v1654 = vpack.c.b16 %v1610, %v1606
    %v1655 = vpack.c.b16 %v1611, %v1607
    %v1656 = vpack.c.b16 %v1612, %v1608
    %v1657 = vpack.c.b16 %v1617, %v1613
    %v1658 = vpack.c.b16 %v1618, %v1614
    %v1659 = vpack.c.b16 %v1619, %v1615
    %v1660 = vpack.c.b16 %v1620, %v1616
    %v1661 = vpack.c.b16 %v1625, %v1621
    %v1662 = vpack.c.b16 %v1626, %v1622
    %v1663 = vpack.c.b16 %v1627, %v1623
    %v1664 = vpack.c.b16 %v1628, %v1624
    %v1665 = vpack.c.b16 %v1633, %v1629
    %v1666 = vpack.c.b16 %v1634, %v1630
    %v1667 = vpack.c.b16 %v1635, %v1631
    %v1668 = vpack.c.b16 %v1636, %v1632
    %1701 = vmatprep.subr.bf16.mxu0 %v1666
    %1702 = vmatpush1.bf16.msra.mxu0 %v1665
    %1703 = vmatprep.subr.bf16.mxu0 %v1662
    %1704 = vmatpush1.bf16.msra.mxu0 %v1661
    %1705 = vmatprep.subr.bf16.mxu0 %v1658
    %1706 = vmatpush1.bf16.msra.mxu0 %v1657
    %1707 = vmatprep.subr.bf16.mxu0 %v1654
    %1708 = vmatpush1.bf16.msra.mxu0 %v1653
    %1709 = vmatprep.subr.bf16.mxu0 %v1650
    %1710 = vmatpush1.bf16.msra.mxu0 %v1649
    %1711 = vmatprep.subr.bf16.mxu0 %v1646
    %1712 = vmatpush1.bf16.msra.mxu0 %v1645
    %1713 = vmatprep.subr.bf16.mxu0 %v1642
    %1714 = vmatpush1.bf16.msra.mxu0 %v1641
    %1715 = vmatprep.subr.bf16.mxu0 %v1638
    %1716 = vmatpush1.bf16.msra.mxu0 %v1637
    %1717 = vmatprep.subr.bf16.mxu0 0
    %1718 = vmatpush2.bf16.msra.mxu0 0
    %1719 = vmatprep.subr.bf16.mxu0 0
    %1720 = vmatpush2.bf16.msra.mxu0 0
    %1721 = vmatprep.subr.bf16.mxu0 0
    %1722 = vmatpush2.bf16.msra.mxu0 0
    %1723 = vmatprep.subr.bf16.mxu0 0
    %1724 = vmatpush2.bf16.msra.mxu0 0
    %1725 = vmatprep.subr.bf16.mxu0 0
    %1726 = vmatpush2.bf16.msra.mxu0 0
    %1727 = vmatprep.subr.bf16.mxu0 0
    %1728 = vmatpush2.bf16.msra.mxu0 0
    %1729 = vmatprep.subr.bf16.mxu0 0
    %1730 = vmatpush2.bf16.msra.mxu0 0
    %1731 = vmatprep.subr.bf16.mxu0 0
    %1732 = vmatpush2.bf16.msra.mxu0 0
    %1733 = vmatprep.mubr.bf16.mxu0 0
    %1734 = vmatmul.mubr.bf16.gmra.mxu0 %v1508
    %v1735 = vpop.f32.mrf.mxu0
    %v1736 = vadd.f32 0.0, %v1735
    %v1737 = vpop.f32.mrf.mxu0
    %v1738 = vadd.f32 0.0, %v1737
    %v1739 = vpop.f32.mrf.mxu0
    %v1740 = vadd.f32 0.0, %v1739
    %v1741 = vpop.f32.mrf.mxu0
    %v1742 = vadd.f32 0.0, %v1741
    %1743 = vdwg.mxu0
    %1744 = vmatprep.subr.bf16.mxu0 %v1668
    %1745 = vmatpush1.bf16.msra.mxu0 %v1667
    %1746 = vmatprep.subr.bf16.mxu0 %v1664
    %1747 = vmatpush1.bf16.msra.mxu0 %v1663
    %1748 = vmatprep.subr.bf16.mxu0 %v1660
    %1749 = vmatpush1.bf16.msra.mxu0 %v1659
    %1750 = vmatprep.subr.bf16.mxu0 %v1656
    %1751 = vmatpush1.bf16.msra.mxu0 %v1655
    %1752 = vmatprep.subr.bf16.mxu0 %v1652
    %1753 = vmatpush1.bf16.msra.mxu0 %v1651
    %1754 = vmatprep.subr.bf16.mxu0 %v1648
    %1755 = vmatpush1.bf16.msra.mxu0 %v1647
    %1756 = vmatprep.subr.bf16.mxu0 %v1644
    %1757 = vmatpush1.bf16.msra.mxu0 %v1643
    %1758 = vmatprep.subr.bf16.mxu0 %v1640
    %1759 = vmatpush1.bf16.msra.mxu0 %v1639
    %1760 = vmatprep.subr.bf16.mxu0 0
    %1761 = vmatpush2.bf16.msra.mxu0 0
    %1762 = vmatprep.subr.bf16.mxu0 0
    %1763 = vmatpush2.bf16.msra.mxu0 0
    %1764 = vmatprep.subr.bf16.mxu0 0
    %1765 = vmatpush2.bf16.msra.mxu0 0
    %1766 = vmatprep.subr.bf16.mxu0 0
    %1767 = vmatpush2.bf16.msra.mxu0 0
    %1768 = vmatprep.subr.bf16.mxu0 0
    %1769 = vmatpush2.bf16.msra.mxu0 0
    %1770 = vmatprep.subr.bf16.mxu0 0
    %1771 = vmatpush2.bf16.msra.mxu0 0
    %1772 = vmatprep.subr.bf16.mxu0 0
    %1773 = vmatpush2.bf16.msra.mxu0 0
    %1774 = vmatprep.subr.bf16.mxu0 0
    %1775 = vmatpush2.bf16.msra.mxu0 0
    %1776 = vmatprep.mubr.bf16.mxu0 0
    %1777 = vmatmul.mubr.bf16.gmra.mxu0 %v1508
    %v1778 = vpop.f32.mrf.mxu0
    %v1779 = vadd.f32 0.0, %v1778
    %v1780 = vpop.f32.mrf.mxu0
    %v1781 = vadd.f32 0.0, %v1780
    %v1782 = vpop.f32.mrf.mxu0
    %v1783 = vadd.f32 0.0, %v1782
    %v1784 = vpop.f32.mrf.mxu0
    %v1785 = vadd.f32 0.0, %v1784
    %1786 = vdwg.mxu0
    %v1787 = vadd.f32 %v1500, %v1736
    %v1788 = vadd.f32 %v1501, %v1738
    %v1789 = vadd.f32 %v1502, %v1779
    %v1790 = vadd.f32 %v1503, %v1781
    %v1791 = vadd.f32 %v1504, %v1740
    %v1792 = vadd.f32 %v1505, %v1742
    %v1793 = vadd.f32 %v1506, %v1783
    %v1794 = vadd.f32 %v1507, %v1785
    %s1795 = smul.u32 14, 4
    %s1796 = smul.addr %s1795, 4
    %s1797 = scalar_lea.vmem %s1, %s1796
    %v1798 = vld [vmem:[%s1797] sm:$0xff]
    %v1799 = vld [vmem:[%s1797 + $0x8] sm:$0xff]
    %v1800 = vld [vmem:[%s1797 + $0x10] sm:$0xff]
    %v1801 = vld [vmem:[%s1797 + $0x18] sm:$0xff]
    %v1802 = vunpack.c.l.bf16 %v1798
    %v1803 = vunpack.c.h.bf16 %v1798
    %v1804 = vunpack.c.l.bf16 %v1799
    %v1805 = vunpack.c.h.bf16 %v1799
    %v1806 = vunpack.c.l.bf16 %v1800
    %v1807 = vunpack.c.h.bf16 %v1800
    %v1808 = vunpack.c.l.bf16 %v1801
    %v1809 = vunpack.c.h.bf16 %v1801
    %v1810 = vpack.c.bf16 %v1474, %v1473
    %v1811 = vld [vmem:[%s4] sm:$0xff]
    %v1812 = vld [vmem:[%s4 + $0x8] sm:$0xff]
    %v1813 = vld [vmem:[%s4 + $0x10] sm:$0xff]
    %v1814 = vld [vmem:[%s4 + $0x18] sm:$0xff]
    %v1815 = vld [vmem:[%s4 + $0x20] sm:$0xff]
    %v1816 = vld [vmem:[%s4 + $0x28] sm:$0xff]
    %v1817 = vld [vmem:[%s4 + $0x30] sm:$0xff]
    %v1818 = vld [vmem:[%s4 + $0x38] sm:$0xff]
    %v1819 = vld [vmem:[%s4 + $0x40] sm:$0xff]
    %v1820 = vld [vmem:[%s4 + $0x48] sm:$0xff]
    %v1821 = vld [vmem:[%s4 + $0x50] sm:$0xff]
    %v1822 = vld [vmem:[%s4 + $0x58] sm:$0xff]
    %v1823 = vld [vmem:[%s4 + $0x60] sm:$0xff]
    %v1824 = vld [vmem:[%s4 + $0x68] sm:$0xff]
    %v1825 = vld [vmem:[%s4 + $0x70] sm:$0xff]
    %v1826 = vld [vmem:[%s4 + $0x78] sm:$0xff]
    %v1827 = vld [vmem:[%s4 + $0x80] sm:$0xff]
    %v1828 = vld [vmem:[%s4 + $0x88] sm:$0xff]
    %v1829 = vld [vmem:[%s4 + $0x90] sm:$0xff]
    %v1830 = vld [vmem:[%s4 + $0x98] sm:$0xff]
    %v1831 = vld [vmem:[%s4 + $0xa0] sm:$0xff]
    %v1832 = vld [vmem:[%s4 + $0xa8] sm:$0xff]
    %v1833 = vld [vmem:[%s4 + $0xb0] sm:$0xff]
    %v1834 = vld [vmem:[%s4 + $0xb8] sm:$0xff]
    %v1835 = vld [vmem:[%s4 + $0xc0] sm:$0xff]
    %v1836 = vld [vmem:[%s4 + $0xc8] sm:$0xff]
    %v1837 = vld [vmem:[%s4 + $0xd0] sm:$0xff]
    %v1838 = vld [vmem:[%s4 + $0xd8] sm:$0xff]
    %v1839 = vld [vmem:[%s4 + $0xe0] sm:$0xff]
    %v1840 = vld [vmem:[%s4 + $0xe8] sm:$0xff]
    %v1841 = vld [vmem:[%s4 + $0xf0] sm:$0xff]
    %v1842 = vld [vmem:[%s4 + $0xf8] sm:$0xff]
    %v1875 = vunpack.c.l.b16 %v1811
    %v1876 = vunpack.c.h.b16 %v1811
    %v1877 = vunpack.c.l.b16 %v1812
    %v1878 = vunpack.c.h.b16 %v1812
    %v1879 = vunpack.c.l.b16 %v1813
    %v1880 = vunpack.c.h.b16 %v1813
    %v1881 = vunpack.c.l.b16 %v1814
    %v1882 = vunpack.c.h.b16 %v1814
    %v1883 = vunpack.c.l.b16 %v1815
    %v1884 = vunpack.c.h.b16 %v1815
    %v1885 = vunpack.c.l.b16 %v1816
    %v1886 = vunpack.c.h.b16 %v1816
    %v1887 = vunpack.c.l.b16 %v1817
    %v1888 = vunpack.c.h.b16 %v1817
    %v1889 = vunpack.c.l.b16 %v1818
    %v1890 = vunpack.c.h.b16 %v1818
    %v1891 = vunpack.c.l.b16 %v1819
    %v1892 = vunpack.c.h.b16 %v1819
    %v1893 = vunpack.c.l.b16 %v1820
    %v1894 = vunpack.c.h.b16 %v1820
    %v1895 = vunpack.c.l.b16 %v1821
    %v1896 = vunpack.c.h.b16 %v1821
    %v1897 = vunpack.c.l.b16 %v1822
    %v1898 = vunpack.c.h.b16 %v1822
    %v1899 = vunpack.c.l.b16 %v1823
    %v1900 = vunpack.c.h.b16 %v1823
    %v1901 = vunpack.c.l.b16 %v1824
    %v1902 = vunpack.c.h.b16 %v1824
    %v1903 = vunpack.c.l.b16 %v1825
    %v1904 = vunpack.c.h.b16 %v1825
    %v1905 = vunpack.c.l.b16 %v1826
    %v1906 = vunpack.c.h.b16 %v1826
    %v1907 = vunpack.c.l.b16 %v1827
    %v1908 = vunpack.c.h.b16 %v1827
    %v1909 = vunpack.c.l.b16 %v1828
    %v1910 = vunpack.c.h.b16 %v1828
    %v1911 = vunpack.c.l.b16 %v1829
    %v1912 = vunpack.c.h.b16 %v1829
    %v1913 = vunpack.c.l.b16 %v1830
    %v1914 = vunpack.c.h.b16 %v1830
    %v1915 = vunpack.c.l.b16 %v1831
    %v1916 = vunpack.c.h.b16 %v1831
    %v1917 = vunpack.c.l.b16 %v1832
    %v1918 = vunpack.c.h.b16 %v1832
    %v1919 = vunpack.c.l.b16 %v1833
    %v1920 = vunpack.c.h.b16 %v1833
    %v1921 = vunpack.c.l.b16 %v1834
    %v1922 = vunpack.c.h.b16 %v1834
    %v1923 = vunpack.c.l.b16 %v1835
    %v1924 = vunpack.c.h.b16 %v1835
    %v1925 = vunpack.c.l.b16 %v1836
    %v1926 = vunpack.c.h.b16 %v1836
    %v1927 = vunpack.c.l.b16 %v1837
    %v1928 = vunpack.c.h.b16 %v1837
    %v1929 = vunpack.c.l.b16 %v1838
    %v1930 = vunpack.c.h.b16 %v1838
    %v1931 = vunpack.c.l.b16 %v1839
    %v1932 = vunpack.c.h.b16 %v1839
    %v1933 = vunpack.c.l.b16 %v1840
    %v1934 = vunpack.c.h.b16 %v1840
    %v1935 = vunpack.c.l.b16 %v1841
    %v1936 = vunpack.c.h.b16 %v1841
    %v1937 = vunpack.c.l.b16 %v1842
    %v1938 = vunpack.c.h.b16 %v1842
    %v1939 = vpack.c.b16 %v1879, %v1875
    %v1940 = vpack.c.b16 %v1880, %v1876
    %v1941 = vpack.c.b16 %v1881, %v1877
    %v1942 = vpack.c.b16 %v1882, %v1878
    %v1943 = vpack.c.b16 %v1887, %v1883
    %v1944 = vpack.c.b16 %v1888, %v1884
    %v1945 = vpack.c.b16 %v1889, %v1885
    %v1946 = vpack.c.b16 %v1890, %v1886
    %v1947 = vpack.c.b16 %v1895, %v1891
    %v1948 = vpack.c.b16 %v1896, %v1892
    %v1949 = vpack.c.b16 %v1897, %v1893
    %v1950 = vpack.c.b16 %v1898, %v1894
    %v1951 = vpack.c.b16 %v1903, %v1899
    %v1952 = vpack.c.b16 %v1904, %v1900
    %v1953 = vpack.c.b16 %v1905, %v1901
    %v1954 = vpack.c.b16 %v1906, %v1902
    %v1955 = vpack.c.b16 %v1911, %v1907
    %v1956 = vpack.c.b16 %v1912, %v1908
    %v1957 = vpack.c.b16 %v1913, %v1909
    %v1958 = vpack.c.b16 %v1914, %v1910
    %v1959 = vpack.c.b16 %v1919, %v1915
    %v1960 = vpack.c.b16 %v1920, %v1916
    %v1961 = vpack.c.b16 %v1921, %v1917
    %v1962 = vpack.c.b16 %v1922, %v1918
    %v1963 = vpack.c.b16 %v1927, %v1923
    %v1964 = vpack.c.b16 %v1928, %v1924
    %v1965 = vpack.c.b16 %v1929, %v1925
    %v1966 = vpack.c.b16 %v1930, %v1926
    %v1967 = vpack.c.b16 %v1935, %v1931
    %v1968 = vpack.c.b16 %v1936, %v1932
    %v1969 = vpack.c.b16 %v1937, %v1933
    %v1970 = vpack.c.b16 %v1938, %v1934
    %2003 = vmatprep.subr.bf16.mxu0 %v1968
    %2004 = vmatpush1.bf16.msra.mxu0 %v1967
    %2005 = vmatprep.subr.bf16.mxu0 %v1964
    %2006 = vmatpush1.bf16.msra.mxu0 %v1963
    %2007 = vmatprep.subr.bf16.mxu0 %v1960
    %2008 = vmatpush1.bf16.msra.mxu0 %v1959
    %2009 = vmatprep.subr.bf16.mxu0 %v1956
    %2010 = vmatpush1.bf16.msra.mxu0 %v1955
    %2011 = vmatprep.subr.bf16.mxu0 %v1952
    %2012 = vmatpush1.bf16.msra.mxu0 %v1951
    %2013 = vmatprep.subr.bf16.mxu0 %v1948
    %2014 = vmatpush1.bf16.msra.mxu0 %v1947
    %2015 = vmatprep.subr.bf16.mxu0 %v1944
    %2016 = vmatpush1.bf16.msra.mxu0 %v1943
    %2017 = vmatprep.subr.bf16.mxu0 %v1940
    %2018 = vmatpush1.bf16.msra.mxu0 %v1939
    %2019 = vmatprep.subr.bf16.mxu0 0
    %2020 = vmatpush2.bf16.msra.mxu0 0
    %2021 = vmatprep.subr.bf16.mxu0 0
    %2022 = vmatpush2.bf16.msra.mxu0 0
    %2023 = vmatprep.subr.bf16.mxu0 0
    %2024 = vmatpush2.bf16.msra.mxu0 0
    %2025 = vmatprep.subr.bf16.mxu0 0
    %2026 = vmatpush2.bf16.msra.mxu0 0
    %2027 = vmatprep.subr.bf16.mxu0 0
    %2028 = vmatpush2.bf16.msra.mxu0 0
    %2029 = vmatprep.subr.bf16.mxu0 0
    %2030 = vmatpush2.bf16.msra.mxu0 0
    %2031 = vmatprep.subr.bf16.mxu0 0
    %2032 = vmatpush2.bf16.msra.mxu0 0
    %2033 = vmatprep.subr.bf16.mxu0 0
    %2034 = vmatpush2.bf16.msra.mxu0 0
    %2035 = vmatprep.mubr.bf16.mxu0 0
    %2036 = vmatmul.mubr.bf16.gmra.mxu0 %v1810
    %v2037 = vpop.f32.mrf.mxu0
    %v2038 = vadd.f32 0.0, %v2037
    %v2039 = vpop.f32.mrf.mxu0
    %v2040 = vadd.f32 0.0, %v2039
    %v2041 = vpop.f32.mrf.mxu0
    %v2042 = vadd.f32 0.0, %v2041
    %v2043 = vpop.f32.mrf.mxu0
    %v2044 = vadd.f32 0.0, %v2043
    %2045 = vdwg.mxu0
    %2046 = vmatprep.subr.bf16.mxu0 %v1970
    %2047 = vmatpush1.bf16.msra.mxu0 %v1969
    %2048 = vmatprep.subr.bf16.mxu0 %v1966
    %2049 = vmatpush1.bf16.msra.mxu0 %v1965
    %2050 = vmatprep.subr.bf16.mxu0 %v1962
    %2051 = vmatpush1.bf16.msra.mxu0 %v1961
    %2052 = vmatprep.subr.bf16.mxu0 %v1958
    %2053 = vmatpush1.bf16.msra.mxu0 %v1957
    %2054 = vmatprep.subr.bf16.mxu0 %v1954
    %2055 = vmatpush1.bf16.msra.mxu0 %v1953
    %2056 = vmatprep.subr.bf16.mxu0 %v1950
    %2057 = vmatpush1.bf16.msra.mxu0 %v1949
    %2058 = vmatprep.subr.bf16.mxu0 %v1946
    %2059 = vmatpush1.bf16.msra.mxu0 %v1945
    %2060 = vmatprep.subr.bf16.mxu0 %v1942
    %2061 = vmatpush1.bf16.msra.mxu0 %v1941
    %2062 = vmatprep.subr.bf16.mxu0 0
    %2063 = vmatpush2.bf16.msra.mxu0 0
    %2064 = vmatprep.subr.bf16.mxu0 0
    %2065 = vmatpush2.bf16.msra.mxu0 0
    %2066 = vmatprep.subr.bf16.mxu0 0
    %2067 = vmatpush2.bf16.msra.mxu0 0
    %2068 = vmatprep.subr.bf16.mxu0 0
    %2069 = vmatpush2.bf16.msra.mxu0 0
    %2070 = vmatprep.subr.bf16.mxu0 0
    %2071 = vmatpush2.bf16.msra.mxu0 0
    %2072 = vmatprep.subr.bf16.mxu0 0
    %2073 = vmatpush2.bf16.msra.mxu0 0
    %2074 = vmatprep.subr.bf16.mxu0 0
    %2075 = vmatpush2.bf16.msra.mxu0 0
    %2076 = vmatprep.subr.bf16.mxu0 0
    %2077 = vmatpush2.bf16.msra.mxu0 0
    %2078 = vmatprep.mubr.bf16.mxu0 0
    %2079 = vmatmul.mubr.bf16.gmra.mxu0 %v1810
    %v2080 = vpop.f32.mrf.mxu0
    %v2081 = vadd.f32 0.0, %v2080
    %v2082 = vpop.f32.mrf.mxu0
    %v2083 = vadd.f32 0.0, %v2082
    %v2084 = vpop.f32.mrf.mxu0
    %v2085 = vadd.f32 0.0, %v2084
    %v2086 = vpop.f32.mrf.mxu0
    %v2087 = vadd.f32 0.0, %v2086
    %2088 = vdwg.mxu0
    %v2089 = vadd.f32 %v1802, %v2038
    %v2090 = vadd.f32 %v1803, %v2040
    %v2091 = vadd.f32 %v1804, %v2081
    %v2092 = vadd.f32 %v1805, %v2083
    %v2093 = vadd.f32 %v1806, %v2042
    %v2094 = vadd.f32 %v1807, %v2044
    %v2095 = vadd.f32 %v1808, %v2085
    %v2096 = vadd.f32 %v1809, %v2087
    %vm2097 = vcmp.gt.s32.totalorder %v46, 2
    %vm2098 = vcmp.gt.s32.totalorder %v47, 2
    %v2099 = vmul.f32 %v1787, 0.5
    %v2100 = vmul.f32 %v1791, 0.5
    %v2101 = vtanh.pop %v2099
    %v2102 = vtanh.pop %v2100
    %v2103 = vmul.f32 %v2101, 0.5
    %v2104 = vmul.f32 %v2102, 0.5
    %v2105 = vadd.f32 %v2103, 0.5
    %v2106 = vadd.f32 %v2104, 0.5
    %v2107 = vmul.f32 %v1788, 0.5
    %v2108 = vmul.f32 %v1792, 0.5
    %v2109 = vtanh.pop %v2107
    %v2110 = vtanh.pop %v2108
    %v2111 = vmul.f32 %v2109, 0.5
    %v2112 = vmul.f32 %v2110, 0.5
    %v2113 = vadd.f32 %v2111, 0.5
    %v2114 = vadd.f32 %v2112, 0.5
    %v2115 = vtanh.pop %v1789
    %v2116 = vtanh.pop %v1793
    %v2117 = vmul.f32 %v1790, 0.5
    %v2118 = vmul.f32 %v1794, 0.5
    %v2119 = vtanh.pop %v2117
    %v2120 = vtanh.pop %v2118
    %v2121 = vmul.f32 %v2119, 0.5
    %v2122 = vmul.f32 %v2120, 0.5
    %v2123 = vadd.f32 %v2121, 0.5
    %v2124 = vadd.f32 %v2122, 0.5
    %v2125 = vmul.f32 %v2113, %v1421
    %v2126 = vmul.f32 %v2114, %v1422
    %v2127 = vmul.f32 %v2105, %v2115
    %v2128 = vmul.f32 %v2106, %v2116
    %v2129 = vadd.f32 %v2125, %v2127
    %v2130 = vadd.f32 %v2126, %v2128
    %v2131 = vtanh.pop %v2129
    %v2132 = vtanh.pop %v2130
    %v2133 = vmul.f32 %v2123, %v2131
    %v2134 = vmul.f32 %v2124, %v2132
    %v2135 = vsel %vm2097, 1, 0
    %v2136 = vsel %vm2098, 1, 0
    %2137 = vset.pattern.permute.xlu0 0
    %2138 = vperm.xlu0 %2137, %v2135
    %v2139 = vpop.permute.xlu0 %2138
    %2140 = vset.pattern.permute.xlu0 0
    %2141 = vperm.xlu0 %2140, %v2136
    %v2142 = vpop.permute.xlu0 %2141
    %vm2143 = vcmp.eq.s32.totalorder %v2139, 1
    %vm2144 = vcmp.eq.s32.totalorder %v2142, 1
    %v2145 = vsel %vm2143, %v2133, %v1419
    %v2146 = vsel %vm2144, %v2134, %v1420
    %v2147 = vsel %vm2143, %v2129, %v1421
    %v2148 = vsel %vm2144, %v2130, %v1422
    %v2149 = vsel %vm2143, %v2133, 0.0
    %v2150 = vsel %vm2144, %v2134, 0.0
    %vm2151 = vcmp.gt.s32.totalorder %v46, 7
    %vm2152 = vcmp.gt.s32.totalorder %v47, 7
    %v2153 = vmul.f32 %v2089, 0.5
    %v2154 = vmul.f32 %v2093, 0.5
    %v2155 = vtanh.pop %v2153
    %v2156 = vtanh.pop %v2154
    %v2157 = vmul.f32 %v2155, 0.5
    %v2158 = vmul.f32 %v2156, 0.5
    %v2159 = vadd.f32 %v2157, 0.5
    %v2160 = vadd.f32 %v2158, 0.5
    %v2161 = vmul.f32 %v2090, 0.5
    %v2162 = vmul.f32 %v2094, 0.5
    %v2163 = vtanh.pop %v2161
    %v2164 = vtanh.pop %v2162
    %v2165 = vmul.f32 %v2163, 0.5
    %v2166 = vmul.f32 %v2164, 0.5
    %v2167 = vadd.f32 %v2165, 0.5
    %v2168 = vadd.f32 %v2166, 0.5
    %v2169 = vtanh.pop %v2091
    %v2170 = vtanh.pop %v2095
    %v2171 = vmul.f32 %v2092, 0.5
    %v2172 = vmul.f32 %v2096, 0.5
    %v2173 = vtanh.pop %v2171
    %v2174 = vtanh.pop %v2172
    %v2175 = vmul.f32 %v2173, 0.5
    %v2176 = vmul.f32 %v2174, 0.5
    %v2177 = vadd.f32 %v2175, 0.5
    %v2178 = vadd.f32 %v2176, 0.5
    %v2179 = vmul.f32 %v2167, %v1475
    %v2180 = vmul.f32 %v2168, %v1476
    %v2181 = vmul.f32 %v2159, %v2169
    %v2182 = vmul.f32 %v2160, %v2170
    %v2183 = vadd.f32 %v2179, %v2181
    %v2184 = vadd.f32 %v2180, %v2182
    %v2185 = vtanh.pop %v2183
    %v2186 = vtanh.pop %v2184
    %v2187 = vmul.f32 %v2177, %v2185
    %v2188 = vmul.f32 %v2178, %v2186
    %v2189 = vsel %vm2151, 1, 0
    %v2190 = vsel %vm2152, 1, 0
    %2191 = vset.pattern.permute.xlu0 0
    %2192 = vperm.xlu0 %2191, %v2189
    %v2193 = vpop.permute.xlu0 %2192
    %2194 = vset.pattern.permute.xlu0 0
    %2195 = vperm.xlu0 %2194, %v2190
    %v2196 = vpop.permute.xlu0 %2195
    %vm2197 = vcmp.eq.s32.totalorder %v2193, 1
    %vm2198 = vcmp.eq.s32.totalorder %v2196, 1
    %v2199 = vsel %vm2197, %v2187, %v1473
    %v2200 = vsel %vm2198, %v2188, %v1474
    %v2201 = vsel %vm2197, %v2183, %v1475
    %v2202 = vsel %vm2198, %v2184, %v1476
    %v2203 = vsel %vm2197, %v2187, 0.0
    %v2204 = vsel %vm2198, %v2188, 0.0
    %s2205 = scalar_lea.vmem [#allocation2], 32
    %v2206 = vld [vmem:[%s2205] sm:$0xff]
    %v2207 = vld [vmem:[%s2205 + $0x8] sm:$0xff]
    %v2208 = vadd.f32 %v2206, %v2149
    %v2209 = vadd.f32 %v2207, %v2150
    %2210 = vst [vmem:[%s2205] sm:$0xff] %v2208
    %2211 = vst [vmem:[%s2205 + $0x8] sm:$0xff] %v2209
    %s2212 = scalar_lea.vmem [#allocation2], 112
    %v2213 = vld [vmem:[%s2212] sm:$0xff]
    %v2214 = vld [vmem:[%s2212 + $0x8] sm:$0xff]
    %v2215 = vadd.f32 %v2213, %v2203
    %v2216 = vadd.f32 %v2214, %v2204
    %2217 = vst [vmem:[%s2212] sm:$0xff] %v2215
    %2218 = vst [vmem:[%s2212 + $0x8] sm:$0xff] %v2216
    %s2219 = smul.u32 6, 4
    %s2220 = smul.addr %s2219, 4
    %s2221 = scalar_lea.vmem %s0, %s2220
    %v2222 = vld [vmem:[%s2221] sm:$0xff]
    %v2223 = vld [vmem:[%s2221 + $0x8] sm:$0xff]
    %v2224 = vld [vmem:[%s2221 + $0x10] sm:$0xff]
    %v2225 = vld [vmem:[%s2221 + $0x18] sm:$0xff]
    %v2226 = vunpack.c.l.bf16 %v2222
    %v2227 = vunpack.c.h.bf16 %v2222
    %v2228 = vunpack.c.l.bf16 %v2223
    %v2229 = vunpack.c.h.bf16 %v2223
    %v2230 = vunpack.c.l.bf16 %v2224
    %v2231 = vunpack.c.h.bf16 %v2224
    %v2232 = vunpack.c.l.bf16 %v2225
    %v2233 = vunpack.c.h.bf16 %v2225
    %v2234 = vpack.c.bf16 %v2146, %v2145
    %v2235 = vld [vmem:[%s3] sm:$0xff]
    %v2236 = vld [vmem:[%s3 + $0x8] sm:$0xff]
    %v2237 = vld [vmem:[%s3 + $0x10] sm:$0xff]
    %v2238 = vld [vmem:[%s3 + $0x18] sm:$0xff]
    %v2239 = vld [vmem:[%s3 + $0x20] sm:$0xff]
    %v2240 = vld [vmem:[%s3 + $0x28] sm:$0xff]
    %v2241 = vld [vmem:[%s3 + $0x30] sm:$0xff]
    %v2242 = vld [vmem:[%s3 + $0x38] sm:$0xff]
    %v2243 = vld [vmem:[%s3 + $0x40] sm:$0xff]
    %v2244 = vld [vmem:[%s3 + $0x48] sm:$0xff]
    %v2245 = vld [vmem:[%s3 + $0x50] sm:$0xff]
    %v2246 = vld [vmem:[%s3 + $0x58] sm:$0xff]
    %v2247 = vld [vmem:[%s3 + $0x60] sm:$0xff]
    %v2248 = vld [vmem:[%s3 + $0x68] sm:$0xff]
    %v2249 = vld [vmem:[%s3 + $0x70] sm:$0xff]
    %v2250 = vld [vmem:[%s3 + $0x78] sm:$0xff]
    %v2251 = vld [vmem:[%s3 + $0x80] sm:$0xff]
    %v2252 = vld [vmem:[%s3 + $0x88] sm:$0xff]
    %v2253 = vld [vmem:[%s3 + $0x90] sm:$0xff]
    %v2254 = vld [vmem:[%s3 + $0x98] sm:$0xff]
    %v2255 = vld [vmem:[%s3 + $0xa0] sm:$0xff]
    %v2256 = vld [vmem:[%s3 + $0xa8] sm:$0xff]
    %v2257 = vld [vmem:[%s3 + $0xb0] sm:$0xff]
    %v2258 = vld [vmem:[%s3 + $0xb8] sm:$0xff]
    %v2259 = vld [vmem:[%s3 + $0xc0] sm:$0xff]
    %v2260 = vld [vmem:[%s3 + $0xc8] sm:$0xff]
    %v2261 = vld [vmem:[%s3 + $0xd0] sm:$0xff]
    %v2262 = vld [vmem:[%s3 + $0xd8] sm:$0xff]
    %v2263 = vld [vmem:[%s3 + $0xe0] sm:$0xff]
    %v2264 = vld [vmem:[%s3 + $0xe8] sm:$0xff]
    %v2265 = vld [vmem:[%s3 + $0xf0] sm:$0xff]
    %v2266 = vld [vmem:[%s3 + $0xf8] sm:$0xff]
    %v2299 = vunpack.c.l.b16 %v2235
    %v2300 = vunpack.c.h.b16 %v2235
    %v2301 = vunpack.c.l.b16 %v2236
    %v2302 = vunpack.c.h.b16 %v2236
    %v2303 = vunpack.c.l.b16 %v2237
    %v2304 = vunpack.c.h.b16 %v2237
    %v2305 = vunpack.c.l.b16 %v2238
    %v2306 = vunpack.c.h.b16 %v2238
    %v2307 = vunpack.c.l.b16 %v2239
    %v2308 = vunpack.c.h.b16 %v2239
    %v2309 = vunpack.c.l.b16 %v2240
    %v2310 = vunpack.c.h.b16 %v2240
    %v2311 = vunpack.c.l.b16 %v2241
    %v2312 = vunpack.c.h.b16 %v2241
    %v2313 = vunpack.c.l.b16 %v2242
    %v2314 = vunpack.c.h.b16 %v2242
    %v2315 = vunpack.c.l.b16 %v2243
    %v2316 = vunpack.c.h.b16 %v2243
    %v2317 = vunpack.c.l.b16 %v2244
    %v2318 = vunpack.c.h.b16 %v2244
    %v2319 = vunpack.c.l.b16 %v2245
    %v2320 = vunpack.c.h.b16 %v2245
    %v2321 = vunpack.c.l.b16 %v2246
    %v2322 = vunpack.c.h.b16 %v2246
    %v2323 = vunpack.c.l.b16 %v2247
    %v2324 = vunpack.c.h.b16 %v2247
    %v2325 = vunpack.c.l.b16 %v2248
    %v2326 = vunpack.c.h.b16 %v2248
    %v2327 = vunpack.c.l.b16 %v2249
    %v2328 = vunpack.c.h.b16 %v2249
    %v2329 = vunpack.c.l.b16 %v2250
    %v2330 = vunpack.c.h.b16 %v2250
    %v2331 = vunpack.c.l.b16 %v2251
    %v2332 = vunpack.c.h.b16 %v2251
    %v2333 = vunpack.c.l.b16 %v2252
    %v2334 = vunpack.c.h.b16 %v2252
    %v2335 = vunpack.c.l.b16 %v2253
    %v2336 = vunpack.c.h.b16 %v2253
    %v2337 = vunpack.c.l.b16 %v2254
    %v2338 = vunpack.c.h.b16 %v2254
    %v2339 = vunpack.c.l.b16 %v2255
    %v2340 = vunpack.c.h.b16 %v2255
    %v2341 = vunpack.c.l.b16 %v2256
    %v2342 = vunpack.c.h.b16 %v2256
    %v2343 = vunpack.c.l.b16 %v2257
    %v2344 = vunpack.c.h.b16 %v2257
    %v2345 = vunpack.c.l.b16 %v2258
    %v2346 = vunpack.c.h.b16 %v2258
    %v2347 = vunpack.c.l.b16 %v2259
    %v2348 = vunpack.c.h.b16 %v2259
    %v2349 = vunpack.c.l.b16 %v2260
    %v2350 = vunpack.c.h.b16 %v2260
    %v2351 = vunpack.c.l.b16 %v2261
    %v2352 = vunpack.c.h.b16 %v2261
    %v2353 = vunpack.c.l.b16 %v2262
    %v2354 = vunpack.c.h.b16 %v2262
    %v2355 = vunpack.c.l.b16 %v2263
    %v2356 = vunpack.c.h.b16 %v2263
    %v2357 = vunpack.c.l.b16 %v2264
    %v2358 = vunpack.c.h.b16 %v2264
    %v2359 = vunpack.c.l.b16 %v2265
    %v2360 = vunpack.c.h.b16 %v2265
    %v2361 = vunpack.c.l.b16 %v2266
    %v2362 = vunpack.c.h.b16 %v2266
    %v2363 = vpack.c.b16 %v2303, %v2299
    %v2364 = vpack.c.b16 %v2304, %v2300
    %v2365 = vpack.c.b16 %v2305, %v2301
    %v2366 = vpack.c.b16 %v2306, %v2302
    %v2367 = vpack.c.b16 %v2311, %v2307
    %v2368 = vpack.c.b16 %v2312, %v2308
    %v2369 = vpack.c.b16 %v2313, %v2309
    %v2370 = vpack.c.b16 %v2314, %v2310
    %v2371 = vpack.c.b16 %v2319, %v2315
    %v2372 = vpack.c.b16 %v2320, %v2316
    %v2373 = vpack.c.b16 %v2321, %v2317
    %v2374 = vpack.c.b16 %v2322, %v2318
    %v2375 = vpack.c.b16 %v2327, %v2323
    %v2376 = vpack.c.b16 %v2328, %v2324
    %v2377 = vpack.c.b16 %v2329, %v2325
    %v2378 = vpack.c.b16 %v2330, %v2326
    %v2379 = vpack.c.b16 %v2335, %v2331
    %v2380 = vpack.c.b16 %v2336, %v2332
    %v2381 = vpack.c.b16 %v2337, %v2333
    %v2382 = vpack.c.b16 %v2338, %v2334
    %v2383 = vpack.c.b16 %v2343, %v2339
    %v2384 = vpack.c.b16 %v2344, %v2340
    %v2385 = vpack.c.b16 %v2345, %v2341
    %v2386 = vpack.c.b16 %v2346, %v2342
    %v2387 = vpack.c.b16 %v2351, %v2347
    %v2388 = vpack.c.b16 %v2352, %v2348
    %v2389 = vpack.c.b16 %v2353, %v2349
    %v2390 = vpack.c.b16 %v2354, %v2350
    %v2391 = vpack.c.b16 %v2359, %v2355
    %v2392 = vpack.c.b16 %v2360, %v2356
    %v2393 = vpack.c.b16 %v2361, %v2357
    %v2394 = vpack.c.b16 %v2362, %v2358
    %2427 = vmatprep.subr.bf16.mxu0 %v2392
    %2428 = vmatpush1.bf16.msra.mxu0 %v2391
    %2429 = vmatprep.subr.bf16.mxu0 %v2388
    %2430 = vmatpush1.bf16.msra.mxu0 %v2387
    %2431 = vmatprep.subr.bf16.mxu0 %v2384
    %2432 = vmatpush1.bf16.msra.mxu0 %v2383
    %2433 = vmatprep.subr.bf16.mxu0 %v2380
    %2434 = vmatpush1.bf16.msra.mxu0 %v2379
    %2435 = vmatprep.subr.bf16.mxu0 %v2376
    %2436 = vmatpush1.bf16.msra.mxu0 %v2375
    %2437 = vmatprep.subr.bf16.mxu0 %v2372
    %2438 = vmatpush1.bf16.msra.mxu0 %v2371
    %2439 = vmatprep.subr.bf16.mxu0 %v2368
    %2440 = vmatpush1.bf16.msra.mxu0 %v2367
    %2441 = vmatprep.subr.bf16.mxu0 %v2364
    %2442 = vmatpush1.bf16.msra.mxu0 %v2363
    %2443 = vmatprep.subr.bf16.mxu0 0
    %2444 = vmatpush2.bf16.msra.mxu0 0
    %2445 = vmatprep.subr.bf16.mxu0 0
    %2446 = vmatpush2.bf16.msra.mxu0 0
    %2447 = vmatprep.subr.bf16.mxu0 0
    %2448 = vmatpush2.bf16.msra.mxu0 0
    %2449 = vmatprep.subr.bf16.mxu0 0
    %2450 = vmatpush2.bf16.msra.mxu0 0
    %2451 = vmatprep.subr.bf16.mxu0 0
    %2452 = vmatpush2.bf16.msra.mxu0 0
    %2453 = vmatprep.subr.bf16.mxu0 0
    %2454 = vmatpush2.bf16.msra.mxu0 0
    %2455 = vmatprep.subr.bf16.mxu0 0
    %2456 = vmatpush2.bf16.msra.mxu0 0
    %2457 = vmatprep.subr.bf16.mxu0 0
    %2458 = vmatpush2.bf16.msra.mxu0 0
    %2459 = vmatprep.mubr.bf16.mxu0 0
    %2460 = vmatmul.mubr.bf16.gmra.mxu0 %v2234
    %v2461 = vpop.f32.mrf.mxu0
    %v2462 = vadd.f32 0.0, %v2461
    %v2463 = vpop.f32.mrf.mxu0
    %v2464 = vadd.f32 0.0, %v2463
    %v2465 = vpop.f32.mrf.mxu0
    %v2466 = vadd.f32 0.0, %v2465
    %v2467 = vpop.f32.mrf.mxu0
    %v2468 = vadd.f32 0.0, %v2467
    %2469 = vdwg.mxu0
    %2470 = vmatprep.subr.bf16.mxu0 %v2394
    %2471 = vmatpush1.bf16.msra.mxu0 %v2393
    %2472 = vmatprep.subr.bf16.mxu0 %v2390
    %2473 = vmatpush1.bf16.msra.mxu0 %v2389
    %2474 = vmatprep.subr.bf16.mxu0 %v2386
    %2475 = vmatpush1.bf16.msra.mxu0 %v2385
    %2476 = vmatprep.subr.bf16.mxu0 %v2382
    %2477 = vmatpush1.bf16.msra.mxu0 %v2381
    %2478 = vmatprep.subr.bf16.mxu0 %v2378
    %2479 = vmatpush1.bf16.msra.mxu0 %v2377
    %2480 = vmatprep.subr.bf16.mxu0 %v2374
    %2481 = vmatpush1.bf16.msra.mxu0 %v2373
    %2482 = vmatprep.subr.bf16.mxu0 %v2370
    %2483 = vmatpush1.bf16.msra.mxu0 %v2369
    %2484 = vmatprep.subr.bf16.mxu0 %v2366
    %2485 = vmatpush1.bf16.msra.mxu0 %v2365
    %2486 = vmatprep.subr.bf16.mxu0 0
    %2487 = vmatpush2.bf16.msra.mxu0 0
    %2488 = vmatprep.subr.bf16.mxu0 0
    %2489 = vmatpush2.bf16.msra.mxu0 0
    %2490 = vmatprep.subr.bf16.mxu0 0
    %2491 = vmatpush2.bf16.msra.mxu0 0
    %2492 = vmatprep.subr.bf16.mxu0 0
    %2493 = vmatpush2.bf16.msra.mxu0 0
    %2494 = vmatprep.subr.bf16.mxu0 0
    %2495 = vmatpush2.bf16.msra.mxu0 0
    %2496 = vmatprep.subr.bf16.mxu0 0
    %2497 = vmatpush2.bf16.msra.mxu0 0
    %2498 = vmatprep.subr.bf16.mxu0 0
    %2499 = vmatpush2.bf16.msra.mxu0 0
    %2500 = vmatprep.subr.bf16.mxu0 0
    %2501 = vmatpush2.bf16.msra.mxu0 0
    %2502 = vmatprep.mubr.bf16.mxu0 0
    %2503 = vmatmul.mubr.bf16.gmra.mxu0 %v2234
    %v2504 = vpop.f32.mrf.mxu0
    %v2505 = vadd.f32 0.0, %v2504
    %v2506 = vpop.f32.mrf.mxu0
    %v2507 = vadd.f32 0.0, %v2506
    %v2508 = vpop.f32.mrf.mxu0
    %v2509 = vadd.f32 0.0, %v2508
    %v2510 = vpop.f32.mrf.mxu0
    %v2511 = vadd.f32 0.0, %v2510
    %2512 = vdwg.mxu0
    %v2513 = vadd.f32 %v2226, %v2462
    %v2514 = vadd.f32 %v2227, %v2464
    %v2515 = vadd.f32 %v2228, %v2505
    %v2516 = vadd.f32 %v2229, %v2507
    %v2517 = vadd.f32 %v2230, %v2466
    %v2518 = vadd.f32 %v2231, %v2468
    %v2519 = vadd.f32 %v2232, %v2509
    %v2520 = vadd.f32 %v2233, %v2511
    %s2521 = smul.u32 12, 4
    %s2522 = smul.addr %s2521, 4
    %s2523 = scalar_lea.vmem %s1, %s2522
    %v2524 = vld [vmem:[%s2523] sm:$0xff]
    %v2525 = vld [vmem:[%s2523 + $0x8] sm:$0xff]
    %v2526 = vld [vmem:[%s2523 + $0x10] sm:$0xff]
    %v2527 = vld [vmem:[%s2523 + $0x18] sm:$0xff]
    %v2528 = vunpack.c.l.bf16 %v2524
    %v2529 = vunpack.c.h.bf16 %v2524
    %v2530 = vunpack.c.l.bf16 %v2525
    %v2531 = vunpack.c.h.bf16 %v2525
    %v2532 = vunpack.c.l.bf16 %v2526
    %v2533 = vunpack.c.h.bf16 %v2526
    %v2534 = vunpack.c.l.bf16 %v2527
    %v2535 = vunpack.c.h.bf16 %v2527
    %v2536 = vpack.c.bf16 %v2200, %v2199
    %v2537 = vld [vmem:[%s4] sm:$0xff]
    %v2538 = vld [vmem:[%s4 + $0x8] sm:$0xff]
    %v2539 = vld [vmem:[%s4 + $0x10] sm:$0xff]
    %v2540 = vld [vmem:[%s4 + $0x18] sm:$0xff]
    %v2541 = vld [vmem:[%s4 + $0x20] sm:$0xff]
    %v2542 = vld [vmem:[%s4 + $0x28] sm:$0xff]
    %v2543 = vld [vmem:[%s4 + $0x30] sm:$0xff]
    %v2544 = vld [vmem:[%s4 + $0x38] sm:$0xff]
    %v2545 = vld [vmem:[%s4 + $0x40] sm:$0xff]
    %v2546 = vld [vmem:[%s4 + $0x48] sm:$0xff]
    %v2547 = vld [vmem:[%s4 + $0x50] sm:$0xff]
    %v2548 = vld [vmem:[%s4 + $0x58] sm:$0xff]
    %v2549 = vld [vmem:[%s4 + $0x60] sm:$0xff]
    %v2550 = vld [vmem:[%s4 + $0x68] sm:$0xff]
    %v2551 = vld [vmem:[%s4 + $0x70] sm:$0xff]
    %v2552 = vld [vmem:[%s4 + $0x78] sm:$0xff]
    %v2553 = vld [vmem:[%s4 + $0x80] sm:$0xff]
    %v2554 = vld [vmem:[%s4 + $0x88] sm:$0xff]
    %v2555 = vld [vmem:[%s4 + $0x90] sm:$0xff]
    %v2556 = vld [vmem:[%s4 + $0x98] sm:$0xff]
    %v2557 = vld [vmem:[%s4 + $0xa0] sm:$0xff]
    %v2558 = vld [vmem:[%s4 + $0xa8] sm:$0xff]
    %v2559 = vld [vmem:[%s4 + $0xb0] sm:$0xff]
    %v2560 = vld [vmem:[%s4 + $0xb8] sm:$0xff]
    %v2561 = vld [vmem:[%s4 + $0xc0] sm:$0xff]
    %v2562 = vld [vmem:[%s4 + $0xc8] sm:$0xff]
    %v2563 = vld [vmem:[%s4 + $0xd0] sm:$0xff]
    %v2564 = vld [vmem:[%s4 + $0xd8] sm:$0xff]
    %v2565 = vld [vmem:[%s4 + $0xe0] sm:$0xff]
    %v2566 = vld [vmem:[%s4 + $0xe8] sm:$0xff]
    %v2567 = vld [vmem:[%s4 + $0xf0] sm:$0xff]
    %v2568 = vld [vmem:[%s4 + $0xf8] sm:$0xff]
    %v2601 = vunpack.c.l.b16 %v2537
    %v2602 = vunpack.c.h.b16 %v2537
    %v2603 = vunpack.c.l.b16 %v2538
    %v2604 = vunpack.c.h.b16 %v2538
    %v2605 = vunpack.c.l.b16 %v2539
    %v2606 = vunpack.c.h.b16 %v2539
    %v2607 = vunpack.c.l.b16 %v2540
    %v2608 = vunpack.c.h.b16 %v2540
    %v2609 = vunpack.c.l.b16 %v2541
    %v2610 = vunpack.c.h.b16 %v2541
    %v2611 = vunpack.c.l.b16 %v2542
    %v2612 = vunpack.c.h.b16 %v2542
    %v2613 = vunpack.c.l.b16 %v2543
    %v2614 = vunpack.c.h.b16 %v2543
    %v2615 = vunpack.c.l.b16 %v2544
    %v2616 = vunpack.c.h.b16 %v2544
    %v2617 = vunpack.c.l.b16 %v2545
    %v2618 = vunpack.c.h.b16 %v2545
    %v2619 = vunpack.c.l.b16 %v2546
    %v2620 = vunpack.c.h.b16 %v2546
    %v2621 = vunpack.c.l.b16 %v2547
    %v2622 = vunpack.c.h.b16 %v2547
    %v2623 = vunpack.c.l.b16 %v2548
    %v2624 = vunpack.c.h.b16 %v2548
    %v2625 = vunpack.c.l.b16 %v2549
    %v2626 = vunpack.c.h.b16 %v2549
    %v2627 = vunpack.c.l.b16 %v2550
    %v2628 = vunpack.c.h.b16 %v2550
    %v2629 = vunpack.c.l.b16 %v2551
    %v2630 = vunpack.c.h.b16 %v2551
    %v2631 = vunpack.c.l.b16 %v2552
    %v2632 = vunpack.c.h.b16 %v2552
    %v2633 = vunpack.c.l.b16 %v2553
    %v2634 = vunpack.c.h.b16 %v2553
    %v2635 = vunpack.c.l.b16 %v2554
    %v2636 = vunpack.c.h.b16 %v2554
    %v2637 = vunpack.c.l.b16 %v2555
    %v2638 = vunpack.c.h.b16 %v2555
    %v2639 = vunpack.c.l.b16 %v2556
    %v2640 = vunpack.c.h.b16 %v2556
    %v2641 = vunpack.c.l.b16 %v2557
    %v2642 = vunpack.c.h.b16 %v2557
    %v2643 = vunpack.c.l.b16 %v2558
    %v2644 = vunpack.c.h.b16 %v2558
    %v2645 = vunpack.c.l.b16 %v2559
    %v2646 = vunpack.c.h.b16 %v2559
    %v2647 = vunpack.c.l.b16 %v2560
    %v2648 = vunpack.c.h.b16 %v2560
    %v2649 = vunpack.c.l.b16 %v2561
    %v2650 = vunpack.c.h.b16 %v2561
    %v2651 = vunpack.c.l.b16 %v2562
    %v2652 = vunpack.c.h.b16 %v2562
    %v2653 = vunpack.c.l.b16 %v2563
    %v2654 = vunpack.c.h.b16 %v2563
    %v2655 = vunpack.c.l.b16 %v2564
    %v2656 = vunpack.c.h.b16 %v2564
    %v2657 = vunpack.c.l.b16 %v2565
    %v2658 = vunpack.c.h.b16 %v2565
    %v2659 = vunpack.c.l.b16 %v2566
    %v2660 = vunpack.c.h.b16 %v2566
    %v2661 = vunpack.c.l.b16 %v2567
    %v2662 = vunpack.c.h.b16 %v2567
    %v2663 = vunpack.c.l.b16 %v2568
    %v2664 = vunpack.c.h.b16 %v2568
    %v2665 = vpack.c.b16 %v2605, %v2601
    %v2666 = vpack.c.b16 %v2606, %v2602
    %v2667 = vpack.c.b16 %v2607, %v2603
    %v2668 = vpack.c.b16 %v2608, %v2604
    %v2669 = vpack.c.b16 %v2613, %v2609
    %v2670 = vpack.c.b16 %v2614, %v2610
    %v2671 = vpack.c.b16 %v2615, %v2611
    %v2672 = vpack.c.b16 %v2616, %v2612
    %v2673 = vpack.c.b16 %v2621, %v2617
    %v2674 = vpack.c.b16 %v2622, %v2618
    %v2675 = vpack.c.b16 %v2623, %v2619
    %v2676 = vpack.c.b16 %v2624, %v2620
    %v2677 = vpack.c.b16 %v2629, %v2625
    %v2678 = vpack.c.b16 %v2630, %v2626
    %v2679 = vpack.c.b16 %v2631, %v2627
    %v2680 = vpack.c.b16 %v2632, %v2628
    %v2681 = vpack.c.b16 %v2637, %v2633
    %v2682 = vpack.c.b16 %v2638, %v2634
    %v2683 = vpack.c.b16 %v2639, %v2635
    %v2684 = vpack.c.b16 %v2640, %v2636
    %v2685 = vpack.c.b16 %v2645, %v2641
    %v2686 = vpack.c.b16 %v2646, %v2642
    %v2687 = vpack.c.b16 %v2647, %v2643
    %v2688 = vpack.c.b16 %v2648, %v2644
    %v2689 = vpack.c.b16 %v2653, %v2649
    %v2690 = vpack.c.b16 %v2654, %v2650
    %v2691 = vpack.c.b16 %v2655, %v2651
    %v2692 = vpack.c.b16 %v2656, %v2652
    %v2693 = vpack.c.b16 %v2661, %v2657
    %v2694 = vpack.c.b16 %v2662, %v2658
    %v2695 = vpack.c.b16 %v2663, %v2659
    %v2696 = vpack.c.b16 %v2664, %v2660
    %2729 = vmatprep.subr.bf16.mxu0 %v2694
    %2730 = vmatpush1.bf16.msra.mxu0 %v2693
    %2731 = vmatprep.subr.bf16.mxu0 %v2690
    %2732 = vmatpush1.bf16.msra.mxu0 %v2689
    %2733 = vmatprep.subr.bf16.mxu0 %v2686
    %2734 = vmatpush1.bf16.msra.mxu0 %v2685
    %2735 = vmatprep.subr.bf16.mxu0 %v2682
    %2736 = vmatpush1.bf16.msra.mxu0 %v2681
    %2737 = vmatprep.subr.bf16.mxu0 %v2678
    %2738 = vmatpush1.bf16.msra.mxu0 %v2677
    %2739 = vmatprep.subr.bf16.mxu0 %v2674
    %2740 = vmatpush1.bf16.msra.mxu0 %v2673
    %2741 = vmatprep.subr.bf16.mxu0 %v2670
    %2742 = vmatpush1.bf16.msra.mxu0 %v2669
    %2743 = vmatprep.subr.bf16.mxu0 %v2666
    %2744 = vmatpush1.bf16.msra.mxu0 %v2665
    %2745 = vmatprep.subr.bf16.mxu0 0
    %2746 = vmatpush2.bf16.msra.mxu0 0
    %2747 = vmatprep.subr.bf16.mxu0 0
    %2748 = vmatpush2.bf16.msra.mxu0 0
    %2749 = vmatprep.subr.bf16.mxu0 0
    %2750 = vmatpush2.bf16.msra.mxu0 0
    %2751 = vmatprep.subr.bf16.mxu0 0
    %2752 = vmatpush2.bf16.msra.mxu0 0
    %2753 = vmatprep.subr.bf16.mxu0 0
    %2754 = vmatpush2.bf16.msra.mxu0 0
    %2755 = vmatprep.subr.bf16.mxu0 0
    %2756 = vmatpush2.bf16.msra.mxu0 0
    %2757 = vmatprep.subr.bf16.mxu0 0
    %2758 = vmatpush2.bf16.msra.mxu0 0
    %2759 = vmatprep.subr.bf16.mxu0 0
    %2760 = vmatpush2.bf16.msra.mxu0 0
    %2761 = vmatprep.mubr.bf16.mxu0 0
    %2762 = vmatmul.mubr.bf16.gmra.mxu0 %v2536
    %v2763 = vpop.f32.mrf.mxu0
    %v2764 = vadd.f32 0.0, %v2763
    %v2765 = vpop.f32.mrf.mxu0
    %v2766 = vadd.f32 0.0, %v2765
    %v2767 = vpop.f32.mrf.mxu0
    %v2768 = vadd.f32 0.0, %v2767
    %v2769 = vpop.f32.mrf.mxu0
    %v2770 = vadd.f32 0.0, %v2769
    %2771 = vdwg.mxu0
    %2772 = vmatprep.subr.bf16.mxu0 %v2696
    %2773 = vmatpush1.bf16.msra.mxu0 %v2695
    %2774 = vmatprep.subr.bf16.mxu0 %v2692
    %2775 = vmatpush1.bf16.msra.mxu0 %v2691
    %2776 = vmatprep.subr.bf16.mxu0 %v2688
    %2777 = vmatpush1.bf16.msra.mxu0 %v2687
    %2778 = vmatprep.subr.bf16.mxu0 %v2684
    %2779 = vmatpush1.bf16.msra.mxu0 %v2683
    %2780 = vmatprep.subr.bf16.mxu0 %v2680
    %2781 = vmatpush1.bf16.msra.mxu0 %v2679
    %2782 = vmatprep.subr.bf16.mxu0 %v2676
    %2783 = vmatpush1.bf16.msra.mxu0 %v2675
    %2784 = vmatprep.subr.bf16.mxu0 %v2672
    %2785 = vmatpush1.bf16.msra.mxu0 %v2671
    %2786 = vmatprep.subr.bf16.mxu0 %v2668
    %2787 = vmatpush1.bf16.msra.mxu0 %v2667
    %2788 = vmatprep.subr.bf16.mxu0 0
    %2789 = vmatpush2.bf16.msra.mxu0 0
    %2790 = vmatprep.subr.bf16.mxu0 0
    %2791 = vmatpush2.bf16.msra.mxu0 0
    %2792 = vmatprep.subr.bf16.mxu0 0
    %2793 = vmatpush2.bf16.msra.mxu0 0
    %2794 = vmatprep.subr.bf16.mxu0 0
    %2795 = vmatpush2.bf16.msra.mxu0 0
    %2796 = vmatprep.subr.bf16.mxu0 0
    %2797 = vmatpush2.bf16.msra.mxu0 0
    %2798 = vmatprep.subr.bf16.mxu0 0
    %2799 = vmatpush2.bf16.msra.mxu0 0
    %2800 = vmatprep.subr.bf16.mxu0 0
    %2801 = vmatpush2.bf16.msra.mxu0 0
    %2802 = vmatprep.subr.bf16.mxu0 0
    %2803 = vmatpush2.bf16.msra.mxu0 0
    %2804 = vmatprep.mubr.bf16.mxu0 0
    %2805 = vmatmul.mubr.bf16.gmra.mxu0 %v2536
    %v2806 = vpop.f32.mrf.mxu0
    %v2807 = vadd.f32 0.0, %v2806
    %v2808 = vpop.f32.mrf.mxu0
    %v2809 = vadd.f32 0.0, %v2808
    %v2810 = vpop.f32.mrf.mxu0
    %v2811 = vadd.f32 0.0, %v2810
    %v2812 = vpop.f32.mrf.mxu0
    %v2813 = vadd.f32 0.0, %v2812
    %2814 = vdwg.mxu0
    %v2815 = vadd.f32 %v2528, %v2764
    %v2816 = vadd.f32 %v2529, %v2766
    %v2817 = vadd.f32 %v2530, %v2807
    %v2818 = vadd.f32 %v2531, %v2809
    %v2819 = vadd.f32 %v2532, %v2768
    %v2820 = vadd.f32 %v2533, %v2770
    %v2821 = vadd.f32 %v2534, %v2811
    %v2822 = vadd.f32 %v2535, %v2813
    %vm2823 = vcmp.gt.s32.totalorder %v46, 3
    %vm2824 = vcmp.gt.s32.totalorder %v47, 3
    %v2825 = vmul.f32 %v2513, 0.5
    %v2826 = vmul.f32 %v2517, 0.5
    %v2827 = vtanh.pop %v2825
    %v2828 = vtanh.pop %v2826
    %v2829 = vmul.f32 %v2827, 0.5
    %v2830 = vmul.f32 %v2828, 0.5
    %v2831 = vadd.f32 %v2829, 0.5
    %v2832 = vadd.f32 %v2830, 0.5
    %v2833 = vmul.f32 %v2514, 0.5
    %v2834 = vmul.f32 %v2518, 0.5
    %v2835 = vtanh.pop %v2833
    %v2836 = vtanh.pop %v2834
    %v2837 = vmul.f32 %v2835, 0.5
    %v2838 = vmul.f32 %v2836, 0.5
    %v2839 = vadd.f32 %v2837, 0.5
    %v2840 = vadd.f32 %v2838, 0.5
    %v2841 = vtanh.pop %v2515
    %v2842 = vtanh.pop %v2519
    %v2843 = vmul.f32 %v2516, 0.5
    %v2844 = vmul.f32 %v2520, 0.5
    %v2845 = vtanh.pop %v2843
    %v2846 = vtanh.pop %v2844
    %v2847 = vmul.f32 %v2845, 0.5
    %v2848 = vmul.f32 %v2846, 0.5
    %v2849 = vadd.f32 %v2847, 0.5
    %v2850 = vadd.f32 %v2848, 0.5
    %v2851 = vmul.f32 %v2839, %v2147
    %v2852 = vmul.f32 %v2840, %v2148
    %v2853 = vmul.f32 %v2831, %v2841
    %v2854 = vmul.f32 %v2832, %v2842
    %v2855 = vadd.f32 %v2851, %v2853
    %v2856 = vadd.f32 %v2852, %v2854
    %v2857 = vtanh.pop %v2855
    %v2858 = vtanh.pop %v2856
    %v2859 = vmul.f32 %v2849, %v2857
    %v2860 = vmul.f32 %v2850, %v2858
    %v2861 = vsel %vm2823, 1, 0
    %v2862 = vsel %vm2824, 1, 0
    %2863 = vset.pattern.permute.xlu0 0
    %2864 = vperm.xlu0 %2863, %v2861
    %v2865 = vpop.permute.xlu0 %2864
    %2866 = vset.pattern.permute.xlu0 0
    %2867 = vperm.xlu0 %2866, %v2862
    %v2868 = vpop.permute.xlu0 %2867
    %vm2869 = vcmp.eq.s32.totalorder %v2865, 1
    %vm2870 = vcmp.eq.s32.totalorder %v2868, 1
    %v2871 = vsel %vm2869, %v2859, %v2145
    %v2872 = vsel %vm2870, %v2860, %v2146
    %v2873 = vsel %vm2869, %v2855, %v2147
    %v2874 = vsel %vm2870, %v2856, %v2148
    %v2875 = vsel %vm2869, %v2859, 0.0
    %v2876 = vsel %vm2870, %v2860, 0.0
    %vm2877 = vcmp.gt.s32.totalorder %v46, 6
    %vm2878 = vcmp.gt.s32.totalorder %v47, 6
    %v2879 = vmul.f32 %v2815, 0.5
    %v2880 = vmul.f32 %v2819, 0.5
    %v2881 = vtanh.pop %v2879
    %v2882 = vtanh.pop %v2880
    %v2883 = vmul.f32 %v2881, 0.5
    %v2884 = vmul.f32 %v2882, 0.5
    %v2885 = vadd.f32 %v2883, 0.5
    %v2886 = vadd.f32 %v2884, 0.5
    %v2887 = vmul.f32 %v2816, 0.5
    %v2888 = vmul.f32 %v2820, 0.5
    %v2889 = vtanh.pop %v2887
    %v2890 = vtanh.pop %v2888
    %v2891 = vmul.f32 %v2889, 0.5
    %v2892 = vmul.f32 %v2890, 0.5
    %v2893 = vadd.f32 %v2891, 0.5
    %v2894 = vadd.f32 %v2892, 0.5
    %v2895 = vtanh.pop %v2817
    %v2896 = vtanh.pop %v2821
    %v2897 = vmul.f32 %v2818, 0.5
    %v2898 = vmul.f32 %v2822, 0.5
    %v2899 = vtanh.pop %v2897
    %v2900 = vtanh.pop %v2898
    %v2901 = vmul.f32 %v2899, 0.5
    %v2902 = vmul.f32 %v2900, 0.5
    %v2903 = vadd.f32 %v2901, 0.5
    %v2904 = vadd.f32 %v2902, 0.5
    %v2905 = vmul.f32 %v2893, %v2201
    %v2906 = vmul.f32 %v2894, %v2202
    %v2907 = vmul.f32 %v2885, %v2895
    %v2908 = vmul.f32 %v2886, %v2896
    %v2909 = vadd.f32 %v2905, %v2907
    %v2910 = vadd.f32 %v2906, %v2908
    %v2911 = vtanh.pop %v2909
    %v2912 = vtanh.pop %v2910
    %v2913 = vmul.f32 %v2903, %v2911
    %v2914 = vmul.f32 %v2904, %v2912
    %v2915 = vsel %vm2877, 1, 0
    %v2916 = vsel %vm2878, 1, 0
    %2917 = vset.pattern.permute.xlu0 0
    %2918 = vperm.xlu0 %2917, %v2915
    %v2919 = vpop.permute.xlu0 %2918
    %2920 = vset.pattern.permute.xlu0 0
    %2921 = vperm.xlu0 %2920, %v2916
    %v2922 = vpop.permute.xlu0 %2921
    %vm2923 = vcmp.eq.s32.totalorder %v2919, 1
    %vm2924 = vcmp.eq.s32.totalorder %v2922, 1
    %v2925 = vsel %vm2923, %v2913, %v2199
    %v2926 = vsel %vm2924, %v2914, %v2200
    %v2927 = vsel %vm2923, %v2909, %v2201
    %v2928 = vsel %vm2924, %v2910, %v2202
    %v2929 = vsel %vm2923, %v2913, 0.0
    %v2930 = vsel %vm2924, %v2914, 0.0
    %s2931 = scalar_lea.vmem [#allocation2], 48
    %v2932 = vld [vmem:[%s2931] sm:$0xff]
    %v2933 = vld [vmem:[%s2931 + $0x8] sm:$0xff]
    %v2934 = vadd.f32 %v2932, %v2875
    %v2935 = vadd.f32 %v2933, %v2876
    %2936 = vst [vmem:[%s2931] sm:$0xff] %v2934
    %2937 = vst [vmem:[%s2931 + $0x8] sm:$0xff] %v2935
    %s2938 = scalar_lea.vmem [#allocation2], 96
    %v2939 = vld [vmem:[%s2938] sm:$0xff]
    %v2940 = vld [vmem:[%s2938 + $0x8] sm:$0xff]
    %v2941 = vadd.f32 %v2939, %v2929
    %v2942 = vadd.f32 %v2940, %v2930
    %2943 = vst [vmem:[%s2938] sm:$0xff] %v2941
    %2944 = vst [vmem:[%s2938 + $0x8] sm:$0xff] %v2942
    %s2945 = smul.u32 8, 4
    %s2946 = smul.addr %s2945, 4
    %s2947 = scalar_lea.vmem %s0, %s2946
    %v2948 = vld [vmem:[%s2947] sm:$0xff]
    %v2949 = vld [vmem:[%s2947 + $0x8] sm:$0xff]
    %v2950 = vld [vmem:[%s2947 + $0x10] sm:$0xff]
    %v2951 = vld [vmem:[%s2947 + $0x18] sm:$0xff]
    %v2952 = vunpack.c.l.bf16 %v2948
    %v2953 = vunpack.c.h.bf16 %v2948
    %v2954 = vunpack.c.l.bf16 %v2949
    %v2955 = vunpack.c.h.bf16 %v2949
    %v2956 = vunpack.c.l.bf16 %v2950
    %v2957 = vunpack.c.h.bf16 %v2950
    %v2958 = vunpack.c.l.bf16 %v2951
    %v2959 = vunpack.c.h.bf16 %v2951
    %v2960 = vpack.c.bf16 %v2872, %v2871
    %v2961 = vld [vmem:[%s3] sm:$0xff]
    %v2962 = vld [vmem:[%s3 + $0x8] sm:$0xff]
    %v2963 = vld [vmem:[%s3 + $0x10] sm:$0xff]
    %v2964 = vld [vmem:[%s3 + $0x18] sm:$0xff]
    %v2965 = vld [vmem:[%s3 + $0x20] sm:$0xff]
    %v2966 = vld [vmem:[%s3 + $0x28] sm:$0xff]
    %v2967 = vld [vmem:[%s3 + $0x30] sm:$0xff]
    %v2968 = vld [vmem:[%s3 + $0x38] sm:$0xff]
    %v2969 = vld [vmem:[%s3 + $0x40] sm:$0xff]
    %v2970 = vld [vmem:[%s3 + $0x48] sm:$0xff]
    %v2971 = vld [vmem:[%s3 + $0x50] sm:$0xff]
    %v2972 = vld [vmem:[%s3 + $0x58] sm:$0xff]
    %v2973 = vld [vmem:[%s3 + $0x60] sm:$0xff]
    %v2974 = vld [vmem:[%s3 + $0x68] sm:$0xff]
    %v2975 = vld [vmem:[%s3 + $0x70] sm:$0xff]
    %v2976 = vld [vmem:[%s3 + $0x78] sm:$0xff]
    %v2977 = vld [vmem:[%s3 + $0x80] sm:$0xff]
    %v2978 = vld [vmem:[%s3 + $0x88] sm:$0xff]
    %v2979 = vld [vmem:[%s3 + $0x90] sm:$0xff]
    %v2980 = vld [vmem:[%s3 + $0x98] sm:$0xff]
    %v2981 = vld [vmem:[%s3 + $0xa0] sm:$0xff]
    %v2982 = vld [vmem:[%s3 + $0xa8] sm:$0xff]
    %v2983 = vld [vmem:[%s3 + $0xb0] sm:$0xff]
    %v2984 = vld [vmem:[%s3 + $0xb8] sm:$0xff]
    %v2985 = vld [vmem:[%s3 + $0xc0] sm:$0xff]
    %v2986 = vld [vmem:[%s3 + $0xc8] sm:$0xff]
    %v2987 = vld [vmem:[%s3 + $0xd0] sm:$0xff]
    %v2988 = vld [vmem:[%s3 + $0xd8] sm:$0xff]
    %v2989 = vld [vmem:[%s3 + $0xe0] sm:$0xff]
    %v2990 = vld [vmem:[%s3 + $0xe8] sm:$0xff]
    %v2991 = vld [vmem:[%s3 + $0xf0] sm:$0xff]
    %v2992 = vld [vmem:[%s3 + $0xf8] sm:$0xff]
    %v3025 = vunpack.c.l.b16 %v2961
    %v3026 = vunpack.c.h.b16 %v2961
    %v3027 = vunpack.c.l.b16 %v2962
    %v3028 = vunpack.c.h.b16 %v2962
    %v3029 = vunpack.c.l.b16 %v2963
    %v3030 = vunpack.c.h.b16 %v2963
    %v3031 = vunpack.c.l.b16 %v2964
    %v3032 = vunpack.c.h.b16 %v2964
    %v3033 = vunpack.c.l.b16 %v2965
    %v3034 = vunpack.c.h.b16 %v2965
    %v3035 = vunpack.c.l.b16 %v2966
    %v3036 = vunpack.c.h.b16 %v2966
    %v3037 = vunpack.c.l.b16 %v2967
    %v3038 = vunpack.c.h.b16 %v2967
    %v3039 = vunpack.c.l.b16 %v2968
    %v3040 = vunpack.c.h.b16 %v2968
    %v3041 = vunpack.c.l.b16 %v2969
    %v3042 = vunpack.c.h.b16 %v2969
    %v3043 = vunpack.c.l.b16 %v2970
    %v3044 = vunpack.c.h.b16 %v2970
    %v3045 = vunpack.c.l.b16 %v2971
    %v3046 = vunpack.c.h.b16 %v2971
    %v3047 = vunpack.c.l.b16 %v2972
    %v3048 = vunpack.c.h.b16 %v2972
    %v3049 = vunpack.c.l.b16 %v2973
    %v3050 = vunpack.c.h.b16 %v2973
    %v3051 = vunpack.c.l.b16 %v2974
    %v3052 = vunpack.c.h.b16 %v2974
    %v3053 = vunpack.c.l.b16 %v2975
    %v3054 = vunpack.c.h.b16 %v2975
    %v3055 = vunpack.c.l.b16 %v2976
    %v3056 = vunpack.c.h.b16 %v2976
    %v3057 = vunpack.c.l.b16 %v2977
    %v3058 = vunpack.c.h.b16 %v2977
    %v3059 = vunpack.c.l.b16 %v2978
    %v3060 = vunpack.c.h.b16 %v2978
    %v3061 = vunpack.c.l.b16 %v2979
    %v3062 = vunpack.c.h.b16 %v2979
    %v3063 = vunpack.c.l.b16 %v2980
    %v3064 = vunpack.c.h.b16 %v2980
    %v3065 = vunpack.c.l.b16 %v2981
    %v3066 = vunpack.c.h.b16 %v2981
    %v3067 = vunpack.c.l.b16 %v2982
    %v3068 = vunpack.c.h.b16 %v2982
    %v3069 = vunpack.c.l.b16 %v2983
    %v3070 = vunpack.c.h.b16 %v2983
    %v3071 = vunpack.c.l.b16 %v2984
    %v3072 = vunpack.c.h.b16 %v2984
    %v3073 = vunpack.c.l.b16 %v2985
    %v3074 = vunpack.c.h.b16 %v2985
    %v3075 = vunpack.c.l.b16 %v2986
    %v3076 = vunpack.c.h.b16 %v2986
    %v3077 = vunpack.c.l.b16 %v2987
    %v3078 = vunpack.c.h.b16 %v2987
    %v3079 = vunpack.c.l.b16 %v2988
    %v3080 = vunpack.c.h.b16 %v2988
    %v3081 = vunpack.c.l.b16 %v2989
    %v3082 = vunpack.c.h.b16 %v2989
    %v3083 = vunpack.c.l.b16 %v2990
    %v3084 = vunpack.c.h.b16 %v2990
    %v3085 = vunpack.c.l.b16 %v2991
    %v3086 = vunpack.c.h.b16 %v2991
    %v3087 = vunpack.c.l.b16 %v2992
    %v3088 = vunpack.c.h.b16 %v2992
    %v3089 = vpack.c.b16 %v3029, %v3025
    %v3090 = vpack.c.b16 %v3030, %v3026
    %v3091 = vpack.c.b16 %v3031, %v3027
    %v3092 = vpack.c.b16 %v3032, %v3028
    %v3093 = vpack.c.b16 %v3037, %v3033
    %v3094 = vpack.c.b16 %v3038, %v3034
    %v3095 = vpack.c.b16 %v3039, %v3035
    %v3096 = vpack.c.b16 %v3040, %v3036
    %v3097 = vpack.c.b16 %v3045, %v3041
    %v3098 = vpack.c.b16 %v3046, %v3042
    %v3099 = vpack.c.b16 %v3047, %v3043
    %v3100 = vpack.c.b16 %v3048, %v3044
    %v3101 = vpack.c.b16 %v3053, %v3049
    %v3102 = vpack.c.b16 %v3054, %v3050
    %v3103 = vpack.c.b16 %v3055, %v3051
    %v3104 = vpack.c.b16 %v3056, %v3052
    %v3105 = vpack.c.b16 %v3061, %v3057
    %v3106 = vpack.c.b16 %v3062, %v3058
    %v3107 = vpack.c.b16 %v3063, %v3059
    %v3108 = vpack.c.b16 %v3064, %v3060
    %v3109 = vpack.c.b16 %v3069, %v3065
    %v3110 = vpack.c.b16 %v3070, %v3066
    %v3111 = vpack.c.b16 %v3071, %v3067
    %v3112 = vpack.c.b16 %v3072, %v3068
    %v3113 = vpack.c.b16 %v3077, %v3073
    %v3114 = vpack.c.b16 %v3078, %v3074
    %v3115 = vpack.c.b16 %v3079, %v3075
    %v3116 = vpack.c.b16 %v3080, %v3076
    %v3117 = vpack.c.b16 %v3085, %v3081
    %v3118 = vpack.c.b16 %v3086, %v3082
    %v3119 = vpack.c.b16 %v3087, %v3083
    %v3120 = vpack.c.b16 %v3088, %v3084
    %3153 = vmatprep.subr.bf16.mxu0 %v3118
    %3154 = vmatpush1.bf16.msra.mxu0 %v3117
    %3155 = vmatprep.subr.bf16.mxu0 %v3114
    %3156 = vmatpush1.bf16.msra.mxu0 %v3113
    %3157 = vmatprep.subr.bf16.mxu0 %v3110
    %3158 = vmatpush1.bf16.msra.mxu0 %v3109
    %3159 = vmatprep.subr.bf16.mxu0 %v3106
    %3160 = vmatpush1.bf16.msra.mxu0 %v3105
    %3161 = vmatprep.subr.bf16.mxu0 %v3102
    %3162 = vmatpush1.bf16.msra.mxu0 %v3101
    %3163 = vmatprep.subr.bf16.mxu0 %v3098
    %3164 = vmatpush1.bf16.msra.mxu0 %v3097
    %3165 = vmatprep.subr.bf16.mxu0 %v3094
    %3166 = vmatpush1.bf16.msra.mxu0 %v3093
    %3167 = vmatprep.subr.bf16.mxu0 %v3090
    %3168 = vmatpush1.bf16.msra.mxu0 %v3089
    %3169 = vmatprep.subr.bf16.mxu0 0
    %3170 = vmatpush2.bf16.msra.mxu0 0
    %3171 = vmatprep.subr.bf16.mxu0 0
    %3172 = vmatpush2.bf16.msra.mxu0 0
    %3173 = vmatprep.subr.bf16.mxu0 0
    %3174 = vmatpush2.bf16.msra.mxu0 0
    %3175 = vmatprep.subr.bf16.mxu0 0
    %3176 = vmatpush2.bf16.msra.mxu0 0
    %3177 = vmatprep.subr.bf16.mxu0 0
    %3178 = vmatpush2.bf16.msra.mxu0 0
    %3179 = vmatprep.subr.bf16.mxu0 0
    %3180 = vmatpush2.bf16.msra.mxu0 0
    %3181 = vmatprep.subr.bf16.mxu0 0
    %3182 = vmatpush2.bf16.msra.mxu0 0
    %3183 = vmatprep.subr.bf16.mxu0 0
    %3184 = vmatpush2.bf16.msra.mxu0 0
    %3185 = vmatprep.mubr.bf16.mxu0 0
    %3186 = vmatmul.mubr.bf16.gmra.mxu0 %v2960
    %v3187 = vpop.f32.mrf.mxu0
    %v3188 = vadd.f32 0.0, %v3187
    %v3189 = vpop.f32.mrf.mxu0
    %v3190 = vadd.f32 0.0, %v3189
    %v3191 = vpop.f32.mrf.mxu0
    %v3192 = vadd.f32 0.0, %v3191
    %v3193 = vpop.f32.mrf.mxu0
    %v3194 = vadd.f32 0.0, %v3193
    %3195 = vdwg.mxu0
    %3196 = vmatprep.subr.bf16.mxu0 %v3120
    %3197 = vmatpush1.bf16.msra.mxu0 %v3119
    %3198 = vmatprep.subr.bf16.mxu0 %v3116
    %3199 = vmatpush1.bf16.msra.mxu0 %v3115
    %3200 = vmatprep.subr.bf16.mxu0 %v3112
    %3201 = vmatpush1.bf16.msra.mxu0 %v3111
    %3202 = vmatprep.subr.bf16.mxu0 %v3108
    %3203 = vmatpush1.bf16.msra.mxu0 %v3107
    %3204 = vmatprep.subr.bf16.mxu0 %v3104
    %3205 = vmatpush1.bf16.msra.mxu0 %v3103
    %3206 = vmatprep.subr.bf16.mxu0 %v3100
    %3207 = vmatpush1.bf16.msra.mxu0 %v3099
    %3208 = vmatprep.subr.bf16.mxu0 %v3096
    %3209 = vmatpush1.bf16.msra.mxu0 %v3095
    %3210 = vmatprep.subr.bf16.mxu0 %v3092
    %3211 = vmatpush1.bf16.msra.mxu0 %v3091
    %3212 = vmatprep.subr.bf16.mxu0 0
    %3213 = vmatpush2.bf16.msra.mxu0 0
    %3214 = vmatprep.subr.bf16.mxu0 0
    %3215 = vmatpush2.bf16.msra.mxu0 0
    %3216 = vmatprep.subr.bf16.mxu0 0
    %3217 = vmatpush2.bf16.msra.mxu0 0
    %3218 = vmatprep.subr.bf16.mxu0 0
    %3219 = vmatpush2.bf16.msra.mxu0 0
    %3220 = vmatprep.subr.bf16.mxu0 0
    %3221 = vmatpush2.bf16.msra.mxu0 0
    %3222 = vmatprep.subr.bf16.mxu0 0
    %3223 = vmatpush2.bf16.msra.mxu0 0
    %3224 = vmatprep.subr.bf16.mxu0 0
    %3225 = vmatpush2.bf16.msra.mxu0 0
    %3226 = vmatprep.subr.bf16.mxu0 0
    %3227 = vmatpush2.bf16.msra.mxu0 0
    %3228 = vmatprep.mubr.bf16.mxu0 0
    %3229 = vmatmul.mubr.bf16.gmra.mxu0 %v2960
    %v3230 = vpop.f32.mrf.mxu0
    %v3231 = vadd.f32 0.0, %v3230
    %v3232 = vpop.f32.mrf.mxu0
    %v3233 = vadd.f32 0.0, %v3232
    %v3234 = vpop.f32.mrf.mxu0
    %v3235 = vadd.f32 0.0, %v3234
    %v3236 = vpop.f32.mrf.mxu0
    %v3237 = vadd.f32 0.0, %v3236
    %3238 = vdwg.mxu0
    %v3239 = vadd.f32 %v2952, %v3188
    %v3240 = vadd.f32 %v2953, %v3190
    %v3241 = vadd.f32 %v2954, %v3231
    %v3242 = vadd.f32 %v2955, %v3233
    %v3243 = vadd.f32 %v2956, %v3192
    %v3244 = vadd.f32 %v2957, %v3194
    %v3245 = vadd.f32 %v2958, %v3235
    %v3246 = vadd.f32 %v2959, %v3237
    %s3247 = smul.u32 10, 4
    %s3248 = smul.addr %s3247, 4
    %s3249 = scalar_lea.vmem %s1, %s3248
    %v3250 = vld [vmem:[%s3249] sm:$0xff]
    %v3251 = vld [vmem:[%s3249 + $0x8] sm:$0xff]
    %v3252 = vld [vmem:[%s3249 + $0x10] sm:$0xff]
    %v3253 = vld [vmem:[%s3249 + $0x18] sm:$0xff]
    %v3254 = vunpack.c.l.bf16 %v3250
    %v3255 = vunpack.c.h.bf16 %v3250
    %v3256 = vunpack.c.l.bf16 %v3251
    %v3257 = vunpack.c.h.bf16 %v3251
    %v3258 = vunpack.c.l.bf16 %v3252
    %v3259 = vunpack.c.h.bf16 %v3252
    %v3260 = vunpack.c.l.bf16 %v3253
    %v3261 = vunpack.c.h.bf16 %v3253
    %v3262 = vpack.c.bf16 %v2926, %v2925
    %v3263 = vld [vmem:[%s4] sm:$0xff]
    %v3264 = vld [vmem:[%s4 + $0x8] sm:$0xff]
    %v3265 = vld [vmem:[%s4 + $0x10] sm:$0xff]
    %v3266 = vld [vmem:[%s4 + $0x18] sm:$0xff]
    %v3267 = vld [vmem:[%s4 + $0x20] sm:$0xff]
    %v3268 = vld [vmem:[%s4 + $0x28] sm:$0xff]
    %v3269 = vld [vmem:[%s4 + $0x30] sm:$0xff]
    %v3270 = vld [vmem:[%s4 + $0x38] sm:$0xff]
    %v3271 = vld [vmem:[%s4 + $0x40] sm:$0xff]
    %v3272 = vld [vmem:[%s4 + $0x48] sm:$0xff]
    %v3273 = vld [vmem:[%s4 + $0x50] sm:$0xff]
    %v3274 = vld [vmem:[%s4 + $0x58] sm:$0xff]
    %v3275 = vld [vmem:[%s4 + $0x60] sm:$0xff]
    %v3276 = vld [vmem:[%s4 + $0x68] sm:$0xff]
    %v3277 = vld [vmem:[%s4 + $0x70] sm:$0xff]
    %v3278 = vld [vmem:[%s4 + $0x78] sm:$0xff]
    %v3279 = vld [vmem:[%s4 + $0x80] sm:$0xff]
    %v3280 = vld [vmem:[%s4 + $0x88] sm:$0xff]
    %v3281 = vld [vmem:[%s4 + $0x90] sm:$0xff]
    %v3282 = vld [vmem:[%s4 + $0x98] sm:$0xff]
    %v3283 = vld [vmem:[%s4 + $0xa0] sm:$0xff]
    %v3284 = vld [vmem:[%s4 + $0xa8] sm:$0xff]
    %v3285 = vld [vmem:[%s4 + $0xb0] sm:$0xff]
    %v3286 = vld [vmem:[%s4 + $0xb8] sm:$0xff]
    %v3287 = vld [vmem:[%s4 + $0xc0] sm:$0xff]
    %v3288 = vld [vmem:[%s4 + $0xc8] sm:$0xff]
    %v3289 = vld [vmem:[%s4 + $0xd0] sm:$0xff]
    %v3290 = vld [vmem:[%s4 + $0xd8] sm:$0xff]
    %v3291 = vld [vmem:[%s4 + $0xe0] sm:$0xff]
    %v3292 = vld [vmem:[%s4 + $0xe8] sm:$0xff]
    %v3293 = vld [vmem:[%s4 + $0xf0] sm:$0xff]
    %v3294 = vld [vmem:[%s4 + $0xf8] sm:$0xff]
    %v3327 = vunpack.c.l.b16 %v3263
    %v3328 = vunpack.c.h.b16 %v3263
    %v3329 = vunpack.c.l.b16 %v3264
    %v3330 = vunpack.c.h.b16 %v3264
    %v3331 = vunpack.c.l.b16 %v3265
    %v3332 = vunpack.c.h.b16 %v3265
    %v3333 = vunpack.c.l.b16 %v3266
    %v3334 = vunpack.c.h.b16 %v3266
    %v3335 = vunpack.c.l.b16 %v3267
    %v3336 = vunpack.c.h.b16 %v3267
    %v3337 = vunpack.c.l.b16 %v3268
    %v3338 = vunpack.c.h.b16 %v3268
    %v3339 = vunpack.c.l.b16 %v3269
    %v3340 = vunpack.c.h.b16 %v3269
    %v3341 = vunpack.c.l.b16 %v3270
    %v3342 = vunpack.c.h.b16 %v3270
    %v3343 = vunpack.c.l.b16 %v3271
    %v3344 = vunpack.c.h.b16 %v3271
    %v3345 = vunpack.c.l.b16 %v3272
    %v3346 = vunpack.c.h.b16 %v3272
    %v3347 = vunpack.c.l.b16 %v3273
    %v3348 = vunpack.c.h.b16 %v3273
    %v3349 = vunpack.c.l.b16 %v3274
    %v3350 = vunpack.c.h.b16 %v3274
    %v3351 = vunpack.c.l.b16 %v3275
    %v3352 = vunpack.c.h.b16 %v3275
    %v3353 = vunpack.c.l.b16 %v3276
    %v3354 = vunpack.c.h.b16 %v3276
    %v3355 = vunpack.c.l.b16 %v3277
    %v3356 = vunpack.c.h.b16 %v3277
    %v3357 = vunpack.c.l.b16 %v3278
    %v3358 = vunpack.c.h.b16 %v3278
    %v3359 = vunpack.c.l.b16 %v3279
    %v3360 = vunpack.c.h.b16 %v3279
    %v3361 = vunpack.c.l.b16 %v3280
    %v3362 = vunpack.c.h.b16 %v3280
    %v3363 = vunpack.c.l.b16 %v3281
    %v3364 = vunpack.c.h.b16 %v3281
    %v3365 = vunpack.c.l.b16 %v3282
    %v3366 = vunpack.c.h.b16 %v3282
    %v3367 = vunpack.c.l.b16 %v3283
    %v3368 = vunpack.c.h.b16 %v3283
    %v3369 = vunpack.c.l.b16 %v3284
    %v3370 = vunpack.c.h.b16 %v3284
    %v3371 = vunpack.c.l.b16 %v3285
    %v3372 = vunpack.c.h.b16 %v3285
    %v3373 = vunpack.c.l.b16 %v3286
    %v3374 = vunpack.c.h.b16 %v3286
    %v3375 = vunpack.c.l.b16 %v3287
    %v3376 = vunpack.c.h.b16 %v3287
    %v3377 = vunpack.c.l.b16 %v3288
    %v3378 = vunpack.c.h.b16 %v3288
    %v3379 = vunpack.c.l.b16 %v3289
    %v3380 = vunpack.c.h.b16 %v3289
    %v3381 = vunpack.c.l.b16 %v3290
    %v3382 = vunpack.c.h.b16 %v3290
    %v3383 = vunpack.c.l.b16 %v3291
    %v3384 = vunpack.c.h.b16 %v3291
    %v3385 = vunpack.c.l.b16 %v3292
    %v3386 = vunpack.c.h.b16 %v3292
    %v3387 = vunpack.c.l.b16 %v3293
    %v3388 = vunpack.c.h.b16 %v3293
    %v3389 = vunpack.c.l.b16 %v3294
    %v3390 = vunpack.c.h.b16 %v3294
    %v3391 = vpack.c.b16 %v3331, %v3327
    %v3392 = vpack.c.b16 %v3332, %v3328
    %v3393 = vpack.c.b16 %v3333, %v3329
    %v3394 = vpack.c.b16 %v3334, %v3330
    %v3395 = vpack.c.b16 %v3339, %v3335
    %v3396 = vpack.c.b16 %v3340, %v3336
    %v3397 = vpack.c.b16 %v3341, %v3337
    %v3398 = vpack.c.b16 %v3342, %v3338
    %v3399 = vpack.c.b16 %v3347, %v3343
    %v3400 = vpack.c.b16 %v3348, %v3344
    %v3401 = vpack.c.b16 %v3349, %v3345
    %v3402 = vpack.c.b16 %v3350, %v3346
    %v3403 = vpack.c.b16 %v3355, %v3351
    %v3404 = vpack.c.b16 %v3356, %v3352
    %v3405 = vpack.c.b16 %v3357, %v3353
    %v3406 = vpack.c.b16 %v3358, %v3354
    %v3407 = vpack.c.b16 %v3363, %v3359
    %v3408 = vpack.c.b16 %v3364, %v3360
    %v3409 = vpack.c.b16 %v3365, %v3361
    %v3410 = vpack.c.b16 %v3366, %v3362
    %v3411 = vpack.c.b16 %v3371, %v3367
    %v3412 = vpack.c.b16 %v3372, %v3368
    %v3413 = vpack.c.b16 %v3373, %v3369
    %v3414 = vpack.c.b16 %v3374, %v3370
    %v3415 = vpack.c.b16 %v3379, %v3375
    %v3416 = vpack.c.b16 %v3380, %v3376
    %v3417 = vpack.c.b16 %v3381, %v3377
    %v3418 = vpack.c.b16 %v3382, %v3378
    %v3419 = vpack.c.b16 %v3387, %v3383
    %v3420 = vpack.c.b16 %v3388, %v3384
    %v3421 = vpack.c.b16 %v3389, %v3385
    %v3422 = vpack.c.b16 %v3390, %v3386
    %3455 = vmatprep.subr.bf16.mxu0 %v3420
    %3456 = vmatpush1.bf16.msra.mxu0 %v3419
    %3457 = vmatprep.subr.bf16.mxu0 %v3416
    %3458 = vmatpush1.bf16.msra.mxu0 %v3415
    %3459 = vmatprep.subr.bf16.mxu0 %v3412
    %3460 = vmatpush1.bf16.msra.mxu0 %v3411
    %3461 = vmatprep.subr.bf16.mxu0 %v3408
    %3462 = vmatpush1.bf16.msra.mxu0 %v3407
    %3463 = vmatprep.subr.bf16.mxu0 %v3404
    %3464 = vmatpush1.bf16.msra.mxu0 %v3403
    %3465 = vmatprep.subr.bf16.mxu0 %v3400
    %3466 = vmatpush1.bf16.msra.mxu0 %v3399
    %3467 = vmatprep.subr.bf16.mxu0 %v3396
    %3468 = vmatpush1.bf16.msra.mxu0 %v3395
    %3469 = vmatprep.subr.bf16.mxu0 %v3392
    %3470 = vmatpush1.bf16.msra.mxu0 %v3391
    %3471 = vmatprep.subr.bf16.mxu0 0
    %3472 = vmatpush2.bf16.msra.mxu0 0
    %3473 = vmatprep.subr.bf16.mxu0 0
    %3474 = vmatpush2.bf16.msra.mxu0 0
    %3475 = vmatprep.subr.bf16.mxu0 0
    %3476 = vmatpush2.bf16.msra.mxu0 0
    %3477 = vmatprep.subr.bf16.mxu0 0
    %3478 = vmatpush2.bf16.msra.mxu0 0
    %3479 = vmatprep.subr.bf16.mxu0 0
    %3480 = vmatpush2.bf16.msra.mxu0 0
    %3481 = vmatprep.subr.bf16.mxu0 0
    %3482 = vmatpush2.bf16.msra.mxu0 0
    %3483 = vmatprep.subr.bf16.mxu0 0
    %3484 = vmatpush2.bf16.msra.mxu0 0
    %3485 = vmatprep.subr.bf16.mxu0 0
    %3486 = vmatpush2.bf16.msra.mxu0 0
    %3487 = vmatprep.mubr.bf16.mxu0 0
    %3488 = vmatmul.mubr.bf16.gmra.mxu0 %v3262
    %v3489 = vpop.f32.mrf.mxu0
    %v3490 = vadd.f32 0.0, %v3489
    %v3491 = vpop.f32.mrf.mxu0
    %v3492 = vadd.f32 0.0, %v3491
    %v3493 = vpop.f32.mrf.mxu0
    %v3494 = vadd.f32 0.0, %v3493
    %v3495 = vpop.f32.mrf.mxu0
    %v3496 = vadd.f32 0.0, %v3495
    %3497 = vdwg.mxu0
    %3498 = vmatprep.subr.bf16.mxu0 %v3422
    %3499 = vmatpush1.bf16.msra.mxu0 %v3421
    %3500 = vmatprep.subr.bf16.mxu0 %v3418
    %3501 = vmatpush1.bf16.msra.mxu0 %v3417
    %3502 = vmatprep.subr.bf16.mxu0 %v3414
    %3503 = vmatpush1.bf16.msra.mxu0 %v3413
    %3504 = vmatprep.subr.bf16.mxu0 %v3410
    %3505 = vmatpush1.bf16.msra.mxu0 %v3409
    %3506 = vmatprep.subr.bf16.mxu0 %v3406
    %3507 = vmatpush1.bf16.msra.mxu0 %v3405
    %3508 = vmatprep.subr.bf16.mxu0 %v3402
    %3509 = vmatpush1.bf16.msra.mxu0 %v3401
    %3510 = vmatprep.subr.bf16.mxu0 %v3398
    %3511 = vmatpush1.bf16.msra.mxu0 %v3397
    %3512 = vmatprep.subr.bf16.mxu0 %v3394
    %3513 = vmatpush1.bf16.msra.mxu0 %v3393
    %3514 = vmatprep.subr.bf16.mxu0 0
    %3515 = vmatpush2.bf16.msra.mxu0 0
    %3516 = vmatprep.subr.bf16.mxu0 0
    %3517 = vmatpush2.bf16.msra.mxu0 0
    %3518 = vmatprep.subr.bf16.mxu0 0
    %3519 = vmatpush2.bf16.msra.mxu0 0
    %3520 = vmatprep.subr.bf16.mxu0 0
    %3521 = vmatpush2.bf16.msra.mxu0 0
    %3522 = vmatprep.subr.bf16.mxu0 0
    %3523 = vmatpush2.bf16.msra.mxu0 0
    %3524 = vmatprep.subr.bf16.mxu0 0
    %3525 = vmatpush2.bf16.msra.mxu0 0
    %3526 = vmatprep.subr.bf16.mxu0 0
    %3527 = vmatpush2.bf16.msra.mxu0 0
    %3528 = vmatprep.subr.bf16.mxu0 0
    %3529 = vmatpush2.bf16.msra.mxu0 0
    %3530 = vmatprep.mubr.bf16.mxu0 0
    %3531 = vmatmul.mubr.bf16.gmra.mxu0 %v3262
    %v3532 = vpop.f32.mrf.mxu0
    %v3533 = vadd.f32 0.0, %v3532
    %v3534 = vpop.f32.mrf.mxu0
    %v3535 = vadd.f32 0.0, %v3534
    %v3536 = vpop.f32.mrf.mxu0
    %v3537 = vadd.f32 0.0, %v3536
    %v3538 = vpop.f32.mrf.mxu0
    %v3539 = vadd.f32 0.0, %v3538
    %3540 = vdwg.mxu0
    %v3541 = vadd.f32 %v3254, %v3490
    %v3542 = vadd.f32 %v3255, %v3492
    %v3543 = vadd.f32 %v3256, %v3533
    %v3544 = vadd.f32 %v3257, %v3535
    %v3545 = vadd.f32 %v3258, %v3494
    %v3546 = vadd.f32 %v3259, %v3496
    %v3547 = vadd.f32 %v3260, %v3537
    %v3548 = vadd.f32 %v3261, %v3539
    %vm3549 = vcmp.gt.s32.totalorder %v46, 4
    %vm3550 = vcmp.gt.s32.totalorder %v47, 4
    %v3551 = vmul.f32 %v3239, 0.5
    %v3552 = vmul.f32 %v3243, 0.5
    %v3553 = vtanh.pop %v3551
    %v3554 = vtanh.pop %v3552
    %v3555 = vmul.f32 %v3553, 0.5
    %v3556 = vmul.f32 %v3554, 0.5
    %v3557 = vadd.f32 %v3555, 0.5
    %v3558 = vadd.f32 %v3556, 0.5
    %v3559 = vmul.f32 %v3240, 0.5
    %v3560 = vmul.f32 %v3244, 0.5
    %v3561 = vtanh.pop %v3559
    %v3562 = vtanh.pop %v3560
    %v3563 = vmul.f32 %v3561, 0.5
    %v3564 = vmul.f32 %v3562, 0.5
    %v3565 = vadd.f32 %v3563, 0.5
    %v3566 = vadd.f32 %v3564, 0.5
    %v3567 = vtanh.pop %v3241
    %v3568 = vtanh.pop %v3245
    %v3569 = vmul.f32 %v3242, 0.5
    %v3570 = vmul.f32 %v3246, 0.5
    %v3571 = vtanh.pop %v3569
    %v3572 = vtanh.pop %v3570
    %v3573 = vmul.f32 %v3571, 0.5
    %v3574 = vmul.f32 %v3572, 0.5
    %v3575 = vadd.f32 %v3573, 0.5
    %v3576 = vadd.f32 %v3574, 0.5
    %v3577 = vmul.f32 %v3565, %v2873
    %v3578 = vmul.f32 %v3566, %v2874
    %v3579 = vmul.f32 %v3557, %v3567
    %v3580 = vmul.f32 %v3558, %v3568
    %v3581 = vadd.f32 %v3577, %v3579
    %v3582 = vadd.f32 %v3578, %v3580
    %v3583 = vtanh.pop %v3581
    %v3584 = vtanh.pop %v3582
    %v3585 = vmul.f32 %v3575, %v3583
    %v3586 = vmul.f32 %v3576, %v3584
    %v3587 = vsel %vm3549, 1, 0
    %v3588 = vsel %vm3550, 1, 0
    %3589 = vset.pattern.permute.xlu0 0
    %3590 = vperm.xlu0 %3589, %v3587
    %v3591 = vpop.permute.xlu0 %3590
    %3592 = vset.pattern.permute.xlu0 0
    %3593 = vperm.xlu0 %3592, %v3588
    %v3594 = vpop.permute.xlu0 %3593
    %vm3595 = vcmp.eq.s32.totalorder %v3591, 1
    %vm3596 = vcmp.eq.s32.totalorder %v3594, 1
    %v3597 = vsel %vm3595, %v3585, %v2871
    %v3598 = vsel %vm3596, %v3586, %v2872
    %v3599 = vsel %vm3595, %v3581, %v2873
    %v3600 = vsel %vm3596, %v3582, %v2874
    %v3601 = vsel %vm3595, %v3585, 0.0
    %v3602 = vsel %vm3596, %v3586, 0.0
    %vm3603 = vcmp.gt.s32.totalorder %v46, 5
    %vm3604 = vcmp.gt.s32.totalorder %v47, 5
    %v3605 = vmul.f32 %v3541, 0.5
    %v3606 = vmul.f32 %v3545, 0.5
    %v3607 = vtanh.pop %v3605
    %v3608 = vtanh.pop %v3606
    %v3609 = vmul.f32 %v3607, 0.5
    %v3610 = vmul.f32 %v3608, 0.5
    %v3611 = vadd.f32 %v3609, 0.5
    %v3612 = vadd.f32 %v3610, 0.5
    %v3613 = vmul.f32 %v3542, 0.5
    %v3614 = vmul.f32 %v3546, 0.5
    %v3615 = vtanh.pop %v3613
    %v3616 = vtanh.pop %v3614
    %v3617 = vmul.f32 %v3615, 0.5
    %v3618 = vmul.f32 %v3616, 0.5
    %v3619 = vadd.f32 %v3617, 0.5
    %v3620 = vadd.f32 %v3618, 0.5
    %v3621 = vtanh.pop %v3543
    %v3622 = vtanh.pop %v3547
    %v3623 = vmul.f32 %v3544, 0.5
    %v3624 = vmul.f32 %v3548, 0.5
    %v3625 = vtanh.pop %v3623
    %v3626 = vtanh.pop %v3624
    %v3627 = vmul.f32 %v3625, 0.5
    %v3628 = vmul.f32 %v3626, 0.5
    %v3629 = vadd.f32 %v3627, 0.5
    %v3630 = vadd.f32 %v3628, 0.5
    %v3631 = vmul.f32 %v3619, %v2927
    %v3632 = vmul.f32 %v3620, %v2928
    %v3633 = vmul.f32 %v3611, %v3621
    %v3634 = vmul.f32 %v3612, %v3622
    %v3635 = vadd.f32 %v3631, %v3633
    %v3636 = vadd.f32 %v3632, %v3634
    %v3637 = vtanh.pop %v3635
    %v3638 = vtanh.pop %v3636
    %v3639 = vmul.f32 %v3629, %v3637
    %v3640 = vmul.f32 %v3630, %v3638
    %v3641 = vsel %vm3603, 1, 0
    %v3642 = vsel %vm3604, 1, 0
    %3643 = vset.pattern.permute.xlu0 0
    %3644 = vperm.xlu0 %3643, %v3641
    %v3645 = vpop.permute.xlu0 %3644
    %3646 = vset.pattern.permute.xlu0 0
    %3647 = vperm.xlu0 %3646, %v3642
    %v3648 = vpop.permute.xlu0 %3647
    %vm3649 = vcmp.eq.s32.totalorder %v3645, 1
    %vm3650 = vcmp.eq.s32.totalorder %v3648, 1
    %v3651 = vsel %vm3649, %v3639, %v2925
    %v3652 = vsel %vm3650, %v3640, %v2926
    %v3653 = vsel %vm3649, %v3635, %v2927
    %v3654 = vsel %vm3650, %v3636, %v2928
    %v3655 = vsel %vm3649, %v3639, 0.0
    %v3656 = vsel %vm3650, %v3640, 0.0
    %s3657 = scalar_lea.vmem [#allocation2], 64
    %v3658 = vld [vmem:[%s3657] sm:$0xff]
    %v3659 = vld [vmem:[%s3657 + $0x8] sm:$0xff]
    %v3660 = vadd.f32 %v3658, %v3601
    %v3661 = vadd.f32 %v3659, %v3602
    %3662 = vst [vmem:[%s3657] sm:$0xff] %v3660
    %3663 = vst [vmem:[%s3657 + $0x8] sm:$0xff] %v3661
    %s3664 = scalar_lea.vmem [#allocation2], 80
    %v3665 = vld [vmem:[%s3664] sm:$0xff]
    %v3666 = vld [vmem:[%s3664 + $0x8] sm:$0xff]
    %v3667 = vadd.f32 %v3665, %v3655
    %v3668 = vadd.f32 %v3666, %v3656
    %3669 = vst [vmem:[%s3664] sm:$0xff] %v3667
    %3670 = vst [vmem:[%s3664 + $0x8] sm:$0xff] %v3668
    %s3671 = smul.addr %s3247, 4
    %s3672 = scalar_lea.vmem %s0, %s3671
    %v3673 = vld [vmem:[%s3672] sm:$0xff]
    %v3674 = vld [vmem:[%s3672 + $0x8] sm:$0xff]
    %v3675 = vld [vmem:[%s3672 + $0x10] sm:$0xff]
    %v3676 = vld [vmem:[%s3672 + $0x18] sm:$0xff]
    %v3677 = vunpack.c.l.bf16 %v3673
    %v3678 = vunpack.c.h.bf16 %v3673
    %v3679 = vunpack.c.l.bf16 %v3674
    %v3680 = vunpack.c.h.bf16 %v3674
    %v3681 = vunpack.c.l.bf16 %v3675
    %v3682 = vunpack.c.h.bf16 %v3675
    %v3683 = vunpack.c.l.bf16 %v3676
    %v3684 = vunpack.c.h.bf16 %v3676
    %v3685 = vpack.c.bf16 %v3598, %v3597
    %v3686 = vld [vmem:[%s3] sm:$0xff]
    %v3687 = vld [vmem:[%s3 + $0x8] sm:$0xff]
    %v3688 = vld [vmem:[%s3 + $0x10] sm:$0xff]
    %v3689 = vld [vmem:[%s3 + $0x18] sm:$0xff]
    %v3690 = vld [vmem:[%s3 + $0x20] sm:$0xff]
    %v3691 = vld [vmem:[%s3 + $0x28] sm:$0xff]
    %v3692 = vld [vmem:[%s3 + $0x30] sm:$0xff]
    %v3693 = vld [vmem:[%s3 + $0x38] sm:$0xff]
    %v3694 = vld [vmem:[%s3 + $0x40] sm:$0xff]
    %v3695 = vld [vmem:[%s3 + $0x48] sm:$0xff]
    %v3696 = vld [vmem:[%s3 + $0x50] sm:$0xff]
    %v3697 = vld [vmem:[%s3 + $0x58] sm:$0xff]
    %v3698 = vld [vmem:[%s3 + $0x60] sm:$0xff]
    %v3699 = vld [vmem:[%s3 + $0x68] sm:$0xff]
    %v3700 = vld [vmem:[%s3 + $0x70] sm:$0xff]
    %v3701 = vld [vmem:[%s3 + $0x78] sm:$0xff]
    %v3702 = vld [vmem:[%s3 + $0x80] sm:$0xff]
    %v3703 = vld [vmem:[%s3 + $0x88] sm:$0xff]
    %v3704 = vld [vmem:[%s3 + $0x90] sm:$0xff]
    %v3705 = vld [vmem:[%s3 + $0x98] sm:$0xff]
    %v3706 = vld [vmem:[%s3 + $0xa0] sm:$0xff]
    %v3707 = vld [vmem:[%s3 + $0xa8] sm:$0xff]
    %v3708 = vld [vmem:[%s3 + $0xb0] sm:$0xff]
    %v3709 = vld [vmem:[%s3 + $0xb8] sm:$0xff]
    %v3710 = vld [vmem:[%s3 + $0xc0] sm:$0xff]
    %v3711 = vld [vmem:[%s3 + $0xc8] sm:$0xff]
    %v3712 = vld [vmem:[%s3 + $0xd0] sm:$0xff]
    %v3713 = vld [vmem:[%s3 + $0xd8] sm:$0xff]
    %v3714 = vld [vmem:[%s3 + $0xe0] sm:$0xff]
    %v3715 = vld [vmem:[%s3 + $0xe8] sm:$0xff]
    %v3716 = vld [vmem:[%s3 + $0xf0] sm:$0xff]
    %v3717 = vld [vmem:[%s3 + $0xf8] sm:$0xff]
    %v3750 = vunpack.c.l.b16 %v3686
    %v3751 = vunpack.c.h.b16 %v3686
    %v3752 = vunpack.c.l.b16 %v3687
    %v3753 = vunpack.c.h.b16 %v3687
    %v3754 = vunpack.c.l.b16 %v3688
    %v3755 = vunpack.c.h.b16 %v3688
    %v3756 = vunpack.c.l.b16 %v3689
    %v3757 = vunpack.c.h.b16 %v3689
    %v3758 = vunpack.c.l.b16 %v3690
    %v3759 = vunpack.c.h.b16 %v3690
    %v3760 = vunpack.c.l.b16 %v3691
    %v3761 = vunpack.c.h.b16 %v3691
    %v3762 = vunpack.c.l.b16 %v3692
    %v3763 = vunpack.c.h.b16 %v3692
    %v3764 = vunpack.c.l.b16 %v3693
    %v3765 = vunpack.c.h.b16 %v3693
    %v3766 = vunpack.c.l.b16 %v3694
    %v3767 = vunpack.c.h.b16 %v3694
    %v3768 = vunpack.c.l.b16 %v3695
    %v3769 = vunpack.c.h.b16 %v3695
    %v3770 = vunpack.c.l.b16 %v3696
    %v3771 = vunpack.c.h.b16 %v3696
    %v3772 = vunpack.c.l.b16 %v3697
    %v3773 = vunpack.c.h.b16 %v3697
    %v3774 = vunpack.c.l.b16 %v3698
    %v3775 = vunpack.c.h.b16 %v3698
    %v3776 = vunpack.c.l.b16 %v3699
    %v3777 = vunpack.c.h.b16 %v3699
    %v3778 = vunpack.c.l.b16 %v3700
    %v3779 = vunpack.c.h.b16 %v3700
    %v3780 = vunpack.c.l.b16 %v3701
    %v3781 = vunpack.c.h.b16 %v3701
    %v3782 = vunpack.c.l.b16 %v3702
    %v3783 = vunpack.c.h.b16 %v3702
    %v3784 = vunpack.c.l.b16 %v3703
    %v3785 = vunpack.c.h.b16 %v3703
    %v3786 = vunpack.c.l.b16 %v3704
    %v3787 = vunpack.c.h.b16 %v3704
    %v3788 = vunpack.c.l.b16 %v3705
    %v3789 = vunpack.c.h.b16 %v3705
    %v3790 = vunpack.c.l.b16 %v3706
    %v3791 = vunpack.c.h.b16 %v3706
    %v3792 = vunpack.c.l.b16 %v3707
    %v3793 = vunpack.c.h.b16 %v3707
    %v3794 = vunpack.c.l.b16 %v3708
    %v3795 = vunpack.c.h.b16 %v3708
    %v3796 = vunpack.c.l.b16 %v3709
    %v3797 = vunpack.c.h.b16 %v3709
    %v3798 = vunpack.c.l.b16 %v3710
    %v3799 = vunpack.c.h.b16 %v3710
    %v3800 = vunpack.c.l.b16 %v3711
    %v3801 = vunpack.c.h.b16 %v3711
    %v3802 = vunpack.c.l.b16 %v3712
    %v3803 = vunpack.c.h.b16 %v3712
    %v3804 = vunpack.c.l.b16 %v3713
    %v3805 = vunpack.c.h.b16 %v3713
    %v3806 = vunpack.c.l.b16 %v3714
    %v3807 = vunpack.c.h.b16 %v3714
    %v3808 = vunpack.c.l.b16 %v3715
    %v3809 = vunpack.c.h.b16 %v3715
    %v3810 = vunpack.c.l.b16 %v3716
    %v3811 = vunpack.c.h.b16 %v3716
    %v3812 = vunpack.c.l.b16 %v3717
    %v3813 = vunpack.c.h.b16 %v3717
    %v3814 = vpack.c.b16 %v3754, %v3750
    %v3815 = vpack.c.b16 %v3755, %v3751
    %v3816 = vpack.c.b16 %v3756, %v3752
    %v3817 = vpack.c.b16 %v3757, %v3753
    %v3818 = vpack.c.b16 %v3762, %v3758
    %v3819 = vpack.c.b16 %v3763, %v3759
    %v3820 = vpack.c.b16 %v3764, %v3760
    %v3821 = vpack.c.b16 %v3765, %v3761
    %v3822 = vpack.c.b16 %v3770, %v3766
    %v3823 = vpack.c.b16 %v3771, %v3767
    %v3824 = vpack.c.b16 %v3772, %v3768
    %v3825 = vpack.c.b16 %v3773, %v3769
    %v3826 = vpack.c.b16 %v3778, %v3774
    %v3827 = vpack.c.b16 %v3779, %v3775
    %v3828 = vpack.c.b16 %v3780, %v3776
    %v3829 = vpack.c.b16 %v3781, %v3777
    %v3830 = vpack.c.b16 %v3786, %v3782
    %v3831 = vpack.c.b16 %v3787, %v3783
    %v3832 = vpack.c.b16 %v3788, %v3784
    %v3833 = vpack.c.b16 %v3789, %v3785
    %v3834 = vpack.c.b16 %v3794, %v3790
    %v3835 = vpack.c.b16 %v3795, %v3791
    %v3836 = vpack.c.b16 %v3796, %v3792
    %v3837 = vpack.c.b16 %v3797, %v3793
    %v3838 = vpack.c.b16 %v3802, %v3798
    %v3839 = vpack.c.b16 %v3803, %v3799
    %v3840 = vpack.c.b16 %v3804, %v3800
    %v3841 = vpack.c.b16 %v3805, %v3801
    %v3842 = vpack.c.b16 %v3810, %v3806
    %v3843 = vpack.c.b16 %v3811, %v3807
    %v3844 = vpack.c.b16 %v3812, %v3808
    %v3845 = vpack.c.b16 %v3813, %v3809
    %3878 = vmatprep.subr.bf16.mxu0 %v3843
    %3879 = vmatpush1.bf16.msra.mxu0 %v3842
    %3880 = vmatprep.subr.bf16.mxu0 %v3839
    %3881 = vmatpush1.bf16.msra.mxu0 %v3838
    %3882 = vmatprep.subr.bf16.mxu0 %v3835
    %3883 = vmatpush1.bf16.msra.mxu0 %v3834
    %3884 = vmatprep.subr.bf16.mxu0 %v3831
    %3885 = vmatpush1.bf16.msra.mxu0 %v3830
    %3886 = vmatprep.subr.bf16.mxu0 %v3827
    %3887 = vmatpush1.bf16.msra.mxu0 %v3826
    %3888 = vmatprep.subr.bf16.mxu0 %v3823
    %3889 = vmatpush1.bf16.msra.mxu0 %v3822
    %3890 = vmatprep.subr.bf16.mxu0 %v3819
    %3891 = vmatpush1.bf16.msra.mxu0 %v3818
    %3892 = vmatprep.subr.bf16.mxu0 %v3815
    %3893 = vmatpush1.bf16.msra.mxu0 %v3814
    %3894 = vmatprep.subr.bf16.mxu0 0
    %3895 = vmatpush2.bf16.msra.mxu0 0
    %3896 = vmatprep.subr.bf16.mxu0 0
    %3897 = vmatpush2.bf16.msra.mxu0 0
    %3898 = vmatprep.subr.bf16.mxu0 0
    %3899 = vmatpush2.bf16.msra.mxu0 0
    %3900 = vmatprep.subr.bf16.mxu0 0
    %3901 = vmatpush2.bf16.msra.mxu0 0
    %3902 = vmatprep.subr.bf16.mxu0 0
    %3903 = vmatpush2.bf16.msra.mxu0 0
    %3904 = vmatprep.subr.bf16.mxu0 0
    %3905 = vmatpush2.bf16.msra.mxu0 0
    %3906 = vmatprep.subr.bf16.mxu0 0
    %3907 = vmatpush2.bf16.msra.mxu0 0
    %3908 = vmatprep.subr.bf16.mxu0 0
    %3909 = vmatpush2.bf16.msra.mxu0 0
    %3910 = vmatprep.mubr.bf16.mxu0 0
    %3911 = vmatmul.mubr.bf16.gmra.mxu0 %v3685
    %v3912 = vpop.f32.mrf.mxu0
    %v3913 = vadd.f32 0.0, %v3912
    %v3914 = vpop.f32.mrf.mxu0
    %v3915 = vadd.f32 0.0, %v3914
    %v3916 = vpop.f32.mrf.mxu0
    %v3917 = vadd.f32 0.0, %v3916
    %v3918 = vpop.f32.mrf.mxu0
    %v3919 = vadd.f32 0.0, %v3918
    %3920 = vdwg.mxu0
    %3921 = vmatprep.subr.bf16.mxu0 %v3845
    %3922 = vmatpush1.bf16.msra.mxu0 %v3844
    %3923 = vmatprep.subr.bf16.mxu0 %v3841
    %3924 = vmatpush1.bf16.msra.mxu0 %v3840
    %3925 = vmatprep.subr.bf16.mxu0 %v3837
    %3926 = vmatpush1.bf16.msra.mxu0 %v3836
    %3927 = vmatprep.subr.bf16.mxu0 %v3833
    %3928 = vmatpush1.bf16.msra.mxu0 %v3832
    %3929 = vmatprep.subr.bf16.mxu0 %v3829
    %3930 = vmatpush1.bf16.msra.mxu0 %v3828
    %3931 = vmatprep.subr.bf16.mxu0 %v3825
    %3932 = vmatpush1.bf16.msra.mxu0 %v3824
    %3933 = vmatprep.subr.bf16.mxu0 %v3821
    %3934 = vmatpush1.bf16.msra.mxu0 %v3820
    %3935 = vmatprep.subr.bf16.mxu0 %v3817
    %3936 = vmatpush1.bf16.msra.mxu0 %v3816
    %3937 = vmatprep.subr.bf16.mxu0 0
    %3938 = vmatpush2.bf16.msra.mxu0 0
    %3939 = vmatprep.subr.bf16.mxu0 0
    %3940 = vmatpush2.bf16.msra.mxu0 0
    %3941 = vmatprep.subr.bf16.mxu0 0
    %3942 = vmatpush2.bf16.msra.mxu0 0
    %3943 = vmatprep.subr.bf16.mxu0 0
    %3944 = vmatpush2.bf16.msra.mxu0 0
    %3945 = vmatprep.subr.bf16.mxu0 0
    %3946 = vmatpush2.bf16.msra.mxu0 0
    %3947 = vmatprep.subr.bf16.mxu0 0
    %3948 = vmatpush2.bf16.msra.mxu0 0
    %3949 = vmatprep.subr.bf16.mxu0 0
    %3950 = vmatpush2.bf16.msra.mxu0 0
    %3951 = vmatprep.subr.bf16.mxu0 0
    %3952 = vmatpush2.bf16.msra.mxu0 0
    %3953 = vmatprep.mubr.bf16.mxu0 0
    %3954 = vmatmul.mubr.bf16.gmra.mxu0 %v3685
    %v3955 = vpop.f32.mrf.mxu0
    %v3956 = vadd.f32 0.0, %v3955
    %v3957 = vpop.f32.mrf.mxu0
    %v3958 = vadd.f32 0.0, %v3957
    %v3959 = vpop.f32.mrf.mxu0
    %v3960 = vadd.f32 0.0, %v3959
    %v3961 = vpop.f32.mrf.mxu0
    %v3962 = vadd.f32 0.0, %v3961
    %3963 = vdwg.mxu0
    %v3964 = vadd.f32 %v3677, %v3913
    %v3965 = vadd.f32 %v3678, %v3915
    %v3966 = vadd.f32 %v3679, %v3956
    %v3967 = vadd.f32 %v3680, %v3958
    %v3968 = vadd.f32 %v3681, %v3917
    %v3969 = vadd.f32 %v3682, %v3919
    %v3970 = vadd.f32 %v3683, %v3960
    %v3971 = vadd.f32 %v3684, %v3962
    %s3972 = smul.addr %s2945, 4
    %s3973 = scalar_lea.vmem %s1, %s3972
    %v3974 = vld [vmem:[%s3973] sm:$0xff]
    %v3975 = vld [vmem:[%s3973 + $0x8] sm:$0xff]
    %v3976 = vld [vmem:[%s3973 + $0x10] sm:$0xff]
    %v3977 = vld [vmem:[%s3973 + $0x18] sm:$0xff]
    %v3978 = vunpack.c.l.bf16 %v3974
    %v3979 = vunpack.c.h.bf16 %v3974
    %v3980 = vunpack.c.l.bf16 %v3975
    %v3981 = vunpack.c.h.bf16 %v3975
    %v3982 = vunpack.c.l.bf16 %v3976
    %v3983 = vunpack.c.h.bf16 %v3976
    %v3984 = vunpack.c.l.bf16 %v3977
    %v3985 = vunpack.c.h.bf16 %v3977
    %v3986 = vpack.c.bf16 %v3652, %v3651
    %v3987 = vld [vmem:[%s4] sm:$0xff]
    %v3988 = vld [vmem:[%s4 + $0x8] sm:$0xff]
    %v3989 = vld [vmem:[%s4 + $0x10] sm:$0xff]
    %v3990 = vld [vmem:[%s4 + $0x18] sm:$0xff]
    %v3991 = vld [vmem:[%s4 + $0x20] sm:$0xff]
    %v3992 = vld [vmem:[%s4 + $0x28] sm:$0xff]
    %v3993 = vld [vmem:[%s4 + $0x30] sm:$0xff]
    %v3994 = vld [vmem:[%s4 + $0x38] sm:$0xff]
    %v3995 = vld [vmem:[%s4 + $0x40] sm:$0xff]
    %v3996 = vld [vmem:[%s4 + $0x48] sm:$0xff]
    %v3997 = vld [vmem:[%s4 + $0x50] sm:$0xff]
    %v3998 = vld [vmem:[%s4 + $0x58] sm:$0xff]
    %v3999 = vld [vmem:[%s4 + $0x60] sm:$0xff]
    %v4000 = vld [vmem:[%s4 + $0x68] sm:$0xff]
    %v4001 = vld [vmem:[%s4 + $0x70] sm:$0xff]
    %v4002 = vld [vmem:[%s4 + $0x78] sm:$0xff]
    %v4003 = vld [vmem:[%s4 + $0x80] sm:$0xff]
    %v4004 = vld [vmem:[%s4 + $0x88] sm:$0xff]
    %v4005 = vld [vmem:[%s4 + $0x90] sm:$0xff]
    %v4006 = vld [vmem:[%s4 + $0x98] sm:$0xff]
    %v4007 = vld [vmem:[%s4 + $0xa0] sm:$0xff]
    %v4008 = vld [vmem:[%s4 + $0xa8] sm:$0xff]
    %v4009 = vld [vmem:[%s4 + $0xb0] sm:$0xff]
    %v4010 = vld [vmem:[%s4 + $0xb8] sm:$0xff]
    %v4011 = vld [vmem:[%s4 + $0xc0] sm:$0xff]
    %v4012 = vld [vmem:[%s4 + $0xc8] sm:$0xff]
    %v4013 = vld [vmem:[%s4 + $0xd0] sm:$0xff]
    %v4014 = vld [vmem:[%s4 + $0xd8] sm:$0xff]
    %v4015 = vld [vmem:[%s4 + $0xe0] sm:$0xff]
    %v4016 = vld [vmem:[%s4 + $0xe8] sm:$0xff]
    %v4017 = vld [vmem:[%s4 + $0xf0] sm:$0xff]
    %v4018 = vld [vmem:[%s4 + $0xf8] sm:$0xff]
    %v4051 = vunpack.c.l.b16 %v3987
    %v4052 = vunpack.c.h.b16 %v3987
    %v4053 = vunpack.c.l.b16 %v3988
    %v4054 = vunpack.c.h.b16 %v3988
    %v4055 = vunpack.c.l.b16 %v3989
    %v4056 = vunpack.c.h.b16 %v3989
    %v4057 = vunpack.c.l.b16 %v3990
    %v4058 = vunpack.c.h.b16 %v3990
    %v4059 = vunpack.c.l.b16 %v3991
    %v4060 = vunpack.c.h.b16 %v3991
    %v4061 = vunpack.c.l.b16 %v3992
    %v4062 = vunpack.c.h.b16 %v3992
    %v4063 = vunpack.c.l.b16 %v3993
    %v4064 = vunpack.c.h.b16 %v3993
    %v4065 = vunpack.c.l.b16 %v3994
    %v4066 = vunpack.c.h.b16 %v3994
    %v4067 = vunpack.c.l.b16 %v3995
    %v4068 = vunpack.c.h.b16 %v3995
    %v4069 = vunpack.c.l.b16 %v3996
    %v4070 = vunpack.c.h.b16 %v3996
    %v4071 = vunpack.c.l.b16 %v3997
    %v4072 = vunpack.c.h.b16 %v3997
    %v4073 = vunpack.c.l.b16 %v3998
    %v4074 = vunpack.c.h.b16 %v3998
    %v4075 = vunpack.c.l.b16 %v3999
    %v4076 = vunpack.c.h.b16 %v3999
    %v4077 = vunpack.c.l.b16 %v4000
    %v4078 = vunpack.c.h.b16 %v4000
    %v4079 = vunpack.c.l.b16 %v4001
    %v4080 = vunpack.c.h.b16 %v4001
    %v4081 = vunpack.c.l.b16 %v4002
    %v4082 = vunpack.c.h.b16 %v4002
    %v4083 = vunpack.c.l.b16 %v4003
    %v4084 = vunpack.c.h.b16 %v4003
    %v4085 = vunpack.c.l.b16 %v4004
    %v4086 = vunpack.c.h.b16 %v4004
    %v4087 = vunpack.c.l.b16 %v4005
    %v4088 = vunpack.c.h.b16 %v4005
    %v4089 = vunpack.c.l.b16 %v4006
    %v4090 = vunpack.c.h.b16 %v4006
    %v4091 = vunpack.c.l.b16 %v4007
    %v4092 = vunpack.c.h.b16 %v4007
    %v4093 = vunpack.c.l.b16 %v4008
    %v4094 = vunpack.c.h.b16 %v4008
    %v4095 = vunpack.c.l.b16 %v4009
    %v4096 = vunpack.c.h.b16 %v4009
    %v4097 = vunpack.c.l.b16 %v4010
    %v4098 = vunpack.c.h.b16 %v4010
    %v4099 = vunpack.c.l.b16 %v4011
    %v4100 = vunpack.c.h.b16 %v4011
    %v4101 = vunpack.c.l.b16 %v4012
    %v4102 = vunpack.c.h.b16 %v4012
    %v4103 = vunpack.c.l.b16 %v4013
    %v4104 = vunpack.c.h.b16 %v4013
    %v4105 = vunpack.c.l.b16 %v4014
    %v4106 = vunpack.c.h.b16 %v4014
    %v4107 = vunpack.c.l.b16 %v4015
    %v4108 = vunpack.c.h.b16 %v4015
    %v4109 = vunpack.c.l.b16 %v4016
    %v4110 = vunpack.c.h.b16 %v4016
    %v4111 = vunpack.c.l.b16 %v4017
    %v4112 = vunpack.c.h.b16 %v4017
    %v4113 = vunpack.c.l.b16 %v4018
    %v4114 = vunpack.c.h.b16 %v4018
    %v4115 = vpack.c.b16 %v4055, %v4051
    %v4116 = vpack.c.b16 %v4056, %v4052
    %v4117 = vpack.c.b16 %v4057, %v4053
    %v4118 = vpack.c.b16 %v4058, %v4054
    %v4119 = vpack.c.b16 %v4063, %v4059
    %v4120 = vpack.c.b16 %v4064, %v4060
    %v4121 = vpack.c.b16 %v4065, %v4061
    %v4122 = vpack.c.b16 %v4066, %v4062
    %v4123 = vpack.c.b16 %v4071, %v4067
    %v4124 = vpack.c.b16 %v4072, %v4068
    %v4125 = vpack.c.b16 %v4073, %v4069
    %v4126 = vpack.c.b16 %v4074, %v4070
    %v4127 = vpack.c.b16 %v4079, %v4075
    %v4128 = vpack.c.b16 %v4080, %v4076
    %v4129 = vpack.c.b16 %v4081, %v4077
    %v4130 = vpack.c.b16 %v4082, %v4078
    %v4131 = vpack.c.b16 %v4087, %v4083
    %v4132 = vpack.c.b16 %v4088, %v4084
    %v4133 = vpack.c.b16 %v4089, %v4085
    %v4134 = vpack.c.b16 %v4090, %v4086
    %v4135 = vpack.c.b16 %v4095, %v4091
    %v4136 = vpack.c.b16 %v4096, %v4092
    %v4137 = vpack.c.b16 %v4097, %v4093
    %v4138 = vpack.c.b16 %v4098, %v4094
    %v4139 = vpack.c.b16 %v4103, %v4099
    %v4140 = vpack.c.b16 %v4104, %v4100
    %v4141 = vpack.c.b16 %v4105, %v4101
    %v4142 = vpack.c.b16 %v4106, %v4102
    %v4143 = vpack.c.b16 %v4111, %v4107
    %v4144 = vpack.c.b16 %v4112, %v4108
    %v4145 = vpack.c.b16 %v4113, %v4109
    %v4146 = vpack.c.b16 %v4114, %v4110
    %4179 = vmatprep.subr.bf16.mxu0 %v4144
    %4180 = vmatpush1.bf16.msra.mxu0 %v4143
    %4181 = vmatprep.subr.bf16.mxu0 %v4140
    %4182 = vmatpush1.bf16.msra.mxu0 %v4139
    %4183 = vmatprep.subr.bf16.mxu0 %v4136
    %4184 = vmatpush1.bf16.msra.mxu0 %v4135
    %4185 = vmatprep.subr.bf16.mxu0 %v4132
    %4186 = vmatpush1.bf16.msra.mxu0 %v4131
    %4187 = vmatprep.subr.bf16.mxu0 %v4128
    %4188 = vmatpush1.bf16.msra.mxu0 %v4127
    %4189 = vmatprep.subr.bf16.mxu0 %v4124
    %4190 = vmatpush1.bf16.msra.mxu0 %v4123
    %4191 = vmatprep.subr.bf16.mxu0 %v4120
    %4192 = vmatpush1.bf16.msra.mxu0 %v4119
    %4193 = vmatprep.subr.bf16.mxu0 %v4116
    %4194 = vmatpush1.bf16.msra.mxu0 %v4115
    %4195 = vmatprep.subr.bf16.mxu0 0
    %4196 = vmatpush2.bf16.msra.mxu0 0
    %4197 = vmatprep.subr.bf16.mxu0 0
    %4198 = vmatpush2.bf16.msra.mxu0 0
    %4199 = vmatprep.subr.bf16.mxu0 0
    %4200 = vmatpush2.bf16.msra.mxu0 0
    %4201 = vmatprep.subr.bf16.mxu0 0
    %4202 = vmatpush2.bf16.msra.mxu0 0
    %4203 = vmatprep.subr.bf16.mxu0 0
    %4204 = vmatpush2.bf16.msra.mxu0 0
    %4205 = vmatprep.subr.bf16.mxu0 0
    %4206 = vmatpush2.bf16.msra.mxu0 0
    %4207 = vmatprep.subr.bf16.mxu0 0
    %4208 = vmatpush2.bf16.msra.mxu0 0
    %4209 = vmatprep.subr.bf16.mxu0 0
    %4210 = vmatpush2.bf16.msra.mxu0 0
    %4211 = vmatprep.mubr.bf16.mxu0 0
    %4212 = vmatmul.mubr.bf16.gmra.mxu0 %v3986
    %v4213 = vpop.f32.mrf.mxu0
    %v4214 = vadd.f32 0.0, %v4213
    %v4215 = vpop.f32.mrf.mxu0
    %v4216 = vadd.f32 0.0, %v4215
    %v4217 = vpop.f32.mrf.mxu0
    %v4218 = vadd.f32 0.0, %v4217
    %v4219 = vpop.f32.mrf.mxu0
    %v4220 = vadd.f32 0.0, %v4219
    %4221 = vdwg.mxu0
    %4222 = vmatprep.subr.bf16.mxu0 %v4146
    %4223 = vmatpush1.bf16.msra.mxu0 %v4145
    %4224 = vmatprep.subr.bf16.mxu0 %v4142
    %4225 = vmatpush1.bf16.msra.mxu0 %v4141
    %4226 = vmatprep.subr.bf16.mxu0 %v4138
    %4227 = vmatpush1.bf16.msra.mxu0 %v4137
    %4228 = vmatprep.subr.bf16.mxu0 %v4134
    %4229 = vmatpush1.bf16.msra.mxu0 %v4133
    %4230 = vmatprep.subr.bf16.mxu0 %v4130
    %4231 = vmatpush1.bf16.msra.mxu0 %v4129
    %4232 = vmatprep.subr.bf16.mxu0 %v4126
    %4233 = vmatpush1.bf16.msra.mxu0 %v4125
    %4234 = vmatprep.subr.bf16.mxu0 %v4122
    %4235 = vmatpush1.bf16.msra.mxu0 %v4121
    %4236 = vmatprep.subr.bf16.mxu0 %v4118
    %4237 = vmatpush1.bf16.msra.mxu0 %v4117
    %4238 = vmatprep.subr.bf16.mxu0 0
    %4239 = vmatpush2.bf16.msra.mxu0 0
    %4240 = vmatprep.subr.bf16.mxu0 0
    %4241 = vmatpush2.bf16.msra.mxu0 0
    %4242 = vmatprep.subr.bf16.mxu0 0
    %4243 = vmatpush2.bf16.msra.mxu0 0
    %4244 = vmatprep.subr.bf16.mxu0 0
    %4245 = vmatpush2.bf16.msra.mxu0 0
    %4246 = vmatprep.subr.bf16.mxu0 0
    %4247 = vmatpush2.bf16.msra.mxu0 0
    %4248 = vmatprep.subr.bf16.mxu0 0
    %4249 = vmatpush2.bf16.msra.mxu0 0
    %4250 = vmatprep.subr.bf16.mxu0 0
    %4251 = vmatpush2.bf16.msra.mxu0 0
    %4252 = vmatprep.subr.bf16.mxu0 0
    %4253 = vmatpush2.bf16.msra.mxu0 0
    %4254 = vmatprep.mubr.bf16.mxu0 0
    %4255 = vmatmul.mubr.bf16.gmra.mxu0 %v3986
    %v4256 = vpop.f32.mrf.mxu0
    %v4257 = vadd.f32 0.0, %v4256
    %v4258 = vpop.f32.mrf.mxu0
    %v4259 = vadd.f32 0.0, %v4258
    %v4260 = vpop.f32.mrf.mxu0
    %v4261 = vadd.f32 0.0, %v4260
    %v4262 = vpop.f32.mrf.mxu0
    %v4263 = vadd.f32 0.0, %v4262
    %4264 = vdwg.mxu0
    %v4265 = vadd.f32 %v3978, %v4214
    %v4266 = vadd.f32 %v3979, %v4216
    %v4267 = vadd.f32 %v3980, %v4257
    %v4268 = vadd.f32 %v3981, %v4259
    %v4269 = vadd.f32 %v3982, %v4218
    %v4270 = vadd.f32 %v3983, %v4220
    %v4271 = vadd.f32 %v3984, %v4261
    %v4272 = vadd.f32 %v3985, %v4263
    %v4273 = vmul.f32 %v3964, 0.5
    %v4274 = vmul.f32 %v3968, 0.5
    %v4275 = vtanh.pop %v4273
    %v4276 = vtanh.pop %v4274
    %v4277 = vmul.f32 %v4275, 0.5
    %v4278 = vmul.f32 %v4276, 0.5
    %v4279 = vadd.f32 %v4277, 0.5
    %v4280 = vadd.f32 %v4278, 0.5
    %v4281 = vmul.f32 %v3965, 0.5
    %v4282 = vmul.f32 %v3969, 0.5
    %v4283 = vtanh.pop %v4281
    %v4284 = vtanh.pop %v4282
    %v4285 = vmul.f32 %v4283, 0.5
    %v4286 = vmul.f32 %v4284, 0.5
    %v4287 = vadd.f32 %v4285, 0.5
    %v4288 = vadd.f32 %v4286, 0.5
    %v4289 = vtanh.pop %v3966
    %v4290 = vtanh.pop %v3970
    %v4291 = vmul.f32 %v3967, 0.5
    %v4292 = vmul.f32 %v3971, 0.5
    %v4293 = vtanh.pop %v4291
    %v4294 = vtanh.pop %v4292
    %v4295 = vmul.f32 %v4293, 0.5
    %v4296 = vmul.f32 %v4294, 0.5
    %v4297 = vadd.f32 %v4295, 0.5
    %v4298 = vadd.f32 %v4296, 0.5
    %v4299 = vmul.f32 %v4287, %v3599
    %v4300 = vmul.f32 %v4288, %v3600
    %v4301 = vmul.f32 %v4279, %v4289
    %v4302 = vmul.f32 %v4280, %v4290
    %v4303 = vadd.f32 %v4299, %v4301
    %v4304 = vadd.f32 %v4300, %v4302
    %v4305 = vtanh.pop %v4303
    %v4306 = vtanh.pop %v4304
    %v4307 = vmul.f32 %v4297, %v4305
    %v4308 = vmul.f32 %v4298, %v4306
    %v4309 = vsel %vm3649, %v4307, %v3597
    %v4310 = vsel %vm3650, %v4308, %v3598
    %v4311 = vsel %vm3649, %v4303, %v3599
    %v4312 = vsel %vm3650, %v4304, %v3600
    %v4313 = vsel %vm3649, %v4307, 0.0
    %v4314 = vsel %vm3650, %v4308, 0.0
    %v4315 = vmul.f32 %v4265, 0.5
    %v4316 = vmul.f32 %v4269, 0.5
    %v4317 = vtanh.pop %v4315
    %v4318 = vtanh.pop %v4316
    %v4319 = vmul.f32 %v4317, 0.5
    %v4320 = vmul.f32 %v4318, 0.5
    %v4321 = vadd.f32 %v4319, 0.5
    %v4322 = vadd.f32 %v4320, 0.5
    %v4323 = vmul.f32 %v4266, 0.5
    %v4324 = vmul.f32 %v4270, 0.5
    %v4325 = vtanh.pop %v4323
    %v4326 = vtanh.pop %v4324
    %v4327 = vmul.f32 %v4325, 0.5
    %v4328 = vmul.f32 %v4326, 0.5
    %v4329 = vadd.f32 %v4327, 0.5
    %v4330 = vadd.f32 %v4328, 0.5
    %v4331 = vtanh.pop %v4267
    %v4332 = vtanh.pop %v4271
    %v4333 = vmul.f32 %v4268, 0.5
    %v4334 = vmul.f32 %v4272, 0.5
    %v4335 = vtanh.pop %v4333
    %v4336 = vtanh.pop %v4334
    %v4337 = vmul.f32 %v4335, 0.5
    %v4338 = vmul.f32 %v4336, 0.5
    %v4339 = vadd.f32 %v4337, 0.5
    %v4340 = vadd.f32 %v4338, 0.5
    %v4341 = vmul.f32 %v4329, %v3653
    %v4342 = vmul.f32 %v4330, %v3654
    %v4343 = vmul.f32 %v4321, %v4331
    %v4344 = vmul.f32 %v4322, %v4332
    %v4345 = vadd.f32 %v4341, %v4343
    %v4346 = vadd.f32 %v4342, %v4344
    %v4347 = vtanh.pop %v4345
    %v4348 = vtanh.pop %v4346
    %v4349 = vmul.f32 %v4339, %v4347
    %v4350 = vmul.f32 %v4340, %v4348
    %v4351 = vsel %vm3595, %v4349, %v3651
    %v4352 = vsel %vm3596, %v4350, %v3652
    %v4353 = vsel %vm3595, %v4345, %v3653
    %v4354 = vsel %vm3596, %v4346, %v3654
    %v4355 = vsel %vm3595, %v4349, 0.0
    %v4356 = vsel %vm3596, %v4350, 0.0
    %v4357 = vld [vmem:[%s3664] sm:$0xff]
    %v4358 = vld [vmem:[%s3664 + $0x8] sm:$0xff]
    %v4359 = vadd.f32 %v4357, %v4313
    %v4360 = vadd.f32 %v4358, %v4314
    %4361 = vst [vmem:[%s3664] sm:$0xff] %v4359
    %4362 = vst [vmem:[%s3664 + $0x8] sm:$0xff] %v4360
    %v4363 = vld [vmem:[%s3657] sm:$0xff]
    %v4364 = vld [vmem:[%s3657 + $0x8] sm:$0xff]
    %v4365 = vadd.f32 %v4363, %v4355
    %v4366 = vadd.f32 %v4364, %v4356
    %4367 = vst [vmem:[%s3657] sm:$0xff] %v4365
    %4368 = vst [vmem:[%s3657 + $0x8] sm:$0xff] %v4366
    %s4369 = smul.addr %s2521, 4
    %s4370 = scalar_lea.vmem %s0, %s4369
    %v4371 = vld [vmem:[%s4370] sm:$0xff]
    %v4372 = vld [vmem:[%s4370 + $0x8] sm:$0xff]
    %v4373 = vld [vmem:[%s4370 + $0x10] sm:$0xff]
    %v4374 = vld [vmem:[%s4370 + $0x18] sm:$0xff]
    %v4375 = vunpack.c.l.bf16 %v4371
    %v4376 = vunpack.c.h.bf16 %v4371
    %v4377 = vunpack.c.l.bf16 %v4372
    %v4378 = vunpack.c.h.bf16 %v4372
    %v4379 = vunpack.c.l.bf16 %v4373
    %v4380 = vunpack.c.h.bf16 %v4373
    %v4381 = vunpack.c.l.bf16 %v4374
    %v4382 = vunpack.c.h.bf16 %v4374
    %v4383 = vpack.c.bf16 %v4310, %v4309
    %v4384 = vld [vmem:[%s3] sm:$0xff]
    %v4385 = vld [vmem:[%s3 + $0x8] sm:$0xff]
    %v4386 = vld [vmem:[%s3 + $0x10] sm:$0xff]
    %v4387 = vld [vmem:[%s3 + $0x18] sm:$0xff]
    %v4388 = vld [vmem:[%s3 + $0x20] sm:$0xff]
    %v4389 = vld [vmem:[%s3 + $0x28] sm:$0xff]
    %v4390 = vld [vmem:[%s3 + $0x30] sm:$0xff]
    %v4391 = vld [vmem:[%s3 + $0x38] sm:$0xff]
    %v4392 = vld [vmem:[%s3 + $0x40] sm:$0xff]
    %v4393 = vld [vmem:[%s3 + $0x48] sm:$0xff]
    %v4394 = vld [vmem:[%s3 + $0x50] sm:$0xff]
    %v4395 = vld [vmem:[%s3 + $0x58] sm:$0xff]
    %v4396 = vld [vmem:[%s3 + $0x60] sm:$0xff]
    %v4397 = vld [vmem:[%s3 + $0x68] sm:$0xff]
    %v4398 = vld [vmem:[%s3 + $0x70] sm:$0xff]
    %v4399 = vld [vmem:[%s3 + $0x78] sm:$0xff]
    %v4400 = vld [vmem:[%s3 + $0x80] sm:$0xff]
    %v4401 = vld [vmem:[%s3 + $0x88] sm:$0xff]
    %v4402 = vld [vmem:[%s3 + $0x90] sm:$0xff]
    %v4403 = vld [vmem:[%s3 + $0x98] sm:$0xff]
    %v4404 = vld [vmem:[%s3 + $0xa0] sm:$0xff]
    %v4405 = vld [vmem:[%s3 + $0xa8] sm:$0xff]
    %v4406 = vld [vmem:[%s3 + $0xb0] sm:$0xff]
    %v4407 = vld [vmem:[%s3 + $0xb8] sm:$0xff]
    %v4408 = vld [vmem:[%s3 + $0xc0] sm:$0xff]
    %v4409 = vld [vmem:[%s3 + $0xc8] sm:$0xff]
    %v4410 = vld [vmem:[%s3 + $0xd0] sm:$0xff]
    %v4411 = vld [vmem:[%s3 + $0xd8] sm:$0xff]
    %v4412 = vld [vmem:[%s3 + $0xe0] sm:$0xff]
    %v4413 = vld [vmem:[%s3 + $0xe8] sm:$0xff]
    %v4414 = vld [vmem:[%s3 + $0xf0] sm:$0xff]
    %v4415 = vld [vmem:[%s3 + $0xf8] sm:$0xff]
    %v4448 = vunpack.c.l.b16 %v4384
    %v4449 = vunpack.c.h.b16 %v4384
    %v4450 = vunpack.c.l.b16 %v4385
    %v4451 = vunpack.c.h.b16 %v4385
    %v4452 = vunpack.c.l.b16 %v4386
    %v4453 = vunpack.c.h.b16 %v4386
    %v4454 = vunpack.c.l.b16 %v4387
    %v4455 = vunpack.c.h.b16 %v4387
    %v4456 = vunpack.c.l.b16 %v4388
    %v4457 = vunpack.c.h.b16 %v4388
    %v4458 = vunpack.c.l.b16 %v4389
    %v4459 = vunpack.c.h.b16 %v4389
    %v4460 = vunpack.c.l.b16 %v4390
    %v4461 = vunpack.c.h.b16 %v4390
    %v4462 = vunpack.c.l.b16 %v4391
    %v4463 = vunpack.c.h.b16 %v4391
    %v4464 = vunpack.c.l.b16 %v4392
    %v4465 = vunpack.c.h.b16 %v4392
    %v4466 = vunpack.c.l.b16 %v4393
    %v4467 = vunpack.c.h.b16 %v4393
    %v4468 = vunpack.c.l.b16 %v4394
    %v4469 = vunpack.c.h.b16 %v4394
    %v4470 = vunpack.c.l.b16 %v4395
    %v4471 = vunpack.c.h.b16 %v4395
    %v4472 = vunpack.c.l.b16 %v4396
    %v4473 = vunpack.c.h.b16 %v4396
    %v4474 = vunpack.c.l.b16 %v4397
    %v4475 = vunpack.c.h.b16 %v4397
    %v4476 = vunpack.c.l.b16 %v4398
    %v4477 = vunpack.c.h.b16 %v4398
    %v4478 = vunpack.c.l.b16 %v4399
    %v4479 = vunpack.c.h.b16 %v4399
    %v4480 = vunpack.c.l.b16 %v4400
    %v4481 = vunpack.c.h.b16 %v4400
    %v4482 = vunpack.c.l.b16 %v4401
    %v4483 = vunpack.c.h.b16 %v4401
    %v4484 = vunpack.c.l.b16 %v4402
    %v4485 = vunpack.c.h.b16 %v4402
    %v4486 = vunpack.c.l.b16 %v4403
    %v4487 = vunpack.c.h.b16 %v4403
    %v4488 = vunpack.c.l.b16 %v4404
    %v4489 = vunpack.c.h.b16 %v4404
    %v4490 = vunpack.c.l.b16 %v4405
    %v4491 = vunpack.c.h.b16 %v4405
    %v4492 = vunpack.c.l.b16 %v4406
    %v4493 = vunpack.c.h.b16 %v4406
    %v4494 = vunpack.c.l.b16 %v4407
    %v4495 = vunpack.c.h.b16 %v4407
    %v4496 = vunpack.c.l.b16 %v4408
    %v4497 = vunpack.c.h.b16 %v4408
    %v4498 = vunpack.c.l.b16 %v4409
    %v4499 = vunpack.c.h.b16 %v4409
    %v4500 = vunpack.c.l.b16 %v4410
    %v4501 = vunpack.c.h.b16 %v4410
    %v4502 = vunpack.c.l.b16 %v4411
    %v4503 = vunpack.c.h.b16 %v4411
    %v4504 = vunpack.c.l.b16 %v4412
    %v4505 = vunpack.c.h.b16 %v4412
    %v4506 = vunpack.c.l.b16 %v4413
    %v4507 = vunpack.c.h.b16 %v4413
    %v4508 = vunpack.c.l.b16 %v4414
    %v4509 = vunpack.c.h.b16 %v4414
    %v4510 = vunpack.c.l.b16 %v4415
    %v4511 = vunpack.c.h.b16 %v4415
    %v4512 = vpack.c.b16 %v4452, %v4448
    %v4513 = vpack.c.b16 %v4453, %v4449
    %v4514 = vpack.c.b16 %v4454, %v4450
    %v4515 = vpack.c.b16 %v4455, %v4451
    %v4516 = vpack.c.b16 %v4460, %v4456
    %v4517 = vpack.c.b16 %v4461, %v4457
    %v4518 = vpack.c.b16 %v4462, %v4458
    %v4519 = vpack.c.b16 %v4463, %v4459
    %v4520 = vpack.c.b16 %v4468, %v4464
    %v4521 = vpack.c.b16 %v4469, %v4465
    %v4522 = vpack.c.b16 %v4470, %v4466
    %v4523 = vpack.c.b16 %v4471, %v4467
    %v4524 = vpack.c.b16 %v4476, %v4472
    %v4525 = vpack.c.b16 %v4477, %v4473
    %v4526 = vpack.c.b16 %v4478, %v4474
    %v4527 = vpack.c.b16 %v4479, %v4475
    %v4528 = vpack.c.b16 %v4484, %v4480
    %v4529 = vpack.c.b16 %v4485, %v4481
    %v4530 = vpack.c.b16 %v4486, %v4482
    %v4531 = vpack.c.b16 %v4487, %v4483
    %v4532 = vpack.c.b16 %v4492, %v4488
    %v4533 = vpack.c.b16 %v4493, %v4489
    %v4534 = vpack.c.b16 %v4494, %v4490
    %v4535 = vpack.c.b16 %v4495, %v4491
    %v4536 = vpack.c.b16 %v4500, %v4496
    %v4537 = vpack.c.b16 %v4501, %v4497
    %v4538 = vpack.c.b16 %v4502, %v4498
    %v4539 = vpack.c.b16 %v4503, %v4499
    %v4540 = vpack.c.b16 %v4508, %v4504
    %v4541 = vpack.c.b16 %v4509, %v4505
    %v4542 = vpack.c.b16 %v4510, %v4506
    %v4543 = vpack.c.b16 %v4511, %v4507
    %4576 = vmatprep.subr.bf16.mxu0 %v4541
    %4577 = vmatpush1.bf16.msra.mxu0 %v4540
    %4578 = vmatprep.subr.bf16.mxu0 %v4537
    %4579 = vmatpush1.bf16.msra.mxu0 %v4536
    %4580 = vmatprep.subr.bf16.mxu0 %v4533
    %4581 = vmatpush1.bf16.msra.mxu0 %v4532
    %4582 = vmatprep.subr.bf16.mxu0 %v4529
    %4583 = vmatpush1.bf16.msra.mxu0 %v4528
    %4584 = vmatprep.subr.bf16.mxu0 %v4525
    %4585 = vmatpush1.bf16.msra.mxu0 %v4524
    %4586 = vmatprep.subr.bf16.mxu0 %v4521
    %4587 = vmatpush1.bf16.msra.mxu0 %v4520
    %4588 = vmatprep.subr.bf16.mxu0 %v4517
    %4589 = vmatpush1.bf16.msra.mxu0 %v4516
    %4590 = vmatprep.subr.bf16.mxu0 %v4513
    %4591 = vmatpush1.bf16.msra.mxu0 %v4512
    %4592 = vmatprep.subr.bf16.mxu0 0
    %4593 = vmatpush2.bf16.msra.mxu0 0
    %4594 = vmatprep.subr.bf16.mxu0 0
    %4595 = vmatpush2.bf16.msra.mxu0 0
    %4596 = vmatprep.subr.bf16.mxu0 0
    %4597 = vmatpush2.bf16.msra.mxu0 0
    %4598 = vmatprep.subr.bf16.mxu0 0
    %4599 = vmatpush2.bf16.msra.mxu0 0
    %4600 = vmatprep.subr.bf16.mxu0 0
    %4601 = vmatpush2.bf16.msra.mxu0 0
    %4602 = vmatprep.subr.bf16.mxu0 0
    %4603 = vmatpush2.bf16.msra.mxu0 0
    %4604 = vmatprep.subr.bf16.mxu0 0
    %4605 = vmatpush2.bf16.msra.mxu0 0
    %4606 = vmatprep.subr.bf16.mxu0 0
    %4607 = vmatpush2.bf16.msra.mxu0 0
    %4608 = vmatprep.mubr.bf16.mxu0 0
    %4609 = vmatmul.mubr.bf16.gmra.mxu0 %v4383
    %v4610 = vpop.f32.mrf.mxu0
    %v4611 = vadd.f32 0.0, %v4610
    %v4612 = vpop.f32.mrf.mxu0
    %v4613 = vadd.f32 0.0, %v4612
    %v4614 = vpop.f32.mrf.mxu0
    %v4615 = vadd.f32 0.0, %v4614
    %v4616 = vpop.f32.mrf.mxu0
    %v4617 = vadd.f32 0.0, %v4616
    %4618 = vdwg.mxu0
    %4619 = vmatprep.subr.bf16.mxu0 %v4543
    %4620 = vmatpush1.bf16.msra.mxu0 %v4542
    %4621 = vmatprep.subr.bf16.mxu0 %v4539
    %4622 = vmatpush1.bf16.msra.mxu0 %v4538
    %4623 = vmatprep.subr.bf16.mxu0 %v4535
    %4624 = vmatpush1.bf16.msra.mxu0 %v4534
    %4625 = vmatprep.subr.bf16.mxu0 %v4531
    %4626 = vmatpush1.bf16.msra.mxu0 %v4530
    %4627 = vmatprep.subr.bf16.mxu0 %v4527
    %4628 = vmatpush1.bf16.msra.mxu0 %v4526
    %4629 = vmatprep.subr.bf16.mxu0 %v4523
    %4630 = vmatpush1.bf16.msra.mxu0 %v4522
    %4631 = vmatprep.subr.bf16.mxu0 %v4519
    %4632 = vmatpush1.bf16.msra.mxu0 %v4518
    %4633 = vmatprep.subr.bf16.mxu0 %v4515
    %4634 = vmatpush1.bf16.msra.mxu0 %v4514
    %4635 = vmatprep.subr.bf16.mxu0 0
    %4636 = vmatpush2.bf16.msra.mxu0 0
    %4637 = vmatprep.subr.bf16.mxu0 0
    %4638 = vmatpush2.bf16.msra.mxu0 0
    %4639 = vmatprep.subr.bf16.mxu0 0
    %4640 = vmatpush2.bf16.msra.mxu0 0
    %4641 = vmatprep.subr.bf16.mxu0 0
    %4642 = vmatpush2.bf16.msra.mxu0 0
    %4643 = vmatprep.subr.bf16.mxu0 0
    %4644 = vmatpush2.bf16.msra.mxu0 0
    %4645 = vmatprep.subr.bf16.mxu0 0
    %4646 = vmatpush2.bf16.msra.mxu0 0
    %4647 = vmatprep.subr.bf16.mxu0 0
    %4648 = vmatpush2.bf16.msra.mxu0 0
    %4649 = vmatprep.subr.bf16.mxu0 0
    %4650 = vmatpush2.bf16.msra.mxu0 0
    %4651 = vmatprep.mubr.bf16.mxu0 0
    %4652 = vmatmul.mubr.bf16.gmra.mxu0 %v4383
    %v4653 = vpop.f32.mrf.mxu0
    %v4654 = vadd.f32 0.0, %v4653
    %v4655 = vpop.f32.mrf.mxu0
    %v4656 = vadd.f32 0.0, %v4655
    %v4657 = vpop.f32.mrf.mxu0
    %v4658 = vadd.f32 0.0, %v4657
    %v4659 = vpop.f32.mrf.mxu0
    %v4660 = vadd.f32 0.0, %v4659
    %4661 = vdwg.mxu0
    %v4662 = vadd.f32 %v4375, %v4611
    %v4663 = vadd.f32 %v4376, %v4613
    %v4664 = vadd.f32 %v4377, %v4654
    %v4665 = vadd.f32 %v4378, %v4656
    %v4666 = vadd.f32 %v4379, %v4615
    %v4667 = vadd.f32 %v4380, %v4617
    %v4668 = vadd.f32 %v4381, %v4658
    %v4669 = vadd.f32 %v4382, %v4660
    %s4670 = smul.addr %s2219, 4
    %s4671 = scalar_lea.vmem %s1, %s4670
    %v4672 = vld [vmem:[%s4671] sm:$0xff]
    %v4673 = vld [vmem:[%s4671 + $0x8] sm:$0xff]
    %v4674 = vld [vmem:[%s4671 + $0x10] sm:$0xff]
    %v4675 = vld [vmem:[%s4671 + $0x18] sm:$0xff]
    %v4676 = vunpack.c.l.bf16 %v4672
    %v4677 = vunpack.c.h.bf16 %v4672
    %v4678 = vunpack.c.l.bf16 %v4673
    %v4679 = vunpack.c.h.bf16 %v4673
    %v4680 = vunpack.c.l.bf16 %v4674
    %v4681 = vunpack.c.h.bf16 %v4674
    %v4682 = vunpack.c.l.bf16 %v4675
    %v4683 = vunpack.c.h.bf16 %v4675
    %v4684 = vpack.c.bf16 %v4352, %v4351
    %v4685 = vld [vmem:[%s4] sm:$0xff]
    %v4686 = vld [vmem:[%s4 + $0x8] sm:$0xff]
    %v4687 = vld [vmem:[%s4 + $0x10] sm:$0xff]
    %v4688 = vld [vmem:[%s4 + $0x18] sm:$0xff]
    %v4689 = vld [vmem:[%s4 + $0x20] sm:$0xff]
    %v4690 = vld [vmem:[%s4 + $0x28] sm:$0xff]
    %v4691 = vld [vmem:[%s4 + $0x30] sm:$0xff]
    %v4692 = vld [vmem:[%s4 + $0x38] sm:$0xff]
    %v4693 = vld [vmem:[%s4 + $0x40] sm:$0xff]
    %v4694 = vld [vmem:[%s4 + $0x48] sm:$0xff]
    %v4695 = vld [vmem:[%s4 + $0x50] sm:$0xff]
    %v4696 = vld [vmem:[%s4 + $0x58] sm:$0xff]
    %v4697 = vld [vmem:[%s4 + $0x60] sm:$0xff]
    %v4698 = vld [vmem:[%s4 + $0x68] sm:$0xff]
    %v4699 = vld [vmem:[%s4 + $0x70] sm:$0xff]
    %v4700 = vld [vmem:[%s4 + $0x78] sm:$0xff]
    %v4701 = vld [vmem:[%s4 + $0x80] sm:$0xff]
    %v4702 = vld [vmem:[%s4 + $0x88] sm:$0xff]
    %v4703 = vld [vmem:[%s4 + $0x90] sm:$0xff]
    %v4704 = vld [vmem:[%s4 + $0x98] sm:$0xff]
    %v4705 = vld [vmem:[%s4 + $0xa0] sm:$0xff]
    %v4706 = vld [vmem:[%s4 + $0xa8] sm:$0xff]
    %v4707 = vld [vmem:[%s4 + $0xb0] sm:$0xff]
    %v4708 = vld [vmem:[%s4 + $0xb8] sm:$0xff]
    %v4709 = vld [vmem:[%s4 + $0xc0] sm:$0xff]
    %v4710 = vld [vmem:[%s4 + $0xc8] sm:$0xff]
    %v4711 = vld [vmem:[%s4 + $0xd0] sm:$0xff]
    %v4712 = vld [vmem:[%s4 + $0xd8] sm:$0xff]
    %v4713 = vld [vmem:[%s4 + $0xe0] sm:$0xff]
    %v4714 = vld [vmem:[%s4 + $0xe8] sm:$0xff]
    %v4715 = vld [vmem:[%s4 + $0xf0] sm:$0xff]
    %v4716 = vld [vmem:[%s4 + $0xf8] sm:$0xff]
    %v4749 = vunpack.c.l.b16 %v4685
    %v4750 = vunpack.c.h.b16 %v4685
    %v4751 = vunpack.c.l.b16 %v4686
    %v4752 = vunpack.c.h.b16 %v4686
    %v4753 = vunpack.c.l.b16 %v4687
    %v4754 = vunpack.c.h.b16 %v4687
    %v4755 = vunpack.c.l.b16 %v4688
    %v4756 = vunpack.c.h.b16 %v4688
    %v4757 = vunpack.c.l.b16 %v4689
    %v4758 = vunpack.c.h.b16 %v4689
    %v4759 = vunpack.c.l.b16 %v4690
    %v4760 = vunpack.c.h.b16 %v4690
    %v4761 = vunpack.c.l.b16 %v4691
    %v4762 = vunpack.c.h.b16 %v4691
    %v4763 = vunpack.c.l.b16 %v4692
    %v4764 = vunpack.c.h.b16 %v4692
    %v4765 = vunpack.c.l.b16 %v4693
    %v4766 = vunpack.c.h.b16 %v4693
    %v4767 = vunpack.c.l.b16 %v4694
    %v4768 = vunpack.c.h.b16 %v4694
    %v4769 = vunpack.c.l.b16 %v4695
    %v4770 = vunpack.c.h.b16 %v4695
    %v4771 = vunpack.c.l.b16 %v4696
    %v4772 = vunpack.c.h.b16 %v4696
    %v4773 = vunpack.c.l.b16 %v4697
    %v4774 = vunpack.c.h.b16 %v4697
    %v4775 = vunpack.c.l.b16 %v4698
    %v4776 = vunpack.c.h.b16 %v4698
    %v4777 = vunpack.c.l.b16 %v4699
    %v4778 = vunpack.c.h.b16 %v4699
    %v4779 = vunpack.c.l.b16 %v4700
    %v4780 = vunpack.c.h.b16 %v4700
    %v4781 = vunpack.c.l.b16 %v4701
    %v4782 = vunpack.c.h.b16 %v4701
    %v4783 = vunpack.c.l.b16 %v4702
    %v4784 = vunpack.c.h.b16 %v4702
    %v4785 = vunpack.c.l.b16 %v4703
    %v4786 = vunpack.c.h.b16 %v4703
    %v4787 = vunpack.c.l.b16 %v4704
    %v4788 = vunpack.c.h.b16 %v4704
    %v4789 = vunpack.c.l.b16 %v4705
    %v4790 = vunpack.c.h.b16 %v4705
    %v4791 = vunpack.c.l.b16 %v4706
    %v4792 = vunpack.c.h.b16 %v4706
    %v4793 = vunpack.c.l.b16 %v4707
    %v4794 = vunpack.c.h.b16 %v4707
    %v4795 = vunpack.c.l.b16 %v4708
    %v4796 = vunpack.c.h.b16 %v4708
    %v4797 = vunpack.c.l.b16 %v4709
    %v4798 = vunpack.c.h.b16 %v4709
    %v4799 = vunpack.c.l.b16 %v4710
    %v4800 = vunpack.c.h.b16 %v4710
    %v4801 = vunpack.c.l.b16 %v4711
    %v4802 = vunpack.c.h.b16 %v4711
    %v4803 = vunpack.c.l.b16 %v4712
    %v4804 = vunpack.c.h.b16 %v4712
    %v4805 = vunpack.c.l.b16 %v4713
    %v4806 = vunpack.c.h.b16 %v4713
    %v4807 = vunpack.c.l.b16 %v4714
    %v4808 = vunpack.c.h.b16 %v4714
    %v4809 = vunpack.c.l.b16 %v4715
    %v4810 = vunpack.c.h.b16 %v4715
    %v4811 = vunpack.c.l.b16 %v4716
    %v4812 = vunpack.c.h.b16 %v4716
    %v4813 = vpack.c.b16 %v4753, %v4749
    %v4814 = vpack.c.b16 %v4754, %v4750
    %v4815 = vpack.c.b16 %v4755, %v4751
    %v4816 = vpack.c.b16 %v4756, %v4752
    %v4817 = vpack.c.b16 %v4761, %v4757
    %v4818 = vpack.c.b16 %v4762, %v4758
    %v4819 = vpack.c.b16 %v4763, %v4759
    %v4820 = vpack.c.b16 %v4764, %v4760
    %v4821 = vpack.c.b16 %v4769, %v4765
    %v4822 = vpack.c.b16 %v4770, %v4766
    %v4823 = vpack.c.b16 %v4771, %v4767
    %v4824 = vpack.c.b16 %v4772, %v4768
    %v4825 = vpack.c.b16 %v4777, %v4773
    %v4826 = vpack.c.b16 %v4778, %v4774
    %v4827 = vpack.c.b16 %v4779, %v4775
    %v4828 = vpack.c.b16 %v4780, %v4776
    %v4829 = vpack.c.b16 %v4785, %v4781
    %v4830 = vpack.c.b16 %v4786, %v4782
    %v4831 = vpack.c.b16 %v4787, %v4783
    %v4832 = vpack.c.b16 %v4788, %v4784
    %v4833 = vpack.c.b16 %v4793, %v4789
    %v4834 = vpack.c.b16 %v4794, %v4790
    %v4835 = vpack.c.b16 %v4795, %v4791
    %v4836 = vpack.c.b16 %v4796, %v4792
    %v4837 = vpack.c.b16 %v4801, %v4797
    %v4838 = vpack.c.b16 %v4802, %v4798
    %v4839 = vpack.c.b16 %v4803, %v4799
    %v4840 = vpack.c.b16 %v4804, %v4800
    %v4841 = vpack.c.b16 %v4809, %v4805
    %v4842 = vpack.c.b16 %v4810, %v4806
    %v4843 = vpack.c.b16 %v4811, %v4807
    %v4844 = vpack.c.b16 %v4812, %v4808
    %4877 = vmatprep.subr.bf16.mxu0 %v4842
    %4878 = vmatpush1.bf16.msra.mxu0 %v4841
    %4879 = vmatprep.subr.bf16.mxu0 %v4838
    %4880 = vmatpush1.bf16.msra.mxu0 %v4837
    %4881 = vmatprep.subr.bf16.mxu0 %v4834
    %4882 = vmatpush1.bf16.msra.mxu0 %v4833
    %4883 = vmatprep.subr.bf16.mxu0 %v4830
    %4884 = vmatpush1.bf16.msra.mxu0 %v4829
    %4885 = vmatprep.subr.bf16.mxu0 %v4826
    %4886 = vmatpush1.bf16.msra.mxu0 %v4825
    %4887 = vmatprep.subr.bf16.mxu0 %v4822
    %4888 = vmatpush1.bf16.msra.mxu0 %v4821
    %4889 = vmatprep.subr.bf16.mxu0 %v4818
    %4890 = vmatpush1.bf16.msra.mxu0 %v4817
    %4891 = vmatprep.subr.bf16.mxu0 %v4814
    %4892 = vmatpush1.bf16.msra.mxu0 %v4813
    %4893 = vmatprep.subr.bf16.mxu0 0
    %4894 = vmatpush2.bf16.msra.mxu0 0
    %4895 = vmatprep.subr.bf16.mxu0 0
    %4896 = vmatpush2.bf16.msra.mxu0 0
    %4897 = vmatprep.subr.bf16.mxu0 0
    %4898 = vmatpush2.bf16.msra.mxu0 0
    %4899 = vmatprep.subr.bf16.mxu0 0
    %4900 = vmatpush2.bf16.msra.mxu0 0
    %4901 = vmatprep.subr.bf16.mxu0 0
    %4902 = vmatpush2.bf16.msra.mxu0 0
    %4903 = vmatprep.subr.bf16.mxu0 0
    %4904 = vmatpush2.bf16.msra.mxu0 0
    %4905 = vmatprep.subr.bf16.mxu0 0
    %4906 = vmatpush2.bf16.msra.mxu0 0
    %4907 = vmatprep.subr.bf16.mxu0 0
    %4908 = vmatpush2.bf16.msra.mxu0 0
    %4909 = vmatprep.mubr.bf16.mxu0 0
    %4910 = vmatmul.mubr.bf16.gmra.mxu0 %v4684
    %v4911 = vpop.f32.mrf.mxu0
    %v4912 = vadd.f32 0.0, %v4911
    %v4913 = vpop.f32.mrf.mxu0
    %v4914 = vadd.f32 0.0, %v4913
    %v4915 = vpop.f32.mrf.mxu0
    %v4916 = vadd.f32 0.0, %v4915
    %v4917 = vpop.f32.mrf.mxu0
    %v4918 = vadd.f32 0.0, %v4917
    %4919 = vdwg.mxu0
    %4920 = vmatprep.subr.bf16.mxu0 %v4844
    %4921 = vmatpush1.bf16.msra.mxu0 %v4843
    %4922 = vmatprep.subr.bf16.mxu0 %v4840
    %4923 = vmatpush1.bf16.msra.mxu0 %v4839
    %4924 = vmatprep.subr.bf16.mxu0 %v4836
    %4925 = vmatpush1.bf16.msra.mxu0 %v4835
    %4926 = vmatprep.subr.bf16.mxu0 %v4832
    %4927 = vmatpush1.bf16.msra.mxu0 %v4831
    %4928 = vmatprep.subr.bf16.mxu0 %v4828
    %4929 = vmatpush1.bf16.msra.mxu0 %v4827
    %4930 = vmatprep.subr.bf16.mxu0 %v4824
    %4931 = vmatpush1.bf16.msra.mxu0 %v4823
    %4932 = vmatprep.subr.bf16.mxu0 %v4820
    %4933 = vmatpush1.bf16.msra.mxu0 %v4819
    %4934 = vmatprep.subr.bf16.mxu0 %v4816
    %4935 = vmatpush1.bf16.msra.mxu0 %v4815
    %4936 = vmatprep.subr.bf16.mxu0 0
    %4937 = vmatpush2.bf16.msra.mxu0 0
    %4938 = vmatprep.subr.bf16.mxu0 0
    %4939 = vmatpush2.bf16.msra.mxu0 0
    %4940 = vmatprep.subr.bf16.mxu0 0
    %4941 = vmatpush2.bf16.msra.mxu0 0
    %4942 = vmatprep.subr.bf16.mxu0 0
    %4943 = vmatpush2.bf16.msra.mxu0 0
    %4944 = vmatprep.subr.bf16.mxu0 0
    %4945 = vmatpush2.bf16.msra.mxu0 0
    %4946 = vmatprep.subr.bf16.mxu0 0
    %4947 = vmatpush2.bf16.msra.mxu0 0
    %4948 = vmatprep.subr.bf16.mxu0 0
    %4949 = vmatpush2.bf16.msra.mxu0 0
    %4950 = vmatprep.subr.bf16.mxu0 0
    %4951 = vmatpush2.bf16.msra.mxu0 0
    %4952 = vmatprep.mubr.bf16.mxu0 0
    %4953 = vmatmul.mubr.bf16.gmra.mxu0 %v4684
    %v4954 = vpop.f32.mrf.mxu0
    %v4955 = vadd.f32 0.0, %v4954
    %v4956 = vpop.f32.mrf.mxu0
    %v4957 = vadd.f32 0.0, %v4956
    %v4958 = vpop.f32.mrf.mxu0
    %v4959 = vadd.f32 0.0, %v4958
    %v4960 = vpop.f32.mrf.mxu0
    %v4961 = vadd.f32 0.0, %v4960
    %4962 = vdwg.mxu0
    %v4963 = vadd.f32 %v4676, %v4912
    %v4964 = vadd.f32 %v4677, %v4914
    %v4965 = vadd.f32 %v4678, %v4955
    %v4966 = vadd.f32 %v4679, %v4957
    %v4967 = vadd.f32 %v4680, %v4916
    %v4968 = vadd.f32 %v4681, %v4918
    %v4969 = vadd.f32 %v4682, %v4959
    %v4970 = vadd.f32 %v4683, %v4961
    %v4971 = vmul.f32 %v4662, 0.5
    %v4972 = vmul.f32 %v4666, 0.5
    %v4973 = vtanh.pop %v4971
    %v4974 = vtanh.pop %v4972
    %v4975 = vmul.f32 %v4973, 0.5
    %v4976 = vmul.f32 %v4974, 0.5
    %v4977 = vadd.f32 %v4975, 0.5
    %v4978 = vadd.f32 %v4976, 0.5
    %v4979 = vmul.f32 %v4663, 0.5
    %v4980 = vmul.f32 %v4667, 0.5
    %v4981 = vtanh.pop %v4979
    %v4982 = vtanh.pop %v4980
    %v4983 = vmul.f32 %v4981, 0.5
    %v4984 = vmul.f32 %v4982, 0.5
    %v4985 = vadd.f32 %v4983, 0.5
    %v4986 = vadd.f32 %v4984, 0.5
    %v4987 = vtanh.pop %v4664
    %v4988 = vtanh.pop %v4668
    %v4989 = vmul.f32 %v4665, 0.5
    %v4990 = vmul.f32 %v4669, 0.5
    %v4991 = vtanh.pop %v4989
    %v4992 = vtanh.pop %v4990
    %v4993 = vmul.f32 %v4991, 0.5
    %v4994 = vmul.f32 %v4992, 0.5
    %v4995 = vadd.f32 %v4993, 0.5
    %v4996 = vadd.f32 %v4994, 0.5
    %v4997 = vmul.f32 %v4985, %v4311
    %v4998 = vmul.f32 %v4986, %v4312
    %v4999 = vmul.f32 %v4977, %v4987
    %v5000 = vmul.f32 %v4978, %v4988
    %v5001 = vadd.f32 %v4997, %v4999
    %v5002 = vadd.f32 %v4998, %v5000
    %v5003 = vtanh.pop %v5001
    %v5004 = vtanh.pop %v5002
    %v5005 = vmul.f32 %v4995, %v5003
    %v5006 = vmul.f32 %v4996, %v5004
    %v5007 = vsel %vm2923, %v5005, %v4309
    %v5008 = vsel %vm2924, %v5006, %v4310
    %v5009 = vsel %vm2923, %v5001, %v4311
    %v5010 = vsel %vm2924, %v5002, %v4312
    %v5011 = vsel %vm2923, %v5005, 0.0
    %v5012 = vsel %vm2924, %v5006, 0.0
    %v5013 = vmul.f32 %v4963, 0.5
    %v5014 = vmul.f32 %v4967, 0.5
    %v5015 = vtanh.pop %v5013
    %v5016 = vtanh.pop %v5014
    %v5017 = vmul.f32 %v5015, 0.5
    %v5018 = vmul.f32 %v5016, 0.5
    %v5019 = vadd.f32 %v5017, 0.5
    %v5020 = vadd.f32 %v5018, 0.5
    %v5021 = vmul.f32 %v4964, 0.5
    %v5022 = vmul.f32 %v4968, 0.5
    %v5023 = vtanh.pop %v5021
    %v5024 = vtanh.pop %v5022
    %v5025 = vmul.f32 %v5023, 0.5
    %v5026 = vmul.f32 %v5024, 0.5
    %v5027 = vadd.f32 %v5025, 0.5
    %v5028 = vadd.f32 %v5026, 0.5
    %v5029 = vtanh.pop %v4965
    %v5030 = vtanh.pop %v4969
    %v5031 = vmul.f32 %v4966, 0.5
    %v5032 = vmul.f32 %v4970, 0.5
    %v5033 = vtanh.pop %v5031
    %v5034 = vtanh.pop %v5032
    %v5035 = vmul.f32 %v5033, 0.5
    %v5036 = vmul.f32 %v5034, 0.5
    %v5037 = vadd.f32 %v5035, 0.5
    %v5038 = vadd.f32 %v5036, 0.5
    %v5039 = vmul.f32 %v5027, %v4353
    %v5040 = vmul.f32 %v5028, %v4354
    %v5041 = vmul.f32 %v5019, %v5029
    %v5042 = vmul.f32 %v5020, %v5030
    %v5043 = vadd.f32 %v5039, %v5041
    %v5044 = vadd.f32 %v5040, %v5042
    %v5045 = vtanh.pop %v5043
    %v5046 = vtanh.pop %v5044
    %v5047 = vmul.f32 %v5037, %v5045
    %v5048 = vmul.f32 %v5038, %v5046
    %v5049 = vsel %vm2869, %v5047, %v4351
    %v5050 = vsel %vm2870, %v5048, %v4352
    %v5051 = vsel %vm2869, %v5043, %v4353
    %v5052 = vsel %vm2870, %v5044, %v4354
    %v5053 = vsel %vm2869, %v5047, 0.0
    %v5054 = vsel %vm2870, %v5048, 0.0
    %v5055 = vld [vmem:[%s2938] sm:$0xff]
    %v5056 = vld [vmem:[%s2938 + $0x8] sm:$0xff]
    %v5057 = vadd.f32 %v5055, %v5011
    %v5058 = vadd.f32 %v5056, %v5012
    %5059 = vst [vmem:[%s2938] sm:$0xff] %v5057
    %5060 = vst [vmem:[%s2938 + $0x8] sm:$0xff] %v5058
    %v5061 = vld [vmem:[%s2931] sm:$0xff]
    %v5062 = vld [vmem:[%s2931 + $0x8] sm:$0xff]
    %v5063 = vadd.f32 %v5061, %v5053
    %v5064 = vadd.f32 %v5062, %v5054
    %5065 = vst [vmem:[%s2931] sm:$0xff] %v5063
    %5066 = vst [vmem:[%s2931 + $0x8] sm:$0xff] %v5064
    %s5067 = smul.addr %s1795, 4
    %s5068 = scalar_lea.vmem %s0, %s5067
    %v5069 = vld [vmem:[%s5068] sm:$0xff]
    %v5070 = vld [vmem:[%s5068 + $0x8] sm:$0xff]
    %v5071 = vld [vmem:[%s5068 + $0x10] sm:$0xff]
    %v5072 = vld [vmem:[%s5068 + $0x18] sm:$0xff]
    %v5073 = vunpack.c.l.bf16 %v5069
    %v5074 = vunpack.c.h.bf16 %v5069
    %v5075 = vunpack.c.l.bf16 %v5070
    %v5076 = vunpack.c.h.bf16 %v5070
    %v5077 = vunpack.c.l.bf16 %v5071
    %v5078 = vunpack.c.h.bf16 %v5071
    %v5079 = vunpack.c.l.bf16 %v5072
    %v5080 = vunpack.c.h.bf16 %v5072
    %v5081 = vpack.c.bf16 %v5008, %v5007
    %v5082 = vld [vmem:[%s3] sm:$0xff]
    %v5083 = vld [vmem:[%s3 + $0x8] sm:$0xff]
    %v5084 = vld [vmem:[%s3 + $0x10] sm:$0xff]
    %v5085 = vld [vmem:[%s3 + $0x18] sm:$0xff]
    %v5086 = vld [vmem:[%s3 + $0x20] sm:$0xff]
    %v5087 = vld [vmem:[%s3 + $0x28] sm:$0xff]
    %v5088 = vld [vmem:[%s3 + $0x30] sm:$0xff]
    %v5089 = vld [vmem:[%s3 + $0x38] sm:$0xff]
    %v5090 = vld [vmem:[%s3 + $0x40] sm:$0xff]
    %v5091 = vld [vmem:[%s3 + $0x48] sm:$0xff]
    %v5092 = vld [vmem:[%s3 + $0x50] sm:$0xff]
    %v5093 = vld [vmem:[%s3 + $0x58] sm:$0xff]
    %v5094 = vld [vmem:[%s3 + $0x60] sm:$0xff]
    %v5095 = vld [vmem:[%s3 + $0x68] sm:$0xff]
    %v5096 = vld [vmem:[%s3 + $0x70] sm:$0xff]
    %v5097 = vld [vmem:[%s3 + $0x78] sm:$0xff]
    %v5098 = vld [vmem:[%s3 + $0x80] sm:$0xff]
    %v5099 = vld [vmem:[%s3 + $0x88] sm:$0xff]
    %v5100 = vld [vmem:[%s3 + $0x90] sm:$0xff]
    %v5101 = vld [vmem:[%s3 + $0x98] sm:$0xff]
    %v5102 = vld [vmem:[%s3 + $0xa0] sm:$0xff]
    %v5103 = vld [vmem:[%s3 + $0xa8] sm:$0xff]
    %v5104 = vld [vmem:[%s3 + $0xb0] sm:$0xff]
    %v5105 = vld [vmem:[%s3 + $0xb8] sm:$0xff]
    %v5106 = vld [vmem:[%s3 + $0xc0] sm:$0xff]
    %v5107 = vld [vmem:[%s3 + $0xc8] sm:$0xff]
    %v5108 = vld [vmem:[%s3 + $0xd0] sm:$0xff]
    %v5109 = vld [vmem:[%s3 + $0xd8] sm:$0xff]
    %v5110 = vld [vmem:[%s3 + $0xe0] sm:$0xff]
    %v5111 = vld [vmem:[%s3 + $0xe8] sm:$0xff]
    %v5112 = vld [vmem:[%s3 + $0xf0] sm:$0xff]
    %v5113 = vld [vmem:[%s3 + $0xf8] sm:$0xff]
    %v5146 = vunpack.c.l.b16 %v5082
    %v5147 = vunpack.c.h.b16 %v5082
    %v5148 = vunpack.c.l.b16 %v5083
    %v5149 = vunpack.c.h.b16 %v5083
    %v5150 = vunpack.c.l.b16 %v5084
    %v5151 = vunpack.c.h.b16 %v5084
    %v5152 = vunpack.c.l.b16 %v5085
    %v5153 = vunpack.c.h.b16 %v5085
    %v5154 = vunpack.c.l.b16 %v5086
    %v5155 = vunpack.c.h.b16 %v5086
    %v5156 = vunpack.c.l.b16 %v5087
    %v5157 = vunpack.c.h.b16 %v5087
    %v5158 = vunpack.c.l.b16 %v5088
    %v5159 = vunpack.c.h.b16 %v5088
    %v5160 = vunpack.c.l.b16 %v5089
    %v5161 = vunpack.c.h.b16 %v5089
    %v5162 = vunpack.c.l.b16 %v5090
    %v5163 = vunpack.c.h.b16 %v5090
    %v5164 = vunpack.c.l.b16 %v5091
    %v5165 = vunpack.c.h.b16 %v5091
    %v5166 = vunpack.c.l.b16 %v5092
    %v5167 = vunpack.c.h.b16 %v5092
    %v5168 = vunpack.c.l.b16 %v5093
    %v5169 = vunpack.c.h.b16 %v5093
    %v5170 = vunpack.c.l.b16 %v5094
    %v5171 = vunpack.c.h.b16 %v5094
    %v5172 = vunpack.c.l.b16 %v5095
    %v5173 = vunpack.c.h.b16 %v5095
    %v5174 = vunpack.c.l.b16 %v5096
    %v5175 = vunpack.c.h.b16 %v5096
    %v5176 = vunpack.c.l.b16 %v5097
    %v5177 = vunpack.c.h.b16 %v5097
    %v5178 = vunpack.c.l.b16 %v5098
    %v5179 = vunpack.c.h.b16 %v5098
    %v5180 = vunpack.c.l.b16 %v5099
    %v5181 = vunpack.c.h.b16 %v5099
    %v5182 = vunpack.c.l.b16 %v5100
    %v5183 = vunpack.c.h.b16 %v5100
    %v5184 = vunpack.c.l.b16 %v5101
    %v5185 = vunpack.c.h.b16 %v5101
    %v5186 = vunpack.c.l.b16 %v5102
    %v5187 = vunpack.c.h.b16 %v5102
    %v5188 = vunpack.c.l.b16 %v5103
    %v5189 = vunpack.c.h.b16 %v5103
    %v5190 = vunpack.c.l.b16 %v5104
    %v5191 = vunpack.c.h.b16 %v5104
    %v5192 = vunpack.c.l.b16 %v5105
    %v5193 = vunpack.c.h.b16 %v5105
    %v5194 = vunpack.c.l.b16 %v5106
    %v5195 = vunpack.c.h.b16 %v5106
    %v5196 = vunpack.c.l.b16 %v5107
    %v5197 = vunpack.c.h.b16 %v5107
    %v5198 = vunpack.c.l.b16 %v5108
    %v5199 = vunpack.c.h.b16 %v5108
    %v5200 = vunpack.c.l.b16 %v5109
    %v5201 = vunpack.c.h.b16 %v5109
    %v5202 = vunpack.c.l.b16 %v5110
    %v5203 = vunpack.c.h.b16 %v5110
    %v5204 = vunpack.c.l.b16 %v5111
    %v5205 = vunpack.c.h.b16 %v5111
    %v5206 = vunpack.c.l.b16 %v5112
    %v5207 = vunpack.c.h.b16 %v5112
    %v5208 = vunpack.c.l.b16 %v5113
    %v5209 = vunpack.c.h.b16 %v5113
    %v5210 = vpack.c.b16 %v5150, %v5146
    %v5211 = vpack.c.b16 %v5151, %v5147
    %v5212 = vpack.c.b16 %v5152, %v5148
    %v5213 = vpack.c.b16 %v5153, %v5149
    %v5214 = vpack.c.b16 %v5158, %v5154
    %v5215 = vpack.c.b16 %v5159, %v5155
    %v5216 = vpack.c.b16 %v5160, %v5156
    %v5217 = vpack.c.b16 %v5161, %v5157
    %v5218 = vpack.c.b16 %v5166, %v5162
    %v5219 = vpack.c.b16 %v5167, %v5163
    %v5220 = vpack.c.b16 %v5168, %v5164
    %v5221 = vpack.c.b16 %v5169, %v5165
    %v5222 = vpack.c.b16 %v5174, %v5170
    %v5223 = vpack.c.b16 %v5175, %v5171
    %v5224 = vpack.c.b16 %v5176, %v5172
    %v5225 = vpack.c.b16 %v5177, %v5173
    %v5226 = vpack.c.b16 %v5182, %v5178
    %v5227 = vpack.c.b16 %v5183, %v5179
    %v5228 = vpack.c.b16 %v5184, %v5180
    %v5229 = vpack.c.b16 %v5185, %v5181
    %v5230 = vpack.c.b16 %v5190, %v5186
    %v5231 = vpack.c.b16 %v5191, %v5187
    %v5232 = vpack.c.b16 %v5192, %v5188
    %v5233 = vpack.c.b16 %v5193, %v5189
    %v5234 = vpack.c.b16 %v5198, %v5194
    %v5235 = vpack.c.b16 %v5199, %v5195
    %v5236 = vpack.c.b16 %v5200, %v5196
    %v5237 = vpack.c.b16 %v5201, %v5197
    %v5238 = vpack.c.b16 %v5206, %v5202
    %v5239 = vpack.c.b16 %v5207, %v5203
    %v5240 = vpack.c.b16 %v5208, %v5204
    %v5241 = vpack.c.b16 %v5209, %v5205
    %5274 = vmatprep.subr.bf16.mxu0 %v5239
    %5275 = vmatpush1.bf16.msra.mxu0 %v5238
    %5276 = vmatprep.subr.bf16.mxu0 %v5235
    %5277 = vmatpush1.bf16.msra.mxu0 %v5234
    %5278 = vmatprep.subr.bf16.mxu0 %v5231
    %5279 = vmatpush1.bf16.msra.mxu0 %v5230
    %5280 = vmatprep.subr.bf16.mxu0 %v5227
    %5281 = vmatpush1.bf16.msra.mxu0 %v5226
    %5282 = vmatprep.subr.bf16.mxu0 %v5223
    %5283 = vmatpush1.bf16.msra.mxu0 %v5222
    %5284 = vmatprep.subr.bf16.mxu0 %v5219
    %5285 = vmatpush1.bf16.msra.mxu0 %v5218
    %5286 = vmatprep.subr.bf16.mxu0 %v5215
    %5287 = vmatpush1.bf16.msra.mxu0 %v5214
    %5288 = vmatprep.subr.bf16.mxu0 %v5211
    %5289 = vmatpush1.bf16.msra.mxu0 %v5210
    %5290 = vmatprep.subr.bf16.mxu0 0
    %5291 = vmatpush2.bf16.msra.mxu0 0
    %5292 = vmatprep.subr.bf16.mxu0 0
    %5293 = vmatpush2.bf16.msra.mxu0 0
    %5294 = vmatprep.subr.bf16.mxu0 0
    %5295 = vmatpush2.bf16.msra.mxu0 0
    %5296 = vmatprep.subr.bf16.mxu0 0
    %5297 = vmatpush2.bf16.msra.mxu0 0
    %5298 = vmatprep.subr.bf16.mxu0 0
    %5299 = vmatpush2.bf16.msra.mxu0 0
    %5300 = vmatprep.subr.bf16.mxu0 0
    %5301 = vmatpush2.bf16.msra.mxu0 0
    %5302 = vmatprep.subr.bf16.mxu0 0
    %5303 = vmatpush2.bf16.msra.mxu0 0
    %5304 = vmatprep.subr.bf16.mxu0 0
    %5305 = vmatpush2.bf16.msra.mxu0 0
    %5306 = vmatprep.mubr.bf16.mxu0 0
    %5307 = vmatmul.mubr.bf16.gmra.mxu0 %v5081
    %v5308 = vpop.f32.mrf.mxu0
    %v5309 = vadd.f32 0.0, %v5308
    %v5310 = vpop.f32.mrf.mxu0
    %v5311 = vadd.f32 0.0, %v5310
    %v5312 = vpop.f32.mrf.mxu0
    %v5313 = vadd.f32 0.0, %v5312
    %v5314 = vpop.f32.mrf.mxu0
    %v5315 = vadd.f32 0.0, %v5314
    %5316 = vdwg.mxu0
    %5317 = vmatprep.subr.bf16.mxu0 %v5241
    %5318 = vmatpush1.bf16.msra.mxu0 %v5240
    %5319 = vmatprep.subr.bf16.mxu0 %v5237
    %5320 = vmatpush1.bf16.msra.mxu0 %v5236
    %5321 = vmatprep.subr.bf16.mxu0 %v5233
    %5322 = vmatpush1.bf16.msra.mxu0 %v5232
    %5323 = vmatprep.subr.bf16.mxu0 %v5229
    %5324 = vmatpush1.bf16.msra.mxu0 %v5228
    %5325 = vmatprep.subr.bf16.mxu0 %v5225
    %5326 = vmatpush1.bf16.msra.mxu0 %v5224
    %5327 = vmatprep.subr.bf16.mxu0 %v5221
    %5328 = vmatpush1.bf16.msra.mxu0 %v5220
    %5329 = vmatprep.subr.bf16.mxu0 %v5217
    %5330 = vmatpush1.bf16.msra.mxu0 %v5216
    %5331 = vmatprep.subr.bf16.mxu0 %v5213
    %5332 = vmatpush1.bf16.msra.mxu0 %v5212
    %5333 = vmatprep.subr.bf16.mxu0 0
    %5334 = vmatpush2.bf16.msra.mxu0 0
    %5335 = vmatprep.subr.bf16.mxu0 0
    %5336 = vmatpush2.bf16.msra.mxu0 0
    %5337 = vmatprep.subr.bf16.mxu0 0
    %5338 = vmatpush2.bf16.msra.mxu0 0
    %5339 = vmatprep.subr.bf16.mxu0 0
    %5340 = vmatpush2.bf16.msra.mxu0 0
    %5341 = vmatprep.subr.bf16.mxu0 0
    %5342 = vmatpush2.bf16.msra.mxu0 0
    %5343 = vmatprep.subr.bf16.mxu0 0
    %5344 = vmatpush2.bf16.msra.mxu0 0
    %5345 = vmatprep.subr.bf16.mxu0 0
    %5346 = vmatpush2.bf16.msra.mxu0 0
    %5347 = vmatprep.subr.bf16.mxu0 0
    %5348 = vmatpush2.bf16.msra.mxu0 0
    %5349 = vmatprep.mubr.bf16.mxu0 0
    %5350 = vmatmul.mubr.bf16.gmra.mxu0 %v5081
    %v5351 = vpop.f32.mrf.mxu0
    %v5352 = vadd.f32 0.0, %v5351
    %v5353 = vpop.f32.mrf.mxu0
    %v5354 = vadd.f32 0.0, %v5353
    %v5355 = vpop.f32.mrf.mxu0
    %v5356 = vadd.f32 0.0, %v5355
    %v5357 = vpop.f32.mrf.mxu0
    %v5358 = vadd.f32 0.0, %v5357
    %5359 = vdwg.mxu0
    %v5360 = vadd.f32 %v5073, %v5309
    %v5361 = vadd.f32 %v5074, %v5311
    %v5362 = vadd.f32 %v5075, %v5352
    %v5363 = vadd.f32 %v5076, %v5354
    %v5364 = vadd.f32 %v5077, %v5313
    %v5365 = vadd.f32 %v5078, %v5315
    %v5366 = vadd.f32 %v5079, %v5356
    %v5367 = vadd.f32 %v5080, %v5358
    %s5368 = smul.addr %s1493, 4
    %s5369 = scalar_lea.vmem %s1, %s5368
    %v5370 = vld [vmem:[%s5369] sm:$0xff]
    %v5371 = vld [vmem:[%s5369 + $0x8] sm:$0xff]
    %v5372 = vld [vmem:[%s5369 + $0x10] sm:$0xff]
    %v5373 = vld [vmem:[%s5369 + $0x18] sm:$0xff]
    %v5374 = vunpack.c.l.bf16 %v5370
    %v5375 = vunpack.c.h.bf16 %v5370
    %v5376 = vunpack.c.l.bf16 %v5371
    %v5377 = vunpack.c.h.bf16 %v5371
    %v5378 = vunpack.c.l.bf16 %v5372
    %v5379 = vunpack.c.h.bf16 %v5372
    %v5380 = vunpack.c.l.bf16 %v5373
    %v5381 = vunpack.c.h.bf16 %v5373
    %v5382 = vpack.c.bf16 %v5050, %v5049
    %v5383 = vld [vmem:[%s4] sm:$0xff]
    %v5384 = vld [vmem:[%s4 + $0x8] sm:$0xff]
    %v5385 = vld [vmem:[%s4 + $0x10] sm:$0xff]
    %v5386 = vld [vmem:[%s4 + $0x18] sm:$0xff]
    %v5387 = vld [vmem:[%s4 + $0x20] sm:$0xff]
    %v5388 = vld [vmem:[%s4 + $0x28] sm:$0xff]
    %v5389 = vld [vmem:[%s4 + $0x30] sm:$0xff]
    %v5390 = vld [vmem:[%s4 + $0x38] sm:$0xff]
    %v5391 = vld [vmem:[%s4 + $0x40] sm:$0xff]
    %v5392 = vld [vmem:[%s4 + $0x48] sm:$0xff]
    %v5393 = vld [vmem:[%s4 + $0x50] sm:$0xff]
    %v5394 = vld [vmem:[%s4 + $0x58] sm:$0xff]
    %v5395 = vld [vmem:[%s4 + $0x60] sm:$0xff]
    %v5396 = vld [vmem:[%s4 + $0x68] sm:$0xff]
    %v5397 = vld [vmem:[%s4 + $0x70] sm:$0xff]
    %v5398 = vld [vmem:[%s4 + $0x78] sm:$0xff]
    %v5399 = vld [vmem:[%s4 + $0x80] sm:$0xff]
    %v5400 = vld [vmem:[%s4 + $0x88] sm:$0xff]
    %v5401 = vld [vmem:[%s4 + $0x90] sm:$0xff]
    %v5402 = vld [vmem:[%s4 + $0x98] sm:$0xff]
    %v5403 = vld [vmem:[%s4 + $0xa0] sm:$0xff]
    %v5404 = vld [vmem:[%s4 + $0xa8] sm:$0xff]
    %v5405 = vld [vmem:[%s4 + $0xb0] sm:$0xff]
    %v5406 = vld [vmem:[%s4 + $0xb8] sm:$0xff]
    %v5407 = vld [vmem:[%s4 + $0xc0] sm:$0xff]
    %v5408 = vld [vmem:[%s4 + $0xc8] sm:$0xff]
    %v5409 = vld [vmem:[%s4 + $0xd0] sm:$0xff]
    %v5410 = vld [vmem:[%s4 + $0xd8] sm:$0xff]
    %v5411 = vld [vmem:[%s4 + $0xe0] sm:$0xff]
    %v5412 = vld [vmem:[%s4 + $0xe8] sm:$0xff]
    %v5413 = vld [vmem:[%s4 + $0xf0] sm:$0xff]
    %v5414 = vld [vmem:[%s4 + $0xf8] sm:$0xff]
    %v5447 = vunpack.c.l.b16 %v5383
    %v5448 = vunpack.c.h.b16 %v5383
    %v5449 = vunpack.c.l.b16 %v5384
    %v5450 = vunpack.c.h.b16 %v5384
    %v5451 = vunpack.c.l.b16 %v5385
    %v5452 = vunpack.c.h.b16 %v5385
    %v5453 = vunpack.c.l.b16 %v5386
    %v5454 = vunpack.c.h.b16 %v5386
    %v5455 = vunpack.c.l.b16 %v5387
    %v5456 = vunpack.c.h.b16 %v5387
    %v5457 = vunpack.c.l.b16 %v5388
    %v5458 = vunpack.c.h.b16 %v5388
    %v5459 = vunpack.c.l.b16 %v5389
    %v5460 = vunpack.c.h.b16 %v5389
    %v5461 = vunpack.c.l.b16 %v5390
    %v5462 = vunpack.c.h.b16 %v5390
    %v5463 = vunpack.c.l.b16 %v5391
    %v5464 = vunpack.c.h.b16 %v5391
    %v5465 = vunpack.c.l.b16 %v5392
    %v5466 = vunpack.c.h.b16 %v5392
    %v5467 = vunpack.c.l.b16 %v5393
    %v5468 = vunpack.c.h.b16 %v5393
    %v5469 = vunpack.c.l.b16 %v5394
    %v5470 = vunpack.c.h.b16 %v5394
    %v5471 = vunpack.c.l.b16 %v5395
    %v5472 = vunpack.c.h.b16 %v5395
    %v5473 = vunpack.c.l.b16 %v5396
    %v5474 = vunpack.c.h.b16 %v5396
    %v5475 = vunpack.c.l.b16 %v5397
    %v5476 = vunpack.c.h.b16 %v5397
    %v5477 = vunpack.c.l.b16 %v5398
    %v5478 = vunpack.c.h.b16 %v5398
    %v5479 = vunpack.c.l.b16 %v5399
    %v5480 = vunpack.c.h.b16 %v5399
    %v5481 = vunpack.c.l.b16 %v5400
    %v5482 = vunpack.c.h.b16 %v5400
    %v5483 = vunpack.c.l.b16 %v5401
    %v5484 = vunpack.c.h.b16 %v5401
    %v5485 = vunpack.c.l.b16 %v5402
    %v5486 = vunpack.c.h.b16 %v5402
    %v5487 = vunpack.c.l.b16 %v5403
    %v5488 = vunpack.c.h.b16 %v5403
    %v5489 = vunpack.c.l.b16 %v5404
    %v5490 = vunpack.c.h.b16 %v5404
    %v5491 = vunpack.c.l.b16 %v5405
    %v5492 = vunpack.c.h.b16 %v5405
    %v5493 = vunpack.c.l.b16 %v5406
    %v5494 = vunpack.c.h.b16 %v5406
    %v5495 = vunpack.c.l.b16 %v5407
    %v5496 = vunpack.c.h.b16 %v5407
    %v5497 = vunpack.c.l.b16 %v5408
    %v5498 = vunpack.c.h.b16 %v5408
    %v5499 = vunpack.c.l.b16 %v5409
    %v5500 = vunpack.c.h.b16 %v5409
    %v5501 = vunpack.c.l.b16 %v5410
    %v5502 = vunpack.c.h.b16 %v5410
    %v5503 = vunpack.c.l.b16 %v5411
    %v5504 = vunpack.c.h.b16 %v5411
    %v5505 = vunpack.c.l.b16 %v5412
    %v5506 = vunpack.c.h.b16 %v5412
    %v5507 = vunpack.c.l.b16 %v5413
    %v5508 = vunpack.c.h.b16 %v5413
    %v5509 = vunpack.c.l.b16 %v5414
    %v5510 = vunpack.c.h.b16 %v5414
    %v5511 = vpack.c.b16 %v5451, %v5447
    %v5512 = vpack.c.b16 %v5452, %v5448
    %v5513 = vpack.c.b16 %v5453, %v5449
    %v5514 = vpack.c.b16 %v5454, %v5450
    %v5515 = vpack.c.b16 %v5459, %v5455
    %v5516 = vpack.c.b16 %v5460, %v5456
    %v5517 = vpack.c.b16 %v5461, %v5457
    %v5518 = vpack.c.b16 %v5462, %v5458
    %v5519 = vpack.c.b16 %v5467, %v5463
    %v5520 = vpack.c.b16 %v5468, %v5464
    %v5521 = vpack.c.b16 %v5469, %v5465
    %v5522 = vpack.c.b16 %v5470, %v5466
    %v5523 = vpack.c.b16 %v5475, %v5471
    %v5524 = vpack.c.b16 %v5476, %v5472
    %v5525 = vpack.c.b16 %v5477, %v5473
    %v5526 = vpack.c.b16 %v5478, %v5474
    %v5527 = vpack.c.b16 %v5483, %v5479
    %v5528 = vpack.c.b16 %v5484, %v5480
    %v5529 = vpack.c.b16 %v5485, %v5481
    %v5530 = vpack.c.b16 %v5486, %v5482
    %v5531 = vpack.c.b16 %v5491, %v5487
    %v5532 = vpack.c.b16 %v5492, %v5488
    %v5533 = vpack.c.b16 %v5493, %v5489
    %v5534 = vpack.c.b16 %v5494, %v5490
    %v5535 = vpack.c.b16 %v5499, %v5495
    %v5536 = vpack.c.b16 %v5500, %v5496
    %v5537 = vpack.c.b16 %v5501, %v5497
    %v5538 = vpack.c.b16 %v5502, %v5498
    %v5539 = vpack.c.b16 %v5507, %v5503
    %v5540 = vpack.c.b16 %v5508, %v5504
    %v5541 = vpack.c.b16 %v5509, %v5505
    %v5542 = vpack.c.b16 %v5510, %v5506
    %5575 = vmatprep.subr.bf16.mxu0 %v5540
    %5576 = vmatpush1.bf16.msra.mxu0 %v5539
    %5577 = vmatprep.subr.bf16.mxu0 %v5536
    %5578 = vmatpush1.bf16.msra.mxu0 %v5535
    %5579 = vmatprep.subr.bf16.mxu0 %v5532
    %5580 = vmatpush1.bf16.msra.mxu0 %v5531
    %5581 = vmatprep.subr.bf16.mxu0 %v5528
    %5582 = vmatpush1.bf16.msra.mxu0 %v5527
    %5583 = vmatprep.subr.bf16.mxu0 %v5524
    %5584 = vmatpush1.bf16.msra.mxu0 %v5523
    %5585 = vmatprep.subr.bf16.mxu0 %v5520
    %5586 = vmatpush1.bf16.msra.mxu0 %v5519
    %5587 = vmatprep.subr.bf16.mxu0 %v5516
    %5588 = vmatpush1.bf16.msra.mxu0 %v5515
    %5589 = vmatprep.subr.bf16.mxu0 %v5512
    %5590 = vmatpush1.bf16.msra.mxu0 %v5511
    %5591 = vmatprep.subr.bf16.mxu0 0
    %5592 = vmatpush2.bf16.msra.mxu0 0
    %5593 = vmatprep.subr.bf16.mxu0 0
    %5594 = vmatpush2.bf16.msra.mxu0 0
    %5595 = vmatprep.subr.bf16.mxu0 0
    %5596 = vmatpush2.bf16.msra.mxu0 0
    %5597 = vmatprep.subr.bf16.mxu0 0
    %5598 = vmatpush2.bf16.msra.mxu0 0
    %5599 = vmatprep.subr.bf16.mxu0 0
    %5600 = vmatpush2.bf16.msra.mxu0 0
    %5601 = vmatprep.subr.bf16.mxu0 0
    %5602 = vmatpush2.bf16.msra.mxu0 0
    %5603 = vmatprep.subr.bf16.mxu0 0
    %5604 = vmatpush2.bf16.msra.mxu0 0
    %5605 = vmatprep.subr.bf16.mxu0 0
    %5606 = vmatpush2.bf16.msra.mxu0 0
    %5607 = vmatprep.mubr.bf16.mxu0 0
    %5608 = vmatmul.mubr.bf16.gmra.mxu0 %v5382
    %v5609 = vpop.f32.mrf.mxu0
    %v5610 = vadd.f32 0.0, %v5609
    %v5611 = vpop.f32.mrf.mxu0
    %v5612 = vadd.f32 0.0, %v5611
    %v5613 = vpop.f32.mrf.mxu0
    %v5614 = vadd.f32 0.0, %v5613
    %v5615 = vpop.f32.mrf.mxu0
    %v5616 = vadd.f32 0.0, %v5615
    %5617 = vdwg.mxu0
    %5618 = vmatprep.subr.bf16.mxu0 %v5542
    %5619 = vmatpush1.bf16.msra.mxu0 %v5541
    %5620 = vmatprep.subr.bf16.mxu0 %v5538
    %5621 = vmatpush1.bf16.msra.mxu0 %v5537
    %5622 = vmatprep.subr.bf16.mxu0 %v5534
    %5623 = vmatpush1.bf16.msra.mxu0 %v5533
    %5624 = vmatprep.subr.bf16.mxu0 %v5530
    %5625 = vmatpush1.bf16.msra.mxu0 %v5529
    %5626 = vmatprep.subr.bf16.mxu0 %v5526
    %5627 = vmatpush1.bf16.msra.mxu0 %v5525
    %5628 = vmatprep.subr.bf16.mxu0 %v5522
    %5629 = vmatpush1.bf16.msra.mxu0 %v5521
    %5630 = vmatprep.subr.bf16.mxu0 %v5518
    %5631 = vmatpush1.bf16.msra.mxu0 %v5517
    %5632 = vmatprep.subr.bf16.mxu0 %v5514
    %5633 = vmatpush1.bf16.msra.mxu0 %v5513
    %5634 = vmatprep.subr.bf16.mxu0 0
    %5635 = vmatpush2.bf16.msra.mxu0 0
    %5636 = vmatprep.subr.bf16.mxu0 0
    %5637 = vmatpush2.bf16.msra.mxu0 0
    %5638 = vmatprep.subr.bf16.mxu0 0
    %5639 = vmatpush2.bf16.msra.mxu0 0
    %5640 = vmatprep.subr.bf16.mxu0 0
    %5641 = vmatpush2.bf16.msra.mxu0 0
    %5642 = vmatprep.subr.bf16.mxu0 0
    %5643 = vmatpush2.bf16.msra.mxu0 0
    %5644 = vmatprep.subr.bf16.mxu0 0
    %5645 = vmatpush2.bf16.msra.mxu0 0
    %5646 = vmatprep.subr.bf16.mxu0 0
    %5647 = vmatpush2.bf16.msra.mxu0 0
    %5648 = vmatprep.subr.bf16.mxu0 0
    %5649 = vmatpush2.bf16.msra.mxu0 0
    %5650 = vmatprep.mubr.bf16.mxu0 0
    %5651 = vmatmul.mubr.bf16.gmra.mxu0 %v5382
    %v5652 = vpop.f32.mrf.mxu0
    %v5653 = vadd.f32 0.0, %v5652
    %v5654 = vpop.f32.mrf.mxu0
    %v5655 = vadd.f32 0.0, %v5654
    %v5656 = vpop.f32.mrf.mxu0
    %v5657 = vadd.f32 0.0, %v5656
    %v5658 = vpop.f32.mrf.mxu0
    %v5659 = vadd.f32 0.0, %v5658
    %5660 = vdwg.mxu0
    %v5661 = vadd.f32 %v5374, %v5610
    %v5662 = vadd.f32 %v5375, %v5612
    %v5663 = vadd.f32 %v5376, %v5653
    %v5664 = vadd.f32 %v5377, %v5655
    %v5665 = vadd.f32 %v5378, %v5614
    %v5666 = vadd.f32 %v5379, %v5616
    %v5667 = vadd.f32 %v5380, %v5657
    %v5668 = vadd.f32 %v5381, %v5659
    %v5669 = vmul.f32 %v5360, 0.5
    %v5670 = vmul.f32 %v5364, 0.5
    %v5671 = vtanh.pop %v5669
    %v5672 = vtanh.pop %v5670
    %v5673 = vmul.f32 %v5671, 0.5
    %v5674 = vmul.f32 %v5672, 0.5
    %v5675 = vadd.f32 %v5673, 0.5
    %v5676 = vadd.f32 %v5674, 0.5
    %v5677 = vmul.f32 %v5361, 0.5
    %v5678 = vmul.f32 %v5365, 0.5
    %v5679 = vtanh.pop %v5677
    %v5680 = vtanh.pop %v5678
    %v5681 = vmul.f32 %v5679, 0.5
    %v5682 = vmul.f32 %v5680, 0.5
    %v5683 = vadd.f32 %v5681, 0.5
    %v5684 = vadd.f32 %v5682, 0.5
    %v5685 = vtanh.pop %v5362
    %v5686 = vtanh.pop %v5366
    %v5687 = vmul.f32 %v5363, 0.5
    %v5688 = vmul.f32 %v5367, 0.5
    %v5689 = vtanh.pop %v5687
    %v5690 = vtanh.pop %v5688
    %v5691 = vmul.f32 %v5689, 0.5
    %v5692 = vmul.f32 %v5690, 0.5
    %v5693 = vadd.f32 %v5691, 0.5
    %v5694 = vadd.f32 %v5692, 0.5
    %v5695 = vmul.f32 %v5683, %v5009
    %v5696 = vmul.f32 %v5684, %v5010
    %v5697 = vmul.f32 %v5675, %v5685
    %v5698 = vmul.f32 %v5676, %v5686
    %v5699 = vadd.f32 %v5695, %v5697
    %v5700 = vadd.f32 %v5696, %v5698
    %v5701 = vtanh.pop %v5699
    %v5702 = vtanh.pop %v5700
    %v5703 = vmul.f32 %v5693, %v5701
    %v5704 = vmul.f32 %v5694, %v5702
    %v5705 = vsel %vm2197, %v5703, %v5007
    %v5706 = vsel %vm2198, %v5704, %v5008
    %v5707 = vsel %vm2197, %v5699, %v5009
    %v5708 = vsel %vm2198, %v5700, %v5010
    %v5709 = vsel %vm2197, %v5703, 0.0
    %v5710 = vsel %vm2198, %v5704, 0.0
    %v5711 = vmul.f32 %v5661, 0.5
    %v5712 = vmul.f32 %v5665, 0.5
    %v5713 = vtanh.pop %v5711
    %v5714 = vtanh.pop %v5712
    %v5715 = vmul.f32 %v5713, 0.5
    %v5716 = vmul.f32 %v5714, 0.5
    %v5717 = vadd.f32 %v5715, 0.5
    %v5718 = vadd.f32 %v5716, 0.5
    %v5719 = vmul.f32 %v5662, 0.5
    %v5720 = vmul.f32 %v5666, 0.5
    %v5721 = vtanh.pop %v5719
    %v5722 = vtanh.pop %v5720
    %v5723 = vmul.f32 %v5721, 0.5
    %v5724 = vmul.f32 %v5722, 0.5
    %v5725 = vadd.f32 %v5723, 0.5
    %v5726 = vadd.f32 %v5724, 0.5
    %v5727 = vtanh.pop %v5663
    %v5728 = vtanh.pop %v5667
    %v5729 = vmul.f32 %v5664, 0.5
    %v5730 = vmul.f32 %v5668, 0.5
    %v5731 = vtanh.pop %v5729
    %v5732 = vtanh.pop %v5730
    %v5733 = vmul.f32 %v5731, 0.5
    %v5734 = vmul.f32 %v5732, 0.5
    %v5735 = vadd.f32 %v5733, 0.5
    %v5736 = vadd.f32 %v5734, 0.5
    %v5737 = vmul.f32 %v5725, %v5051
    %v5738 = vmul.f32 %v5726, %v5052
    %v5739 = vmul.f32 %v5717, %v5727
    %v5740 = vmul.f32 %v5718, %v5728
    %v5741 = vadd.f32 %v5737, %v5739
    %v5742 = vadd.f32 %v5738, %v5740
    %v5743 = vtanh.pop %v5741
    %v5744 = vtanh.pop %v5742
    %v5745 = vmul.f32 %v5735, %v5743
    %v5746 = vmul.f32 %v5736, %v5744
    %v5747 = vsel %vm2143, %v5745, %v5049
    %v5748 = vsel %vm2144, %v5746, %v5050
    %v5749 = vsel %vm2143, %v5741, %v5051
    %v5750 = vsel %vm2144, %v5742, %v5052
    %v5751 = vsel %vm2143, %v5745, 0.0
    %v5752 = vsel %vm2144, %v5746, 0.0
    %v5753 = vld [vmem:[%s2212] sm:$0xff]
    %v5754 = vld [vmem:[%s2212 + $0x8] sm:$0xff]
    %v5755 = vadd.f32 %v5753, %v5709
    %v5756 = vadd.f32 %v5754, %v5710
    %5757 = vst [vmem:[%s2212] sm:$0xff] %v5755
    %5758 = vst [vmem:[%s2212 + $0x8] sm:$0xff] %v5756
    %v5759 = vld [vmem:[%s2205] sm:$0xff]
    %v5760 = vld [vmem:[%s2205 + $0x8] sm:$0xff]
    %v5761 = vadd.f32 %v5759, %v5751
    %v5762 = vadd.f32 %v5760, %v5752
    %5763 = vst [vmem:[%s2205] sm:$0xff] %v5761
    %5764 = vst [vmem:[%s2205 + $0x8] sm:$0xff] %v5762
    %s5765 = smul.addr %s1069, 4
    %s5766 = scalar_lea.vmem %s0, %s5765
    %v5767 = vld [vmem:[%s5766] sm:$0xff]
    %v5768 = vld [vmem:[%s5766 + $0x8] sm:$0xff]
    %v5769 = vld [vmem:[%s5766 + $0x10] sm:$0xff]
    %v5770 = vld [vmem:[%s5766 + $0x18] sm:$0xff]
    %v5771 = vunpack.c.l.bf16 %v5767
    %v5772 = vunpack.c.h.bf16 %v5767
    %v5773 = vunpack.c.l.bf16 %v5768
    %v5774 = vunpack.c.h.bf16 %v5768
    %v5775 = vunpack.c.l.bf16 %v5769
    %v5776 = vunpack.c.h.bf16 %v5769
    %v5777 = vunpack.c.l.bf16 %v5770
    %v5778 = vunpack.c.h.bf16 %v5770
    %v5779 = vpack.c.bf16 %v5706, %v5705
    %v5780 = vld [vmem:[%s3] sm:$0xff]
    %v5781 = vld [vmem:[%s3 + $0x8] sm:$0xff]
    %v5782 = vld [vmem:[%s3 + $0x10] sm:$0xff]
    %v5783 = vld [vmem:[%s3 + $0x18] sm:$0xff]
    %v5784 = vld [vmem:[%s3 + $0x20] sm:$0xff]
    %v5785 = vld [vmem:[%s3 + $0x28] sm:$0xff]
    %v5786 = vld [vmem:[%s3 + $0x30] sm:$0xff]
    %v5787 = vld [vmem:[%s3 + $0x38] sm:$0xff]
    %v5788 = vld [vmem:[%s3 + $0x40] sm:$0xff]
    %v5789 = vld [vmem:[%s3 + $0x48] sm:$0xff]
    %v5790 = vld [vmem:[%s3 + $0x50] sm:$0xff]
    %v5791 = vld [vmem:[%s3 + $0x58] sm:$0xff]
    %v5792 = vld [vmem:[%s3 + $0x60] sm:$0xff]
    %v5793 = vld [vmem:[%s3 + $0x68] sm:$0xff]
    %v5794 = vld [vmem:[%s3 + $0x70] sm:$0xff]
    %v5795 = vld [vmem:[%s3 + $0x78] sm:$0xff]
    %v5796 = vld [vmem:[%s3 + $0x80] sm:$0xff]
    %v5797 = vld [vmem:[%s3 + $0x88] sm:$0xff]
    %v5798 = vld [vmem:[%s3 + $0x90] sm:$0xff]
    %v5799 = vld [vmem:[%s3 + $0x98] sm:$0xff]
    %v5800 = vld [vmem:[%s3 + $0xa0] sm:$0xff]
    %v5801 = vld [vmem:[%s3 + $0xa8] sm:$0xff]
    %v5802 = vld [vmem:[%s3 + $0xb0] sm:$0xff]
    %v5803 = vld [vmem:[%s3 + $0xb8] sm:$0xff]
    %v5804 = vld [vmem:[%s3 + $0xc0] sm:$0xff]
    %v5805 = vld [vmem:[%s3 + $0xc8] sm:$0xff]
    %v5806 = vld [vmem:[%s3 + $0xd0] sm:$0xff]
    %v5807 = vld [vmem:[%s3 + $0xd8] sm:$0xff]
    %v5808 = vld [vmem:[%s3 + $0xe0] sm:$0xff]
    %v5809 = vld [vmem:[%s3 + $0xe8] sm:$0xff]
    %v5810 = vld [vmem:[%s3 + $0xf0] sm:$0xff]
    %v5811 = vld [vmem:[%s3 + $0xf8] sm:$0xff]
    %v5844 = vunpack.c.l.b16 %v5780
    %v5845 = vunpack.c.h.b16 %v5780
    %v5846 = vunpack.c.l.b16 %v5781
    %v5847 = vunpack.c.h.b16 %v5781
    %v5848 = vunpack.c.l.b16 %v5782
    %v5849 = vunpack.c.h.b16 %v5782
    %v5850 = vunpack.c.l.b16 %v5783
    %v5851 = vunpack.c.h.b16 %v5783
    %v5852 = vunpack.c.l.b16 %v5784
    %v5853 = vunpack.c.h.b16 %v5784
    %v5854 = vunpack.c.l.b16 %v5785
    %v5855 = vunpack.c.h.b16 %v5785
    %v5856 = vunpack.c.l.b16 %v5786
    %v5857 = vunpack.c.h.b16 %v5786
    %v5858 = vunpack.c.l.b16 %v5787
    %v5859 = vunpack.c.h.b16 %v5787
    %v5860 = vunpack.c.l.b16 %v5788
    %v5861 = vunpack.c.h.b16 %v5788
    %v5862 = vunpack.c.l.b16 %v5789
    %v5863 = vunpack.c.h.b16 %v5789
    %v5864 = vunpack.c.l.b16 %v5790
    %v5865 = vunpack.c.h.b16 %v5790
    %v5866 = vunpack.c.l.b16 %v5791
    %v5867 = vunpack.c.h.b16 %v5791
    %v5868 = vunpack.c.l.b16 %v5792
    %v5869 = vunpack.c.h.b16 %v5792
    %v5870 = vunpack.c.l.b16 %v5793
    %v5871 = vunpack.c.h.b16 %v5793
    %v5872 = vunpack.c.l.b16 %v5794
    %v5873 = vunpack.c.h.b16 %v5794
    %v5874 = vunpack.c.l.b16 %v5795
    %v5875 = vunpack.c.h.b16 %v5795
    %v5876 = vunpack.c.l.b16 %v5796
    %v5877 = vunpack.c.h.b16 %v5796
    %v5878 = vunpack.c.l.b16 %v5797
    %v5879 = vunpack.c.h.b16 %v5797
    %v5880 = vunpack.c.l.b16 %v5798
    %v5881 = vunpack.c.h.b16 %v5798
    %v5882 = vunpack.c.l.b16 %v5799
    %v5883 = vunpack.c.h.b16 %v5799
    %v5884 = vunpack.c.l.b16 %v5800
    %v5885 = vunpack.c.h.b16 %v5800
    %v5886 = vunpack.c.l.b16 %v5801
    %v5887 = vunpack.c.h.b16 %v5801
    %v5888 = vunpack.c.l.b16 %v5802
    %v5889 = vunpack.c.h.b16 %v5802
    %v5890 = vunpack.c.l.b16 %v5803
    %v5891 = vunpack.c.h.b16 %v5803
    %v5892 = vunpack.c.l.b16 %v5804
    %v5893 = vunpack.c.h.b16 %v5804
    %v5894 = vunpack.c.l.b16 %v5805
    %v5895 = vunpack.c.h.b16 %v5805
    %v5896 = vunpack.c.l.b16 %v5806
    %v5897 = vunpack.c.h.b16 %v5806
    %v5898 = vunpack.c.l.b16 %v5807
    %v5899 = vunpack.c.h.b16 %v5807
    %v5900 = vunpack.c.l.b16 %v5808
    %v5901 = vunpack.c.h.b16 %v5808
    %v5902 = vunpack.c.l.b16 %v5809
    %v5903 = vunpack.c.h.b16 %v5809
    %v5904 = vunpack.c.l.b16 %v5810
    %v5905 = vunpack.c.h.b16 %v5810
    %v5906 = vunpack.c.l.b16 %v5811
    %v5907 = vunpack.c.h.b16 %v5811
    %v5908 = vpack.c.b16 %v5848, %v5844
    %v5909 = vpack.c.b16 %v5849, %v5845
    %v5910 = vpack.c.b16 %v5850, %v5846
    %v5911 = vpack.c.b16 %v5851, %v5847
    %v5912 = vpack.c.b16 %v5856, %v5852
    %v5913 = vpack.c.b16 %v5857, %v5853
    %v5914 = vpack.c.b16 %v5858, %v5854
    %v5915 = vpack.c.b16 %v5859, %v5855
    %v5916 = vpack.c.b16 %v5864, %v5860
    %v5917 = vpack.c.b16 %v5865, %v5861
    %v5918 = vpack.c.b16 %v5866, %v5862
    %v5919 = vpack.c.b16 %v5867, %v5863
    %v5920 = vpack.c.b16 %v5872, %v5868
    %v5921 = vpack.c.b16 %v5873, %v5869
    %v5922 = vpack.c.b16 %v5874, %v5870
    %v5923 = vpack.c.b16 %v5875, %v5871
    %v5924 = vpack.c.b16 %v5880, %v5876
    %v5925 = vpack.c.b16 %v5881, %v5877
    %v5926 = vpack.c.b16 %v5882, %v5878
    %v5927 = vpack.c.b16 %v5883, %v5879
    %v5928 = vpack.c.b16 %v5888, %v5884
    %v5929 = vpack.c.b16 %v5889, %v5885
    %v5930 = vpack.c.b16 %v5890, %v5886
    %v5931 = vpack.c.b16 %v5891, %v5887
    %v5932 = vpack.c.b16 %v5896, %v5892
    %v5933 = vpack.c.b16 %v5897, %v5893
    %v5934 = vpack.c.b16 %v5898, %v5894
    %v5935 = vpack.c.b16 %v5899, %v5895
    %v5936 = vpack.c.b16 %v5904, %v5900
    %v5937 = vpack.c.b16 %v5905, %v5901
    %v5938 = vpack.c.b16 %v5906, %v5902
    %v5939 = vpack.c.b16 %v5907, %v5903
    %5972 = vmatprep.subr.bf16.mxu0 %v5937
    %5973 = vmatpush1.bf16.msra.mxu0 %v5936
    %5974 = vmatprep.subr.bf16.mxu0 %v5933
    %5975 = vmatpush1.bf16.msra.mxu0 %v5932
    %5976 = vmatprep.subr.bf16.mxu0 %v5929
    %5977 = vmatpush1.bf16.msra.mxu0 %v5928
    %5978 = vmatprep.subr.bf16.mxu0 %v5925
    %5979 = vmatpush1.bf16.msra.mxu0 %v5924
    %5980 = vmatprep.subr.bf16.mxu0 %v5921
    %5981 = vmatpush1.bf16.msra.mxu0 %v5920
    %5982 = vmatprep.subr.bf16.mxu0 %v5917
    %5983 = vmatpush1.bf16.msra.mxu0 %v5916
    %5984 = vmatprep.subr.bf16.mxu0 %v5913
    %5985 = vmatpush1.bf16.msra.mxu0 %v5912
    %5986 = vmatprep.subr.bf16.mxu0 %v5909
    %5987 = vmatpush1.bf16.msra.mxu0 %v5908
    %5988 = vmatprep.subr.bf16.mxu0 0
    %5989 = vmatpush2.bf16.msra.mxu0 0
    %5990 = vmatprep.subr.bf16.mxu0 0
    %5991 = vmatpush2.bf16.msra.mxu0 0
    %5992 = vmatprep.subr.bf16.mxu0 0
    %5993 = vmatpush2.bf16.msra.mxu0 0
    %5994 = vmatprep.subr.bf16.mxu0 0
    %5995 = vmatpush2.bf16.msra.mxu0 0
    %5996 = vmatprep.subr.bf16.mxu0 0
    %5997 = vmatpush2.bf16.msra.mxu0 0
    %5998 = vmatprep.subr.bf16.mxu0 0
    %5999 = vmatpush2.bf16.msra.mxu0 0
    %6000 = vmatprep.subr.bf16.mxu0 0
    %6001 = vmatpush2.bf16.msra.mxu0 0
    %6002 = vmatprep.subr.bf16.mxu0 0
    %6003 = vmatpush2.bf16.msra.mxu0 0
    %6004 = vmatprep.mubr.bf16.mxu0 0
    %6005 = vmatmul.mubr.bf16.gmra.mxu0 %v5779
    %v6006 = vpop.f32.mrf.mxu0
    %v6007 = vadd.f32 0.0, %v6006
    %v6008 = vpop.f32.mrf.mxu0
    %v6009 = vadd.f32 0.0, %v6008
    %v6010 = vpop.f32.mrf.mxu0
    %v6011 = vadd.f32 0.0, %v6010
    %v6012 = vpop.f32.mrf.mxu0
    %v6013 = vadd.f32 0.0, %v6012
    %6014 = vdwg.mxu0
    %6015 = vmatprep.subr.bf16.mxu0 %v5939
    %6016 = vmatpush1.bf16.msra.mxu0 %v5938
    %6017 = vmatprep.subr.bf16.mxu0 %v5935
    %6018 = vmatpush1.bf16.msra.mxu0 %v5934
    %6019 = vmatprep.subr.bf16.mxu0 %v5931
    %6020 = vmatpush1.bf16.msra.mxu0 %v5930
    %6021 = vmatprep.subr.bf16.mxu0 %v5927
    %6022 = vmatpush1.bf16.msra.mxu0 %v5926
    %6023 = vmatprep.subr.bf16.mxu0 %v5923
    %6024 = vmatpush1.bf16.msra.mxu0 %v5922
    %6025 = vmatprep.subr.bf16.mxu0 %v5919
    %6026 = vmatpush1.bf16.msra.mxu0 %v5918
    %6027 = vmatprep.subr.bf16.mxu0 %v5915
    %6028 = vmatpush1.bf16.msra.mxu0 %v5914
    %6029 = vmatprep.subr.bf16.mxu0 %v5911
    %6030 = vmatpush1.bf16.msra.mxu0 %v5910
    %6031 = vmatprep.subr.bf16.mxu0 0
    %6032 = vmatpush2.bf16.msra.mxu0 0
    %6033 = vmatprep.subr.bf16.mxu0 0
    %6034 = vmatpush2.bf16.msra.mxu0 0
    %6035 = vmatprep.subr.bf16.mxu0 0
    %6036 = vmatpush2.bf16.msra.mxu0 0
    %6037 = vmatprep.subr.bf16.mxu0 0
    %6038 = vmatpush2.bf16.msra.mxu0 0
    %6039 = vmatprep.subr.bf16.mxu0 0
    %6040 = vmatpush2.bf16.msra.mxu0 0
    %6041 = vmatprep.subr.bf16.mxu0 0
    %6042 = vmatpush2.bf16.msra.mxu0 0
    %6043 = vmatprep.subr.bf16.mxu0 0
    %6044 = vmatpush2.bf16.msra.mxu0 0
    %6045 = vmatprep.subr.bf16.mxu0 0
    %6046 = vmatpush2.bf16.msra.mxu0 0
    %6047 = vmatprep.mubr.bf16.mxu0 0
    %6048 = vmatmul.mubr.bf16.gmra.mxu0 %v5779
    %v6049 = vpop.f32.mrf.mxu0
    %v6050 = vadd.f32 0.0, %v6049
    %v6051 = vpop.f32.mrf.mxu0
    %v6052 = vadd.f32 0.0, %v6051
    %v6053 = vpop.f32.mrf.mxu0
    %v6054 = vadd.f32 0.0, %v6053
    %v6055 = vpop.f32.mrf.mxu0
    %v6056 = vadd.f32 0.0, %v6055
    %6057 = vdwg.mxu0
    %v6058 = vadd.f32 %v5771, %v6007
    %v6059 = vadd.f32 %v5772, %v6009
    %v6060 = vadd.f32 %v5773, %v6050
    %v6061 = vadd.f32 %v5774, %v6052
    %v6062 = vadd.f32 %v5775, %v6011
    %v6063 = vadd.f32 %v5776, %v6013
    %v6064 = vadd.f32 %v5777, %v6054
    %v6065 = vadd.f32 %v5778, %v6056
    %s6066 = smul.addr %s767, 4
    %s6067 = scalar_lea.vmem %s1, %s6066
    %v6068 = vld [vmem:[%s6067] sm:$0xff]
    %v6069 = vld [vmem:[%s6067 + $0x8] sm:$0xff]
    %v6070 = vld [vmem:[%s6067 + $0x10] sm:$0xff]
    %v6071 = vld [vmem:[%s6067 + $0x18] sm:$0xff]
    %v6072 = vunpack.c.l.bf16 %v6068
    %v6073 = vunpack.c.h.bf16 %v6068
    %v6074 = vunpack.c.l.bf16 %v6069
    %v6075 = vunpack.c.h.bf16 %v6069
    %v6076 = vunpack.c.l.bf16 %v6070
    %v6077 = vunpack.c.h.bf16 %v6070
    %v6078 = vunpack.c.l.bf16 %v6071
    %v6079 = vunpack.c.h.bf16 %v6071
    %v6080 = vpack.c.bf16 %v5748, %v5747
    %v6081 = vld [vmem:[%s4] sm:$0xff]
    %v6082 = vld [vmem:[%s4 + $0x8] sm:$0xff]
    %v6083 = vld [vmem:[%s4 + $0x10] sm:$0xff]
    %v6084 = vld [vmem:[%s4 + $0x18] sm:$0xff]
    %v6085 = vld [vmem:[%s4 + $0x20] sm:$0xff]
    %v6086 = vld [vmem:[%s4 + $0x28] sm:$0xff]
    %v6087 = vld [vmem:[%s4 + $0x30] sm:$0xff]
    %v6088 = vld [vmem:[%s4 + $0x38] sm:$0xff]
    %v6089 = vld [vmem:[%s4 + $0x40] sm:$0xff]
    %v6090 = vld [vmem:[%s4 + $0x48] sm:$0xff]
    %v6091 = vld [vmem:[%s4 + $0x50] sm:$0xff]
    %v6092 = vld [vmem:[%s4 + $0x58] sm:$0xff]
    %v6093 = vld [vmem:[%s4 + $0x60] sm:$0xff]
    %v6094 = vld [vmem:[%s4 + $0x68] sm:$0xff]
    %v6095 = vld [vmem:[%s4 + $0x70] sm:$0xff]
    %v6096 = vld [vmem:[%s4 + $0x78] sm:$0xff]
    %v6097 = vld [vmem:[%s4 + $0x80] sm:$0xff]
    %v6098 = vld [vmem:[%s4 + $0x88] sm:$0xff]
    %v6099 = vld [vmem:[%s4 + $0x90] sm:$0xff]
    %v6100 = vld [vmem:[%s4 + $0x98] sm:$0xff]
    %v6101 = vld [vmem:[%s4 + $0xa0] sm:$0xff]
    %v6102 = vld [vmem:[%s4 + $0xa8] sm:$0xff]
    %v6103 = vld [vmem:[%s4 + $0xb0] sm:$0xff]
    %v6104 = vld [vmem:[%s4 + $0xb8] sm:$0xff]
    %v6105 = vld [vmem:[%s4 + $0xc0] sm:$0xff]
    %v6106 = vld [vmem:[%s4 + $0xc8] sm:$0xff]
    %v6107 = vld [vmem:[%s4 + $0xd0] sm:$0xff]
    %v6108 = vld [vmem:[%s4 + $0xd8] sm:$0xff]
    %v6109 = vld [vmem:[%s4 + $0xe0] sm:$0xff]
    %v6110 = vld [vmem:[%s4 + $0xe8] sm:$0xff]
    %v6111 = vld [vmem:[%s4 + $0xf0] sm:$0xff]
    %v6112 = vld [vmem:[%s4 + $0xf8] sm:$0xff]
    %v6145 = vunpack.c.l.b16 %v6081
    %v6146 = vunpack.c.h.b16 %v6081
    %v6147 = vunpack.c.l.b16 %v6082
    %v6148 = vunpack.c.h.b16 %v6082
    %v6149 = vunpack.c.l.b16 %v6083
    %v6150 = vunpack.c.h.b16 %v6083
    %v6151 = vunpack.c.l.b16 %v6084
    %v6152 = vunpack.c.h.b16 %v6084
    %v6153 = vunpack.c.l.b16 %v6085
    %v6154 = vunpack.c.h.b16 %v6085
    %v6155 = vunpack.c.l.b16 %v6086
    %v6156 = vunpack.c.h.b16 %v6086
    %v6157 = vunpack.c.l.b16 %v6087
    %v6158 = vunpack.c.h.b16 %v6087
    %v6159 = vunpack.c.l.b16 %v6088
    %v6160 = vunpack.c.h.b16 %v6088
    %v6161 = vunpack.c.l.b16 %v6089
    %v6162 = vunpack.c.h.b16 %v6089
    %v6163 = vunpack.c.l.b16 %v6090
    %v6164 = vunpack.c.h.b16 %v6090
    %v6165 = vunpack.c.l.b16 %v6091
    %v6166 = vunpack.c.h.b16 %v6091
    %v6167 = vunpack.c.l.b16 %v6092
    %v6168 = vunpack.c.h.b16 %v6092
    %v6169 = vunpack.c.l.b16 %v6093
    %v6170 = vunpack.c.h.b16 %v6093
    %v6171 = vunpack.c.l.b16 %v6094
    %v6172 = vunpack.c.h.b16 %v6094
    %v6173 = vunpack.c.l.b16 %v6095
    %v6174 = vunpack.c.h.b16 %v6095
    %v6175 = vunpack.c.l.b16 %v6096
    %v6176 = vunpack.c.h.b16 %v6096
    %v6177 = vunpack.c.l.b16 %v6097
    %v6178 = vunpack.c.h.b16 %v6097
    %v6179 = vunpack.c.l.b16 %v6098
    %v6180 = vunpack.c.h.b16 %v6098
    %v6181 = vunpack.c.l.b16 %v6099
    %v6182 = vunpack.c.h.b16 %v6099
    %v6183 = vunpack.c.l.b16 %v6100
    %v6184 = vunpack.c.h.b16 %v6100
    %v6185 = vunpack.c.l.b16 %v6101
    %v6186 = vunpack.c.h.b16 %v6101
    %v6187 = vunpack.c.l.b16 %v6102
    %v6188 = vunpack.c.h.b16 %v6102
    %v6189 = vunpack.c.l.b16 %v6103
    %v6190 = vunpack.c.h.b16 %v6103
    %v6191 = vunpack.c.l.b16 %v6104
    %v6192 = vunpack.c.h.b16 %v6104
    %v6193 = vunpack.c.l.b16 %v6105
    %v6194 = vunpack.c.h.b16 %v6105
    %v6195 = vunpack.c.l.b16 %v6106
    %v6196 = vunpack.c.h.b16 %v6106
    %v6197 = vunpack.c.l.b16 %v6107
    %v6198 = vunpack.c.h.b16 %v6107
    %v6199 = vunpack.c.l.b16 %v6108
    %v6200 = vunpack.c.h.b16 %v6108
    %v6201 = vunpack.c.l.b16 %v6109
    %v6202 = vunpack.c.h.b16 %v6109
    %v6203 = vunpack.c.l.b16 %v6110
    %v6204 = vunpack.c.h.b16 %v6110
    %v6205 = vunpack.c.l.b16 %v6111
    %v6206 = vunpack.c.h.b16 %v6111
    %v6207 = vunpack.c.l.b16 %v6112
    %v6208 = vunpack.c.h.b16 %v6112
    %v6209 = vpack.c.b16 %v6149, %v6145
    %v6210 = vpack.c.b16 %v6150, %v6146
    %v6211 = vpack.c.b16 %v6151, %v6147
    %v6212 = vpack.c.b16 %v6152, %v6148
    %v6213 = vpack.c.b16 %v6157, %v6153
    %v6214 = vpack.c.b16 %v6158, %v6154
    %v6215 = vpack.c.b16 %v6159, %v6155
    %v6216 = vpack.c.b16 %v6160, %v6156
    %v6217 = vpack.c.b16 %v6165, %v6161
    %v6218 = vpack.c.b16 %v6166, %v6162
    %v6219 = vpack.c.b16 %v6167, %v6163
    %v6220 = vpack.c.b16 %v6168, %v6164
    %v6221 = vpack.c.b16 %v6173, %v6169
    %v6222 = vpack.c.b16 %v6174, %v6170
    %v6223 = vpack.c.b16 %v6175, %v6171
    %v6224 = vpack.c.b16 %v6176, %v6172
    %v6225 = vpack.c.b16 %v6181, %v6177
    %v6226 = vpack.c.b16 %v6182, %v6178
    %v6227 = vpack.c.b16 %v6183, %v6179
    %v6228 = vpack.c.b16 %v6184, %v6180
    %v6229 = vpack.c.b16 %v6189, %v6185
    %v6230 = vpack.c.b16 %v6190, %v6186
    %v6231 = vpack.c.b16 %v6191, %v6187
    %v6232 = vpack.c.b16 %v6192, %v6188
    %v6233 = vpack.c.b16 %v6197, %v6193
    %v6234 = vpack.c.b16 %v6198, %v6194
    %v6235 = vpack.c.b16 %v6199, %v6195
    %v6236 = vpack.c.b16 %v6200, %v6196
    %v6237 = vpack.c.b16 %v6205, %v6201
    %v6238 = vpack.c.b16 %v6206, %v6202
    %v6239 = vpack.c.b16 %v6207, %v6203
    %v6240 = vpack.c.b16 %v6208, %v6204
    %6273 = vmatprep.subr.bf16.mxu0 %v6238
    %6274 = vmatpush1.bf16.msra.mxu0 %v6237
    %6275 = vmatprep.subr.bf16.mxu0 %v6234
    %6276 = vmatpush1.bf16.msra.mxu0 %v6233
    %6277 = vmatprep.subr.bf16.mxu0 %v6230
    %6278 = vmatpush1.bf16.msra.mxu0 %v6229
    %6279 = vmatprep.subr.bf16.mxu0 %v6226
    %6280 = vmatpush1.bf16.msra.mxu0 %v6225
    %6281 = vmatprep.subr.bf16.mxu0 %v6222
    %6282 = vmatpush1.bf16.msra.mxu0 %v6221
    %6283 = vmatprep.subr.bf16.mxu0 %v6218
    %6284 = vmatpush1.bf16.msra.mxu0 %v6217
    %6285 = vmatprep.subr.bf16.mxu0 %v6214
    %6286 = vmatpush1.bf16.msra.mxu0 %v6213
    %6287 = vmatprep.subr.bf16.mxu0 %v6210
    %6288 = vmatpush1.bf16.msra.mxu0 %v6209
    %6289 = vmatprep.subr.bf16.mxu0 0
    %6290 = vmatpush2.bf16.msra.mxu0 0
    %6291 = vmatprep.subr.bf16.mxu0 0
    %6292 = vmatpush2.bf16.msra.mxu0 0
    %6293 = vmatprep.subr.bf16.mxu0 0
    %6294 = vmatpush2.bf16.msra.mxu0 0
    %6295 = vmatprep.subr.bf16.mxu0 0
    %6296 = vmatpush2.bf16.msra.mxu0 0
    %6297 = vmatprep.subr.bf16.mxu0 0
    %6298 = vmatpush2.bf16.msra.mxu0 0
    %6299 = vmatprep.subr.bf16.mxu0 0
    %6300 = vmatpush2.bf16.msra.mxu0 0
    %6301 = vmatprep.subr.bf16.mxu0 0
    %6302 = vmatpush2.bf16.msra.mxu0 0
    %6303 = vmatprep.subr.bf16.mxu0 0
    %6304 = vmatpush2.bf16.msra.mxu0 0
    %6305 = vmatprep.mubr.bf16.mxu0 0
    %6306 = vmatmul.mubr.bf16.gmra.mxu0 %v6080
    %v6307 = vpop.f32.mrf.mxu0
    %v6308 = vadd.f32 0.0, %v6307
    %v6309 = vpop.f32.mrf.mxu0
    %v6310 = vadd.f32 0.0, %v6309
    %v6311 = vpop.f32.mrf.mxu0
    %v6312 = vadd.f32 0.0, %v6311
    %v6313 = vpop.f32.mrf.mxu0
    %v6314 = vadd.f32 0.0, %v6313
    %6315 = vdwg.mxu0
    %6316 = vmatprep.subr.bf16.mxu0 %v6240
    %6317 = vmatpush1.bf16.msra.mxu0 %v6239
    %6318 = vmatprep.subr.bf16.mxu0 %v6236
    %6319 = vmatpush1.bf16.msra.mxu0 %v6235
    %6320 = vmatprep.subr.bf16.mxu0 %v6232
    %6321 = vmatpush1.bf16.msra.mxu0 %v6231
    %6322 = vmatprep.subr.bf16.mxu0 %v6228
    %6323 = vmatpush1.bf16.msra.mxu0 %v6227
    %6324 = vmatprep.subr.bf16.mxu0 %v6224
    %6325 = vmatpush1.bf16.msra.mxu0 %v6223
    %6326 = vmatprep.subr.bf16.mxu0 %v6220
    %6327 = vmatpush1.bf16.msra.mxu0 %v6219
    %6328 = vmatprep.subr.bf16.mxu0 %v6216
    %6329 = vmatpush1.bf16.msra.mxu0 %v6215
    %6330 = vmatprep.subr.bf16.mxu0 %v6212
    %6331 = vmatpush1.bf16.msra.mxu0 %v6211
    %6332 = vmatprep.subr.bf16.mxu0 0
    %6333 = vmatpush2.bf16.msra.mxu0 0
    %6334 = vmatprep.subr.bf16.mxu0 0
    %6335 = vmatpush2.bf16.msra.mxu0 0
    %6336 = vmatprep.subr.bf16.mxu0 0
    %6337 = vmatpush2.bf16.msra.mxu0 0
    %6338 = vmatprep.subr.bf16.mxu0 0
    %6339 = vmatpush2.bf16.msra.mxu0 0
    %6340 = vmatprep.subr.bf16.mxu0 0
    %6341 = vmatpush2.bf16.msra.mxu0 0
    %6342 = vmatprep.subr.bf16.mxu0 0
    %6343 = vmatpush2.bf16.msra.mxu0 0
    %6344 = vmatprep.subr.bf16.mxu0 0
    %6345 = vmatpush2.bf16.msra.mxu0 0
    %6346 = vmatprep.subr.bf16.mxu0 0
    %6347 = vmatpush2.bf16.msra.mxu0 0
    %6348 = vmatprep.mubr.bf16.mxu0 0
    %6349 = vmatmul.mubr.bf16.gmra.mxu0 %v6080
    %v6350 = vpop.f32.mrf.mxu0
    %v6351 = vadd.f32 0.0, %v6350
    %v6352 = vpop.f32.mrf.mxu0
    %v6353 = vadd.f32 0.0, %v6352
    %v6354 = vpop.f32.mrf.mxu0
    %v6355 = vadd.f32 0.0, %v6354
    %v6356 = vpop.f32.mrf.mxu0
    %v6357 = vadd.f32 0.0, %v6356
    %6358 = vdwg.mxu0
    %v6359 = vadd.f32 %v6072, %v6308
    %v6360 = vadd.f32 %v6073, %v6310
    %v6361 = vadd.f32 %v6074, %v6351
    %v6362 = vadd.f32 %v6075, %v6353
    %v6363 = vadd.f32 %v6076, %v6312
    %v6364 = vadd.f32 %v6077, %v6314
    %v6365 = vadd.f32 %v6078, %v6355
    %v6366 = vadd.f32 %v6079, %v6357
    %v6367 = vmul.f32 %v6058, 0.5
    %v6368 = vmul.f32 %v6062, 0.5
    %v6369 = vtanh.pop %v6367
    %v6370 = vtanh.pop %v6368
    %v6371 = vmul.f32 %v6369, 0.5
    %v6372 = vmul.f32 %v6370, 0.5
    %v6373 = vadd.f32 %v6371, 0.5
    %v6374 = vadd.f32 %v6372, 0.5
    %v6375 = vmul.f32 %v6059, 0.5
    %v6376 = vmul.f32 %v6063, 0.5
    %v6377 = vtanh.pop %v6375
    %v6378 = vtanh.pop %v6376
    %v6379 = vmul.f32 %v6377, 0.5
    %v6380 = vmul.f32 %v6378, 0.5
    %v6381 = vadd.f32 %v6379, 0.5
    %v6382 = vadd.f32 %v6380, 0.5
    %v6383 = vtanh.pop %v6060
    %v6384 = vtanh.pop %v6064
    %v6385 = vmul.f32 %v6061, 0.5
    %v6386 = vmul.f32 %v6065, 0.5
    %v6387 = vtanh.pop %v6385
    %v6388 = vtanh.pop %v6386
    %v6389 = vmul.f32 %v6387, 0.5
    %v6390 = vmul.f32 %v6388, 0.5
    %v6391 = vadd.f32 %v6389, 0.5
    %v6392 = vadd.f32 %v6390, 0.5
    %v6393 = vmul.f32 %v6381, %v5707
    %v6394 = vmul.f32 %v6382, %v5708
    %v6395 = vmul.f32 %v6373, %v6383
    %v6396 = vmul.f32 %v6374, %v6384
    %v6397 = vadd.f32 %v6393, %v6395
    %v6398 = vadd.f32 %v6394, %v6396
    %v6399 = vtanh.pop %v6397
    %v6400 = vtanh.pop %v6398
    %v6401 = vmul.f32 %v6391, %v6399
    %v6402 = vmul.f32 %v6392, %v6400
    %v6403 = vsel %vm1471, %v6401, %v5705
    %v6404 = vsel %vm1472, %v6402, %v5706
    %v6405 = vsel %vm1471, %v6397, %v5707
    %v6406 = vsel %vm1472, %v6398, %v5708
    %v6407 = vsel %vm1471, %v6401, 0.0
    %v6408 = vsel %vm1472, %v6402, 0.0
    %v6409 = vmul.f32 %v6359, 0.5
    %v6410 = vmul.f32 %v6363, 0.5
    %v6411 = vtanh.pop %v6409
    %v6412 = vtanh.pop %v6410
    %v6413 = vmul.f32 %v6411, 0.5
    %v6414 = vmul.f32 %v6412, 0.5
    %v6415 = vadd.f32 %v6413, 0.5
    %v6416 = vadd.f32 %v6414, 0.5
    %v6417 = vmul.f32 %v6360, 0.5
    %v6418 = vmul.f32 %v6364, 0.5
    %v6419 = vtanh.pop %v6417
    %v6420 = vtanh.pop %v6418
    %v6421 = vmul.f32 %v6419, 0.5
    %v6422 = vmul.f32 %v6420, 0.5
    %v6423 = vadd.f32 %v6421, 0.5
    %v6424 = vadd.f32 %v6422, 0.5
    %v6425 = vtanh.pop %v6361
    %v6426 = vtanh.pop %v6365
    %v6427 = vmul.f32 %v6362, 0.5
    %v6428 = vmul.f32 %v6366, 0.5
    %v6429 = vtanh.pop %v6427
    %v6430 = vtanh.pop %v6428
    %v6431 = vmul.f32 %v6429, 0.5
    %v6432 = vmul.f32 %v6430, 0.5
    %v6433 = vadd.f32 %v6431, 0.5
    %v6434 = vadd.f32 %v6432, 0.5
    %v6435 = vmul.f32 %v6423, %v5749
    %v6436 = vmul.f32 %v6424, %v5750
    %v6437 = vmul.f32 %v6415, %v6425
    %v6438 = vmul.f32 %v6416, %v6426
    %v6439 = vadd.f32 %v6435, %v6437
    %v6440 = vadd.f32 %v6436, %v6438
    %v6441 = vtanh.pop %v6439
    %v6442 = vtanh.pop %v6440
    %v6443 = vmul.f32 %v6433, %v6441
    %v6444 = vmul.f32 %v6434, %v6442
    %v6445 = vsel %vm1417, %v6443, %v5747
    %v6446 = vsel %vm1418, %v6444, %v5748
    %v6447 = vsel %vm1417, %v6439, %v5749
    %v6448 = vsel %vm1418, %v6440, %v5750
    %v6449 = vsel %vm1417, %v6443, 0.0
    %v6450 = vsel %vm1418, %v6444, 0.0
    %v6451 = vld [vmem:[%s1486] sm:$0xff]
    %v6452 = vld [vmem:[%s1486 + $0x8] sm:$0xff]
    %v6453 = vadd.f32 %v6451, %v6407
    %v6454 = vadd.f32 %v6452, %v6408
    %6455 = vst [vmem:[%s1486] sm:$0xff] %v6453
    %6456 = vst [vmem:[%s1486 + $0x8] sm:$0xff] %v6454
    %v6457 = vld [vmem:[%s1479] sm:$0xff]
    %v6458 = vld [vmem:[%s1479 + $0x8] sm:$0xff]
    %v6459 = vadd.f32 %v6457, %v6449
    %v6460 = vadd.f32 %v6458, %v6450
    %6461 = vst [vmem:[%s1479] sm:$0xff] %v6459
    %6462 = vst [vmem:[%s1479 + $0x8] sm:$0xff] %v6460
    %s6463 = smul.addr %s349, 4
    %s6464 = scalar_lea.vmem %s0, %s6463
    %v6465 = vld [vmem:[%s6464] sm:$0xff]
    %v6466 = vld [vmem:[%s6464 + $0x8] sm:$0xff]
    %v6467 = vld [vmem:[%s6464 + $0x10] sm:$0xff]
    %v6468 = vld [vmem:[%s6464 + $0x18] sm:$0xff]
    %v6469 = vunpack.c.l.bf16 %v6465
    %v6470 = vunpack.c.h.bf16 %v6465
    %v6471 = vunpack.c.l.bf16 %v6466
    %v6472 = vunpack.c.h.bf16 %v6466
    %v6473 = vunpack.c.l.bf16 %v6467
    %v6474 = vunpack.c.h.bf16 %v6467
    %v6475 = vunpack.c.l.bf16 %v6468
    %v6476 = vunpack.c.h.bf16 %v6468
    %v6477 = vpack.c.bf16 %v6404, %v6403
    %v6478 = vld [vmem:[%s3] sm:$0xff]
    %v6479 = vld [vmem:[%s3 + $0x8] sm:$0xff]
    %v6480 = vld [vmem:[%s3 + $0x10] sm:$0xff]
    %v6481 = vld [vmem:[%s3 + $0x18] sm:$0xff]
    %v6482 = vld [vmem:[%s3 + $0x20] sm:$0xff]
    %v6483 = vld [vmem:[%s3 + $0x28] sm:$0xff]
    %v6484 = vld [vmem:[%s3 + $0x30] sm:$0xff]
    %v6485 = vld [vmem:[%s3 + $0x38] sm:$0xff]
    %v6486 = vld [vmem:[%s3 + $0x40] sm:$0xff]
    %v6487 = vld [vmem:[%s3 + $0x48] sm:$0xff]
    %v6488 = vld [vmem:[%s3 + $0x50] sm:$0xff]
    %v6489 = vld [vmem:[%s3 + $0x58] sm:$0xff]
    %v6490 = vld [vmem:[%s3 + $0x60] sm:$0xff]
    %v6491 = vld [vmem:[%s3 + $0x68] sm:$0xff]
    %v6492 = vld [vmem:[%s3 + $0x70] sm:$0xff]
    %v6493 = vld [vmem:[%s3 + $0x78] sm:$0xff]
    %v6494 = vld [vmem:[%s3 + $0x80] sm:$0xff]
    %v6495 = vld [vmem:[%s3 + $0x88] sm:$0xff]
    %v6496 = vld [vmem:[%s3 + $0x90] sm:$0xff]
    %v6497 = vld [vmem:[%s3 + $0x98] sm:$0xff]
    %v6498 = vld [vmem:[%s3 + $0xa0] sm:$0xff]
    %v6499 = vld [vmem:[%s3 + $0xa8] sm:$0xff]
    %v6500 = vld [vmem:[%s3 + $0xb0] sm:$0xff]
    %v6501 = vld [vmem:[%s3 + $0xb8] sm:$0xff]
    %v6502 = vld [vmem:[%s3 + $0xc0] sm:$0xff]
    %v6503 = vld [vmem:[%s3 + $0xc8] sm:$0xff]
    %v6504 = vld [vmem:[%s3 + $0xd0] sm:$0xff]
    %v6505 = vld [vmem:[%s3 + $0xd8] sm:$0xff]
    %v6506 = vld [vmem:[%s3 + $0xe0] sm:$0xff]
    %v6507 = vld [vmem:[%s3 + $0xe8] sm:$0xff]
    %v6508 = vld [vmem:[%s3 + $0xf0] sm:$0xff]
    %v6509 = vld [vmem:[%s3 + $0xf8] sm:$0xff]
    %v6542 = vunpack.c.l.b16 %v6478
    %v6543 = vunpack.c.h.b16 %v6478
    %v6544 = vunpack.c.l.b16 %v6479
    %v6545 = vunpack.c.h.b16 %v6479
    %v6546 = vunpack.c.l.b16 %v6480
    %v6547 = vunpack.c.h.b16 %v6480
    %v6548 = vunpack.c.l.b16 %v6481
    %v6549 = vunpack.c.h.b16 %v6481
    %v6550 = vunpack.c.l.b16 %v6482
    %v6551 = vunpack.c.h.b16 %v6482
    %v6552 = vunpack.c.l.b16 %v6483
    %v6553 = vunpack.c.h.b16 %v6483
    %v6554 = vunpack.c.l.b16 %v6484
    %v6555 = vunpack.c.h.b16 %v6484
    %v6556 = vunpack.c.l.b16 %v6485
    %v6557 = vunpack.c.h.b16 %v6485
    %v6558 = vunpack.c.l.b16 %v6486
    %v6559 = vunpack.c.h.b16 %v6486
    %v6560 = vunpack.c.l.b16 %v6487
    %v6561 = vunpack.c.h.b16 %v6487
    %v6562 = vunpack.c.l.b16 %v6488
    %v6563 = vunpack.c.h.b16 %v6488
    %v6564 = vunpack.c.l.b16 %v6489
    %v6565 = vunpack.c.h.b16 %v6489
    %v6566 = vunpack.c.l.b16 %v6490
    %v6567 = vunpack.c.h.b16 %v6490
    %v6568 = vunpack.c.l.b16 %v6491
    %v6569 = vunpack.c.h.b16 %v6491
    %v6570 = vunpack.c.l.b16 %v6492
    %v6571 = vunpack.c.h.b16 %v6492
    %v6572 = vunpack.c.l.b16 %v6493
    %v6573 = vunpack.c.h.b16 %v6493
    %v6574 = vunpack.c.l.b16 %v6494
    %v6575 = vunpack.c.h.b16 %v6494
    %v6576 = vunpack.c.l.b16 %v6495
    %v6577 = vunpack.c.h.b16 %v6495
    %v6578 = vunpack.c.l.b16 %v6496
    %v6579 = vunpack.c.h.b16 %v6496
    %v6580 = vunpack.c.l.b16 %v6497
    %v6581 = vunpack.c.h.b16 %v6497
    %v6582 = vunpack.c.l.b16 %v6498
    %v6583 = vunpack.c.h.b16 %v6498
    %v6584 = vunpack.c.l.b16 %v6499
    %v6585 = vunpack.c.h.b16 %v6499
    %v6586 = vunpack.c.l.b16 %v6500
    %v6587 = vunpack.c.h.b16 %v6500
    %v6588 = vunpack.c.l.b16 %v6501
    %v6589 = vunpack.c.h.b16 %v6501
    %v6590 = vunpack.c.l.b16 %v6502
    %v6591 = vunpack.c.h.b16 %v6502
    %v6592 = vunpack.c.l.b16 %v6503
    %v6593 = vunpack.c.h.b16 %v6503
    %v6594 = vunpack.c.l.b16 %v6504
    %v6595 = vunpack.c.h.b16 %v6504
    %v6596 = vunpack.c.l.b16 %v6505
    %v6597 = vunpack.c.h.b16 %v6505
    %v6598 = vunpack.c.l.b16 %v6506
    %v6599 = vunpack.c.h.b16 %v6506
    %v6600 = vunpack.c.l.b16 %v6507
    %v6601 = vunpack.c.h.b16 %v6507
    %v6602 = vunpack.c.l.b16 %v6508
    %v6603 = vunpack.c.h.b16 %v6508
    %v6604 = vunpack.c.l.b16 %v6509
    %v6605 = vunpack.c.h.b16 %v6509
    %v6606 = vpack.c.b16 %v6546, %v6542
    %v6607 = vpack.c.b16 %v6547, %v6543
    %v6608 = vpack.c.b16 %v6548, %v6544
    %v6609 = vpack.c.b16 %v6549, %v6545
    %v6610 = vpack.c.b16 %v6554, %v6550
    %v6611 = vpack.c.b16 %v6555, %v6551
    %v6612 = vpack.c.b16 %v6556, %v6552
    %v6613 = vpack.c.b16 %v6557, %v6553
    %v6614 = vpack.c.b16 %v6562, %v6558
    %v6615 = vpack.c.b16 %v6563, %v6559
    %v6616 = vpack.c.b16 %v6564, %v6560
    %v6617 = vpack.c.b16 %v6565, %v6561
    %v6618 = vpack.c.b16 %v6570, %v6566
    %v6619 = vpack.c.b16 %v6571, %v6567
    %v6620 = vpack.c.b16 %v6572, %v6568
    %v6621 = vpack.c.b16 %v6573, %v6569
    %v6622 = vpack.c.b16 %v6578, %v6574
    %v6623 = vpack.c.b16 %v6579, %v6575
    %v6624 = vpack.c.b16 %v6580, %v6576
    %v6625 = vpack.c.b16 %v6581, %v6577
    %v6626 = vpack.c.b16 %v6586, %v6582
    %v6627 = vpack.c.b16 %v6587, %v6583
    %v6628 = vpack.c.b16 %v6588, %v6584
    %v6629 = vpack.c.b16 %v6589, %v6585
    %v6630 = vpack.c.b16 %v6594, %v6590
    %v6631 = vpack.c.b16 %v6595, %v6591
    %v6632 = vpack.c.b16 %v6596, %v6592
    %v6633 = vpack.c.b16 %v6597, %v6593
    %v6634 = vpack.c.b16 %v6602, %v6598
    %v6635 = vpack.c.b16 %v6603, %v6599
    %v6636 = vpack.c.b16 %v6604, %v6600
    %v6637 = vpack.c.b16 %v6605, %v6601
    %6670 = vmatprep.subr.bf16.mxu0 %v6635
    %6671 = vmatpush1.bf16.msra.mxu0 %v6634
    %6672 = vmatprep.subr.bf16.mxu0 %v6631
    %6673 = vmatpush1.bf16.msra.mxu0 %v6630
    %6674 = vmatprep.subr.bf16.mxu0 %v6627
    %6675 = vmatpush1.bf16.msra.mxu0 %v6626
    %6676 = vmatprep.subr.bf16.mxu0 %v6623
    %6677 = vmatpush1.bf16.msra.mxu0 %v6622
    %6678 = vmatprep.subr.bf16.mxu0 %v6619
    %6679 = vmatpush1.bf16.msra.mxu0 %v6618
    %6680 = vmatprep.subr.bf16.mxu0 %v6615
    %6681 = vmatpush1.bf16.msra.mxu0 %v6614
    %6682 = vmatprep.subr.bf16.mxu0 %v6611
    %6683 = vmatpush1.bf16.msra.mxu0 %v6610
    %6684 = vmatprep.subr.bf16.mxu0 %v6607
    %6685 = vmatpush1.bf16.msra.mxu0 %v6606
    %6686 = vmatprep.subr.bf16.mxu0 0
    %6687 = vmatpush2.bf16.msra.mxu0 0
    %6688 = vmatprep.subr.bf16.mxu0 0
    %6689 = vmatpush2.bf16.msra.mxu0 0
    %6690 = vmatprep.subr.bf16.mxu0 0
    %6691 = vmatpush2.bf16.msra.mxu0 0
    %6692 = vmatprep.subr.bf16.mxu0 0
    %6693 = vmatpush2.bf16.msra.mxu0 0
    %6694 = vmatprep.subr.bf16.mxu0 0
    %6695 = vmatpush2.bf16.msra.mxu0 0
    %6696 = vmatprep.subr.bf16.mxu0 0
    %6697 = vmatpush2.bf16.msra.mxu0 0
    %6698 = vmatprep.subr.bf16.mxu0 0
    %6699 = vmatpush2.bf16.msra.mxu0 0
    %6700 = vmatprep.subr.bf16.mxu0 0
    %6701 = vmatpush2.bf16.msra.mxu0 0
    %6702 = vmatprep.mubr.bf16.mxu0 0
    %6703 = vmatmul.mubr.bf16.gmra.mxu0 %v6477
    %v6704 = vpop.f32.mrf.mxu0
    %v6705 = vadd.f32 0.0, %v6704
    %v6706 = vpop.f32.mrf.mxu0
    %v6707 = vadd.f32 0.0, %v6706
    %v6708 = vpop.f32.mrf.mxu0
    %v6709 = vadd.f32 0.0, %v6708
    %v6710 = vpop.f32.mrf.mxu0
    %v6711 = vadd.f32 0.0, %v6710
    %6712 = vdwg.mxu0
    %6713 = vmatprep.subr.bf16.mxu0 %v6637
    %6714 = vmatpush1.bf16.msra.mxu0 %v6636
    %6715 = vmatprep.subr.bf16.mxu0 %v6633
    %6716 = vmatpush1.bf16.msra.mxu0 %v6632
    %6717 = vmatprep.subr.bf16.mxu0 %v6629
    %6718 = vmatpush1.bf16.msra.mxu0 %v6628
    %6719 = vmatprep.subr.bf16.mxu0 %v6625
    %6720 = vmatpush1.bf16.msra.mxu0 %v6624
    %6721 = vmatprep.subr.bf16.mxu0 %v6621
    %6722 = vmatpush1.bf16.msra.mxu0 %v6620
    %6723 = vmatprep.subr.bf16.mxu0 %v6617
    %6724 = vmatpush1.bf16.msra.mxu0 %v6616
    %6725 = vmatprep.subr.bf16.mxu0 %v6613
    %6726 = vmatpush1.bf16.msra.mxu0 %v6612
    %6727 = vmatprep.subr.bf16.mxu0 %v6609
    %6728 = vmatpush1.bf16.msra.mxu0 %v6608
    %6729 = vmatprep.subr.bf16.mxu0 0
    %6730 = vmatpush2.bf16.msra.mxu0 0
    %6731 = vmatprep.subr.bf16.mxu0 0
    %6732 = vmatpush2.bf16.msra.mxu0 0
    %6733 = vmatprep.subr.bf16.mxu0 0
    %6734 = vmatpush2.bf16.msra.mxu0 0
    %6735 = vmatprep.subr.bf16.mxu0 0
    %6736 = vmatpush2.bf16.msra.mxu0 0
    %6737 = vmatprep.subr.bf16.mxu0 0
    %6738 = vmatpush2.bf16.msra.mxu0 0
    %6739 = vmatprep.subr.bf16.mxu0 0
    %6740 = vmatpush2.bf16.msra.mxu0 0
    %6741 = vmatprep.subr.bf16.mxu0 0
    %6742 = vmatpush2.bf16.msra.mxu0 0
    %6743 = vmatprep.subr.bf16.mxu0 0
    %6744 = vmatpush2.bf16.msra.mxu0 0
    %6745 = vmatprep.mubr.bf16.mxu0 0
    %6746 = vmatmul.mubr.bf16.gmra.mxu0 %v6477
    %v6747 = vpop.f32.mrf.mxu0
    %v6748 = vadd.f32 0.0, %v6747
    %v6749 = vpop.f32.mrf.mxu0
    %v6750 = vadd.f32 0.0, %v6749
    %v6751 = vpop.f32.mrf.mxu0
    %v6752 = vadd.f32 0.0, %v6751
    %v6753 = vpop.f32.mrf.mxu0
    %v6754 = vadd.f32 0.0, %v6753
    %6755 = vdwg.mxu0
    %v6756 = vadd.f32 %v6469, %v6705
    %v6757 = vadd.f32 %v6470, %v6707
    %v6758 = vadd.f32 %v6471, %v6748
    %v6759 = vadd.f32 %v6472, %v6750
    %v6760 = vadd.f32 %v6473, %v6709
    %v6761 = vadd.f32 %v6474, %v6711
    %v6762 = vadd.f32 %v6475, %v6752
    %v6763 = vadd.f32 %v6476, %v6754
    %s6764 = smul.addr %s48, 4
    %s6765 = scalar_lea.vmem %s1, %s6764
    %v6766 = vld [vmem:[%s6765] sm:$0xff]
    %v6767 = vld [vmem:[%s6765 + $0x8] sm:$0xff]
    %v6768 = vld [vmem:[%s6765 + $0x10] sm:$0xff]
    %v6769 = vld [vmem:[%s6765 + $0x18] sm:$0xff]
    %v6770 = vunpack.c.l.bf16 %v6766
    %v6771 = vunpack.c.h.bf16 %v6766
    %v6772 = vunpack.c.l.bf16 %v6767
    %v6773 = vunpack.c.h.bf16 %v6767
    %v6774 = vunpack.c.l.bf16 %v6768
    %v6775 = vunpack.c.h.bf16 %v6768
    %v6776 = vunpack.c.l.bf16 %v6769
    %v6777 = vunpack.c.h.bf16 %v6769
    %v6778 = vpack.c.bf16 %v6446, %v6445
    %v6779 = vld [vmem:[%s4] sm:$0xff]
    %v6780 = vld [vmem:[%s4 + $0x8] sm:$0xff]
    %v6781 = vld [vmem:[%s4 + $0x10] sm:$0xff]
    %v6782 = vld [vmem:[%s4 + $0x18] sm:$0xff]
    %v6783 = vld [vmem:[%s4 + $0x20] sm:$0xff]
    %v6784 = vld [vmem:[%s4 + $0x28] sm:$0xff]
    %v6785 = vld [vmem:[%s4 + $0x30] sm:$0xff]
    %v6786 = vld [vmem:[%s4 + $0x38] sm:$0xff]
    %v6787 = vld [vmem:[%s4 + $0x40] sm:$0xff]
    %v6788 = vld [vmem:[%s4 + $0x48] sm:$0xff]
    %v6789 = vld [vmem:[%s4 + $0x50] sm:$0xff]
    %v6790 = vld [vmem:[%s4 + $0x58] sm:$0xff]
    %v6791 = vld [vmem:[%s4 + $0x60] sm:$0xff]
    %v6792 = vld [vmem:[%s4 + $0x68] sm:$0xff]
    %v6793 = vld [vmem:[%s4 + $0x70] sm:$0xff]
    %v6794 = vld [vmem:[%s4 + $0x78] sm:$0xff]
    %v6795 = vld [vmem:[%s4 + $0x80] sm:$0xff]
    %v6796 = vld [vmem:[%s4 + $0x88] sm:$0xff]
    %v6797 = vld [vmem:[%s4 + $0x90] sm:$0xff]
    %v6798 = vld [vmem:[%s4 + $0x98] sm:$0xff]
    %v6799 = vld [vmem:[%s4 + $0xa0] sm:$0xff]
    %v6800 = vld [vmem:[%s4 + $0xa8] sm:$0xff]
    %v6801 = vld [vmem:[%s4 + $0xb0] sm:$0xff]
    %v6802 = vld [vmem:[%s4 + $0xb8] sm:$0xff]
    %v6803 = vld [vmem:[%s4 + $0xc0] sm:$0xff]
    %v6804 = vld [vmem:[%s4 + $0xc8] sm:$0xff]
    %v6805 = vld [vmem:[%s4 + $0xd0] sm:$0xff]
    %v6806 = vld [vmem:[%s4 + $0xd8] sm:$0xff]
    %v6807 = vld [vmem:[%s4 + $0xe0] sm:$0xff]
    %v6808 = vld [vmem:[%s4 + $0xe8] sm:$0xff]
    %v6809 = vld [vmem:[%s4 + $0xf0] sm:$0xff]
    %v6810 = vld [vmem:[%s4 + $0xf8] sm:$0xff]
    %v6843 = vunpack.c.l.b16 %v6779
    %v6844 = vunpack.c.h.b16 %v6779
    %v6845 = vunpack.c.l.b16 %v6780
    %v6846 = vunpack.c.h.b16 %v6780
    %v6847 = vunpack.c.l.b16 %v6781
    %v6848 = vunpack.c.h.b16 %v6781
    %v6849 = vunpack.c.l.b16 %v6782
    %v6850 = vunpack.c.h.b16 %v6782
    %v6851 = vunpack.c.l.b16 %v6783
    %v6852 = vunpack.c.h.b16 %v6783
    %v6853 = vunpack.c.l.b16 %v6784
    %v6854 = vunpack.c.h.b16 %v6784
    %v6855 = vunpack.c.l.b16 %v6785
    %v6856 = vunpack.c.h.b16 %v6785
    %v6857 = vunpack.c.l.b16 %v6786
    %v6858 = vunpack.c.h.b16 %v6786
    %v6859 = vunpack.c.l.b16 %v6787
    %v6860 = vunpack.c.h.b16 %v6787
    %v6861 = vunpack.c.l.b16 %v6788
    %v6862 = vunpack.c.h.b16 %v6788
    %v6863 = vunpack.c.l.b16 %v6789
    %v6864 = vunpack.c.h.b16 %v6789
    %v6865 = vunpack.c.l.b16 %v6790
    %v6866 = vunpack.c.h.b16 %v6790
    %v6867 = vunpack.c.l.b16 %v6791
    %v6868 = vunpack.c.h.b16 %v6791
    %v6869 = vunpack.c.l.b16 %v6792
    %v6870 = vunpack.c.h.b16 %v6792
    %v6871 = vunpack.c.l.b16 %v6793
    %v6872 = vunpack.c.h.b16 %v6793
    %v6873 = vunpack.c.l.b16 %v6794
    %v6874 = vunpack.c.h.b16 %v6794
    %v6875 = vunpack.c.l.b16 %v6795
    %v6876 = vunpack.c.h.b16 %v6795
    %v6877 = vunpack.c.l.b16 %v6796
    %v6878 = vunpack.c.h.b16 %v6796
    %v6879 = vunpack.c.l.b16 %v6797
    %v6880 = vunpack.c.h.b16 %v6797
    %v6881 = vunpack.c.l.b16 %v6798
    %v6882 = vunpack.c.h.b16 %v6798
    %v6883 = vunpack.c.l.b16 %v6799
    %v6884 = vunpack.c.h.b16 %v6799
    %v6885 = vunpack.c.l.b16 %v6800
    %v6886 = vunpack.c.h.b16 %v6800
    %v6887 = vunpack.c.l.b16 %v6801
    %v6888 = vunpack.c.h.b16 %v6801
    %v6889 = vunpack.c.l.b16 %v6802
    %v6890 = vunpack.c.h.b16 %v6802
    %v6891 = vunpack.c.l.b16 %v6803
    %v6892 = vunpack.c.h.b16 %v6803
    %v6893 = vunpack.c.l.b16 %v6804
    %v6894 = vunpack.c.h.b16 %v6804
    %v6895 = vunpack.c.l.b16 %v6805
    %v6896 = vunpack.c.h.b16 %v6805
    %v6897 = vunpack.c.l.b16 %v6806
    %v6898 = vunpack.c.h.b16 %v6806
    %v6899 = vunpack.c.l.b16 %v6807
    %v6900 = vunpack.c.h.b16 %v6807
    %v6901 = vunpack.c.l.b16 %v6808
    %v6902 = vunpack.c.h.b16 %v6808
    %v6903 = vunpack.c.l.b16 %v6809
    %v6904 = vunpack.c.h.b16 %v6809
    %v6905 = vunpack.c.l.b16 %v6810
    %v6906 = vunpack.c.h.b16 %v6810
    %v6907 = vpack.c.b16 %v6847, %v6843
    %v6908 = vpack.c.b16 %v6848, %v6844
    %v6909 = vpack.c.b16 %v6849, %v6845
    %v6910 = vpack.c.b16 %v6850, %v6846
    %v6911 = vpack.c.b16 %v6855, %v6851
    %v6912 = vpack.c.b16 %v6856, %v6852
    %v6913 = vpack.c.b16 %v6857, %v6853
    %v6914 = vpack.c.b16 %v6858, %v6854
    %v6915 = vpack.c.b16 %v6863, %v6859
    %v6916 = vpack.c.b16 %v6864, %v6860
    %v6917 = vpack.c.b16 %v6865, %v6861
    %v6918 = vpack.c.b16 %v6866, %v6862
    %v6919 = vpack.c.b16 %v6871, %v6867
    %v6920 = vpack.c.b16 %v6872, %v6868
    %v6921 = vpack.c.b16 %v6873, %v6869
    %v6922 = vpack.c.b16 %v6874, %v6870
    %v6923 = vpack.c.b16 %v6879, %v6875
    %v6924 = vpack.c.b16 %v6880, %v6876
    %v6925 = vpack.c.b16 %v6881, %v6877
    %v6926 = vpack.c.b16 %v6882, %v6878
    %v6927 = vpack.c.b16 %v6887, %v6883
    %v6928 = vpack.c.b16 %v6888, %v6884
    %v6929 = vpack.c.b16 %v6889, %v6885
    %v6930 = vpack.c.b16 %v6890, %v6886
    %v6931 = vpack.c.b16 %v6895, %v6891
    %v6932 = vpack.c.b16 %v6896, %v6892
    %v6933 = vpack.c.b16 %v6897, %v6893
    %v6934 = vpack.c.b16 %v6898, %v6894
    %v6935 = vpack.c.b16 %v6903, %v6899
    %v6936 = vpack.c.b16 %v6904, %v6900
    %v6937 = vpack.c.b16 %v6905, %v6901
    %v6938 = vpack.c.b16 %v6906, %v6902
    %6971 = vmatprep.subr.bf16.mxu0 %v6936
    %6972 = vmatpush1.bf16.msra.mxu0 %v6935
    %6973 = vmatprep.subr.bf16.mxu0 %v6932
    %6974 = vmatpush1.bf16.msra.mxu0 %v6931
    %6975 = vmatprep.subr.bf16.mxu0 %v6928
    %6976 = vmatpush1.bf16.msra.mxu0 %v6927
    %6977 = vmatprep.subr.bf16.mxu0 %v6924
    %6978 = vmatpush1.bf16.msra.mxu0 %v6923
    %6979 = vmatprep.subr.bf16.mxu0 %v6920
    %6980 = vmatpush1.bf16.msra.mxu0 %v6919
    %6981 = vmatprep.subr.bf16.mxu0 %v6916
    %6982 = vmatpush1.bf16.msra.mxu0 %v6915
    %6983 = vmatprep.subr.bf16.mxu0 %v6912
    %6984 = vmatpush1.bf16.msra.mxu0 %v6911
    %6985 = vmatprep.subr.bf16.mxu0 %v6908
    %6986 = vmatpush1.bf16.msra.mxu0 %v6907
    %6987 = vmatprep.subr.bf16.mxu0 0
    %6988 = vmatpush2.bf16.msra.mxu0 0
    %6989 = vmatprep.subr.bf16.mxu0 0
    %6990 = vmatpush2.bf16.msra.mxu0 0
    %6991 = vmatprep.subr.bf16.mxu0 0
    %6992 = vmatpush2.bf16.msra.mxu0 0
    %6993 = vmatprep.subr.bf16.mxu0 0
    %6994 = vmatpush2.bf16.msra.mxu0 0
    %6995 = vmatprep.subr.bf16.mxu0 0
    %6996 = vmatpush2.bf16.msra.mxu0 0
    %6997 = vmatprep.subr.bf16.mxu0 0
    %6998 = vmatpush2.bf16.msra.mxu0 0
    %6999 = vmatprep.subr.bf16.mxu0 0
    %7000 = vmatpush2.bf16.msra.mxu0 0
    %7001 = vmatprep.subr.bf16.mxu0 0
    %7002 = vmatpush2.bf16.msra.mxu0 0
    %7003 = vmatprep.mubr.bf16.mxu0 0
    %7004 = vmatmul.mubr.bf16.gmra.mxu0 %v6778
    %v7005 = vpop.f32.mrf.mxu0
    %v7006 = vadd.f32 0.0, %v7005
    %v7007 = vpop.f32.mrf.mxu0
    %v7008 = vadd.f32 0.0, %v7007
    %v7009 = vpop.f32.mrf.mxu0
    %v7010 = vadd.f32 0.0, %v7009
    %v7011 = vpop.f32.mrf.mxu0
    %v7012 = vadd.f32 0.0, %v7011
    %7013 = vdwg.mxu0
    %7014 = vmatprep.subr.bf16.mxu0 %v6938
    %7015 = vmatpush1.bf16.msra.mxu0 %v6937
    %7016 = vmatprep.subr.bf16.mxu0 %v6934
    %7017 = vmatpush1.bf16.msra.mxu0 %v6933
    %7018 = vmatprep.subr.bf16.mxu0 %v6930
    %7019 = vmatpush1.bf16.msra.mxu0 %v6929
    %7020 = vmatprep.subr.bf16.mxu0 %v6926
    %7021 = vmatpush1.bf16.msra.mxu0 %v6925
    %7022 = vmatprep.subr.bf16.mxu0 %v6922
    %7023 = vmatpush1.bf16.msra.mxu0 %v6921
    %7024 = vmatprep.subr.bf16.mxu0 %v6918
    %7025 = vmatpush1.bf16.msra.mxu0 %v6917
    %7026 = vmatprep.subr.bf16.mxu0 %v6914
    %7027 = vmatpush1.bf16.msra.mxu0 %v6913
    %7028 = vmatprep.subr.bf16.mxu0 %v6910
    %7029 = vmatpush1.bf16.msra.mxu0 %v6909
    %7030 = vmatprep.subr.bf16.mxu0 0
    %7031 = vmatpush2.bf16.msra.mxu0 0
    %7032 = vmatprep.subr.bf16.mxu0 0
    %7033 = vmatpush2.bf16.msra.mxu0 0
    %7034 = vmatprep.subr.bf16.mxu0 0
    %7035 = vmatpush2.bf16.msra.mxu0 0
    %7036 = vmatprep.subr.bf16.mxu0 0
    %7037 = vmatpush2.bf16.msra.mxu0 0
    %7038 = vmatprep.subr.bf16.mxu0 0
    %7039 = vmatpush2.bf16.msra.mxu0 0
    %7040 = vmatprep.subr.bf16.mxu0 0
    %7041 = vmatpush2.bf16.msra.mxu0 0
    %7042 = vmatprep.subr.bf16.mxu0 0
    %7043 = vmatpush2.bf16.msra.mxu0 0
    %7044 = vmatprep.subr.bf16.mxu0 0
    %7045 = vmatpush2.bf16.msra.mxu0 0
    %7046 = vmatprep.mubr.bf16.mxu0 0
    %7047 = vmatmul.mubr.bf16.gmra.mxu0 %v6778
    %v7048 = vpop.f32.mrf.mxu0
    %v7049 = vadd.f32 0.0, %v7048
    %v7050 = vpop.f32.mrf.mxu0
    %v7051 = vadd.f32 0.0, %v7050
    %v7052 = vpop.f32.mrf.mxu0
    %v7053 = vadd.f32 0.0, %v7052
    %v7054 = vpop.f32.mrf.mxu0
    %v7055 = vadd.f32 0.0, %v7054
    %7056 = vdwg.mxu0
    %v7057 = vadd.f32 %v6770, %v7006
    %v7058 = vadd.f32 %v6771, %v7008
    %v7059 = vadd.f32 %v6772, %v7049
    %v7060 = vadd.f32 %v6773, %v7051
    %v7061 = vadd.f32 %v6774, %v7010
    %v7062 = vadd.f32 %v6775, %v7012
    %v7063 = vadd.f32 %v6776, %v7053
    %v7064 = vadd.f32 %v6777, %v7055
    %v7065 = vmul.f32 %v6756, 0.5
    %v7066 = vmul.f32 %v6760, 0.5
    %v7067 = vtanh.pop %v7065
    %v7068 = vtanh.pop %v7066
    %v7069 = vmul.f32 %v7067, 0.5
    %v7070 = vmul.f32 %v7068, 0.5
    %v7071 = vadd.f32 %v7069, 0.5
    %v7072 = vadd.f32 %v7070, 0.5
    %v7073 = vmul.f32 %v6757, 0.5
    %v7074 = vmul.f32 %v6761, 0.5
    %v7075 = vtanh.pop %v7073
    %v7076 = vtanh.pop %v7074
    %v7077 = vmul.f32 %v7075, 0.5
    %v7078 = vmul.f32 %v7076, 0.5
    %v7079 = vadd.f32 %v7077, 0.5
    %v7080 = vadd.f32 %v7078, 0.5
    %v7081 = vtanh.pop %v6758
    %v7082 = vtanh.pop %v6762
    %v7083 = vmul.f32 %v6759, 0.5
    %v7084 = vmul.f32 %v6763, 0.5
    %v7085 = vtanh.pop %v7083
    %v7086 = vtanh.pop %v7084
    %v7087 = vmul.f32 %v7085, 0.5
    %v7088 = vmul.f32 %v7086, 0.5
    %v7089 = vadd.f32 %v7087, 0.5
    %v7090 = vadd.f32 %v7088, 0.5
    %v7091 = vmul.f32 %v7079, %v6405
    %v7092 = vmul.f32 %v7080, %v6406
    %v7093 = vmul.f32 %v7071, %v7081
    %v7094 = vmul.f32 %v7072, %v7082
    %v7095 = vadd.f32 %v7091, %v7093
    %v7096 = vadd.f32 %v7092, %v7094
    %v7097 = vtanh.pop %v7095
    %v7098 = vtanh.pop %v7096
    %v7099 = vmul.f32 %v7089, %v7097
    %v7100 = vmul.f32 %v7090, %v7098
    %v7101 = vsel %vm748, %v7099, %v6403
    %v7102 = vsel %vm749, %v7100, %v6404
    %v7103 = vsel %vm748, %v7095, %v6405
    %v7104 = vsel %vm749, %v7096, %v6406
    %v7105 = vsel %vm748, %v7099, 0.0
    %v7106 = vsel %vm749, %v7100, 0.0
    %v7107 = vmul.f32 %v7057, 0.5
    %v7108 = vmul.f32 %v7061, 0.5
    %v7109 = vtanh.pop %v7107
    %v7110 = vtanh.pop %v7108
    %v7111 = vmul.f32 %v7109, 0.5
    %v7112 = vmul.f32 %v7110, 0.5
    %v7113 = vadd.f32 %v7111, 0.5
    %v7114 = vadd.f32 %v7112, 0.5
    %v7115 = vmul.f32 %v7058, 0.5
    %v7116 = vmul.f32 %v7062, 0.5
    %v7117 = vtanh.pop %v7115
    %v7118 = vtanh.pop %v7116
    %v7119 = vmul.f32 %v7117, 0.5
    %v7120 = vmul.f32 %v7118, 0.5
    %v7121 = vadd.f32 %v7119, 0.5
    %v7122 = vadd.f32 %v7120, 0.5
    %v7123 = vtanh.pop %v7059
    %v7124 = vtanh.pop %v7063
    %v7125 = vmul.f32 %v7060, 0.5
    %v7126 = vmul.f32 %v7064, 0.5
    %v7127 = vtanh.pop %v7125
    %v7128 = vtanh.pop %v7126
    %v7129 = vmul.f32 %v7127, 0.5
    %v7130 = vmul.f32 %v7128, 0.5
    %v7131 = vadd.f32 %v7129, 0.5
    %v7132 = vadd.f32 %v7130, 0.5
    %v7133 = vmul.f32 %v7121, %v6447
    %v7134 = vmul.f32 %v7122, %v6448
    %v7135 = vmul.f32 %v7113, %v7123
    %v7136 = vmul.f32 %v7114, %v7124
    %v7137 = vadd.f32 %v7133, %v7135
    %v7138 = vadd.f32 %v7134, %v7136
    %v7139 = vtanh.pop %v7137
    %v7140 = vtanh.pop %v7138
    %v7141 = vmul.f32 %v7131, %v7139
    %v7142 = vmul.f32 %v7132, %v7140
    %v7143 = vsel %vm696, %v7141, %v6445
    %v7144 = vsel %vm697, %v7142, %v6446
    %v7145 = vsel %vm696, %v7137, %v6447
    %v7146 = vsel %vm697, %v7138, %v6448
    %v7147 = vsel %vm696, %v7141, 0.0
    %v7148 = vsel %vm697, %v7142, 0.0
    %v7149 = vld [vmem:[%s760] sm:$0xff]
    %v7150 = vld [vmem:[%s760 + $0x8] sm:$0xff]
    %v7151 = vadd.f32 %v7149, %v7105
    %v7152 = vadd.f32 %v7150, %v7106
    %7153 = vst [vmem:[%s760] sm:$0xff] %v7151
    %7154 = vst [vmem:[%s760 + $0x8] sm:$0xff] %v7152
    %v7155 = vld [vmem:[#allocation2] sm:$0xff]
    %v7156 = vld [vmem:[#allocation2 + $0x8] sm:$0xff]
    %v7157 = vadd.f32 %v7155, %v7147
    %v7158 = vadd.f32 %v7156, %v7148
    %7159 = vst [vmem:[#allocation2] sm:$0xff] %v7157
    %7160 = vst [vmem:[#allocation2 + $0x8] sm:$0xff] %v7158
    %7161 = vst [vmem:[#allocation4] sm:$0xff] %v7101
    %7162 = vst [vmem:[#allocation4 + $0x8] sm:$0xff] %v7102
    %s7163 = scalar_lea.vmem [#allocation4], 16
    %7164 = vst [vmem:[%s7163] sm:$0xff] %v7143
    %7165 = vst [vmem:[%s7163 + $0x8] sm:$0xff] %v7144
    %7166 = vst [vmem:[#allocation6] sm:$0xff] %v7103
    %7167 = vst [vmem:[#allocation6 + $0x8] sm:$0xff] %v7104
    %s7168 = scalar_lea.vmem [#allocation6], 16
    %7169 = vst [vmem:[%s7168] sm:$0xff] %v7145
    %7170 = vst [vmem:[%s7168 + $0x8] sm:$0xff] %v7146
    // Predicated region
    $region22: #{encoder_model_batch_forward.1} parent=1 // pred_check
      _
    $region23: #{encoder_model_batch_forward.1} parent=1 // pred_check_branch
      %7172 = sbr.rel (0) target = $region25
    $region24: #{encoder_model_batch_forward.1} parent=1 // pred_region
      %s7174 = ssub.s32 2560, 2560
      %7175 = vsyncadd [#allocation3], %s7174
      %s7176 = sshll.u32 [#allocation2], 4
      %s7177 = int_to_ptr.vmem [resolvable:$true] %s7176
      %7182 = dma.vmem_to_hbm [thread:$0]  %s7177, 2560, %s5, [#allocation3], 128, 128, 8
    $region25: #{encoder_model_batch_forward.1} parent=1 // pred_fallthru
      _
    // Predicated region
    $region26: #{encoder_model_batch_forward.1} parent=1 // pred_check
      _
    $region27: #{encoder_model_batch_forward.1} parent=1 // pred_check_branch
      %7184 = sbr.rel (0) target = $region29
    $region28: #{encoder_model_batch_forward.1} parent=1 // pred_region
      %s7186 = ssub.s32 512, 512
      %7187 = vsyncadd [#allocation5], %s7186
      %s7188 = sshll.u32 [#allocation4], 4
      %s7189 = int_to_ptr.vmem [resolvable:$true] %s7188
      %7194 = dma.vmem_to_hbm [thread:$0]  %s7189, 512, %s6, [#allocation5], 128, 128, 8
    $region29: #{encoder_model_batch_forward.1} parent=1 // pred_fallthru
      _
    // Predicated region
    $region30: #{encoder_model_batch_forward.1} parent=1 // pred_check
      _
    $region31: #{encoder_model_batch_forward.1} parent=1 // pred_check_branch
      %7196 = sbr.rel (0) target = $region33
    $region32: #{encoder_model_batch_forward.1} parent=1 // pred_region
      %s7198 = ssub.s32 512, 512
      %7199 = vsyncadd [#allocation5], %s7198
      %s7200 = sshll.u32 [#allocation6], 4
      %s7201 = int_to_ptr.vmem [resolvable:$true] %s7200
      %7206 = dma.vmem_to_hbm [thread:$0]  %s7201, 512, %s7, [#allocation5], 128, 128, 8
    $region33: #{encoder_model_batch_forward.1} parent=1 // pred_fallthru
      _
    // Predicated region
    $region34: #{encoder_model_batch_forward.1} parent=1 // pred_check
      _
    $region35: #{encoder_model_batch_forward.1} parent=1 // pred_check_branch
      %7208 = sbr.rel (0) target = $region37
    $region36: #{encoder_model_batch_forward.1} parent=1 // pred_region
      %7209 = dma.done [#allocation3], 2560
    $region37: #{encoder_model_batch_forward.1} parent=1 // pred_fallthru
      _
    // Predicated region
    $region38: #{encoder_model_batch_forward.1} parent=1 // pred_check
      _
    $region39: #{encoder_model_batch_forward.1} parent=1 // pred_check_branch
      %7211 = sbr.rel (0) target = $region41
    $region40: #{encoder_model_batch_forward.1} parent=1 // pred_region
      %7212 = dma.done [#allocation5], 512
    $region41: #{encoder_model_batch_forward.1} parent=1 // pred_fallthru
      _
    // Predicated region
    $region42: #{encoder_model_batch_forward.1} parent=1 // pred_check
      _
    $region43: #{encoder_model_batch_forward.1} parent=1 // pred_check_branch
      %7214 = sbr.rel (0) target = $region45
    $region44: #{encoder_model_batch_forward.1} parent=1 // pred_region
      %7215 = dma.done [#allocation5], 512
    $region45: #{encoder_model_batch_forward.1} parent=1 // pred_fallthru
      _
    %7216 = vsyncpa [#allocation3], 1
    %7217 = vsyncpa [#allocation5], 1

</llo_original>
